<compile_context>
chip_gen: v7x
topology: tpu7x:2x2x1
jax: 0.10.0
libtpu: 0.0.40
codegen_flags: <defaults>
</compile_context>

<pallas_src>
import functools

import jax
import jax.numpy as jnp
from jax import lax
from jax.experimental import pallas as pl
from jax.experimental.pallas import tpu as pltpu

BN_EPS = 1e-5                              # BatchNorm2d default eps
IN_EPS = 1e-3                              # InstanceNorm2d(dim, eps=0.001)
BN_SCALE = 1.0 / (1.0 + BN_EPS) ** 0.5     # eval BatchNorm with default stats
NEG_BIG = -1e30


def _fused_kernel(x_ref, wg1_ref, bg1_ref, wg2_ref, bg2_ref,
                  wh_ref, bh_ref, wc_ref, b1_ref, wd_ref, w2_ref, b2_ref,
                  wrl_ref, wrg_ref, bres_ref, wproj_ref, bproj_ref,
                  maskf_ref, tilef_ref, foldbf_ref,
                  out_ref,
                  *, num_heads, dim_head, knn_k, clusters, scale):
    f32, bf16 = jnp.float32, jnp.bfloat16
    H, dh, K = num_heads, dim_head, clusters
    HD, HK = H * dh, H * K

    x = x_ref[0]                                               # (C, N) f32
    maskf = maskf_ref[...]                                     # (HD, HK) head-block mask
    tilef = tilef_ref[...]                                     # (K, HK)  lane "tile" op
    fold_bf = foldbf_ref[...]                                  # (HK, K)  lane "fold" op

    # ---- conv_group1/2 shared prefix: InstanceNorm(1e-3) -> BN(eval) -> ReLU
    mean = jnp.mean(x, axis=1, keepdims=True)
    var = jnp.mean((x - mean) ** 2, axis=1, keepdims=True)
    xn = (x - mean) * lax.rsqrt(var + IN_EPS)
    xn_bf = jnp.maximum(xn * BN_SCALE, 0.0).astype(bf16)

    # ---- conv_group1 -> softmax over points (dim=2) -> S1 (K, N)
    e1 = jnp.dot(wg1_ref[...], xn_bf, preferred_element_type=f32) + bg1_ref[...]
    e1 = e1 - jnp.max(e1, axis=1, keepdims=True)
    p1 = jnp.exp(e1)
    s1 = p1 / jnp.sum(p1, axis=1, keepdims=True)

    # ---- conv_group2 -> softmax over clusters (dim=1) -> S2 (K, N)
    e2 = jnp.dot(wg2_ref[...], xn_bf, preferred_element_type=f32) + bg2_ref[...]
    e2 = e2 - jnp.max(e2, axis=0, keepdims=True)
    p2 = jnp.exp(e2)
    s2 = p2 / jnp.sum(p2, axis=0, keepdims=True)

    # ---- cluster_x = x @ S1^T -> (C, K)
    cx = lax.dot_general(x.astype(bf16), s1.astype(bf16), (((1,), (1,)), ((), ())),
                         preferred_element_type=f32)

    # ---- all per-head 1x1 convs (qkvs[i] + qkvs1[i]) in one MXU matmul.
    # Row layout: [qk_local | q | k | v], each block head-major (HD rows).
    qkv = jnp.dot(wh_ref[...], cx.astype(bf16), preferred_element_type=f32) + bh_ref[...]
    qk = qkv[0 * HD:1 * HD]                                    # (HD, K) local path
    q = qkv[1 * HD:2 * HD]
    k_ = qkv[2 * HD:3 * HD]
    v_ = qkv[3 * HD:4 * HD]
    qk_bf = qk.astype(bf16)

    # lane-stacked block-diagonal copies: X_bd[r, h*K+i] = X[r, i] iff head(r)==h
    qk_bd = lax.dot_general(qk, tilef, (((1,), (0,)), ((), ())),
                            preferred_element_type=f32) * maskf          # (HD, HK)
    q_bd = lax.dot_general(q, tilef, (((1,), (0,)), ((), ())),
                           preferred_element_type=f32) * maskf           # (HD, HK)

    # ================= global attention (all heads stacked along sublanes) ==
    logits = scale * lax.dot_general(q_bd.astype(bf16), k_.astype(bf16),
                                     (((0,), (0,)), ((), ())),
                                     preferred_element_type=f32)         # (HK, K)
    logits = logits - jnp.max(logits, axis=-1, keepdims=True)
    pa = jnp.exp(logits)
    attn = pa / jnp.sum(pa, axis=-1, keepdims=True)                      # softmax dim=-1
    gtmp = lax.dot_general(v_.astype(bf16), attn.astype(bf16),
                           (((1,), (1,)), ((), ())),
                           preferred_element_type=f32)                   # (HD, HK)
    glob = jnp.dot((gtmp * maskf).astype(bf16), fold_bf,
                   preferred_element_type=f32)                           # (HD, K)

    # ============ local path: kNN(k=9) + GCBlock, all heads batched =========
    # score[j, h*K+i] ranks cluster j as neighbour of cluster i in head h.
    # The per-column -||x_i||^2 constant of the reference distance is dropped
    # (rank-invariant).  Kept in f32 so neighbour ranking matches reference.
    inner = lax.dot_general(qk, qk_bd, (((0,), (0,)), ((), ())),
                            preferred_element_type=f32)                  # (K, HK)
    xx = lax.dot_general(qk * qk, maskf, (((0,), (0,)), ((), ())),
                         preferred_element_type=f32)                     # (K, HK)
    score = 2.0 * inner - xx

    # GC conv1 split: centre-effective weight applied once to qk, plus per-tap
    # diff weights applied to the gathered neighbours (no graph-feature slab).
    y_all = jnp.dot(wd_ref[...], qk_bf, preferred_element_type=f32)      # (3*HD, K)
    y_bf = [y_all[p * HD:(p + 1) * HD].astype(bf16) for p in range(3)]
    center = jnp.dot(wc_ref[...], qk_bf, preferred_element_type=f32) + b1_ref[...]
    accs = [center, center, center]                                      # per window w

    row_ids = lax.broadcasted_iota(jnp.int32, (K, HK), 0).astype(f32)
    scm = score
    for n in range(knn_k):                                               # top-9, unrolled
        w, p = n // 3, n % 3
        m = jnp.max(scm, axis=0, keepdims=True)                          # (1, HK)
        # deterministic tie-break: smallest row index among the maxima
        idx = jnp.min(jnp.where(scm >= m, row_ids, float(K)), axis=0, keepdims=True)
        onehot = row_ids == idx                                          # (K, HK)
        # W1_diff[p] @ neighbour_n for every head: two small MXU pushes
        t = jnp.dot(y_bf[p], onehot.astype(bf16), preferred_element_type=f32)   # (HD,HK)
        contrib = jnp.dot((t * maskf).astype(bf16), fold_bf,
                          preferred_element_type=f32)                    # (HD, K)
        accs[w] = accs[w] - contrib
        scm = jnp.where(onehot, NEG_BIG, scm)

    # conv1 -> BN(eval) -> ReLU, then conv2 (1,3) -> BN(eval) -> ReLU
    h1 = jnp.concatenate([jnp.maximum(a * BN_SCALE, 0.0) for a in accs], axis=0)
    h2 = jnp.dot(w2_ref[...], h1.astype(bf16), preferred_element_type=f32) + b2_ref[...]
    local = jnp.maximum(h2 * BN_SCALE, 0.0)                              # (HD, K)

    # ---- proj_res accumulated directly from the head-stacked local / global
    t_res = (jnp.dot(wrl_ref[...], local.astype(bf16), preferred_element_type=f32)
             + jnp.dot(wrg_ref[...], glob.astype(bf16), preferred_element_type=f32)
             + bres_ref[...])                                            # (C, K)
    t2 = jnp.dot(t_res.astype(bf16), s2.astype(bf16), preferred_element_type=f32)  # (C,N)
    out_ref[0] = jnp.dot(wproj_ref[...], t2.astype(bf16),
                         preferred_element_type=f32) + bproj_ref[...]


def efficient_attention_forward(params, x, num_heads=4, knn_k=9):
    # TODO(synk): only the knn_num==9 GCBlock variant is implemented (3 windows
    # of 3 taps); the knn_num==6 variant changes conv2 to a (1,2) kernel.
    assert knn_k == 9
    B, C, N, _ = x.shape
    x3 = x[..., 0]                                       # (B, C, N)
    K = params["wg1"].shape[0]
    dh = C // num_heads
    HD, HK = C, num_heads * K

    # constant head-block / lane operators (compile-time constants under jit)
    maskf = ((jnp.arange(HD)[:, None] // dh) ==
             (jnp.arange(HK)[None, :] // K)).astype(jnp.float32)         # (HD, HK)
    lane = jnp.arange(HK) % K
    tilef = (lane[None, :] == jnp.arange(K)[:, None]).astype(jnp.float32)    # (K, HK)
    foldbf = (lane[:, None] == jnp.arange(K)[None, :]).astype(jnp.bfloat16)  # (HK, K)

    kernel = functools.partial(_fused_kernel, num_heads=num_heads, dim_head=dh,
                               knn_k=knn_k, clusters=K, scale=float(dh) ** -0.5)
    c2 = lambda b: (0, 0)
    out = pl.pallas_call(
        kernel,
        out_shape=jax.ShapeDtypeStruct((B, C, N), jnp.float32),
        grid=(B,),
        in_specs=[
            pl.BlockSpec((1, C, N), lambda b: (b, 0, 0)),                # x
            pl.BlockSpec((K, C), c2), pl.BlockSpec((K, 1), c2),          # conv_group1
            pl.BlockSpec((K, C), c2), pl.BlockSpec((K, 1), c2),          # conv_group2
            pl.BlockSpec((4 * HD, C), c2), pl.BlockSpec((4 * HD, 1), c2),  # qkvs/qkvs1
            pl.BlockSpec((HD, HD), c2), pl.BlockSpec((HD, 1), c2),       # GC conv1 centre
            pl.BlockSpec((3 * HD, HD), c2),                              # GC conv1 diff taps
            pl.BlockSpec((HD, 3 * HD), c2), pl.BlockSpec((HD, 1), c2),   # GC conv2
            pl.BlockSpec((C, HD), c2), pl.BlockSpec((C, HD), c2),        # proj_res (loc/glob)
            pl.BlockSpec((C, 1), c2),
            pl.BlockSpec((C, C), c2), pl.BlockSpec((C, 1), c2),          # proj
            pl.BlockSpec((HD, HK), c2),                                  # head block mask
            pl.BlockSpec((K, HK), c2),                                   # lane tile operator
            pl.BlockSpec((HK, K), c2),                                   # lane fold operator
        ],
        out_specs=pl.BlockSpec((1, C, N), lambda b: (b, 0, 0)),
        compiler_params=pltpu.CompilerParams(dimension_semantics=("parallel",)),
    )(x3, params["wg1"], params["bg1"], params["wg2"], params["bg2"],
      params["w_heads"], params["b_heads"],
      params["wc_blk"], params["b1"], params["wd_blk"],
      params["w2_blk"], params["b2"],
      params["wres_local"], params["wres_global"], params["bres"],
      params["wproj"], params["bproj"],
      maskf, tilef, foldbf)
    return out[..., None]                                # (B, C, N, 1)


# ---------------------------------------------------------------------------
# Deterministic synthetic parameters in the kernel's pre-fused layouts.
# ---------------------------------------------------------------------------
def _block_diag(blocks):
    h = len(blocks)
    r, c = blocks[0].shape
    out = jnp.zeros((h * r, h * c), jnp.float32)
    for i, b in enumerate(blocks):
        out = out.at[i * r:(i + 1) * r, i * c:(i + 1) * c].set(b)
    return out


def init_params(key, dim=32, num_heads=4, clusters=50, knn_k=9):
    dh = dim // num_heads
    HD = num_heads * dh
    ks = jax.random.split(key, 16)
    rnd = lambda k, s, sc=0.1: sc * jax.random.normal(k, s, jnp.float32)

    wg1 = rnd(ks[0], (clusters, dim)); bg1 = rnd(ks[1], (clusters, 1))
    wg2 = rnd(ks[2], (clusters, dim)); bg2 = rnd(ks[3], (clusters, 1))

    # per-head 1x1 projections: qkvs[i] (dh,C), qkvs1[i] (3dh,C); fused rows [qk|q|k|v]
    wq = rnd(ks[4], (num_heads, dh, dim)); bq = rnd(ks[5], (num_heads, dh))
    wqkv = rnd(ks[6], (num_heads, 3 * dh, dim)); bqkv = rnd(ks[7], (num_heads, 3 * dh))
    w_heads = jnp.concatenate([
        wq.reshape(HD, dim),
        wqkv[:, 0 * dh:1 * dh].reshape(HD, dim),
        wqkv[:, 1 * dh:2 * dh].reshape(HD, dim),
        wqkv[:, 2 * dh:3 * dh].reshape(HD, dim)], axis=0)
    b_heads = jnp.concatenate([
        bq.reshape(HD), bqkv[:, :dh].reshape(HD),
        bqkv[:, dh:2 * dh].reshape(HD), bqkv[:, 2 * dh:].reshape(HD)], axis=0)[:, None]

    # GCBlock conv1: Conv2d(2dh, dh, (1,3), stride (1,3)); feature channel order
    # per neighbour is [center, center - neigh] (as in get_graph_feature).
    w1 = rnd(ks[8], (num_heads, dh, 2 * dh, 3))          # (H, out, in, tap)
    b1 = rnd(ks[9], (num_heads, dh))
    wc_blk = _block_diag([w1[h, :, :dh, :].sum(-1) + w1[h, :, dh:, :].sum(-1)
                          for h in range(num_heads)])                       # (HD, HD)
    wd_blk = jnp.concatenate(
        [_block_diag([w1[h, :, dh:, p] for h in range(num_heads)]) for p in range(3)],
        axis=0)                                                             # (3HD, HD)

    # GCBlock conv2: Conv2d(dh, dh, (1,3)); columns ordered (window, head, in_ch)
    w2 = rnd(ks[10], (num_heads, dh, dh, 3))             # (H, out, in, window)
    b2 = rnd(ks[11], (num_heads, dh))
    w2_blk = jnp.concatenate(
        [_block_diag([w2[h, :, :, w] for h in range(num_heads)]) for w in range(3)],
        axis=1)                                                             # (HD, 3HD)

    # proj_res: original input channel order [local_0, glob_0, local_1, glob_1, ...]
    wres = rnd(ks[12], (dim, 2 * dim)); bres = rnd(ks[13], (dim, 1))
    wres4 = wres.reshape(dim, num_heads, 2, dh)
    wres_local = wres4[:, :, 0, :].reshape(dim, HD)
    wres_global = wres4[:, :, 1, :].reshape(dim, HD)

    wproj = rnd(ks[14], (dim, dim)); bproj = rnd(ks[15], (dim, 1))

    bf = lambda a: a.astype(jnp.bfloat16)
    return dict(
        wg1=bf(wg1), bg1=bg1, wg2=bf(wg2), bg2=bg2,
        w_heads=bf(w_heads), b_heads=b_heads,
        wc_blk=bf(wc_blk), b1=b1.reshape(HD, 1), wd_blk=bf(wd_blk),
        w2_blk=bf(w2_blk), b2=b2.reshape(HD, 1),
        wres_local=bf(wres_local), wres_global=bf(wres_global), bres=bres,
        wproj=bf(wproj), bproj=bproj,
    )


if __name__ == "__main__":
    B, dim, N, num_heads = 2, 32, 16, 4
    key = jax.random.PRNGKey(0)
    kx, kp = jax.random.split(key)
    x = jax.random.normal(kx, (B, dim, N, 1), jnp.float32)
    params = init_params(kp, dim=dim, num_heads=num_heads)

    fwd = jax.jit(efficient_attention_forward, static_argnames=("num_heads", "knn_k"))
    out = fwd(params, x, num_heads=num_heads, knn_k=9)
    jax.block_until_ready(out)
    assert out.shape == (B, dim, N, 1), out.shape
    assert bool(jnp.all(jnp.isfinite(out)))
    print("KERNEL_OK")
</pallas_src>

<mosaic_0001>
module attributes {stable_mosaic.version = 11 : i64} {
  func.func @_fused_kernel(%arg0: i32, %arg1: memref<1x32x16xf32, #tpu.memory_space<vmem>>, %arg2: memref<50x32xbf16, #tpu.memory_space<vmem>>, %arg3: memref<50x1xf32, #tpu.memory_space<vmem>>, %arg4: memref<50x32xbf16, #tpu.memory_space<vmem>>, %arg5: memref<50x1xf32, #tpu.memory_space<vmem>>, %arg6: memref<128x32xbf16, #tpu.memory_space<vmem>>, %arg7: memref<128x1xf32, #tpu.memory_space<vmem>>, %arg8: memref<32x32xbf16, #tpu.memory_space<vmem>>, %arg9: memref<32x1xf32, #tpu.memory_space<vmem>>, %arg10: memref<96x32xbf16, #tpu.memory_space<vmem>>, %arg11: memref<32x96xbf16, #tpu.memory_space<vmem>>, %arg12: memref<32x1xf32, #tpu.memory_space<vmem>>, %arg13: memref<32x32xbf16, #tpu.memory_space<vmem>>, %arg14: memref<32x32xbf16, #tpu.memory_space<vmem>>, %arg15: memref<32x1xf32, #tpu.memory_space<vmem>>, %arg16: memref<32x32xbf16, #tpu.memory_space<vmem>>, %arg17: memref<32x1xf32, #tpu.memory_space<vmem>>, %arg18: memref<32x200xf32, #tpu.memory_space<vmem>>, %arg19: memref<50x200xf32, #tpu.memory_space<vmem>>, %arg20: memref<200x50xbf16, #tpu.memory_space<vmem>>, %arg21: memref<1x32x16xf32, #tpu.memory_space<vmem>>) attributes {dimension_semantics = [#tpu.dimension_semantics<parallel>], iteration_bounds = array<i64: 2>, scalar_prefetch = 0 : i64, scratch_operands = 0 : i64, tpu.core_type = #tpu.core_type<tc>, window_params = [{transform_indices = @transform_0, window_bounds = array<i64: 1, 32, 16>}, {pipeline_mode = #tpu.pipeline_mode<synchronous>, transform_indices = @transform_1, window_bounds = array<i64: 50, 32>}, {pipeline_mode = #tpu.pipeline_mode<synchronous>, transform_indices = @transform_2, window_bounds = array<i64: 50, 1>}, {pipeline_mode = #tpu.pipeline_mode<synchronous>, transform_indices = @transform_3, window_bounds = array<i64: 50, 32>}, {pipeline_mode = #tpu.pipeline_mode<synchronous>, transform_indices = @transform_4, window_bounds = array<i64: 50, 1>}, {pipeline_mode = #tpu.pipeline_mode<synchronous>, transform_indices = @transform_5, window_bounds = array<i64: 128, 32>}, {pipeline_mode = #tpu.pipeline_mode<synchronous>, transform_indices = @transform_6, window_bounds = array<i64: 128, 1>}, {pipeline_mode = #tpu.pipeline_mode<synchronous>, transform_indices = @transform_7, window_bounds = array<i64: 32, 32>}, {pipeline_mode = #tpu.pipeline_mode<synchronous>, transform_indices = @transform_8, window_bounds = array<i64: 32, 1>}, {pipeline_mode = #tpu.pipeline_mode<synchronous>, transform_indices = @transform_9, window_bounds = array<i64: 96, 32>}, {pipeline_mode = #tpu.pipeline_mode<synchronous>, transform_indices = @transform_10, window_bounds = array<i64: 32, 96>}, {pipeline_mode = #tpu.pipeline_mode<synchronous>, transform_indices = @transform_11, window_bounds = array<i64: 32, 1>}, {pipeline_mode = #tpu.pipeline_mode<synchronous>, transform_indices = @transform_12, window_bounds = array<i64: 32, 32>}, {pipeline_mode = #tpu.pipeline_mode<synchronous>, transform_indices = @transform_13, window_bounds = array<i64: 32, 32>}, {pipeline_mode = #tpu.pipeline_mode<synchronous>, transform_indices = @transform_14, window_bounds = array<i64: 32, 1>}, {pipeline_mode = #tpu.pipeline_mode<synchronous>, transform_indices = @transform_15, window_bounds = array<i64: 32, 32>}, {pipeline_mode = #tpu.pipeline_mode<synchronous>, transform_indices = @transform_16, window_bounds = array<i64: 32, 1>}, {pipeline_mode = #tpu.pipeline_mode<synchronous>, transform_indices = @transform_17, window_bounds = array<i64: 32, 200>}, {pipeline_mode = #tpu.pipeline_mode<synchronous>, transform_indices = @transform_18, window_bounds = array<i64: 50, 200>}, {pipeline_mode = #tpu.pipeline_mode<synchronous>, transform_indices = @transform_19, window_bounds = array<i64: 200, 50>}, {transform_indices = @transform_20, window_bounds = array<i64: 1, 32, 16>}]} {
    %c0 = arith.constant 0 : index
    %c0_0 = arith.constant 0 : index
    %c0_1 = arith.constant 0 : index
    %0 = vector.load %arg1[%c0, %c0_0, %c0_1] : memref<1x32x16xf32, #tpu.memory_space<vmem>>, vector<1x32x16xf32>
    %1 = vector.shape_cast %0 : vector<1x32x16xf32> to vector<32x16xf32>
    %c0_2 = arith.constant 0 : index
    %c0_3 = arith.constant 0 : index
    %2 = vector.load %arg18[%c0_2, %c0_3] : memref<32x200xf32, #tpu.memory_space<vmem>>, vector<32x200xf32>
    %c0_4 = arith.constant 0 : index
    %c0_5 = arith.constant 0 : index
    %3 = vector.load %arg19[%c0_4, %c0_5] : memref<50x200xf32, #tpu.memory_space<vmem>>, vector<50x200xf32>
    %c0_6 = arith.constant 0 : index
    %c0_7 = arith.constant 0 : index
    %4 = vector.load %arg20[%c0_6, %c0_7] : memref<200x50xbf16, #tpu.memory_space<vmem>>, vector<200x50xbf16>
    %cst = arith.constant dense<0.000000e+00> : vector<32xf32>
    %5 = vector.multi_reduction <add>, %1, %cst [1] : vector<32x16xf32> to vector<32xf32>
    %6 = vector.shape_cast %5 : vector<32xf32> to vector<32x1xf32>
    %cst_8 = arith.constant 1.600000e+01 : f32
    %7 = vector.broadcast %cst_8 : f32 to vector<32x1xf32>
    %8 = arith.divf %6, %7 : vector<32x1xf32>
    %9 = vector.broadcast %8 : vector<32x1xf32> to vector<32x16xf32>
    %10 = arith.subf %1, %9 : vector<32x16xf32>
    %11 = arith.mulf %10, %10 : vector<32x16xf32>
    %cst_9 = arith.constant dense<0.000000e+00> : vector<32xf32>
    %12 = vector.multi_reduction <add>, %11, %cst_9 [1] : vector<32x16xf32> to vector<32xf32>
    %13 = vector.shape_cast %12 : vector<32xf32> to vector<32x1xf32>
    %cst_10 = arith.constant 1.600000e+01 : f32
    %14 = vector.broadcast %cst_10 : f32 to vector<32x1xf32>
    %15 = arith.divf %13, %14 : vector<32x1xf32>
    %16 = vector.broadcast %8 : vector<32x1xf32> to vector<32x16xf32>
    %17 = arith.subf %1, %16 : vector<32x16xf32>
    %cst_11 = arith.constant 1.000000e-03 : f32
    %18 = vector.broadcast %cst_11 : f32 to vector<32x1xf32>
    %19 = arith.addf %15, %18 : vector<32x1xf32>
    %20 = math.rsqrt %19 : vector<32x1xf32>
    %21 = vector.broadcast %20 : vector<32x1xf32> to vector<32x16xf32>
    %22 = arith.mulf %17, %21 : vector<32x16xf32>
    %cst_12 = arith.constant 0.999994993 : f32
    %23 = vector.broadcast %cst_12 : f32 to vector<32x16xf32>
    %24 = arith.mulf %22, %23 : vector<32x16xf32>
    %cst_13 = arith.constant 0.000000e+00 : f32
    %25 = vector.broadcast %cst_13 : f32 to vector<32x16xf32>
    %26 = arith.maximumf %24, %25 : vector<32x16xf32>
    %27 = arith.truncf %26 : vector<32x16xf32> to vector<32x16xbf16>
    %c0_14 = arith.constant 0 : index
    %c0_15 = arith.constant 0 : index
    %28 = vector.load %arg2[%c0_14, %c0_15] : memref<50x32xbf16, #tpu.memory_space<vmem>>, vector<50x32xbf16>
    %cst_16 = arith.constant dense<0.000000e+00> : vector<50x16xf32>
    %29 = tpu.matmul %28, %27, %cst_16 {dimension_numbers = #tpu.dot_dimension_numbers<[1], [0], [0], [1], [0, 0, 1, 1], [], []>} : vector<50x32xbf16>, vector<32x16xbf16>, vector<50x16xf32> -> vector<50x16xf32>
    %c0_17 = arith.constant 0 : index
    %c0_18 = arith.constant 0 : index
    %30 = vector.load %arg3[%c0_17, %c0_18] : memref<50x1xf32, #tpu.memory_space<vmem>>, vector<50x1xf32>
    %31 = vector.broadcast %30 : vector<50x1xf32> to vector<50x16xf32>
    %32 = arith.addf %29, %31 : vector<50x16xf32>
    %cst_19 = arith.constant dense<0xFF800000> : vector<50xf32>
    %33 = vector.multi_reduction <maximumf>, %32, %cst_19 [1] : vector<50x16xf32> to vector<50xf32>
    %34 = vector.shape_cast %33 : vector<50xf32> to vector<50x1xf32>
    %35 = vector.broadcast %34 : vector<50x1xf32> to vector<50x16xf32>
    %36 = arith.subf %32, %35 : vector<50x16xf32>
    %37 = math.exp %36 : vector<50x16xf32>
    %cst_20 = arith.constant dense<0.000000e+00> : vector<50xf32>
    %38 = vector.multi_reduction <add>, %37, %cst_20 [1] : vector<50x16xf32> to vector<50xf32>
    %39 = vector.shape_cast %38 : vector<50xf32> to vector<50x1xf32>
    %40 = vector.broadcast %39 : vector<50x1xf32> to vector<50x16xf32>
    %41 = arith.divf %37, %40 : vector<50x16xf32>
    %c0_21 = arith.constant 0 : index
    %c0_22 = arith.constant 0 : index
    %42 = vector.load %arg4[%c0_21, %c0_22] : memref<50x32xbf16, #tpu.memory_space<vmem>>, vector<50x32xbf16>
    %cst_23 = arith.constant dense<0.000000e+00> : vector<50x16xf32>
    %43 = tpu.matmul %42, %27, %cst_23 {dimension_numbers = #tpu.dot_dimension_numbers<[1], [0], [0], [1], [0, 0, 1, 1], [], []>} : vector<50x32xbf16>, vector<32x16xbf16>, vector<50x16xf32> -> vector<50x16xf32>
    %c0_24 = arith.constant 0 : index
    %c0_25 = arith.constant 0 : index
    %44 = vector.load %arg5[%c0_24, %c0_25] : memref<50x1xf32, #tpu.memory_space<vmem>>, vector<50x1xf32>
    %45 = vector.broadcast %44 : vector<50x1xf32> to vector<50x16xf32>
    %46 = arith.addf %43, %45 : vector<50x16xf32>
    %cst_26 = arith.constant dense<0xFF800000> : vector<16xf32>
    %47 = vector.multi_reduction <maximumf>, %46, %cst_26 [0] : vector<50x16xf32> to vector<16xf32>
    %48 = vector.shape_cast %47 : vector<16xf32> to vector<1x16xf32>
    %49 = vector.broadcast %48 : vector<1x16xf32> to vector<50x16xf32>
    %50 = arith.subf %46, %49 : vector<50x16xf32>
    %51 = math.exp %50 : vector<50x16xf32>
    %cst_27 = arith.constant dense<0.000000e+00> : vector<16xf32>
    %52 = vector.multi_reduction <add>, %51, %cst_27 [0] : vector<50x16xf32> to vector<16xf32>
    %53 = vector.shape_cast %52 : vector<16xf32> to vector<1x16xf32>
    %54 = vector.broadcast %53 : vector<1x16xf32> to vector<50x16xf32>
    %55 = arith.divf %51, %54 : vector<50x16xf32>
    %56 = arith.truncf %1 : vector<32x16xf32> to vector<32x16xbf16>
    %57 = arith.truncf %41 : vector<50x16xf32> to vector<50x16xbf16>
    %cst_28 = arith.constant dense<0.000000e+00> : vector<32x50xf32>
    %58 = tpu.matmul %56, %57, %cst_28 {dimension_numbers = #tpu.dot_dimension_numbers<[1], [1], [0], [0], [0, 0, 1, 0], [], []>} : vector<32x16xbf16>, vector<50x16xbf16>, vector<32x50xf32> -> vector<32x50xf32>
    %c0_29 = arith.constant 0 : index
    %c0_30 = arith.constant 0 : index
    %59 = vector.load %arg6[%c0_29, %c0_30] : memref<128x32xbf16, #tpu.memory_space<vmem>>, vector<128x32xbf16>
    %60 = arith.truncf %58 : vector<32x50xf32> to vector<32x50xbf16>
    %cst_31 = arith.constant dense<0.000000e+00> : vector<128x50xf32>
    %61 = tpu.matmul %59, %60, %cst_31 {dimension_numbers = #tpu.dot_dimension_numbers<[1], [0], [0], [1], [0, 0, 1, 1], [], []>} : vector<128x32xbf16>, vector<32x50xbf16>, vector<128x50xf32> -> vector<128x50xf32>
    %c0_32 = arith.constant 0 : index
    %c0_33 = arith.constant 0 : index
    %62 = vector.load %arg7[%c0_32, %c0_33] : memref<128x1xf32, #tpu.memory_space<vmem>>, vector<128x1xf32>
    %63 = vector.broadcast %62 : vector<128x1xf32> to vector<128x50xf32>
    %64 = arith.addf %61, %63 : vector<128x50xf32>
    %65 = vector.extract_strided_slice %64 {offsets = [0, 0], sizes = [32, 50], strides = [1, 1]} : vector<128x50xf32> to vector<32x50xf32>
    %66 = vector.extract_strided_slice %64 {offsets = [32, 0], sizes = [32, 50], strides = [1, 1]} : vector<128x50xf32> to vector<32x50xf32>
    %67 = vector.extract_strided_slice %64 {offsets = [64, 0], sizes = [32, 50], strides = [1, 1]} : vector<128x50xf32> to vector<32x50xf32>
    %68 = vector.extract_strided_slice %64 {offsets = [96, 0], sizes = [32, 50], strides = [1, 1]} : vector<128x50xf32> to vector<32x50xf32>
    %69 = arith.truncf %65 : vector<32x50xf32> to vector<32x50xbf16>
    %cst_34 = arith.constant dense<0.000000e+00> : vector<32x200xf32>
    %70 = tpu.matmul %65, %3, %cst_34 {dimension_numbers = #tpu.dot_dimension_numbers<[1], [0], [0], [1], [0, 0, 1, 1], [], []>} : vector<32x50xf32>, vector<50x200xf32>, vector<32x200xf32> -> vector<32x200xf32>
    %71 = arith.mulf %70, %2 : vector<32x200xf32>
    %cst_35 = arith.constant dense<0.000000e+00> : vector<32x200xf32>
    %72 = tpu.matmul %66, %3, %cst_35 {dimension_numbers = #tpu.dot_dimension_numbers<[1], [0], [0], [1], [0, 0, 1, 1], [], []>} : vector<32x50xf32>, vector<50x200xf32>, vector<32x200xf32> -> vector<32x200xf32>
    %73 = arith.mulf %72, %2 : vector<32x200xf32>
    %74 = arith.truncf %73 : vector<32x200xf32> to vector<32x200xbf16>
    %75 = arith.truncf %67 : vector<32x50xf32> to vector<32x50xbf16>
    %cst_36 = arith.constant dense<0.000000e+00> : vector<200x50xf32>
    %76 = tpu.matmul %74, %75, %cst_36 {dimension_numbers = #tpu.dot_dimension_numbers<[0], [0], [1], [1], [0, 1, 1, 1], [], []>} : vector<32x200xbf16>, vector<32x50xbf16>, vector<200x50xf32> -> vector<200x50xf32>
    %cst_37 = arith.constant 0.353553385 : f32
    %77 = vector.broadcast %cst_37 : f32 to vector<200x50xf32>
    %78 = arith.mulf %77, %76 : vector<200x50xf32>
    %cst_38 = arith.constant dense<0xFF800000> : vector<200xf32>
    %79 = vector.multi_reduction <maximumf>, %78, %cst_38 [1] : vector<200x50xf32> to vector<200xf32>
    %80 = vector.shape_cast %79 : vector<200xf32> to vector<200x1xf32>
    %81 = vector.broadcast %80 : vector<200x1xf32> to vector<200x50xf32>
    %82 = arith.subf %78, %81 : vector<200x50xf32>
    %83 = math.exp %82 : vector<200x50xf32>
    %cst_39 = arith.constant dense<0.000000e+00> : vector<200xf32>
    %84 = vector.multi_reduction <add>, %83, %cst_39 [1] : vector<200x50xf32> to vector<200xf32>
    %85 = vector.shape_cast %84 : vector<200xf32> to vector<200x1xf32>
    %86 = vector.broadcast %85 : vector<200x1xf32> to vector<200x50xf32>
    %87 = arith.divf %83, %86 : vector<200x50xf32>
    %88 = arith.truncf %68 : vector<32x50xf32> to vector<32x50xbf16>
    %89 = arith.truncf %87 : vector<200x50xf32> to vector<200x50xbf16>
    %cst_40 = arith.constant dense<0.000000e+00> : vector<32x200xf32>
    %90 = tpu.matmul %88, %89, %cst_40 {dimension_numbers = #tpu.dot_dimension_numbers<[1], [1], [0], [0], [0, 0, 1, 0], [], []>} : vector<32x50xbf16>, vector<200x50xbf16>, vector<32x200xf32> -> vector<32x200xf32>
    %91 = arith.mulf %90, %2 : vector<32x200xf32>
    %92 = arith.truncf %91 : vector<32x200xf32> to vector<32x200xbf16>
    %cst_41 = arith.constant dense<0.000000e+00> : vector<32x50xf32>
    %93 = tpu.matmul %92, %4, %cst_41 {dimension_numbers = #tpu.dot_dimension_numbers<[1], [0], [0], [1], [0, 0, 1, 1], [], []>} : vector<32x200xbf16>, vector<200x50xbf16>, vector<32x50xf32> -> vector<32x50xf32>
    %cst_42 = arith.constant dense<0.000000e+00> : vector<50x200xf32>
    %94 = tpu.matmul %65, %71, %cst_42 {dimension_numbers = #tpu.dot_dimension_numbers<[0], [0], [1], [1], [0, 1, 1, 1], [], []>} : vector<32x50xf32>, vector<32x200xf32>, vector<50x200xf32> -> vector<50x200xf32>
    %95 = arith.mulf %65, %65 : vector<32x50xf32>
    %cst_43 = arith.constant dense<0.000000e+00> : vector<50x200xf32>
    %96 = tpu.matmul %95, %2, %cst_43 {dimension_numbers = #tpu.dot_dimension_numbers<[0], [0], [1], [1], [0, 1, 1, 1], [], []>} : vector<32x50xf32>, vector<32x200xf32>, vector<50x200xf32> -> vector<50x200xf32>
    %cst_44 = arith.constant 2.000000e+00 : f32
    %97 = vector.broadcast %cst_44 : f32 to vector<50x200xf32>
    %98 = arith.mulf %97, %94 : vector<50x200xf32>
    %99 = arith.subf %98, %96 : vector<50x200xf32>
    %c0_45 = arith.constant 0 : index
    %c0_46 = arith.constant 0 : index
    %100 = vector.load %arg10[%c0_45, %c0_46] : memref<96x32xbf16, #tpu.memory_space<vmem>>, vector<96x32xbf16>
    %cst_47 = arith.constant dense<0.000000e+00> : vector<96x50xf32>
    %101 = tpu.matmul %100, %69, %cst_47 {dimension_numbers = #tpu.dot_dimension_numbers<[1], [0], [0], [1], [0, 0, 1, 1], [], []>} : vector<96x32xbf16>, vector<32x50xbf16>, vector<96x50xf32> -> vector<96x50xf32>
    %102 = vector.extract_strided_slice %101 {offsets = [0, 0], sizes = [32, 50], strides = [1, 1]} : vector<96x50xf32> to vector<32x50xf32>
    %103 = arith.truncf %102 : vector<32x50xf32> to vector<32x50xbf16>
    %104 = vector.extract_strided_slice %101 {offsets = [32, 0], sizes = [32, 50], strides = [1, 1]} : vector<96x50xf32> to vector<32x50xf32>
    %105 = arith.truncf %104 : vector<32x50xf32> to vector<32x50xbf16>
    %106 = vector.extract_strided_slice %101 {offsets = [64, 0], sizes = [32, 50], strides = [1, 1]} : vector<96x50xf32> to vector<32x50xf32>
    %107 = arith.truncf %106 : vector<32x50xf32> to vector<32x50xbf16>
    %c0_48 = arith.constant 0 : index
    %c0_49 = arith.constant 0 : index
    %108 = vector.load %arg8[%c0_48, %c0_49] : memref<32x32xbf16, #tpu.memory_space<vmem>>, vector<32x32xbf16>
    %cst_50 = arith.constant dense<0.000000e+00> : vector<32x50xf32>
    %109 = tpu.matmul %108, %69, %cst_50 {dimension_numbers = #tpu.dot_dimension_numbers<[1], [0], [0], [1], [0, 0, 1, 1], [], []>} : vector<32x32xbf16>, vector<32x50xbf16>, vector<32x50xf32> -> vector<32x50xf32>
    %c0_51 = arith.constant 0 : index
    %c0_52 = arith.constant 0 : index
    %110 = vector.load %arg9[%c0_51, %c0_52] : memref<32x1xf32, #tpu.memory_space<vmem>>, vector<32x1xf32>
    %111 = vector.broadcast %110 : vector<32x1xf32> to vector<32x50xf32>
    %112 = arith.addf %109, %111 : vector<32x50xf32>
    %113 = tpu.iota {dimensions = array<i32: 0>} : vector<50x200xi32>
    %114 = arith.sitofp %113 : vector<50x200xi32> to vector<50x200xf32>
    %cst_53 = arith.constant dense<0xFF800000> : vector<200xf32>
    %115 = vector.multi_reduction <maximumf>, %99, %cst_53 [0] : vector<50x200xf32> to vector<200xf32>
    %116 = vector.shape_cast %115 : vector<200xf32> to vector<1x200xf32>
    %117 = vector.broadcast %116 : vector<1x200xf32> to vector<50x200xf32>
    %118 = arith.cmpf oge, %99, %117 : vector<50x200xf32>
    %cst_54 = arith.constant 5.000000e+01 : f32
    %119 = vector.broadcast %cst_54 : f32 to vector<50x200xf32>
    %120 = arith.select %118, %114, %119 : vector<50x200xi1>, vector<50x200xf32>
    %cst_55 = arith.constant dense<0x7F800000> : vector<200xf32>
    %121 = vector.multi_reduction <minimumf>, %120, %cst_55 [0] : vector<50x200xf32> to vector<200xf32>
    %122 = vector.shape_cast %121 : vector<200xf32> to vector<1x200xf32>
    %123 = vector.broadcast %122 : vector<1x200xf32> to vector<50x200xf32>
    %124 = arith.cmpf oeq, %114, %123 : vector<50x200xf32>
    %125 = arith.extui %124 : vector<50x200xi1> to vector<50x200xi32>
    %126 = arith.sitofp %125 : vector<50x200xi32> to vector<50x200xf32>
    %127 = arith.truncf %126 : vector<50x200xf32> to vector<50x200xbf16>
    %cst_56 = arith.constant dense<0.000000e+00> : vector<32x200xf32>
    %128 = tpu.matmul %103, %127, %cst_56 {dimension_numbers = #tpu.dot_dimension_numbers<[1], [0], [0], [1], [0, 0, 1, 1], [], []>} : vector<32x50xbf16>, vector<50x200xbf16>, vector<32x200xf32> -> vector<32x200xf32>
    %129 = arith.mulf %128, %2 : vector<32x200xf32>
    %130 = arith.truncf %129 : vector<32x200xf32> to vector<32x200xbf16>
    %cst_57 = arith.constant dense<0.000000e+00> : vector<32x50xf32>
    %131 = tpu.matmul %130, %4, %cst_57 {dimension_numbers = #tpu.dot_dimension_numbers<[1], [0], [0], [1], [0, 0, 1, 1], [], []>} : vector<32x200xbf16>, vector<200x50xbf16>, vector<32x50xf32> -> vector<32x50xf32>
    %132 = arith.subf %112, %131 : vector<32x50xf32>
    %cst_58 = arith.constant -1.000000e+30 : f32
    %133 = vector.broadcast %cst_58 : f32 to vector<50x200xf32>
    %134 = arith.select %124, %133, %99 : vector<50x200xi1>, vector<50x200xf32>
    %cst_59 = arith.constant dense<0xFF800000> : vector<200xf32>
    %135 = vector.multi_reduction <maximumf>, %134, %cst_59 [0] : vector<50x200xf32> to vector<200xf32>
    %136 = vector.shape_cast %135 : vector<200xf32> to vector<1x200xf32>
    %137 = vector.broadcast %136 : vector<1x200xf32> to vector<50x200xf32>
    %138 = arith.cmpf oge, %134, %137 : vector<50x200xf32>
    %cst_60 = arith.constant 5.000000e+01 : f32
    %139 = vector.broadcast %cst_60 : f32 to vector<50x200xf32>
    %140 = arith.select %138, %114, %139 : vector<50x200xi1>, vector<50x200xf32>
    %cst_61 = arith.constant dense<0x7F800000> : vector<200xf32>
    %141 = vector.multi_reduction <minimumf>, %140, %cst_61 [0] : vector<50x200xf32> to vector<200xf32>
    %142 = vector.shape_cast %141 : vector<200xf32> to vector<1x200xf32>
    %143 = vector.broadcast %142 : vector<1x200xf32> to vector<50x200xf32>
    %144 = arith.cmpf oeq, %114, %143 : vector<50x200xf32>
    %145 = arith.extui %144 : vector<50x200xi1> to vector<50x200xi32>
    %146 = arith.sitofp %145 : vector<50x200xi32> to vector<50x200xf32>
    %147 = arith.truncf %146 : vector<50x200xf32> to vector<50x200xbf16>
    %cst_62 = arith.constant dense<0.000000e+00> : vector<32x200xf32>
    %148 = tpu.matmul %105, %147, %cst_62 {dimension_numbers = #tpu.dot_dimension_numbers<[1], [0], [0], [1], [0, 0, 1, 1], [], []>} : vector<32x50xbf16>, vector<50x200xbf16>, vector<32x200xf32> -> vector<32x200xf32>
    %149 = arith.mulf %148, %2 : vector<32x200xf32>
    %150 = arith.truncf %149 : vector<32x200xf32> to vector<32x200xbf16>
    %cst_63 = arith.constant dense<0.000000e+00> : vector<32x50xf32>
    %151 = tpu.matmul %150, %4, %cst_63 {dimension_numbers = #tpu.dot_dimension_numbers<[1], [0], [0], [1], [0, 0, 1, 1], [], []>} : vector<32x200xbf16>, vector<200x50xbf16>, vector<32x50xf32> -> vector<32x50xf32>
    %152 = arith.subf %132, %151 : vector<32x50xf32>
    %cst_64 = arith.constant -1.000000e+30 : f32
    %153 = vector.broadcast %cst_64 : f32 to vector<50x200xf32>
    %154 = arith.select %144, %153, %134 : vector<50x200xi1>, vector<50x200xf32>
    %cst_65 = arith.constant dense<0xFF800000> : vector<200xf32>
    %155 = vector.multi_reduction <maximumf>, %154, %cst_65 [0] : vector<50x200xf32> to vector<200xf32>
    %156 = vector.shape_cast %155 : vector<200xf32> to vector<1x200xf32>
    %157 = vector.broadcast %156 : vector<1x200xf32> to vector<50x200xf32>
    %158 = arith.cmpf oge, %154, %157 : vector<50x200xf32>
    %cst_66 = arith.constant 5.000000e+01 : f32
    %159 = vector.broadcast %cst_66 : f32 to vector<50x200xf32>
    %160 = arith.select %158, %114, %159 : vector<50x200xi1>, vector<50x200xf32>
    %cst_67 = arith.constant dense<0x7F800000> : vector<200xf32>
    %161 = vector.multi_reduction <minimumf>, %160, %cst_67 [0] : vector<50x200xf32> to vector<200xf32>
    %162 = vector.shape_cast %161 : vector<200xf32> to vector<1x200xf32>
    %163 = vector.broadcast %162 : vector<1x200xf32> to vector<50x200xf32>
    %164 = arith.cmpf oeq, %114, %163 : vector<50x200xf32>
    %165 = arith.extui %164 : vector<50x200xi1> to vector<50x200xi32>
    %166 = arith.sitofp %165 : vector<50x200xi32> to vector<50x200xf32>
    %167 = arith.truncf %166 : vector<50x200xf32> to vector<50x200xbf16>
    %cst_68 = arith.constant dense<0.000000e+00> : vector<32x200xf32>
    %168 = tpu.matmul %107, %167, %cst_68 {dimension_numbers = #tpu.dot_dimension_numbers<[1], [0], [0], [1], [0, 0, 1, 1], [], []>} : vector<32x50xbf16>, vector<50x200xbf16>, vector<32x200xf32> -> vector<32x200xf32>
    %169 = arith.mulf %168, %2 : vector<32x200xf32>
    %170 = arith.truncf %169 : vector<32x200xf32> to vector<32x200xbf16>
    %cst_69 = arith.constant dense<0.000000e+00> : vector<32x50xf32>
    %171 = tpu.matmul %170, %4, %cst_69 {dimension_numbers = #tpu.dot_dimension_numbers<[1], [0], [0], [1], [0, 0, 1, 1], [], []>} : vector<32x200xbf16>, vector<200x50xbf16>, vector<32x50xf32> -> vector<32x50xf32>
    %172 = arith.subf %152, %171 : vector<32x50xf32>
    %cst_70 = arith.constant -1.000000e+30 : f32
    %173 = vector.broadcast %cst_70 : f32 to vector<50x200xf32>
    %174 = arith.select %164, %173, %154 : vector<50x200xi1>, vector<50x200xf32>
    %cst_71 = arith.constant dense<0xFF800000> : vector<200xf32>
    %175 = vector.multi_reduction <maximumf>, %174, %cst_71 [0] : vector<50x200xf32> to vector<200xf32>
    %176 = vector.shape_cast %175 : vector<200xf32> to vector<1x200xf32>
    %177 = vector.broadcast %176 : vector<1x200xf32> to vector<50x200xf32>
    %178 = arith.cmpf oge, %174, %177 : vector<50x200xf32>
    %cst_72 = arith.constant 5.000000e+01 : f32
    %179 = vector.broadcast %cst_72 : f32 to vector<50x200xf32>
    %180 = arith.select %178, %114, %179 : vector<50x200xi1>, vector<50x200xf32>
    %cst_73 = arith.constant dense<0x7F800000> : vector<200xf32>
    %181 = vector.multi_reduction <minimumf>, %180, %cst_73 [0] : vector<50x200xf32> to vector<200xf32>
    %182 = vector.shape_cast %181 : vector<200xf32> to vector<1x200xf32>
    %183 = vector.broadcast %182 : vector<1x200xf32> to vector<50x200xf32>
    %184 = arith.cmpf oeq, %114, %183 : vector<50x200xf32>
    %185 = arith.extui %184 : vector<50x200xi1> to vector<50x200xi32>
    %186 = arith.sitofp %185 : vector<50x200xi32> to vector<50x200xf32>
    %187 = arith.truncf %186 : vector<50x200xf32> to vector<50x200xbf16>
    %cst_74 = arith.constant dense<0.000000e+00> : vector<32x200xf32>
    %188 = tpu.matmul %103, %187, %cst_74 {dimension_numbers = #tpu.dot_dimension_numbers<[1], [0], [0], [1], [0, 0, 1, 1], [], []>} : vector<32x50xbf16>, vector<50x200xbf16>, vector<32x200xf32> -> vector<32x200xf32>
    %189 = arith.mulf %188, %2 : vector<32x200xf32>
    %190 = arith.truncf %189 : vector<32x200xf32> to vector<32x200xbf16>
    %cst_75 = arith.constant dense<0.000000e+00> : vector<32x50xf32>
    %191 = tpu.matmul %190, %4, %cst_75 {dimension_numbers = #tpu.dot_dimension_numbers<[1], [0], [0], [1], [0, 0, 1, 1], [], []>} : vector<32x200xbf16>, vector<200x50xbf16>, vector<32x50xf32> -> vector<32x50xf32>
    %192 = arith.subf %112, %191 : vector<32x50xf32>
    %cst_76 = arith.constant -1.000000e+30 : f32
    %193 = vector.broadcast %cst_76 : f32 to vector<50x200xf32>
    %194 = arith.select %184, %193, %174 : vector<50x200xi1>, vector<50x200xf32>
    %cst_77 = arith.constant dense<0xFF800000> : vector<200xf32>
    %195 = vector.multi_reduction <maximumf>, %194, %cst_77 [0] : vector<50x200xf32> to vector<200xf32>
    %196 = vector.shape_cast %195 : vector<200xf32> to vector<1x200xf32>
    %197 = vector.broadcast %196 : vector<1x200xf32> to vector<50x200xf32>
    %198 = arith.cmpf oge, %194, %197 : vector<50x200xf32>
    %cst_78 = arith.constant 5.000000e+01 : f32
    %199 = vector.broadcast %cst_78 : f32 to vector<50x200xf32>
    %200 = arith.select %198, %114, %199 : vector<50x200xi1>, vector<50x200xf32>
    %cst_79 = arith.constant dense<0x7F800000> : vector<200xf32>
    %201 = vector.multi_reduction <minimumf>, %200, %cst_79 [0] : vector<50x200xf32> to vector<200xf32>
    %202 = vector.shape_cast %201 : vector<200xf32> to vector<1x200xf32>
    %203 = vector.broadcast %202 : vector<1x200xf32> to vector<50x200xf32>
    %204 = arith.cmpf oeq, %114, %203 : vector<50x200xf32>
    %205 = arith.extui %204 : vector<50x200xi1> to vector<50x200xi32>
    %206 = arith.sitofp %205 : vector<50x200xi32> to vector<50x200xf32>
    %207 = arith.truncf %206 : vector<50x200xf32> to vector<50x200xbf16>
    %cst_80 = arith.constant dense<0.000000e+00> : vector<32x200xf32>
    %208 = tpu.matmul %105, %207, %cst_80 {dimension_numbers = #tpu.dot_dimension_numbers<[1], [0], [0], [1], [0, 0, 1, 1], [], []>} : vector<32x50xbf16>, vector<50x200xbf16>, vector<32x200xf32> -> vector<32x200xf32>
    %209 = arith.mulf %208, %2 : vector<32x200xf32>
    %210 = arith.truncf %209 : vector<32x200xf32> to vector<32x200xbf16>
    %cst_81 = arith.constant dense<0.000000e+00> : vector<32x50xf32>
    %211 = tpu.matmul %210, %4, %cst_81 {dimension_numbers = #tpu.dot_dimension_numbers<[1], [0], [0], [1], [0, 0, 1, 1], [], []>} : vector<32x200xbf16>, vector<200x50xbf16>, vector<32x50xf32> -> vector<32x50xf32>
    %212 = arith.subf %192, %211 : vector<32x50xf32>
    %cst_82 = arith.constant -1.000000e+30 : f32
    %213 = vector.broadcast %cst_82 : f32 to vector<50x200xf32>
    %214 = arith.select %204, %213, %194 : vector<50x200xi1>, vector<50x200xf32>
    %cst_83 = arith.constant dense<0xFF800000> : vector<200xf32>
    %215 = vector.multi_reduction <maximumf>, %214, %cst_83 [0] : vector<50x200xf32> to vector<200xf32>
    %216 = vector.shape_cast %215 : vector<200xf32> to vector<1x200xf32>
    %217 = vector.broadcast %216 : vector<1x200xf32> to vector<50x200xf32>
    %218 = arith.cmpf oge, %214, %217 : vector<50x200xf32>
    %cst_84 = arith.constant 5.000000e+01 : f32
    %219 = vector.broadcast %cst_84 : f32 to vector<50x200xf32>
    %220 = arith.select %218, %114, %219 : vector<50x200xi1>, vector<50x200xf32>
    %cst_85 = arith.constant dense<0x7F800000> : vector<200xf32>
    %221 = vector.multi_reduction <minimumf>, %220, %cst_85 [0] : vector<50x200xf32> to vector<200xf32>
    %222 = vector.shape_cast %221 : vector<200xf32> to vector<1x200xf32>
    %223 = vector.broadcast %222 : vector<1x200xf32> to vector<50x200xf32>
    %224 = arith.cmpf oeq, %114, %223 : vector<50x200xf32>
    %225 = arith.extui %224 : vector<50x200xi1> to vector<50x200xi32>
    %226 = arith.sitofp %225 : vector<50x200xi32> to vector<50x200xf32>
    %227 = arith.truncf %226 : vector<50x200xf32> to vector<50x200xbf16>
    %cst_86 = arith.constant dense<0.000000e+00> : vector<32x200xf32>
    %228 = tpu.matmul %107, %227, %cst_86 {dimension_numbers = #tpu.dot_dimension_numbers<[1], [0], [0], [1], [0, 0, 1, 1], [], []>} : vector<32x50xbf16>, vector<50x200xbf16>, vector<32x200xf32> -> vector<32x200xf32>
    %229 = arith.mulf %228, %2 : vector<32x200xf32>
    %230 = arith.truncf %229 : vector<32x200xf32> to vector<32x200xbf16>
    %cst_87 = arith.constant dense<0.000000e+00> : vector<32x50xf32>
    %231 = tpu.matmul %230, %4, %cst_87 {dimension_numbers = #tpu.dot_dimension_numbers<[1], [0], [0], [1], [0, 0, 1, 1], [], []>} : vector<32x200xbf16>, vector<200x50xbf16>, vector<32x50xf32> -> vector<32x50xf32>
    %232 = arith.subf %212, %231 : vector<32x50xf32>
    %cst_88 = arith.constant -1.000000e+30 : f32
    %233 = vector.broadcast %cst_88 : f32 to vector<50x200xf32>
    %234 = arith.select %224, %233, %214 : vector<50x200xi1>, vector<50x200xf32>
    %cst_89 = arith.constant dense<0xFF800000> : vector<200xf32>
    %235 = vector.multi_reduction <maximumf>, %234, %cst_89 [0] : vector<50x200xf32> to vector<200xf32>
    %236 = vector.shape_cast %235 : vector<200xf32> to vector<1x200xf32>
    %237 = vector.broadcast %236 : vector<1x200xf32> to vector<50x200xf32>
    %238 = arith.cmpf oge, %234, %237 : vector<50x200xf32>
    %cst_90 = arith.constant 5.000000e+01 : f32
    %239 = vector.broadcast %cst_90 : f32 to vector<50x200xf32>
    %240 = arith.select %238, %114, %239 : vector<50x200xi1>, vector<50x200xf32>
    %cst_91 = arith.constant dense<0x7F800000> : vector<200xf32>
    %241 = vector.multi_reduction <minimumf>, %240, %cst_91 [0] : vector<50x200xf32> to vector<200xf32>
    %242 = vector.shape_cast %241 : vector<200xf32> to vector<1x200xf32>
    %243 = vector.broadcast %242 : vector<1x200xf32> to vector<50x200xf32>
    %244 = arith.cmpf oeq, %114, %243 : vector<50x200xf32>
    %245 = arith.extui %244 : vector<50x200xi1> to vector<50x200xi32>
    %246 = arith.sitofp %245 : vector<50x200xi32> to vector<50x200xf32>
    %247 = arith.truncf %246 : vector<50x200xf32> to vector<50x200xbf16>
    %cst_92 = arith.constant dense<0.000000e+00> : vector<32x200xf32>
    %248 = tpu.matmul %103, %247, %cst_92 {dimension_numbers = #tpu.dot_dimension_numbers<[1], [0], [0], [1], [0, 0, 1, 1], [], []>} : vector<32x50xbf16>, vector<50x200xbf16>, vector<32x200xf32> -> vector<32x200xf32>
    %249 = arith.mulf %248, %2 : vector<32x200xf32>
    %250 = arith.truncf %249 : vector<32x200xf32> to vector<32x200xbf16>
    %cst_93 = arith.constant dense<0.000000e+00> : vector<32x50xf32>
    %251 = tpu.matmul %250, %4, %cst_93 {dimension_numbers = #tpu.dot_dimension_numbers<[1], [0], [0], [1], [0, 0, 1, 1], [], []>} : vector<32x200xbf16>, vector<200x50xbf16>, vector<32x50xf32> -> vector<32x50xf32>
    %252 = arith.subf %112, %251 : vector<32x50xf32>
    %cst_94 = arith.constant -1.000000e+30 : f32
    %253 = vector.broadcast %cst_94 : f32 to vector<50x200xf32>
    %254 = arith.select %244, %253, %234 : vector<50x200xi1>, vector<50x200xf32>
    %cst_95 = arith.constant dense<0xFF800000> : vector<200xf32>
    %255 = vector.multi_reduction <maximumf>, %254, %cst_95 [0] : vector<50x200xf32> to vector<200xf32>
    %256 = vector.shape_cast %255 : vector<200xf32> to vector<1x200xf32>
    %257 = vector.broadcast %256 : vector<1x200xf32> to vector<50x200xf32>
    %258 = arith.cmpf oge, %254, %257 : vector<50x200xf32>
    %cst_96 = arith.constant 5.000000e+01 : f32
    %259 = vector.broadcast %cst_96 : f32 to vector<50x200xf32>
    %260 = arith.select %258, %114, %259 : vector<50x200xi1>, vector<50x200xf32>
    %cst_97 = arith.constant dense<0x7F800000> : vector<200xf32>
    %261 = vector.multi_reduction <minimumf>, %260, %cst_97 [0] : vector<50x200xf32> to vector<200xf32>
    %262 = vector.shape_cast %261 : vector<200xf32> to vector<1x200xf32>
    %263 = vector.broadcast %262 : vector<1x200xf32> to vector<50x200xf32>
    %264 = arith.cmpf oeq, %114, %263 : vector<50x200xf32>
    %265 = arith.extui %264 : vector<50x200xi1> to vector<50x200xi32>
    %266 = arith.sitofp %265 : vector<50x200xi32> to vector<50x200xf32>
    %267 = arith.truncf %266 : vector<50x200xf32> to vector<50x200xbf16>
    %cst_98 = arith.constant dense<0.000000e+00> : vector<32x200xf32>
    %268 = tpu.matmul %105, %267, %cst_98 {dimension_numbers = #tpu.dot_dimension_numbers<[1], [0], [0], [1], [0, 0, 1, 1], [], []>} : vector<32x50xbf16>, vector<50x200xbf16>, vector<32x200xf32> -> vector<32x200xf32>
    %269 = arith.mulf %268, %2 : vector<32x200xf32>
    %270 = arith.truncf %269 : vector<32x200xf32> to vector<32x200xbf16>
    %cst_99 = arith.constant dense<0.000000e+00> : vector<32x50xf32>
    %271 = tpu.matmul %270, %4, %cst_99 {dimension_numbers = #tpu.dot_dimension_numbers<[1], [0], [0], [1], [0, 0, 1, 1], [], []>} : vector<32x200xbf16>, vector<200x50xbf16>, vector<32x50xf32> -> vector<32x50xf32>
    %272 = arith.subf %252, %271 : vector<32x50xf32>
    %cst_100 = arith.constant -1.000000e+30 : f32
    %273 = vector.broadcast %cst_100 : f32 to vector<50x200xf32>
    %274 = arith.select %264, %273, %254 : vector<50x200xi1>, vector<50x200xf32>
    %cst_101 = arith.constant dense<0xFF800000> : vector<200xf32>
    %275 = vector.multi_reduction <maximumf>, %274, %cst_101 [0] : vector<50x200xf32> to vector<200xf32>
    %276 = vector.shape_cast %275 : vector<200xf32> to vector<1x200xf32>
    %277 = vector.broadcast %276 : vector<1x200xf32> to vector<50x200xf32>
    %278 = arith.cmpf oge, %274, %277 : vector<50x200xf32>
    %cst_102 = arith.constant 5.000000e+01 : f32
    %279 = vector.broadcast %cst_102 : f32 to vector<50x200xf32>
    %280 = arith.select %278, %114, %279 : vector<50x200xi1>, vector<50x200xf32>
    %cst_103 = arith.constant dense<0x7F800000> : vector<200xf32>
    %281 = vector.multi_reduction <minimumf>, %280, %cst_103 [0] : vector<50x200xf32> to vector<200xf32>
    %282 = vector.shape_cast %281 : vector<200xf32> to vector<1x200xf32>
    %283 = vector.broadcast %282 : vector<1x200xf32> to vector<50x200xf32>
    %284 = arith.cmpf oeq, %114, %283 : vector<50x200xf32>
    %285 = arith.extui %284 : vector<50x200xi1> to vector<50x200xi32>
    %286 = arith.sitofp %285 : vector<50x200xi32> to vector<50x200xf32>
    %287 = arith.truncf %286 : vector<50x200xf32> to vector<50x200xbf16>
    %cst_104 = arith.constant dense<0.000000e+00> : vector<32x200xf32>
    %288 = tpu.matmul %107, %287, %cst_104 {dimension_numbers = #tpu.dot_dimension_numbers<[1], [0], [0], [1], [0, 0, 1, 1], [], []>} : vector<32x50xbf16>, vector<50x200xbf16>, vector<32x200xf32> -> vector<32x200xf32>
    %289 = arith.mulf %288, %2 : vector<32x200xf32>
    %290 = arith.truncf %289 : vector<32x200xf32> to vector<32x200xbf16>
    %cst_105 = arith.constant dense<0.000000e+00> : vector<32x50xf32>
    %291 = tpu.matmul %290, %4, %cst_105 {dimension_numbers = #tpu.dot_dimension_numbers<[1], [0], [0], [1], [0, 0, 1, 1], [], []>} : vector<32x200xbf16>, vector<200x50xbf16>, vector<32x50xf32> -> vector<32x50xf32>
    %292 = arith.subf %272, %291 : vector<32x50xf32>
    %cst_106 = arith.constant 0.999994993 : f32
    %293 = vector.broadcast %cst_106 : f32 to vector<32x50xf32>
    %294 = arith.mulf %172, %293 : vector<32x50xf32>
    %cst_107 = arith.constant 0.000000e+00 : f32
    %295 = vector.broadcast %cst_107 : f32 to vector<32x50xf32>
    %296 = arith.maximumf %294, %295 : vector<32x50xf32>
    %cst_108 = arith.constant 0.999994993 : f32
    %297 = vector.broadcast %cst_108 : f32 to vector<32x50xf32>
    %298 = arith.mulf %232, %297 : vector<32x50xf32>
    %cst_109 = arith.constant 0.000000e+00 : f32
    %299 = vector.broadcast %cst_109 : f32 to vector<32x50xf32>
    %300 = arith.maximumf %298, %299 : vector<32x50xf32>
    %cst_110 = arith.constant 0.999994993 : f32
    %301 = vector.broadcast %cst_110 : f32 to vector<32x50xf32>
    %302 = arith.mulf %292, %301 : vector<32x50xf32>
    %cst_111 = arith.constant 0.000000e+00 : f32
    %303 = vector.broadcast %cst_111 : f32 to vector<32x50xf32>
    %304 = arith.maximumf %302, %303 : vector<32x50xf32>
    %305 = tpu.concatenate %296, %300, %304 in 0 : vector<32x50xf32>, vector<32x50xf32>, vector<32x50xf32> -> vector<96x50xf32>
    %c0_112 = arith.constant 0 : index
    %c0_113 = arith.constant 0 : index
    %306 = vector.load %arg11[%c0_112, %c0_113] : memref<32x96xbf16, #tpu.memory_space<vmem>>, vector<32x96xbf16>
    %307 = arith.truncf %305 : vector<96x50xf32> to vector<96x50xbf16>
    %cst_114 = arith.constant dense<0.000000e+00> : vector<32x50xf32>
    %308 = tpu.matmul %306, %307, %cst_114 {dimension_numbers = #tpu.dot_dimension_numbers<[1], [0], [0], [1], [0, 0, 1, 1], [], []>} : vector<32x96xbf16>, vector<96x50xbf16>, vector<32x50xf32> -> vector<32x50xf32>
    %c0_115 = arith.constant 0 : index
    %c0_116 = arith.constant 0 : index
    %309 = vector.load %arg12[%c0_115, %c0_116] : memref<32x1xf32, #tpu.memory_space<vmem>>, vector<32x1xf32>
    %310 = vector.broadcast %309 : vector<32x1xf32> to vector<32x50xf32>
    %311 = arith.addf %308, %310 : vector<32x50xf32>
    %cst_117 = arith.constant 0.999994993 : f32
    %312 = vector.broadcast %cst_117 : f32 to vector<32x50xf32>
    %313 = arith.mulf %311, %312 : vector<32x50xf32>
    %cst_118 = arith.constant 0.000000e+00 : f32
    %314 = vector.broadcast %cst_118 : f32 to vector<32x50xf32>
    %315 = arith.maximumf %313, %314 : vector<32x50xf32>
    %c0_119 = arith.constant 0 : index
    %c0_120 = arith.constant 0 : index
    %316 = vector.load %arg13[%c0_119, %c0_120] : memref<32x32xbf16, #tpu.memory_space<vmem>>, vector<32x32xbf16>
    %317 = arith.truncf %315 : vector<32x50xf32> to vector<32x50xbf16>
    %cst_121 = arith.constant dense<0.000000e+00> : vector<32x50xf32>
    %318 = tpu.matmul %316, %317, %cst_121 {dimension_numbers = #tpu.dot_dimension_numbers<[1], [0], [0], [1], [0, 0, 1, 1], [], []>} : vector<32x32xbf16>, vector<32x50xbf16>, vector<32x50xf32> -> vector<32x50xf32>
    %c0_122 = arith.constant 0 : index
    %c0_123 = arith.constant 0 : index
    %319 = vector.load %arg14[%c0_122, %c0_123] : memref<32x32xbf16, #tpu.memory_space<vmem>>, vector<32x32xbf16>
    %320 = arith.truncf %93 : vector<32x50xf32> to vector<32x50xbf16>
    %cst_124 = arith.constant dense<0.000000e+00> : vector<32x50xf32>
    %321 = tpu.matmul %319, %320, %cst_124 {dimension_numbers = #tpu.dot_dimension_numbers<[1], [0], [0], [1], [0, 0, 1, 1], [], []>} : vector<32x32xbf16>, vector<32x50xbf16>, vector<32x50xf32> -> vector<32x50xf32>
    %322 = arith.addf %318, %321 : vector<32x50xf32>
    %c0_125 = arith.constant 0 : index
    %c0_126 = arith.constant 0 : index
    %323 = vector.load %arg15[%c0_125, %c0_126] : memref<32x1xf32, #tpu.memory_space<vmem>>, vector<32x1xf32>
    %324 = vector.broadcast %323 : vector<32x1xf32> to vector<32x50xf32>
    %325 = arith.addf %322, %324 : vector<32x50xf32>
    %326 = arith.truncf %325 : vector<32x50xf32> to vector<32x50xbf16>
    %327 = arith.truncf %55 : vector<50x16xf32> to vector<50x16xbf16>
    %cst_127 = arith.constant dense<0.000000e+00> : vector<32x16xf32>
    %328 = tpu.matmul %326, %327, %cst_127 {dimension_numbers = #tpu.dot_dimension_numbers<[1], [0], [0], [1], [0, 0, 1, 1], [], []>} : vector<32x50xbf16>, vector<50x16xbf16>, vector<32x16xf32> -> vector<32x16xf32>
    %c0_128 = arith.constant 0 : index
    %c0_129 = arith.constant 0 : index
    %329 = vector.load %arg16[%c0_128, %c0_129] : memref<32x32xbf16, #tpu.memory_space<vmem>>, vector<32x32xbf16>
    %330 = arith.truncf %328 : vector<32x16xf32> to vector<32x16xbf16>
    %cst_130 = arith.constant dense<0.000000e+00> : vector<32x16xf32>
    %331 = tpu.matmul %329, %330, %cst_130 {dimension_numbers = #tpu.dot_dimension_numbers<[1], [0], [0], [1], [0, 0, 1, 1], [], []>} : vector<32x32xbf16>, vector<32x16xbf16>, vector<32x16xf32> -> vector<32x16xf32>
    %c0_131 = arith.constant 0 : index
    %c0_132 = arith.constant 0 : index
    %332 = vector.load %arg17[%c0_131, %c0_132] : memref<32x1xf32, #tpu.memory_space<vmem>>, vector<32x1xf32>
    %333 = vector.broadcast %332 : vector<32x1xf32> to vector<32x16xf32>
    %334 = arith.addf %331, %333 : vector<32x16xf32>
    %c0_133 = arith.constant 0 : index
    %c0_134 = arith.constant 0 : index
    %c0_135 = arith.constant 0 : index
    %335 = vector.load %arg21[%c0_133, %c0_134, %c0_135] : memref<1x32x16xf32, #tpu.memory_space<vmem>>, vector<1x32x16xf32>
    %336 = vector.shape_cast %335 : vector<1x32x16xf32> to vector<32x16xf32>
    %337 = vector.shape_cast %334 : vector<32x16xf32> to vector<1x32x16xf32>
    tpu.vector_store %arg21[%c0_133, %c0_134, %c0_135], %337 {strides = array<i32>} : memref<1x32x16xf32, #tpu.memory_space<vmem>>, vector<1x32x16xf32>,
    return
  }
  func.func @transform_0(%arg0: i32) -> (i32, i32, i32) {
    %c0_i32 = arith.constant 0 : i32
    %c0_i32_0 = arith.constant 0 : i32
    %c0_i32_1 = arith.constant 0 : i32
    return %arg0, %c0_i32, %c0_i32_0 : i32, i32, i32
  }
  func.func @transform_1(%arg0: i32) -> (i32, i32) {
    %c0_i32 = arith.constant 0 : i32
    %c0_i32_0 = arith.constant 0 : i32
    %c0_i32_1 = arith.constant 0 : i32
    return %c0_i32, %c0_i32_0 : i32, i32
  }
  func.func @transform_2(%arg0: i32) -> (i32, i32) {
    %c0_i32 = arith.constant 0 : i32
    %c0_i32_0 = arith.constant 0 : i32
    %c0_i32_1 = arith.constant 0 : i32
    return %c0_i32, %c0_i32_0 : i32, i32
  }
  func.func @transform_3(%arg0: i32) -> (i32, i32) {
    %c0_i32 = arith.constant 0 : i32
    %c0_i32_0 = arith.constant 0 : i32
    %c0_i32_1 = arith.constant 0 : i32
    return %c0_i32, %c0_i32_0 : i32, i32
  }
  func.func @transform_4(%arg0: i32) -> (i32, i32) {
    %c0_i32 = arith.constant 0 : i32
    %c0_i32_0 = arith.constant 0 : i32
    %c0_i32_1 = arith.constant 0 : i32
    return %c0_i32, %c0_i32_0 : i32, i32
  }
  func.func @transform_5(%arg0: i32) -> (i32, i32) {
    %c0_i32 = arith.constant 0 : i32
    %c0_i32_0 = arith.constant 0 : i32
    %c0_i32_1 = arith.constant 0 : i32
    return %c0_i32, %c0_i32_0 : i32, i32
  }
  func.func @transform_6(%arg0: i32) -> (i32, i32) {
    %c0_i32 = arith.constant 0 : i32
    %c0_i32_0 = arith.constant 0 : i32
    %c0_i32_1 = arith.constant 0 : i32
    return %c0_i32, %c0_i32_0 : i32, i32
  }
  func.func @transform_7(%arg0: i32) -> (i32, i32) {
    %c0_i32 = arith.constant 0 : i32
    %c0_i32_0 = arith.constant 0 : i32
    %c0_i32_1 = arith.constant 0 : i32
    return %c0_i32, %c0_i32_0 : i32, i32
  }
  func.func @transform_8(%arg0: i32) -> (i32, i32) {
    %c0_i32 = arith.constant 0 : i32
    %c0_i32_0 = arith.constant 0 : i32
    %c0_i32_1 = arith.constant 0 : i32
    return %c0_i32, %c0_i32_0 : i32, i32
  }
  func.func @transform_9(%arg0: i32) -> (i32, i32) {
    %c0_i32 = arith.constant 0 : i32
    %c0_i32_0 = arith.constant 0 : i32
    %c0_i32_1 = arith.constant 0 : i32
    return %c0_i32, %c0_i32_0 : i32, i32
  }
  func.func @transform_10(%arg0: i32) -> (i32, i32) {
    %c0_i32 = arith.constant 0 : i32
    %c0_i32_0 = arith.constant 0 : i32
    %c0_i32_1 = arith.constant 0 : i32
    return %c0_i32, %c0_i32_0 : i32, i32
  }
  func.func @transform_11(%arg0: i32) -> (i32, i32) {
    %c0_i32 = arith.constant 0 : i32
    %c0_i32_0 = arith.constant 0 : i32
    %c0_i32_1 = arith.constant 0 : i32
    return %c0_i32, %c0_i32_0 : i32, i32
  }
  func.func @transform_12(%arg0: i32) -> (i32, i32) {
    %c0_i32 = arith.constant 0 : i32
    %c0_i32_0 = arith.constant 0 : i32
    %c0_i32_1 = arith.constant 0 : i32
    return %c0_i32, %c0_i32_0 : i32, i32
  }
  func.func @transform_13(%arg0: i32) -> (i32, i32) {
    %c0_i32 = arith.constant 0 : i32
    %c0_i32_0 = arith.constant 0 : i32
    %c0_i32_1 = arith.constant 0 : i32
    return %c0_i32, %c0_i32_0 : i32, i32
  }
  func.func @transform_14(%arg0: i32) -> (i32, i32) {
    %c0_i32 = arith.constant 0 : i32
    %c0_i32_0 = arith.constant 0 : i32
    %c0_i32_1 = arith.constant 0 : i32
    return %c0_i32, %c0_i32_0 : i32, i32
  }
  func.func @transform_15(%arg0: i32) -> (i32, i32) {
    %c0_i32 = arith.constant 0 : i32
    %c0_i32_0 = arith.constant 0 : i32
    %c0_i32_1 = arith.constant 0 : i32
    return %c0_i32, %c0_i32_0 : i32, i32
  }
  func.func @transform_16(%arg0: i32) -> (i32, i32) {
    %c0_i32 = arith.constant 0 : i32
    %c0_i32_0 = arith.constant 0 : i32
    %c0_i32_1 = arith.constant 0 : i32
    return %c0_i32, %c0_i32_0 : i32, i32
  }
  func.func @transform_17(%arg0: i32) -> (i32, i32) {
    %c0_i32 = arith.constant 0 : i32
    %c0_i32_0 = arith.constant 0 : i32
    %c0_i32_1 = arith.constant 0 : i32
    return %c0_i32, %c0_i32_0 : i32, i32
  }
  func.func @transform_18(%arg0: i32) -> (i32, i32) {
    %c0_i32 = arith.constant 0 : i32
    %c0_i32_0 = arith.constant 0 : i32
    %c0_i32_1 = arith.constant 0 : i32
    return %c0_i32, %c0_i32_0 : i32, i32
  }
  func.func @transform_19(%arg0: i32) -> (i32, i32) {
    %c0_i32 = arith.constant 0 : i32
    %c0_i32_0 = arith.constant 0 : i32
    %c0_i32_1 = arith.constant 0 : i32
    return %c0_i32, %c0_i32_0 : i32, i32
  }
  func.func @transform_20(%arg0: i32) -> (i32, i32, i32) {
    %c0_i32 = arith.constant 0 : i32
    %c0_i32_0 = arith.constant 0 : i32
    %c0_i32_1 = arith.constant 0 : i32
    return %arg0, %c0_i32, %c0_i32_0 : i32, i32, i32
  }
}

</mosaic_0001>

<llo_original>
// kernel: efficient_attention_forward.1
$region0: #{efficient_attention_forward.1}
  #allocation0 [shape = 'u32[]', space=smem, size = 0x4, offset = 0x4, fixed_abs, tag = 'smem constant byte address 0x4 - core index']
  #allocation1 [shape = 'u32[144,128]{1,0:T(1,128)}', space=vmem, size = 0x12000, scoped, tag = 'internal scratch']
  %s0 = inlined_call_operand.vmem [shape: f32[2,32,16], index: 0, kind: input, shape index: {}]
  %s1 = inlined_call_operand.vmem [shape: bf16[50,32], index: 1, kind: input, shape index: {}]
  %s2 = inlined_call_operand.vmem [shape: f32[50,1], index: 2, kind: input, shape index: {}]
  %s3 = inlined_call_operand.vmem [shape: bf16[50,32], index: 3, kind: input, shape index: {}]
  %s4 = inlined_call_operand.vmem [shape: f32[50,1], index: 4, kind: input, shape index: {}]
  %s5 = inlined_call_operand.vmem [shape: bf16[128,32], index: 5, kind: input, shape index: {}]
  %s6 = inlined_call_operand.vmem [shape: f32[128,1], index: 6, kind: input, shape index: {}]
  %s7 = inlined_call_operand.vmem [shape: bf16[32,32], index: 7, kind: input, shape index: {}]
  %s8 = inlined_call_operand.vmem [shape: f32[32,1], index: 8, kind: input, shape index: {}]
  %s9 = inlined_call_operand.vmem [shape: bf16[96,32], index: 9, kind: input, shape index: {}]
  %s10 = inlined_call_operand.vmem [shape: bf16[32,96], index: 10, kind: input, shape index: {}]
  %s11 = inlined_call_operand.vmem [shape: f32[32,1], index: 11, kind: input, shape index: {}]
  %s12 = inlined_call_operand.vmem [shape: bf16[32,32], index: 12, kind: input, shape index: {}]
  %s13 = inlined_call_operand.vmem [shape: bf16[32,32], index: 13, kind: input, shape index: {}]
  %s14 = inlined_call_operand.vmem [shape: f32[32,1], index: 14, kind: input, shape index: {}]
  %s15 = inlined_call_operand.vmem [shape: bf16[32,32], index: 15, kind: input, shape index: {}]
  %s16 = inlined_call_operand.vmem [shape: f32[32,1], index: 16, kind: input, shape index: {}]
  %s17 = inlined_call_operand.vmem [shape: f32[32,200], index: 17, kind: input, shape index: {}]
  %s18 = inlined_call_operand.vmem [shape: f32[50,200], index: 18, kind: input, shape index: {}]
  %s19 = inlined_call_operand.vmem [shape: bf16[200,50], index: 19, kind: input, shape index: {}]
  %s20 = inlined_call_operand.vmem [shape: f32[2,32,16], index: 20, kind: output, shape index: {}]
  %s21 = sld [smem:[#allocation0]]
  $region113: #{efficient_attention_forward.1} parent=0
    _
  %s23 = ssub.s32 1, %s21
  %s24 = scalar_select 0, %s23, %s21
  loop: start=0, step=1, limit=4
  $region2: #{efficient_attention_forward.1} parent=0 // loop_pre_header
    _
  $region3: #{efficient_attention_forward.1} parent=0 // loop_header
    %s26 = sphi 0, %s30
    %p27 = scmp.ge.s32.totalorder %s26, 4
    %s36 = sphi 0, %s38
    %s39 = sphi 0, %s36
    %s40 = sphi 0, %s39
    %s56 = sphi 0, %s40
    %s60 = sphi 0, %s60
    %s62 = sphi 0, %s60
    %s63 = sphi 0, %s62
    %s77 = sphi 0, %s63
    %s81 = sphi 0, %s81
    %s83 = sphi 0, %s81
    %s84 = sphi 0, %s83
    %s98 = sphi 0, %s84
    %s102 = sphi 0, %s102
    %s104 = sphi 0, %s102
    %s105 = sphi 0, %s104
    %s119 = sphi 0, %s105
    %s123 = sphi 0, %s123
    %s125 = sphi 0, %s123
    %s126 = sphi 0, %s125
    %s140 = sphi 0, %s126
    %s144 = sphi 0, %s144
    %s146 = sphi 0, %s144
    %s147 = sphi 0, %s146
    %s161 = sphi 0, %s147
    %s165 = sphi 0, %s165
    %s167 = sphi 0, %s165
    %s168 = sphi 0, %s167
    %s182 = sphi 0, %s168
    %s186 = sphi 0, %s186
    %s188 = sphi 0, %s186
    %s189 = sphi 0, %s188
    %s203 = sphi 0, %s189
    %s207 = sphi 0, %s207
    %s209 = sphi 0, %s207
    %s210 = sphi 0, %s209
    %s224 = sphi 0, %s210
    %s228 = sphi 0, %s228
    %s230 = sphi 0, %s228
    %s231 = sphi 0, %s230
    %s245 = sphi 0, %s231
    %s249 = sphi 0, %s249
    %s251 = sphi 0, %s249
    %s252 = sphi 0, %s251
    %s266 = sphi 0, %s252
    %s270 = sphi 0, %s270
    %s272 = sphi 0, %s270
    %s273 = sphi 0, %s272
    %s287 = sphi 0, %s273
    %s291 = sphi 0, %s291
    %s293 = sphi 0, %s291
    %s294 = sphi 0, %s293
    %s308 = sphi 0, %s294
    %s312 = sphi 0, %s312
    %s314 = sphi 0, %s312
    %s315 = sphi 0, %s314
    %s329 = sphi 0, %s315
    %s333 = sphi 0, %s333
    %s335 = sphi 0, %s333
    %s336 = sphi 0, %s335
    %s350 = sphi 0, %s336
    %s354 = sphi 0, %s354
    %s356 = sphi 0, %s354
    %s357 = sphi 0, %s356
    %s371 = sphi 0, %s357
    %s375 = sphi 0, %s375
    %s377 = sphi 0, %s375
    %s378 = sphi 0, %s377
    %s392 = sphi 0, %s378
    %s396 = sphi 0, %s396
    %s398 = sphi 0, %s396
    %s399 = sphi 0, %s398
    %s413 = sphi 0, %s399
    %s417 = sphi 0, %s417
    %s419 = sphi 0, %s417
    %s420 = sphi 0, %s419
    %s434 = sphi 0, %s420
    %s438 = sphi 0, %s438
    %s440 = sphi 0, %s438
    %s441 = sphi 0, %s440
    %s455 = sphi 0, %s441
    %s461 = sphi 0, %s463
    %s464 = sphi 0, %s461
    %s465 = sphi 0, %s464
    %s481 = sphi 0, %s465
  $region4: #{efficient_attention_forward.1} parent=0 // loop_header_branch
    %29 = sbr.rel (%p27) target = $region8
  $region5: #{efficient_attention_forward.1} parent=0 // loop_body
    %s31 = ssub.s32 %s26, 1
    %s32 = ssub.s32 %s26, 2
    %s33 = sadd.s32 %s26, 1
    %s34 = ssub.s32 %s26, %s33
    %p35 = scmp.eq.s32.totalorder %s34, 0
    %s37 = sadd.s32 %s36, 1
    %s38 = scalar_select %p35, %s36, %s37
    %p41 = pneg %p35
    %p42 = scmp.eq.s32.totalorder %s26, 1
    %p43 = por %p41, %p42
    %p44 = scmp.ne.s32.totalorder %s36, %s39
    %p45 = scmp.eq.s32.totalorder %s26, 0
    %p46 = por %p44, %p45
    %p47 = scmp.ne.s32.totalorder %s36, %s39
    %p48 = scmp.eq.s32.totalorder %s31, 1
    %p49 = por %p47, %p48
    %p50 = scmp.ne.s32.totalorder %s39, %s40
    %p51 = scmp.eq.s32.totalorder %s31, 0
    %p52 = por %p50, %p51
    %p53 = scmp.ne.s32.totalorder %s39, %s40
    %p54 = scmp.eq.s32.totalorder %s32, 1
    %p55 = por %p53, %p54
    %p57 = scmp.ne.s32.totalorder %s40, %s56
    %p58 = scmp.eq.s32.totalorder %s32, 0
    %p59 = por %p57, %p58
    %s61 = sadd.s32 %s60, 1
    %p64 = scmp.eq.s32.totalorder %s26, 1
    %p65 = scmp.ne.s32.totalorder %s60, %s62
    %p66 = scmp.eq.s32.totalorder %s26, 0
    %p67 = por %p65, %p66
    %p68 = scmp.ne.s32.totalorder %s60, %s62
    %p69 = scmp.eq.s32.totalorder %s31, 1
    %p70 = por %p68, %p69
    %p71 = scmp.ne.s32.totalorder %s62, %s63
    %p72 = scmp.eq.s32.totalorder %s31, 0
    %p73 = por %p71, %p72
    %p74 = scmp.ne.s32.totalorder %s62, %s63
    %p75 = scmp.eq.s32.totalorder %s32, 1
    %p76 = por %p74, %p75
    %p78 = scmp.ne.s32.totalorder %s63, %s77
    %p79 = scmp.eq.s32.totalorder %s32, 0
    %p80 = por %p78, %p79
    %s82 = sadd.s32 %s81, 1
    %p85 = scmp.eq.s32.totalorder %s26, 1
    %p86 = scmp.ne.s32.totalorder %s81, %s83
    %p87 = scmp.eq.s32.totalorder %s26, 0
    %p88 = por %p86, %p87
    %p89 = scmp.ne.s32.totalorder %s81, %s83
    %p90 = scmp.eq.s32.totalorder %s31, 1
    %p91 = por %p89, %p90
    %p92 = scmp.ne.s32.totalorder %s83, %s84
    %p93 = scmp.eq.s32.totalorder %s31, 0
    %p94 = por %p92, %p93
    %p95 = scmp.ne.s32.totalorder %s83, %s84
    %p96 = scmp.eq.s32.totalorder %s32, 1
    %p97 = por %p95, %p96
    %p99 = scmp.ne.s32.totalorder %s84, %s98
    %p100 = scmp.eq.s32.totalorder %s32, 0
    %p101 = por %p99, %p100
    %s103 = sadd.s32 %s102, 1
    %p106 = scmp.eq.s32.totalorder %s26, 1
    %p107 = scmp.ne.s32.totalorder %s102, %s104
    %p108 = scmp.eq.s32.totalorder %s26, 0
    %p109 = por %p107, %p108
    %p110 = scmp.ne.s32.totalorder %s102, %s104
    %p111 = scmp.eq.s32.totalorder %s31, 1
    %p112 = por %p110, %p111
    %p113 = scmp.ne.s32.totalorder %s104, %s105
    %p114 = scmp.eq.s32.totalorder %s31, 0
    %p115 = por %p113, %p114
    %p116 = scmp.ne.s32.totalorder %s104, %s105
    %p117 = scmp.eq.s32.totalorder %s32, 1
    %p118 = por %p116, %p117
    %p120 = scmp.ne.s32.totalorder %s105, %s119
    %p121 = scmp.eq.s32.totalorder %s32, 0
    %p122 = por %p120, %p121
    %s124 = sadd.s32 %s123, 1
    %p127 = scmp.eq.s32.totalorder %s26, 1
    %p128 = scmp.ne.s32.totalorder %s123, %s125
    %p129 = scmp.eq.s32.totalorder %s26, 0
    %p130 = por %p128, %p129
    %p131 = scmp.ne.s32.totalorder %s123, %s125
    %p132 = scmp.eq.s32.totalorder %s31, 1
    %p133 = por %p131, %p132
    %p134 = scmp.ne.s32.totalorder %s125, %s126
    %p135 = scmp.eq.s32.totalorder %s31, 0
    %p136 = por %p134, %p135
    %p137 = scmp.ne.s32.totalorder %s125, %s126
    %p138 = scmp.eq.s32.totalorder %s32, 1
    %p139 = por %p137, %p138
    %p141 = scmp.ne.s32.totalorder %s126, %s140
    %p142 = scmp.eq.s32.totalorder %s32, 0
    %p143 = por %p141, %p142
    %s145 = sadd.s32 %s144, 1
    %p148 = scmp.eq.s32.totalorder %s26, 1
    %p149 = scmp.ne.s32.totalorder %s144, %s146
    %p150 = scmp.eq.s32.totalorder %s26, 0
    %p151 = por %p149, %p150
    %p152 = scmp.ne.s32.totalorder %s144, %s146
    %p153 = scmp.eq.s32.totalorder %s31, 1
    %p154 = por %p152, %p153
    %p155 = scmp.ne.s32.totalorder %s146, %s147
    %p156 = scmp.eq.s32.totalorder %s31, 0
    %p157 = por %p155, %p156
    %p158 = scmp.ne.s32.totalorder %s146, %s147
    %p159 = scmp.eq.s32.totalorder %s32, 1
    %p160 = por %p158, %p159
    %p162 = scmp.ne.s32.totalorder %s147, %s161
    %p163 = scmp.eq.s32.totalorder %s32, 0
    %p164 = por %p162, %p163
    %s166 = sadd.s32 %s165, 1
    %p169 = scmp.eq.s32.totalorder %s26, 1
    %p170 = scmp.ne.s32.totalorder %s165, %s167
    %p171 = scmp.eq.s32.totalorder %s26, 0
    %p172 = por %p170, %p171
    %p173 = scmp.ne.s32.totalorder %s165, %s167
    %p174 = scmp.eq.s32.totalorder %s31, 1
    %p175 = por %p173, %p174
    %p176 = scmp.ne.s32.totalorder %s167, %s168
    %p177 = scmp.eq.s32.totalorder %s31, 0
    %p178 = por %p176, %p177
    %p179 = scmp.ne.s32.totalorder %s167, %s168
    %p180 = scmp.eq.s32.totalorder %s32, 1
    %p181 = por %p179, %p180
    %p183 = scmp.ne.s32.totalorder %s168, %s182
    %p184 = scmp.eq.s32.totalorder %s32, 0
    %p185 = por %p183, %p184
    %s187 = sadd.s32 %s186, 1
    %p190 = scmp.eq.s32.totalorder %s26, 1
    %p191 = scmp.ne.s32.totalorder %s186, %s188
    %p192 = scmp.eq.s32.totalorder %s26, 0
    %p193 = por %p191, %p192
    %p194 = scmp.ne.s32.totalorder %s186, %s188
    %p195 = scmp.eq.s32.totalorder %s31, 1
    %p196 = por %p194, %p195
    %p197 = scmp.ne.s32.totalorder %s188, %s189
    %p198 = scmp.eq.s32.totalorder %s31, 0
    %p199 = por %p197, %p198
    %p200 = scmp.ne.s32.totalorder %s188, %s189
    %p201 = scmp.eq.s32.totalorder %s32, 1
    %p202 = por %p200, %p201
    %p204 = scmp.ne.s32.totalorder %s189, %s203
    %p205 = scmp.eq.s32.totalorder %s32, 0
    %p206 = por %p204, %p205
    %s208 = sadd.s32 %s207, 1
    %p211 = scmp.eq.s32.totalorder %s26, 1
    %p212 = scmp.ne.s32.totalorder %s207, %s209
    %p213 = scmp.eq.s32.totalorder %s26, 0
    %p214 = por %p212, %p213
    %p215 = scmp.ne.s32.totalorder %s207, %s209
    %p216 = scmp.eq.s32.totalorder %s31, 1
    %p217 = por %p215, %p216
    %p218 = scmp.ne.s32.totalorder %s209, %s210
    %p219 = scmp.eq.s32.totalorder %s31, 0
    %p220 = por %p218, %p219
    %p221 = scmp.ne.s32.totalorder %s209, %s210
    %p222 = scmp.eq.s32.totalorder %s32, 1
    %p223 = por %p221, %p222
    %p225 = scmp.ne.s32.totalorder %s210, %s224
    %p226 = scmp.eq.s32.totalorder %s32, 0
    %p227 = por %p225, %p226
    %s229 = sadd.s32 %s228, 1
    %p232 = scmp.eq.s32.totalorder %s26, 1
    %p233 = scmp.ne.s32.totalorder %s228, %s230
    %p234 = scmp.eq.s32.totalorder %s26, 0
    %p235 = por %p233, %p234
    %p236 = scmp.ne.s32.totalorder %s228, %s230
    %p237 = scmp.eq.s32.totalorder %s31, 1
    %p238 = por %p236, %p237
    %p239 = scmp.ne.s32.totalorder %s230, %s231
    %p240 = scmp.eq.s32.totalorder %s31, 0
    %p241 = por %p239, %p240
    %p242 = scmp.ne.s32.totalorder %s230, %s231
    %p243 = scmp.eq.s32.totalorder %s32, 1
    %p244 = por %p242, %p243
    %p246 = scmp.ne.s32.totalorder %s231, %s245
    %p247 = scmp.eq.s32.totalorder %s32, 0
    %p248 = por %p246, %p247
    %s250 = sadd.s32 %s249, 1
    %p253 = scmp.eq.s32.totalorder %s26, 1
    %p254 = scmp.ne.s32.totalorder %s249, %s251
    %p255 = scmp.eq.s32.totalorder %s26, 0
    %p256 = por %p254, %p255
    %p257 = scmp.ne.s32.totalorder %s249, %s251
    %p258 = scmp.eq.s32.totalorder %s31, 1
    %p259 = por %p257, %p258
    %p260 = scmp.ne.s32.totalorder %s251, %s252
    %p261 = scmp.eq.s32.totalorder %s31, 0
    %p262 = por %p260, %p261
    %p263 = scmp.ne.s32.totalorder %s251, %s252
    %p264 = scmp.eq.s32.totalorder %s32, 1
    %p265 = por %p263, %p264
    %p267 = scmp.ne.s32.totalorder %s252, %s266
    %p268 = scmp.eq.s32.totalorder %s32, 0
    %p269 = por %p267, %p268
    %s271 = sadd.s32 %s270, 1
    %p274 = scmp.eq.s32.totalorder %s26, 1
    %p275 = scmp.ne.s32.totalorder %s270, %s272
    %p276 = scmp.eq.s32.totalorder %s26, 0
    %p277 = por %p275, %p276
    %p278 = scmp.ne.s32.totalorder %s270, %s272
    %p279 = scmp.eq.s32.totalorder %s31, 1
    %p280 = por %p278, %p279
    %p281 = scmp.ne.s32.totalorder %s272, %s273
    %p282 = scmp.eq.s32.totalorder %s31, 0
    %p283 = por %p281, %p282
    %p284 = scmp.ne.s32.totalorder %s272, %s273
    %p285 = scmp.eq.s32.totalorder %s32, 1
    %p286 = por %p284, %p285
    %p288 = scmp.ne.s32.totalorder %s273, %s287
    %p289 = scmp.eq.s32.totalorder %s32, 0
    %p290 = por %p288, %p289
    %s292 = sadd.s32 %s291, 1
    %p295 = scmp.eq.s32.totalorder %s26, 1
    %p296 = scmp.ne.s32.totalorder %s291, %s293
    %p297 = scmp.eq.s32.totalorder %s26, 0
    %p298 = por %p296, %p297
    %p299 = scmp.ne.s32.totalorder %s291, %s293
    %p300 = scmp.eq.s32.totalorder %s31, 1
    %p301 = por %p299, %p300
    %p302 = scmp.ne.s32.totalorder %s293, %s294
    %p303 = scmp.eq.s32.totalorder %s31, 0
    %p304 = por %p302, %p303
    %p305 = scmp.ne.s32.totalorder %s293, %s294
    %p306 = scmp.eq.s32.totalorder %s32, 1
    %p307 = por %p305, %p306
    %p309 = scmp.ne.s32.totalorder %s294, %s308
    %p310 = scmp.eq.s32.totalorder %s32, 0
    %p311 = por %p309, %p310
    %s313 = sadd.s32 %s312, 1
    %p316 = scmp.eq.s32.totalorder %s26, 1
    %p317 = scmp.ne.s32.totalorder %s312, %s314
    %p318 = scmp.eq.s32.totalorder %s26, 0
    %p319 = por %p317, %p318
    %p320 = scmp.ne.s32.totalorder %s312, %s314
    %p321 = scmp.eq.s32.totalorder %s31, 1
    %p322 = por %p320, %p321
    %p323 = scmp.ne.s32.totalorder %s314, %s315
    %p324 = scmp.eq.s32.totalorder %s31, 0
    %p325 = por %p323, %p324
    %p326 = scmp.ne.s32.totalorder %s314, %s315
    %p327 = scmp.eq.s32.totalorder %s32, 1
    %p328 = por %p326, %p327
    %p330 = scmp.ne.s32.totalorder %s315, %s329
    %p331 = scmp.eq.s32.totalorder %s32, 0
    %p332 = por %p330, %p331
    %s334 = sadd.s32 %s333, 1
    %p337 = scmp.eq.s32.totalorder %s26, 1
    %p338 = scmp.ne.s32.totalorder %s333, %s335
    %p339 = scmp.eq.s32.totalorder %s26, 0
    %p340 = por %p338, %p339
    %p341 = scmp.ne.s32.totalorder %s333, %s335
    %p342 = scmp.eq.s32.totalorder %s31, 1
    %p343 = por %p341, %p342
    %p344 = scmp.ne.s32.totalorder %s335, %s336
    %p345 = scmp.eq.s32.totalorder %s31, 0
    %p346 = por %p344, %p345
    %p347 = scmp.ne.s32.totalorder %s335, %s336
    %p348 = scmp.eq.s32.totalorder %s32, 1
    %p349 = por %p347, %p348
    %p351 = scmp.ne.s32.totalorder %s336, %s350
    %p352 = scmp.eq.s32.totalorder %s32, 0
    %p353 = por %p351, %p352
    %s355 = sadd.s32 %s354, 1
    %p358 = scmp.eq.s32.totalorder %s26, 1
    %p359 = scmp.ne.s32.totalorder %s354, %s356
    %p360 = scmp.eq.s32.totalorder %s26, 0
    %p361 = por %p359, %p360
    %p362 = scmp.ne.s32.totalorder %s354, %s356
    %p363 = scmp.eq.s32.totalorder %s31, 1
    %p364 = por %p362, %p363
    %p365 = scmp.ne.s32.totalorder %s356, %s357
    %p366 = scmp.eq.s32.totalorder %s31, 0
    %p367 = por %p365, %p366
    %p368 = scmp.ne.s32.totalorder %s356, %s357
    %p369 = scmp.eq.s32.totalorder %s32, 1
    %p370 = por %p368, %p369
    %p372 = scmp.ne.s32.totalorder %s357, %s371
    %p373 = scmp.eq.s32.totalorder %s32, 0
    %p374 = por %p372, %p373
    %s376 = sadd.s32 %s375, 1
    %p379 = scmp.eq.s32.totalorder %s26, 1
    %p380 = scmp.ne.s32.totalorder %s375, %s377
    %p381 = scmp.eq.s32.totalorder %s26, 0
    %p382 = por %p380, %p381
    %p383 = scmp.ne.s32.totalorder %s375, %s377
    %p384 = scmp.eq.s32.totalorder %s31, 1
    %p385 = por %p383, %p384
    %p386 = scmp.ne.s32.totalorder %s377, %s378
    %p387 = scmp.eq.s32.totalorder %s31, 0
    %p388 = por %p386, %p387
    %p389 = scmp.ne.s32.totalorder %s377, %s378
    %p390 = scmp.eq.s32.totalorder %s32, 1
    %p391 = por %p389, %p390
    %p393 = scmp.ne.s32.totalorder %s378, %s392
    %p394 = scmp.eq.s32.totalorder %s32, 0
    %p395 = por %p393, %p394
    %s397 = sadd.s32 %s396, 1
    %p400 = scmp.eq.s32.totalorder %s26, 1
    %p401 = scmp.ne.s32.totalorder %s396, %s398
    %p402 = scmp.eq.s32.totalorder %s26, 0
    %p403 = por %p401, %p402
    %p404 = scmp.ne.s32.totalorder %s396, %s398
    %p405 = scmp.eq.s32.totalorder %s31, 1
    %p406 = por %p404, %p405
    %p407 = scmp.ne.s32.totalorder %s398, %s399
    %p408 = scmp.eq.s32.totalorder %s31, 0
    %p409 = por %p407, %p408
    %p410 = scmp.ne.s32.totalorder %s398, %s399
    %p411 = scmp.eq.s32.totalorder %s32, 1
    %p412 = por %p410, %p411
    %p414 = scmp.ne.s32.totalorder %s399, %s413
    %p415 = scmp.eq.s32.totalorder %s32, 0
    %p416 = por %p414, %p415
    %s418 = sadd.s32 %s417, 1
    %p421 = scmp.eq.s32.totalorder %s26, 1
    %p422 = scmp.ne.s32.totalorder %s417, %s419
    %p423 = scmp.eq.s32.totalorder %s26, 0
    %p424 = por %p422, %p423
    %p425 = scmp.ne.s32.totalorder %s417, %s419
    %p426 = scmp.eq.s32.totalorder %s31, 1
    %p427 = por %p425, %p426
    %p428 = scmp.ne.s32.totalorder %s419, %s420
    %p429 = scmp.eq.s32.totalorder %s31, 0
    %p430 = por %p428, %p429
    %p431 = scmp.ne.s32.totalorder %s419, %s420
    %p432 = scmp.eq.s32.totalorder %s32, 1
    %p433 = por %p431, %p432
    %p435 = scmp.ne.s32.totalorder %s420, %s434
    %p436 = scmp.eq.s32.totalorder %s32, 0
    %p437 = por %p435, %p436
    %s439 = sadd.s32 %s438, 1
    %p442 = scmp.eq.s32.totalorder %s26, 1
    %p443 = scmp.ne.s32.totalorder %s438, %s440
    %p444 = scmp.eq.s32.totalorder %s26, 0
    %p445 = por %p443, %p444
    %p446 = scmp.ne.s32.totalorder %s438, %s440
    %p447 = scmp.eq.s32.totalorder %s31, 1
    %p448 = por %p446, %p447
    %p449 = scmp.ne.s32.totalorder %s440, %s441
    %p450 = scmp.eq.s32.totalorder %s31, 0
    %p451 = por %p449, %p450
    %p452 = scmp.ne.s32.totalorder %s440, %s441
    %p453 = scmp.eq.s32.totalorder %s32, 1
    %p454 = por %p452, %p453
    %p456 = scmp.ne.s32.totalorder %s441, %s455
    %p457 = scmp.eq.s32.totalorder %s32, 0
    %p458 = por %p456, %p457
    %s459 = ssub.s32 %s26, %s33
    %p460 = scmp.eq.s32.totalorder %s459, 0
    %s462 = sadd.s32 %s461, 1
    %s463 = scalar_select %p460, %s461, %s462
    %p466 = pneg %p460
    %p467 = scmp.eq.s32.totalorder %s26, 1
    %p468 = por %p466, %p467
    %p469 = scmp.ne.s32.totalorder %s461, %s464
    %p470 = scmp.eq.s32.totalorder %s26, 0
    %p471 = por %p469, %p470
    %p472 = scmp.ne.s32.totalorder %s461, %s464
    %p473 = scmp.eq.s32.totalorder %s31, 1
    %p474 = por %p472, %p473
    %p475 = scmp.ne.s32.totalorder %s464, %s465
    %p476 = scmp.eq.s32.totalorder %s31, 0
    %p477 = por %p475, %p476
    %p478 = scmp.ne.s32.totalorder %s464, %s465
    %p479 = scmp.eq.s32.totalorder %s32, 1
    %p480 = por %p478, %p479
    %p482 = scmp.ne.s32.totalorder %s465, %s481
    %p483 = scmp.eq.s32.totalorder %s32, 0
    %p484 = por %p482, %p483
    %p485 = scmp.le.s32.totalorder 1, %s26
    %p486 = scmp.lt.s32.totalorder %s26, 3
    %p487 = pnand %p485, %p486
    %p488 = pneg %p487
    // Predicated region
    $region9: #{efficient_attention_forward.1} parent=5 // pred_check
      _
    $region10: #{efficient_attention_forward.1} parent=5 // pred_check_branch
      %490 = sbr.rel (%p487) target = $region12
    $region11: #{efficient_attention_forward.1} parent=5 // pred_region
      %s491 = ssub.s32 %s26, 1
      // Predicated region
      $region13: #{efficient_attention_forward.1} parent=11 // pred_check
        %p492 = pneg %p73
      $region14: #{efficient_attention_forward.1} parent=11 // pred_check_branch
        %494 = sbr.rel (%p492) target = $region16
      $region15: #{efficient_attention_forward.1} parent=11 // pred_region
        _
      $region16: #{efficient_attention_forward.1} parent=11 // pred_fallthru
        _
      // Predicated region
      $region17: #{efficient_attention_forward.1} parent=11 // pred_check
        %p495 = pneg %p94
      $region18: #{efficient_attention_forward.1} parent=11 // pred_check_branch
        %497 = sbr.rel (%p495) target = $region20
      $region19: #{efficient_attention_forward.1} parent=11 // pred_region
        _
      $region20: #{efficient_attention_forward.1} parent=11 // pred_fallthru
        _
      // Predicated region
      $region21: #{efficient_attention_forward.1} parent=11 // pred_check
        %p498 = pneg %p115
      $region22: #{efficient_attention_forward.1} parent=11 // pred_check_branch
        %500 = sbr.rel (%p498) target = $region24
      $region23: #{efficient_attention_forward.1} parent=11 // pred_region
        _
      $region24: #{efficient_attention_forward.1} parent=11 // pred_fallthru
        _
      // Predicated region
      $region25: #{efficient_attention_forward.1} parent=11 // pred_check
        %p501 = pneg %p136
      $region26: #{efficient_attention_forward.1} parent=11 // pred_check_branch
        %503 = sbr.rel (%p501) target = $region28
      $region27: #{efficient_attention_forward.1} parent=11 // pred_region
        _
      $region28: #{efficient_attention_forward.1} parent=11 // pred_fallthru
        _
      // Predicated region
      $region29: #{efficient_attention_forward.1} parent=11 // pred_check
        %p504 = pneg %p157
      $region30: #{efficient_attention_forward.1} parent=11 // pred_check_branch
        %506 = sbr.rel (%p504) target = $region32
      $region31: #{efficient_attention_forward.1} parent=11 // pred_region
        _
      $region32: #{efficient_attention_forward.1} parent=11 // pred_fallthru
        _
      // Predicated region
      $region33: #{efficient_attention_forward.1} parent=11 // pred_check
        %p507 = pneg %p178
      $region34: #{efficient_attention_forward.1} parent=11 // pred_check_branch
        %509 = sbr.rel (%p507) target = $region36
      $region35: #{efficient_attention_forward.1} parent=11 // pred_region
        _
      $region36: #{efficient_attention_forward.1} parent=11 // pred_fallthru
        _
      // Predicated region
      $region37: #{efficient_attention_forward.1} parent=11 // pred_check
        %p510 = pneg %p199
      $region38: #{efficient_attention_forward.1} parent=11 // pred_check_branch
        %512 = sbr.rel (%p510) target = $region40
      $region39: #{efficient_attention_forward.1} parent=11 // pred_region
        _
      $region40: #{efficient_attention_forward.1} parent=11 // pred_fallthru
        _
      // Predicated region
      $region41: #{efficient_attention_forward.1} parent=11 // pred_check
        %p513 = pneg %p220
      $region42: #{efficient_attention_forward.1} parent=11 // pred_check_branch
        %515 = sbr.rel (%p513) target = $region44
      $region43: #{efficient_attention_forward.1} parent=11 // pred_region
        _
      $region44: #{efficient_attention_forward.1} parent=11 // pred_fallthru
        _
      // Predicated region
      $region45: #{efficient_attention_forward.1} parent=11 // pred_check
        %p516 = pneg %p241
      $region46: #{efficient_attention_forward.1} parent=11 // pred_check_branch
        %518 = sbr.rel (%p516) target = $region48
      $region47: #{efficient_attention_forward.1} parent=11 // pred_region
        _
      $region48: #{efficient_attention_forward.1} parent=11 // pred_fallthru
        _
      // Predicated region
      $region49: #{efficient_attention_forward.1} parent=11 // pred_check
        %p519 = pneg %p262
      $region50: #{efficient_attention_forward.1} parent=11 // pred_check_branch
        %521 = sbr.rel (%p519) target = $region52
      $region51: #{efficient_attention_forward.1} parent=11 // pred_region
        _
      $region52: #{efficient_attention_forward.1} parent=11 // pred_fallthru
        _
      // Predicated region
      $region53: #{efficient_attention_forward.1} parent=11 // pred_check
        %p522 = pneg %p283
      $region54: #{efficient_attention_forward.1} parent=11 // pred_check_branch
        %524 = sbr.rel (%p522) target = $region56
      $region55: #{efficient_attention_forward.1} parent=11 // pred_region
        _
      $region56: #{efficient_attention_forward.1} parent=11 // pred_fallthru
        _
      // Predicated region
      $region57: #{efficient_attention_forward.1} parent=11 // pred_check
        %p525 = pneg %p304
      $region58: #{efficient_attention_forward.1} parent=11 // pred_check_branch
        %527 = sbr.rel (%p525) target = $region60
      $region59: #{efficient_attention_forward.1} parent=11 // pred_region
        _
      $region60: #{efficient_attention_forward.1} parent=11 // pred_fallthru
        _
      // Predicated region
      $region61: #{efficient_attention_forward.1} parent=11 // pred_check
        %p528 = pneg %p325
      $region62: #{efficient_attention_forward.1} parent=11 // pred_check_branch
        %530 = sbr.rel (%p528) target = $region64
      $region63: #{efficient_attention_forward.1} parent=11 // pred_region
        _
      $region64: #{efficient_attention_forward.1} parent=11 // pred_fallthru
        _
      // Predicated region
      $region65: #{efficient_attention_forward.1} parent=11 // pred_check
        %p531 = pneg %p346
      $region66: #{efficient_attention_forward.1} parent=11 // pred_check_branch
        %533 = sbr.rel (%p531) target = $region68
      $region67: #{efficient_attention_forward.1} parent=11 // pred_region
        _
      $region68: #{efficient_attention_forward.1} parent=11 // pred_fallthru
        _
      // Predicated region
      $region69: #{efficient_attention_forward.1} parent=11 // pred_check
        %p534 = pneg %p367
      $region70: #{efficient_attention_forward.1} parent=11 // pred_check_branch
        %536 = sbr.rel (%p534) target = $region72
      $region71: #{efficient_attention_forward.1} parent=11 // pred_region
        _
      $region72: #{efficient_attention_forward.1} parent=11 // pred_fallthru
        _
      // Predicated region
      $region73: #{efficient_attention_forward.1} parent=11 // pred_check
        %p537 = pneg %p388
      $region74: #{efficient_attention_forward.1} parent=11 // pred_check_branch
        %539 = sbr.rel (%p537) target = $region76
      $region75: #{efficient_attention_forward.1} parent=11 // pred_region
        _
      $region76: #{efficient_attention_forward.1} parent=11 // pred_fallthru
        _
      // Predicated region
      $region77: #{efficient_attention_forward.1} parent=11 // pred_check
        %p540 = pneg %p409
      $region78: #{efficient_attention_forward.1} parent=11 // pred_check_branch
        %542 = sbr.rel (%p540) target = $region80
      $region79: #{efficient_attention_forward.1} parent=11 // pred_region
        _
      $region80: #{efficient_attention_forward.1} parent=11 // pred_fallthru
        _
      // Predicated region
      $region81: #{efficient_attention_forward.1} parent=11 // pred_check
        %p543 = pneg %p430
      $region82: #{efficient_attention_forward.1} parent=11 // pred_check_branch
        %545 = sbr.rel (%p543) target = $region84
      $region83: #{efficient_attention_forward.1} parent=11 // pred_region
        _
      $region84: #{efficient_attention_forward.1} parent=11 // pred_fallthru
        _
      // Predicated region
      $region85: #{efficient_attention_forward.1} parent=11 // pred_check
        %p546 = pneg %p451
      $region86: #{efficient_attention_forward.1} parent=11 // pred_check_branch
        %548 = sbr.rel (%p546) target = $region88
      $region87: #{efficient_attention_forward.1} parent=11 // pred_region
        _
      $region88: #{efficient_attention_forward.1} parent=11 // pred_fallthru
        _
    $region12: #{efficient_attention_forward.1} parent=5 // pred_fallthru
      _
    %p549 = scmp.lt.s32.totalorder %s26, 2
    // Predicated region
    $region89: #{efficient_attention_forward.1} parent=5 // pred_check
      %p550 = pneg %p549
    $region90: #{efficient_attention_forward.1} parent=5 // pred_check_branch
      %552 = sbr.rel (%p550) target = $region92
    $region91: #{efficient_attention_forward.1} parent=5 // pred_region
      // Predicated region
      $region93: #{efficient_attention_forward.1} parent=91 // pred_check
        %p553 = pneg %p46
      $region94: #{efficient_attention_forward.1} parent=91 // pred_check_branch
        %555 = sbr.rel (%p553) target = $region96
      $region95: #{efficient_attention_forward.1} parent=91 // pred_region
        %p556 = scmp.lt.s32.totalorder %s26, 1
        %s557 = scalar_select %p556, %s26, 1
        %s558 = smul.addr %s557, 4
        %s559 = smul.addr %s558, 8
        %s560 = scalar_lea.vmem %s0, %s559
      $region96: #{efficient_attention_forward.1} parent=91 // pred_fallthru
        _
    $region92: #{efficient_attention_forward.1} parent=5 // pred_fallthru
      _
    %p561 = scmp.le.s32.totalorder 1, %s26
    %p562 = scmp.lt.s32.totalorder %s26, 3
    %p563 = pnand %p561, %p562
    %p564 = pneg %p563
    // Predicated region
    $region97: #{efficient_attention_forward.1} parent=5 // pred_check
      _
    $region98: #{efficient_attention_forward.1} parent=5 // pred_check_branch
      %566 = sbr.rel (%p563) target = $region100
    $region99: #{efficient_attention_forward.1} parent=5 // pred_region
      %s567 = ssub.s32 %s26, 1
      %p568 = scmp.lt.s32.totalorder %s31, 1
      %s569 = scalar_select %p568, %s31, 1
      %s570 = smul.addr %s569, 4
      %s571 = smul.addr %s570, 8
      %s572 = scalar_lea.vmem %s0, %s571
      %p573 = pneg %p52
      %p574 = pneg %p49
      %p575 = pneg %p73
      %p576 = pneg %p70
      %p577 = pneg %p94
      %p578 = pneg %p91
      %p579 = pneg %p115
      %p580 = pneg %p112
      %p581 = pneg %p136
      %p582 = pneg %p133
      %p583 = pneg %p157
      %p584 = pneg %p154
      %p585 = pneg %p178
      %p586 = pneg %p175
      %p587 = pneg %p199
      %p588 = pneg %p196
      %p589 = pneg %p220
      %p590 = pneg %p217
      %p591 = pneg %p241
      %p592 = pneg %p238
      %p593 = pneg %p262
      %p594 = pneg %p259
      %p595 = pneg %p283
      %p596 = pneg %p280
      %p597 = pneg %p304
      %p598 = pneg %p301
      %p599 = pneg %p325
      %p600 = pneg %p322
      %p601 = pneg %p346
      %p602 = pneg %p343
      %p603 = pneg %p367
      %p604 = pneg %p364
      %p605 = pneg %p388
      %p606 = pneg %p385
      %p607 = pneg %p409
      %p608 = pneg %p406
      %p609 = pneg %p430
      %p610 = pneg %p427
      %p611 = pneg %p451
      %p612 = pneg %p448
      %p613 = pneg %p477
      %p614 = pneg %p474
      %p615 = scmp.lt.s32.totalorder %s31, 1
      %s616 = scalar_select %p615, %s31, 1
      %s617 = smul.addr %s616, 4
      %s618 = smul.addr %s617, 8
      %s619 = scalar_lea.vmem %s20, %s618
      %p620 = scmp.lt.s32.totalorder %s31, 1
      %s621 = scalar_select %p620, %s31, 1
      %s622 = smul.addr %s621, 4
      %s623 = smul.addr %s622, 8
      %s624 = scalar_lea.vmem %s0, %s623
      %p625 = scmp.lt.s32.totalorder %s31, 1
      %s626 = scalar_select %p625, %s31, 1
      %s627 = smul.addr %s626, 4
      %s628 = smul.addr %s627, 8
      %s629 = scalar_lea.vmem %s20, %s628
      %v631 = vld [vmem:[%s624] sm:$0xff]
      %v632 = vld [vmem:[%s624 + $0x8] sm:$0xff]
      %v633 = vld [vmem:[%s624 + $0x10] sm:$0xff]
      %v634 = vld [vmem:[%s624 + $0x18] sm:$0xff]
      %v635 = vld [vmem:[%s17] sm:$0xff]
      %v636 = vld [vmem:[%s17 + $0x8] sm:$0xff]
      %v637 = vld [vmem:[%s17 + $0x10] sm:$0xff]
      %v638 = vld [vmem:[%s17 + $0x18] sm:$0xff]
      %v639 = vld [vmem:[%s17 + $0x20] sm:$0xff]
      %v640 = vld [vmem:[%s17 + $0x28] sm:$0xff]
      %v641 = vld [vmem:[%s17 + $0x30] sm:$0xff]
      %v642 = vld [vmem:[%s17 + $0x38] sm:$0xff]
      %v643 = vld [vmem:[%s18] sm:$0xff]
      %v644 = vld [vmem:[%s18 + $0x8] sm:$0xff]
      %v645 = vld [vmem:[%s18 + $0x10] sm:$0xff]
      %v646 = vld [vmem:[%s18 + $0x18] sm:$0xff]
      %v647 = vld [vmem:[%s18 + $0x20] sm:$0xff]
      %v648 = vld [vmem:[%s18 + $0x28] sm:$0xff]
      %v649 = vld [vmem:[%s18 + $0x30] sm:$0xff]
      %v650 = vld [vmem:[%s18 + $0x38] sm:$0xff]
      %v651 = vld [vmem:[%s18 + $0x40] sm:$0xff]
      %v652 = vld [vmem:[%s18 + $0x48] sm:$0xff]
      %v653 = vld [vmem:[%s18 + $0x50] sm:$0xff]
      %v654 = vld [vmem:[%s18 + $0x58] sm:$0xff]
      %v655 = vld [vmem:[%s18 + $0x60] sm:$0x3]
      %v656 = vld [vmem:[%s18 + $0x68] sm:$0x3]
      %v657 = vld [vmem:[%s19] sm:$0xf]
      %v658 = vld [vmem:[%s19 + $0x4] sm:$0xf]
      %v659 = vld [vmem:[%s19 + $0x8] sm:$0xf]
      %v660 = vld [vmem:[%s19 + $0xc] sm:$0xf]
      %v661 = vld [vmem:[%s19 + $0x10] sm:$0xf]
      %v662 = vld [vmem:[%s19 + $0x14] sm:$0xf]
      %v663 = vld [vmem:[%s19 + $0x18] sm:$0xf]
      %v664 = vld [vmem:[%s19 + $0x1c] sm:$0xf]
      %v665 = vld [vmem:[%s19 + $0x20] sm:$0xf]
      %v666 = vld [vmem:[%s19 + $0x24] sm:$0xf]
      %v667 = vld [vmem:[%s19 + $0x28] sm:$0xf]
      %v668 = vld [vmem:[%s19 + $0x2c] sm:$0xf]
      %v669 = vld [vmem:[%s19 + $0x30] sm:$0xf]
      %v670 = vld [vmem:[%s19 + $0x34] sm:$0xf]
      %v671 = vld [vmem:[%s19 + $0x38] sm:$0xf]
      %v672 = vld [vmem:[%s19 + $0x3c] sm:$0xf]
      %v673 = vld [vmem:[%s19 + $0x40] sm:$0xf]
      %v674 = vld [vmem:[%s19 + $0x44] sm:$0xf]
      %v675 = vld [vmem:[%s19 + $0x48] sm:$0xf]
      %v676 = vld [vmem:[%s19 + $0x4c] sm:$0xf]
      %v677 = vld [vmem:[%s19 + $0x50] sm:$0xf]
      %v678 = vld [vmem:[%s19 + $0x54] sm:$0xf]
      %v679 = vld [vmem:[%s19 + $0x58] sm:$0xf]
      %v680 = vld [vmem:[%s19 + $0x5c] sm:$0xf]
      %v681 = vld [vmem:[%s19 + $0x60] sm:$0xf]
      %vm682 = vcmask 130048
      %v683 = vsel %vm682, %v631, 0.0
      %684 = vadd.xlane.f32.xlu0 %v683
      %v685 = vpop.xlane.xlu0 %684
      %v686 = vsel %vm682, %v632, 0.0
      %687 = vadd.xlane.f32.xlu0 %v686
      %v688 = vpop.xlane.xlu0 %687
      %v689 = vsel %vm682, %v633, 0.0
      %690 = vadd.xlane.f32.xlu0 %v689
      %v691 = vpop.xlane.xlu0 %690
      %v692 = vsel %vm682, %v634, 0.0
      %693 = vadd.xlane.f32.xlu0 %v692
      %v694 = vpop.xlane.xlu0 %693
      %v695 = vrcp.pop 16.0
      %v696 = vmul.f32 %v685, %v695
      %v697 = vmul.f32 %v688, %v695
      %v698 = vmul.f32 %v691, %v695
      %v699 = vmul.f32 %v694, %v695
      %v700 = vsub.f32 %v631, %v696
      %v701 = vsub.f32 %v632, %v697
      %v702 = vsub.f32 %v633, %v698
      %v703 = vsub.f32 %v634, %v699
      %v704 = vmul.f32 %v700, %v700
      %v705 = vmul.f32 %v701, %v701
      %v706 = vmul.f32 %v702, %v702
      %v707 = vmul.f32 %v703, %v703
      %v708 = vsel %vm682, %v704, 0.0
      %709 = vadd.xlane.f32.xlu0 %v708
      %v710 = vpop.xlane.xlu0 %709
      %v711 = vsel %vm682, %v705, 0.0
      %712 = vadd.xlane.f32.xlu0 %v711
      %v713 = vpop.xlane.xlu0 %712
      %v714 = vsel %vm682, %v706, 0.0
      %715 = vadd.xlane.f32.xlu0 %v714
      %v716 = vpop.xlane.xlu0 %715
      %v717 = vsel %vm682, %v707, 0.0
      %718 = vadd.xlane.f32.xlu0 %v717
      %v719 = vpop.xlane.xlu0 %718
      %v720 = vmul.f32 %v710, %v695
      %v721 = vmul.f32 %v713, %v695
      %v722 = vmul.f32 %v716, %v695
      %v723 = vmul.f32 %v719, %v695
      %v724 = vadd.f32 %v720, 0.001
      %v725 = vadd.f32 %v721, 0.001
      %v726 = vadd.f32 %v722, 0.001
      %v727 = vadd.f32 %v723, 0.001
      %v728 = vrsqrt.pop %v724
      %v729 = vrsqrt.pop %v725
      %v730 = vrsqrt.pop %v726
      %v731 = vrsqrt.pop %v727
      %v732 = vmul.f32 %v700, %v728
      %v733 = vmul.f32 %v701, %v729
      %v734 = vmul.f32 %v702, %v730
      %v735 = vmul.f32 %v703, %v731
      %v736 = vmul.f32 %v732, 0.999995
      %v737 = vmul.f32 %v733, 0.999995
      %v738 = vmul.f32 %v734, 0.999995
      %v739 = vmul.f32 %v735, 0.999995
      %v740 = vmax.f32 %v736, 0.0
      %v741 = vmax.f32 %v737, 0.0
      %v742 = vmax.f32 %v738, 0.0
      %v743 = vmax.f32 %v739, 0.0
      %v744 = vpack.c.bf16 %v741, %v740
      %v745 = vpack.c.bf16 %v743, %v742
      %v746 = vld [vmem:[%s1] sm:$0xf]
      %v747 = vld [vmem:[%s1 + $0x4] sm:$0xf]
      %v748 = vld [vmem:[%s1 + $0x8] sm:$0xf]
      %v749 = vld [vmem:[%s1 + $0xc] sm:$0xf]
      %v750 = vld [vmem:[%s1 + $0x10] sm:$0xf]
      %v751 = vld [vmem:[%s1 + $0x14] sm:$0xf]
      %v752 = vld [vmem:[%s1 + $0x18] sm:$0x1]
      %v753 = vld [vmem:[%s2] sm:$0xff]
      %v754 = vld [vmem:[%s2 + $0x8] sm:$0xff]
      %v755 = vld [vmem:[%s2 + $0x10] sm:$0xff]
      %v756 = vld [vmem:[%s2 + $0x18] sm:$0xff]
      %v757 = vld [vmem:[%s2 + $0x20] sm:$0xff]
      %v758 = vld [vmem:[%s2 + $0x28] sm:$0xff]
      %v759 = vld [vmem:[%s2 + $0x30] sm:$0x3]
      %761 = vset.pattern.permute.xlu0 0
      %762 = vperm.xlu0 %761, %v753
      %v763 = vpop.permute.xlu0 %762
      %766 = vset.pattern.permute.xlu0 0
      %767 = vperm.xlu0 %766, %v754
      %v768 = vpop.permute.xlu0 %767
      %771 = vset.pattern.permute.xlu0 0
      %772 = vperm.xlu0 %771, %v755
      %v773 = vpop.permute.xlu0 %772
      %776 = vset.pattern.permute.xlu0 0
      %777 = vperm.xlu0 %776, %v756
      %v778 = vpop.permute.xlu0 %777
      %781 = vset.pattern.permute.xlu0 0
      %782 = vperm.xlu0 %781, %v757
      %v783 = vpop.permute.xlu0 %782
      %786 = vset.pattern.permute.xlu0 0
      %787 = vperm.xlu0 %786, %v758
      %v788 = vpop.permute.xlu0 %787
      %791 = vset.pattern.permute.xlu0 0
      %792 = vperm.xlu0 %791, %v759
      %v793 = vpop.permute.xlu0 %792
      %v802 = vunpack.c.l.b16 %v746
      %v803 = vunpack.c.l.b16 %v747
      %v804 = vunpack.c.l.b16 %v748
      %v805 = vunpack.c.l.b16 %v749
      %v806 = vunpack.c.l.b16 %v750
      %v807 = vunpack.c.l.b16 %v751
      %v808 = vunpack.c.l.b16 %v752
      %v809 = vpack.c.b16 %v803, %v802
      %v810 = vpack.c.b16 %v805, %v804
      %v811 = vpack.c.b16 %v807, %v806
      %v812 = vpack.c.b16 %v808, %v808
      %vm813 = vcmask 261120
      %v815 = vsel %vm813, %v809, 0
      %v818 = vsel %vm813, %v810, 0
      %v821 = vsel %vm813, %v811, 0
      %v824 = vsel %vm813, %v812, 0
      %826 = vmatprep.subr.bf16.mxu0 0
      %827 = vmatpush1.bf16.msra.mxu0 %v744
      %828 = vmatprep.subr.bf16.mxu0 0
      %829 = vmatpush1.bf16.msra.mxu0 %v745
      %830 = vmatprep.subr.bf16.mxu0 0
      %831 = vmatpush1.bf16.msra.mxu0 0
      %832 = vmatprep.subr.bf16.mxu0 0
      %833 = vmatpush1.bf16.msra.mxu0 0
      %834 = vmatprep.subr.bf16.mxu0 0
      %835 = vmatpush1.bf16.msra.mxu0 0
      %836 = vmatprep.subr.bf16.mxu0 0
      %837 = vmatpush1.bf16.msra.mxu0 0
      %838 = vmatprep.subr.bf16.mxu0 0
      %839 = vmatpush1.bf16.msra.mxu0 0
      %840 = vmatprep.subr.bf16.mxu0 0
      %841 = vmatpush1.bf16.msra.mxu0 0
      %842 = vmatprep.subr.bf16.mxu0 0
      %843 = vmatpush1.bf16.msra.mxu0 0
      %844 = vmatprep.subr.bf16.mxu0 0
      %845 = vmatpush1.bf16.msra.mxu0 0
      %846 = vmatprep.subr.bf16.mxu0 0
      %847 = vmatpush1.bf16.msra.mxu0 0
      %848 = vmatprep.subr.bf16.mxu0 0
      %849 = vmatpush1.bf16.msra.mxu0 0
      %850 = vmatprep.subr.bf16.mxu0 0
      %851 = vmatpush1.bf16.msra.mxu0 0
      %852 = vmatprep.subr.bf16.mxu0 0
      %853 = vmatpush1.bf16.msra.mxu0 0
      %854 = vmatprep.subr.bf16.mxu0 0
      %855 = vmatpush1.bf16.msra.mxu0 0
      %856 = vmatprep.subr.bf16.mxu0 0
      %857 = vmatpush1.bf16.msra.mxu0 0
      %858 = vmatprep.mubr.bf16.mxu0 0
      %859 = vmatmul.mubr.bf16.gmra.mrb[0].mxu0 %v815
      %v860 = vpop.f32.mrb[0].mxu0
      %v861 = vadd.f32 %v763, %v860
      %v862 = vpop.f32.mrb[0].mxu0
      %v863 = vpop.f32.mrb[0].mxu0
      %v864 = vadd.f32 %v768, %v863
      %v865 = vpop.f32.mrb[0].mxu0
      %866 = vmatprep.mubr.bf16.mxu0 0
      %867 = vmatmul.mubr.bf16.gmra.mrb[0].mxu0 %v818
      %v868 = vpop.f32.mrb[0].mxu0
      %v869 = vadd.f32 %v773, %v868
      %v870 = vpop.f32.mrb[0].mxu0
      %v871 = vpop.f32.mrb[0].mxu0
      %v872 = vadd.f32 %v778, %v871
      %v873 = vpop.f32.mrb[0].mxu0
      %874 = vmatprep.mubr.bf16.mxu0 0
      %875 = vmatmul.mubr.bf16.gmra.mrb[0].mxu0 %v821
      %v876 = vpop.f32.mrb[0].mxu0
      %v877 = vadd.f32 %v783, %v876
      %v878 = vpop.f32.mrb[0].mxu0
      %v879 = vpop.f32.mrb[0].mxu0
      %v880 = vadd.f32 %v788, %v879
      %v881 = vpop.f32.mrb[0].mxu0
      %882 = vmatprep.mubr.bf16.mxu0 0
      %883 = vmatmul.mubr.bf16.gmra.mrb[0].mxu0 %v824
      %v884 = vpop.f32.mrb[0].mxu0
      %v885 = vadd.f32 %v793, %v884
      %v886 = vpop.f32.mrb[0].mxu0
      %v887 = vpop.f32.mrb[0].mxu0
      %v888 = vpop.f32.mrb[0].mxu0
      %889 = vdwg.mxu0
      %v890 = vsel %vm682, %v861, -inf
      %891 = vmax.xlane.f32.xlu0 %v890
      %v892 = vpop.xlane.xlu0 %891
      %v893 = vsel %vm682, %v864, -inf
      %894 = vmax.xlane.f32.xlu0 %v893
      %v895 = vpop.xlane.xlu0 %894
      %v896 = vsel %vm682, %v869, -inf
      %897 = vmax.xlane.f32.xlu0 %v896
      %v898 = vpop.xlane.xlu0 %897
      %v899 = vsel %vm682, %v872, -inf
      %900 = vmax.xlane.f32.xlu0 %v899
      %v901 = vpop.xlane.xlu0 %900
      %v902 = vsel %vm682, %v877, -inf
      %903 = vmax.xlane.f32.xlu0 %v902
      %v904 = vpop.xlane.xlu0 %903
      %v905 = vsel %vm682, %v880, -inf
      %906 = vmax.xlane.f32.xlu0 %v905
      %v907 = vpop.xlane.xlu0 %906
      %vm908 = vcmask 123904
      %v909 = vsel %vm908, %v885, -inf
      %910 = vmax.xlane.f32.xlu0 %v909
      %v911 = vpop.xlane.xlu0 %910
      %v912 = vsub.f32 %v861, %v892
      %v913 = vsub.f32 %v864, %v895
      %v914 = vsub.f32 %v869, %v898
      %v915 = vsub.f32 %v872, %v901
      %v916 = vsub.f32 %v877, %v904
      %v917 = vsub.f32 %v880, %v907
      %v918 = vsub.f32 %v885, %v911
      %v919 = vmul.f32 %v912, 1.442695
      %v920 = vpow.pop %v919
      %v921 = vmul.f32 %v913, 1.442695
      %v922 = vpow.pop %v921
      %v923 = vmul.f32 %v914, 1.442695
      %v924 = vpow.pop %v923
      %v925 = vmul.f32 %v915, 1.442695
      %v926 = vpow.pop %v925
      %v927 = vmul.f32 %v916, 1.442695
      %v928 = vpow.pop %v927
      %v929 = vmul.f32 %v917, 1.442695
      %v930 = vpow.pop %v929
      %v931 = vmul.f32 %v918, 1.442695
      %v932 = vpow.pop %v931
      %v933 = vsel %vm682, %v920, 0.0
      %934 = vadd.xlane.f32.xlu0 %v933
      %v935 = vpop.xlane.xlu0 %934
      %v936 = vsel %vm682, %v922, 0.0
      %937 = vadd.xlane.f32.xlu0 %v936
      %v938 = vpop.xlane.xlu0 %937
      %v939 = vsel %vm682, %v924, 0.0
      %940 = vadd.xlane.f32.xlu0 %v939
      %v941 = vpop.xlane.xlu0 %940
      %v942 = vsel %vm682, %v926, 0.0
      %943 = vadd.xlane.f32.xlu0 %v942
      %v944 = vpop.xlane.xlu0 %943
      %v945 = vsel %vm682, %v928, 0.0
      %946 = vadd.xlane.f32.xlu0 %v945
      %v947 = vpop.xlane.xlu0 %946
      %v948 = vsel %vm682, %v930, 0.0
      %949 = vadd.xlane.f32.xlu0 %v948
      %v950 = vpop.xlane.xlu0 %949
      %v951 = vsel %vm908, %v932, 0.0
      %952 = vadd.xlane.f32.xlu0 %v951
      %v953 = vpop.xlane.xlu0 %952
      %v954 = vrcp.pop %v935
      %v955 = vmul.f32 %v920, %v954
      %v956 = vrcp.pop %v938
      %v957 = vmul.f32 %v922, %v956
      %v958 = vrcp.pop %v941
      %v959 = vmul.f32 %v924, %v958
      %v960 = vrcp.pop %v944
      %v961 = vmul.f32 %v926, %v960
      %v962 = vrcp.pop %v947
      %v963 = vmul.f32 %v928, %v962
      %v964 = vrcp.pop %v950
      %v965 = vmul.f32 %v930, %v964
      %v966 = vrcp.pop %v953
      %v967 = vmul.f32 %v932, %v966
      %v968 = vld [vmem:[%s3] sm:$0xf]
      %v969 = vld [vmem:[%s3 + $0x4] sm:$0xf]
      %v970 = vld [vmem:[%s3 + $0x8] sm:$0xf]
      %v971 = vld [vmem:[%s3 + $0xc] sm:$0xf]
      %v972 = vld [vmem:[%s3 + $0x10] sm:$0xf]
      %v973 = vld [vmem:[%s3 + $0x14] sm:$0xf]
      %v974 = vld [vmem:[%s3 + $0x18] sm:$0x1]
      %v975 = vld [vmem:[%s4] sm:$0xff]
      %v976 = vld [vmem:[%s4 + $0x8] sm:$0xff]
      %v977 = vld [vmem:[%s4 + $0x10] sm:$0xff]
      %v978 = vld [vmem:[%s4 + $0x18] sm:$0xff]
      %v979 = vld [vmem:[%s4 + $0x20] sm:$0xff]
      %v980 = vld [vmem:[%s4 + $0x28] sm:$0xff]
      %v981 = vld [vmem:[%s4 + $0x30] sm:$0x3]
      %983 = vset.pattern.permute.xlu0 0
      %984 = vperm.xlu0 %983, %v975
      %v985 = vpop.permute.xlu0 %984
      %988 = vset.pattern.permute.xlu0 0
      %989 = vperm.xlu0 %988, %v976
      %v990 = vpop.permute.xlu0 %989
      %993 = vset.pattern.permute.xlu0 0
      %994 = vperm.xlu0 %993, %v977
      %v995 = vpop.permute.xlu0 %994
      %998 = vset.pattern.permute.xlu0 0
      %999 = vperm.xlu0 %998, %v978
      %v1000 = vpop.permute.xlu0 %999
      %1003 = vset.pattern.permute.xlu0 0
      %1004 = vperm.xlu0 %1003, %v979
      %v1005 = vpop.permute.xlu0 %1004
      %1008 = vset.pattern.permute.xlu0 0
      %1009 = vperm.xlu0 %1008, %v980
      %v1010 = vpop.permute.xlu0 %1009
      %1013 = vset.pattern.permute.xlu0 0
      %1014 = vperm.xlu0 %1013, %v981
      %v1015 = vpop.permute.xlu0 %1014
      %v1024 = vunpack.c.l.b16 %v968
      %v1025 = vunpack.c.l.b16 %v969
      %v1026 = vunpack.c.l.b16 %v970
      %v1027 = vunpack.c.l.b16 %v971
      %v1028 = vunpack.c.l.b16 %v972
      %v1029 = vunpack.c.l.b16 %v973
      %v1030 = vunpack.c.l.b16 %v974
      %v1031 = vpack.c.b16 %v1025, %v1024
      %v1032 = vpack.c.b16 %v1027, %v1026
      %v1033 = vpack.c.b16 %v1029, %v1028
      %v1034 = vpack.c.b16 %v1030, %v1030
      %v1036 = vsel %vm813, %v1031, 0
      %v1039 = vsel %vm813, %v1032, 0
      %v1042 = vsel %vm813, %v1033, 0
      %v1045 = vsel %vm813, %v1034, 0
      %1047 = vmatprep.subr.bf16.mxu0 0
      %1048 = vmatpush1.bf16.msra.mxu0 %v744
      %1049 = vmatprep.subr.bf16.mxu0 0
      %1050 = vmatpush1.bf16.msra.mxu0 %v745
      %1051 = vmatprep.subr.bf16.mxu0 0
      %1052 = vmatpush1.bf16.msra.mxu0 0
      %1053 = vmatprep.subr.bf16.mxu0 0
      %1054 = vmatpush1.bf16.msra.mxu0 0
      %1055 = vmatprep.subr.bf16.mxu0 0
      %1056 = vmatpush1.bf16.msra.mxu0 0
      %1057 = vmatprep.subr.bf16.mxu0 0
      %1058 = vmatpush1.bf16.msra.mxu0 0
      %1059 = vmatprep.subr.bf16.mxu0 0
      %1060 = vmatpush1.bf16.msra.mxu0 0
      %1061 = vmatprep.subr.bf16.mxu0 0
      %1062 = vmatpush1.bf16.msra.mxu0 0
      %1063 = vmatprep.subr.bf16.mxu0 0
      %1064 = vmatpush1.bf16.msra.mxu0 0
      %1065 = vmatprep.subr.bf16.mxu0 0
      %1066 = vmatpush1.bf16.msra.mxu0 0
      %1067 = vmatprep.subr.bf16.mxu0 0
      %1068 = vmatpush1.bf16.msra.mxu0 0
      %1069 = vmatprep.subr.bf16.mxu0 0
      %1070 = vmatpush1.bf16.msra.mxu0 0
      %1071 = vmatprep.subr.bf16.mxu0 0
      %1072 = vmatpush1.bf16.msra.mxu0 0
      %1073 = vmatprep.subr.bf16.mxu0 0
      %1074 = vmatpush1.bf16.msra.mxu0 0
      %1075 = vmatprep.subr.bf16.mxu0 0
      %1076 = vmatpush1.bf16.msra.mxu0 0
      %1077 = vmatprep.subr.bf16.mxu0 0
      %1078 = vmatpush1.bf16.msra.mxu0 0
      %1079 = vmatprep.mubr.bf16.mxu0 0
      %1080 = vmatmul.mubr.bf16.gmra.mrb[0].mxu0 %v1036
      %v1081 = vpop.f32.mrb[0].mxu0
      %v1082 = vadd.f32 %v985, %v1081
      %v1083 = vpop.f32.mrb[0].mxu0
      %v1084 = vpop.f32.mrb[0].mxu0
      %v1085 = vadd.f32 %v990, %v1084
      %v1086 = vpop.f32.mrb[0].mxu0
      %1087 = vmatprep.mubr.bf16.mxu0 0
      %1088 = vmatmul.mubr.bf16.gmra.mrb[0].mxu0 %v1039
      %v1089 = vpop.f32.mrb[0].mxu0
      %v1090 = vadd.f32 %v995, %v1089
      %v1091 = vpop.f32.mrb[0].mxu0
      %v1092 = vpop.f32.mrb[0].mxu0
      %v1093 = vadd.f32 %v1000, %v1092
      %v1094 = vpop.f32.mrb[0].mxu0
      %1095 = vmatprep.mubr.bf16.mxu0 0
      %1096 = vmatmul.mubr.bf16.gmra.mrb[0].mxu0 %v1042
      %v1097 = vpop.f32.mrb[0].mxu0
      %v1098 = vadd.f32 %v1005, %v1097
      %v1099 = vpop.f32.mrb[0].mxu0
      %v1100 = vpop.f32.mrb[0].mxu0
      %v1101 = vadd.f32 %v1010, %v1100
      %v1102 = vpop.f32.mrb[0].mxu0
      %1103 = vmatprep.mubr.bf16.mxu0 0
      %1104 = vmatmul.mubr.bf16.gmra.mrb[0].mxu0 %v1045
      %v1105 = vpop.f32.mrb[0].mxu0
      %v1106 = vadd.f32 %v1015, %v1105
      %v1107 = vpop.f32.mrb[0].mxu0
      %v1108 = vpop.f32.mrb[0].mxu0
      %v1109 = vpop.f32.mrb[0].mxu0
      %1110 = vdwg.mxu0
      %v1111 = vsel %vm682, %v1082, -inf
      %v1112 = vsel %vm682, %v1085, -inf
      %v1113 = vsel %vm682, %v1090, -inf
      %v1114 = vsel %vm682, %v1093, -inf
      %v1115 = vsel %vm682, %v1098, -inf
      %v1116 = vmax.f32 %v1111, %v1115
      %v1117 = vsel %vm682, %v1101, -inf
      %v1118 = vmax.f32 %v1112, %v1117
      %v1119 = vsel %vm908, %v1106, -inf
      %v1120 = vmax.f32 %v1113, %v1119
      %v1121 = vmax.f32 %v1116, %v1118
      %v1122 = vmax.f32 %v1120, %v1114
      %v1123 = vmax.f32 %v1121, %v1122
      %v1124 = vrot.slane %v1123, 4
      %v1125 = vmax.f32 %v1123, %v1124
      %v1126 = vrot.slane %v1125, 2
      %v1127 = vmax.f32 %v1125, %v1126
      %v1128 = vrot.slane %v1127, 1
      %v1129 = vmax.f32 %v1127, %v1128
      %v1130 = vsub.f32 %v1082, %v1129
      %v1131 = vsub.f32 %v1085, %v1129
      %v1132 = vsub.f32 %v1090, %v1129
      %v1133 = vsub.f32 %v1093, %v1129
      %v1134 = vsub.f32 %v1098, %v1129
      %v1135 = vsub.f32 %v1101, %v1129
      %v1136 = vsub.f32 %v1106, %v1129
      %v1137 = vmul.f32 %v1130, 1.442695
      %v1138 = vpow.pop %v1137
      %v1139 = vmul.f32 %v1131, 1.442695
      %v1140 = vpow.pop %v1139
      %v1141 = vmul.f32 %v1132, 1.442695
      %v1142 = vpow.pop %v1141
      %v1143 = vmul.f32 %v1133, 1.442695
      %v1144 = vpow.pop %v1143
      %v1145 = vmul.f32 %v1134, 1.442695
      %v1146 = vpow.pop %v1145
      %v1147 = vmul.f32 %v1135, 1.442695
      %v1148 = vpow.pop %v1147
      %v1149 = vmul.f32 %v1136, 1.442695
      %v1150 = vpow.pop %v1149
      %v1151 = vsel %vm682, %v1138, 0.0
      %v1152 = vsel %vm682, %v1140, 0.0
      %v1153 = vadd.f32 %v1151, %v1152
      %v1154 = vsel %vm682, %v1142, 0.0
      %v1155 = vadd.f32 %v1153, %v1154
      %v1156 = vsel %vm682, %v1144, 0.0
      %v1157 = vadd.f32 %v1155, %v1156
      %v1158 = vsel %vm682, %v1146, 0.0
      %v1159 = vadd.f32 %v1157, %v1158
      %v1160 = vsel %vm682, %v1148, 0.0
      %v1161 = vadd.f32 %v1159, %v1160
      %v1162 = vsel %vm908, %v1150, 0.0
      %v1163 = vadd.f32 %v1161, %v1162
      %v1164 = vrot.slane %v1163, 4
      %v1165 = vadd.f32 %v1163, %v1164
      %v1166 = vrot.slane %v1165, 2
      %v1167 = vadd.f32 %v1165, %v1166
      %v1168 = vrot.slane %v1167, 1
      %v1169 = vadd.f32 %v1167, %v1168
      %v1170 = vrcp.pop %v1169
      %v1171 = vmul.f32 %v1138, %v1170
      %v1172 = vmul.f32 %v1140, %v1170
      %v1173 = vmul.f32 %v1142, %v1170
      %v1174 = vmul.f32 %v1144, %v1170
      %v1175 = vmul.f32 %v1146, %v1170
      %v1176 = vmul.f32 %v1148, %v1170
      %v1177 = vmul.f32 %v1150, %v1170
      %v1178 = vpack.c.bf16 %v632, %v631
      %v1179 = vpack.c.bf16 %v634, %v633
      %v1180 = vpack.c.bf16 %v957, %v955
      %v1181 = vpack.c.bf16 %v961, %v959
      %v1182 = vpack.c.bf16 %v965, %v963
      %v1183 = vpack.c.bf16 %v967, %v967
      %v1185 = vsel %vm682, %v1178, 0
      %v1188 = vsel %vm682, %v1179, 0
      %v1191 = vsel %vm682, %v1180, 0
      %v1194 = vsel %vm682, %v1181, 0
      %v1197 = vsel %vm682, %v1182, 0
      %v1200 = vsel %vm682, %v1183, 0
      %1202 = vmatprep.subr.bf16.mxu0 0
      %1203 = vmatpush1.bf16.xpose.msra.mxu0 %v1191
      %1204 = vmatprep.subr.bf16.mxu0 0
      %1205 = vmatpush1.bf16.xpose.msra.mxu0 %v1194
      %1206 = vmatprep.subr.bf16.mxu0 0
      %1207 = vmatpush1.bf16.xpose.msra.mxu0 %v1197
      %1208 = vmatprep.subr.bf16.mxu0 0
      %1209 = vmatpush1.bf16.xpose.msra.mxu0 %v1200
      %1210 = vmatprep.subr.bf16.mxu0 0
      %1211 = vmatpush1.bf16.xpose.msra.mxu0 0
      %1212 = vmatprep.subr.bf16.mxu0 0
      %1213 = vmatpush1.bf16.xpose.msra.mxu0 0
      %1214 = vmatprep.subr.bf16.mxu0 0
      %1215 = vmatpush1.bf16.xpose.msra.mxu0 0
      %1216 = vmatprep.subr.bf16.mxu0 0
      %1217 = vmatpush1.bf16.xpose.msra.mxu0 0
      %1218 = vmatprep.subr.bf16.mxu0 0
      %1219 = vmatpush1.bf16.xpose.msra.mxu0 0
      %1220 = vmatprep.subr.bf16.mxu0 0
      %1221 = vmatpush1.bf16.xpose.msra.mxu0 0
      %1222 = vmatprep.subr.bf16.mxu0 0
      %1223 = vmatpush1.bf16.xpose.msra.mxu0 0
      %1224 = vmatprep.subr.bf16.mxu0 0
      %1225 = vmatpush1.bf16.xpose.msra.mxu0 0
      %1226 = vmatprep.subr.bf16.mxu0 0
      %1227 = vmatpush1.bf16.xpose.msra.mxu0 0
      %1228 = vmatprep.subr.bf16.mxu0 0
      %1229 = vmatpush1.bf16.xpose.msra.mxu0 0
      %1230 = vmatprep.subr.bf16.mxu0 0
      %1231 = vmatpush1.bf16.xpose.msra.mxu0 0
      %1232 = vmatprep.subr.bf16.mxu0 0
      %1233 = vmatpush1.bf16.xpose.msra.mxu0 0
      %1234 = vmatprep.mubr.bf16.mxu0 0
      %1235 = vmatmul.mubr.bf16.gmra.mrb[0].mxu0 %v1185
      %v1236 = vpop.f32.mrb[0].mxu0
      %v1237 = vadd.f32 0.0, %v1236
      %v1238 = vpop.f32.mrb[0].mxu0
      %v1239 = vpop.f32.mrb[0].mxu0
      %v1240 = vadd.f32 0.0, %v1239
      %v1241 = vpop.f32.mrb[0].mxu0
      %1242 = vmatprep.mubr.bf16.mxu0 0
      %1243 = vmatmul.mubr.bf16.gmra.mrb[0].mxu0 %v1188
      %v1244 = vpop.f32.mrb[0].mxu0
      %v1245 = vadd.f32 0.0, %v1244
      %v1246 = vpop.f32.mrb[0].mxu0
      %v1247 = vpop.f32.mrb[0].mxu0
      %v1248 = vadd.f32 0.0, %v1247
      %v1249 = vpop.f32.mrb[0].mxu0
      %1250 = vdwg.mxu0
      %v1251 = vld [vmem:[%s5] sm:$0xf]
      %v1252 = vld [vmem:[%s5 + $0x4] sm:$0xf]
      %v1253 = vld [vmem:[%s5 + $0x8] sm:$0xf]
      %v1254 = vld [vmem:[%s5 + $0xc] sm:$0xf]
      %v1255 = vld [vmem:[%s5 + $0x10] sm:$0xf]
      %v1256 = vld [vmem:[%s5 + $0x14] sm:$0xf]
      %v1257 = vld [vmem:[%s5 + $0x18] sm:$0xf]
      %v1258 = vld [vmem:[%s5 + $0x1c] sm:$0xf]
      %v1259 = vld [vmem:[%s5 + $0x20] sm:$0xf]
      %v1260 = vld [vmem:[%s5 + $0x24] sm:$0xf]
      %v1261 = vld [vmem:[%s5 + $0x28] sm:$0xf]
      %v1262 = vld [vmem:[%s5 + $0x2c] sm:$0xf]
      %v1263 = vld [vmem:[%s5 + $0x30] sm:$0xf]
      %v1264 = vld [vmem:[%s5 + $0x34] sm:$0xf]
      %v1265 = vld [vmem:[%s5 + $0x38] sm:$0xf]
      %v1266 = vld [vmem:[%s5 + $0x3c] sm:$0xf]
      %v1267 = vpack.c.bf16 %v1240, %v1237
      %v1268 = vpack.c.bf16 %v1248, %v1245
      %v1269 = vld [vmem:[%s6] sm:$0xff]
      %v1270 = vld [vmem:[%s6 + $0x8] sm:$0xff]
      %v1271 = vld [vmem:[%s6 + $0x10] sm:$0xff]
      %v1272 = vld [vmem:[%s6 + $0x18] sm:$0xff]
      %v1273 = vld [vmem:[%s6 + $0x20] sm:$0xff]
      %v1274 = vld [vmem:[%s6 + $0x28] sm:$0xff]
      %v1275 = vld [vmem:[%s6 + $0x30] sm:$0xff]
      %v1276 = vld [vmem:[%s6 + $0x38] sm:$0xff]
      %v1277 = vld [vmem:[%s6 + $0x40] sm:$0xff]
      %v1278 = vld [vmem:[%s6 + $0x48] sm:$0xff]
      %v1279 = vld [vmem:[%s6 + $0x50] sm:$0xff]
      %v1280 = vld [vmem:[%s6 + $0x58] sm:$0xff]
      %v1281 = vld [vmem:[%s6 + $0x60] sm:$0xff]
      %v1282 = vld [vmem:[%s6 + $0x68] sm:$0xff]
      %v1283 = vld [vmem:[%s6 + $0x70] sm:$0xff]
      %v1284 = vld [vmem:[%s6 + $0x78] sm:$0xff]
      %1286 = vset.pattern.permute.xlu0 0
      %1287 = vperm.xlu0 %1286, %v1269
      %v1288 = vpop.permute.xlu0 %1287
      %1291 = vset.pattern.permute.xlu0 0
      %1292 = vperm.xlu0 %1291, %v1270
      %v1293 = vpop.permute.xlu0 %1292
      %1296 = vset.pattern.permute.xlu0 0
      %1297 = vperm.xlu0 %1296, %v1271
      %v1298 = vpop.permute.xlu0 %1297
      %1301 = vset.pattern.permute.xlu0 0
      %1302 = vperm.xlu0 %1301, %v1272
      %v1303 = vpop.permute.xlu0 %1302
      %1306 = vset.pattern.permute.xlu0 0
      %1307 = vperm.xlu0 %1306, %v1273
      %v1308 = vpop.permute.xlu0 %1307
      %1311 = vset.pattern.permute.xlu0 0
      %1312 = vperm.xlu0 %1311, %v1274
      %v1313 = vpop.permute.xlu0 %1312
      %1316 = vset.pattern.permute.xlu0 0
      %1317 = vperm.xlu0 %1316, %v1275
      %v1318 = vpop.permute.xlu0 %1317
      %1321 = vset.pattern.permute.xlu0 0
      %1322 = vperm.xlu0 %1321, %v1276
      %v1323 = vpop.permute.xlu0 %1322
      %1326 = vset.pattern.permute.xlu0 0
      %1327 = vperm.xlu0 %1326, %v1277
      %v1328 = vpop.permute.xlu0 %1327
      %1331 = vset.pattern.permute.xlu0 0
      %1332 = vperm.xlu0 %1331, %v1278
      %v1333 = vpop.permute.xlu0 %1332
      %1336 = vset.pattern.permute.xlu0 0
      %1337 = vperm.xlu0 %1336, %v1279
      %v1338 = vpop.permute.xlu0 %1337
      %1341 = vset.pattern.permute.xlu0 0
      %1342 = vperm.xlu0 %1341, %v1280
      %v1343 = vpop.permute.xlu0 %1342
      %1346 = vset.pattern.permute.xlu0 0
      %1347 = vperm.xlu0 %1346, %v1281
      %v1348 = vpop.permute.xlu0 %1347
      %1351 = vset.pattern.permute.xlu0 0
      %1352 = vperm.xlu0 %1351, %v1282
      %v1353 = vpop.permute.xlu0 %1352
      %1356 = vset.pattern.permute.xlu0 0
      %1357 = vperm.xlu0 %1356, %v1283
      %v1358 = vpop.permute.xlu0 %1357
      %1361 = vset.pattern.permute.xlu0 0
      %1362 = vperm.xlu0 %1361, %v1284
      %v1363 = vpop.permute.xlu0 %1362
      %v1381 = vunpack.c.l.b16 %v1251
      %v1382 = vunpack.c.l.b16 %v1252
      %v1383 = vunpack.c.l.b16 %v1253
      %v1384 = vunpack.c.l.b16 %v1254
      %v1385 = vunpack.c.l.b16 %v1255
      %v1386 = vunpack.c.l.b16 %v1256
      %v1387 = vunpack.c.l.b16 %v1257
      %v1388 = vunpack.c.l.b16 %v1258
      %v1389 = vunpack.c.l.b16 %v1259
      %v1390 = vunpack.c.l.b16 %v1260
      %v1391 = vunpack.c.l.b16 %v1261
      %v1392 = vunpack.c.l.b16 %v1262
      %v1393 = vunpack.c.l.b16 %v1263
      %v1394 = vunpack.c.l.b16 %v1264
      %v1395 = vunpack.c.l.b16 %v1265
      %v1396 = vunpack.c.l.b16 %v1266
      %v1397 = vpack.c.b16 %v1382, %v1381
      %v1398 = vpack.c.b16 %v1384, %v1383
      %v1399 = vpack.c.b16 %v1386, %v1385
      %v1400 = vpack.c.b16 %v1388, %v1387
      %v1401 = vpack.c.b16 %v1390, %v1389
      %v1402 = vpack.c.b16 %v1392, %v1391
      %v1403 = vpack.c.b16 %v1394, %v1393
      %v1404 = vpack.c.b16 %v1396, %v1395
      %v1406 = vsel %vm813, %v1397, 0
      %v1409 = vsel %vm813, %v1398, 0
      %v1412 = vsel %vm813, %v1399, 0
      %v1415 = vsel %vm813, %v1400, 0
      %v1418 = vsel %vm813, %v1401, 0
      %v1421 = vsel %vm813, %v1402, 0
      %v1424 = vsel %vm813, %v1403, 0
      %v1427 = vsel %vm813, %v1404, 0
      %1429 = vmatprep.subr.bf16.mxu0 0
      %1430 = vmatpush1.bf16.msra.mxu0 %v1267
      %1431 = vmatprep.subr.bf16.mxu0 0
      %1432 = vmatpush1.bf16.msra.mxu0 %v1268
      %1433 = vmatprep.subr.bf16.mxu0 0
      %1434 = vmatpush1.bf16.msra.mxu0 0
      %1435 = vmatprep.subr.bf16.mxu0 0
      %1436 = vmatpush1.bf16.msra.mxu0 0
      %1437 = vmatprep.subr.bf16.mxu0 0
      %1438 = vmatpush1.bf16.msra.mxu0 0
      %1439 = vmatprep.subr.bf16.mxu0 0
      %1440 = vmatpush1.bf16.msra.mxu0 0
      %1441 = vmatprep.subr.bf16.mxu0 0
      %1442 = vmatpush1.bf16.msra.mxu0 0
      %1443 = vmatprep.subr.bf16.mxu0 0
      %1444 = vmatpush1.bf16.msra.mxu0 0
      %1445 = vmatprep.subr.bf16.mxu0 0
      %1446 = vmatpush1.bf16.msra.mxu0 0
      %1447 = vmatprep.subr.bf16.mxu0 0
      %1448 = vmatpush1.bf16.msra.mxu0 0
      %1449 = vmatprep.subr.bf16.mxu0 0
      %1450 = vmatpush1.bf16.msra.mxu0 0
      %1451 = vmatprep.subr.bf16.mxu0 0
      %1452 = vmatpush1.bf16.msra.mxu0 0
      %1453 = vmatprep.subr.bf16.mxu0 0
      %1454 = vmatpush1.bf16.msra.mxu0 0
      %1455 = vmatprep.subr.bf16.mxu0 0
      %1456 = vmatpush1.bf16.msra.mxu0 0
      %1457 = vmatprep.subr.bf16.mxu0 0
      %1458 = vmatpush1.bf16.msra.mxu0 0
      %1459 = vmatprep.subr.bf16.mxu0 0
      %1460 = vmatpush1.bf16.msra.mxu0 0
      %1461 = vmatprep.mubr.bf16.mxu0 0
      %1462 = vmatmul.mubr.bf16.gmra.mrb[0].mxu0 %v1406
      %v1463 = vpop.f32.mrb[0].mxu0
      %v1464 = vadd.f32 %v1288, %v1463
      %v1465 = vpop.f32.mrb[0].mxu0
      %v1466 = vpop.f32.mrb[0].mxu0
      %v1467 = vadd.f32 %v1293, %v1466
      %v1468 = vpop.f32.mrb[0].mxu0
      %1469 = vmatprep.mubr.bf16.mxu0 0
      %1470 = vmatmul.mubr.bf16.gmra.mrb[0].mxu0 %v1409
      %v1471 = vpop.f32.mrb[0].mxu0
      %v1472 = vadd.f32 %v1298, %v1471
      %v1473 = vpop.f32.mrb[0].mxu0
      %v1474 = vpop.f32.mrb[0].mxu0
      %v1475 = vadd.f32 %v1303, %v1474
      %v1476 = vpop.f32.mrb[0].mxu0
      %1477 = vmatprep.mubr.bf16.mxu0 0
      %1478 = vmatmul.mubr.bf16.gmra.mrb[0].mxu0 %v1412
      %v1479 = vpop.f32.mrb[0].mxu0
      %v1480 = vadd.f32 %v1308, %v1479
      %v1481 = vpop.f32.mrb[0].mxu0
      %v1482 = vpop.f32.mrb[0].mxu0
      %v1483 = vadd.f32 %v1313, %v1482
      %v1484 = vpop.f32.mrb[0].mxu0
      %1485 = vmatprep.mubr.bf16.mxu0 0
      %1486 = vmatmul.mubr.bf16.gmra.mrb[0].mxu0 %v1415
      %v1487 = vpop.f32.mrb[0].mxu0
      %v1488 = vadd.f32 %v1318, %v1487
      %v1489 = vpop.f32.mrb[0].mxu0
      %v1490 = vpop.f32.mrb[0].mxu0
      %v1491 = vadd.f32 %v1323, %v1490
      %v1492 = vpop.f32.mrb[0].mxu0
      %1493 = vmatprep.mubr.bf16.mxu0 0
      %1494 = vmatmul.mubr.bf16.gmra.mrb[0].mxu0 %v1418
      %v1495 = vpop.f32.mrb[0].mxu0
      %v1496 = vadd.f32 %v1328, %v1495
      %v1497 = vpop.f32.mrb[0].mxu0
      %v1498 = vpop.f32.mrb[0].mxu0
      %v1499 = vadd.f32 %v1333, %v1498
      %v1500 = vpop.f32.mrb[0].mxu0
      %1501 = vmatprep.mubr.bf16.mxu0 0
      %1502 = vmatmul.mubr.bf16.gmra.mrb[0].mxu0 %v1421
      %v1503 = vpop.f32.mrb[0].mxu0
      %v1504 = vadd.f32 %v1338, %v1503
      %v1505 = vpop.f32.mrb[0].mxu0
      %v1506 = vpop.f32.mrb[0].mxu0
      %v1507 = vadd.f32 %v1343, %v1506
      %v1508 = vpop.f32.mrb[0].mxu0
      %1509 = vmatprep.mubr.bf16.mxu0 0
      %1510 = vmatmul.mubr.bf16.gmra.mrb[0].mxu0 %v1424
      %v1511 = vpop.f32.mrb[0].mxu0
      %v1512 = vadd.f32 %v1348, %v1511
      %v1513 = vpop.f32.mrb[0].mxu0
      %v1514 = vpop.f32.mrb[0].mxu0
      %v1515 = vadd.f32 %v1353, %v1514
      %v1516 = vpop.f32.mrb[0].mxu0
      %1517 = vmatprep.mubr.bf16.mxu0 0
      %1518 = vmatmul.mubr.bf16.gmra.mrb[0].mxu0 %v1427
      %v1519 = vpop.f32.mrb[0].mxu0
      %v1520 = vadd.f32 %v1358, %v1519
      %v1521 = vpop.f32.mrb[0].mxu0
      %v1522 = vpop.f32.mrb[0].mxu0
      %v1523 = vadd.f32 %v1363, %v1522
      %v1524 = vpop.f32.mrb[0].mxu0
      %1525 = vdwg.mxu0
      %v1526 = vpack.c.bf16 %v1467, %v1464
      %v1527 = vpack.c.bf16 %v1475, %v1472
      %vm1528 = vcmask 408576
      %v1530 = vsel %vm1528, %v1464, 0
      %v1533 = vsel %vm1528, %v1467, 0
      %v1536 = vsel %vm1528, %v1472, 0
      %v1539 = vsel %vm1528, %v1475, 0
      %vm1541 = vcmask 1041408
      %v1543 = vsel %vm1541, %v655, 0
      %v1546 = vsel %vm1541, %v656, 0
      %1548 = vmatprep.subr.mxu0 %v644
      %1549 = vmatpush1.msra.mxu0 %v643
      %1550 = vmatprep.subr.mxu0 %v646
      %1551 = vmatpush1.msra.mxu0 %v645
      %1552 = vmatprep.subr.mxu0 %v648
      %1553 = vmatpush1.msra.mxu0 %v647
      %1554 = vmatprep.subr.mxu0 %v650
      %1555 = vmatpush1.msra.mxu0 %v649
      %1556 = vmatprep.subr.mxu0 %v652
      %1557 = vmatpush1.msra.mxu0 %v651
      %1558 = vmatprep.subr.mxu0 %v654
      %1559 = vmatpush1.msra.mxu0 %v653
      %1560 = vmatprep.subr.mxu0 %v1546
      %1561 = vmatpush1.msra.mxu0 %v1543
      %1562 = vmatprep.subr.mxu0 0.0
      %1563 = vmatpush1.msra.mxu0 0.0
      %1564 = vmatprep.subr.mxu0 0.0
      %1565 = vmatpush1.msra.mxu0 0.0
      %1566 = vmatprep.subr.mxu0 0.0
      %1567 = vmatpush1.msra.mxu0 0.0
      %1568 = vmatprep.subr.mxu0 0.0
      %1569 = vmatpush1.msra.mxu0 0.0
      %1570 = vmatprep.subr.mxu0 0.0
      %1571 = vmatpush1.msra.mxu0 0.0
      %1572 = vmatprep.subr.mxu0 0.0
      %1573 = vmatpush1.msra.mxu0 0.0
      %1574 = vmatprep.subr.mxu0 0.0
      %1575 = vmatpush1.msra.mxu0 0.0
      %1576 = vmatprep.subr.mxu0 0.0
      %1577 = vmatpush1.msra.mxu0 0.0
      %1578 = vmatprep.subr.mxu0 0.0
      %1579 = vmatpush1.msra.mxu0 0.0
      %1580 = vmatprep.subr.mxu0 0.0
      %1581 = vmatpush1.msra.mxu0 0.0
      %1582 = vmatprep.subr.mxu0 0.0
      %1583 = vmatpush1.msra.mxu0 0.0
      %1584 = vmatprep.subr.mxu0 0.0
      %1585 = vmatpush1.msra.mxu0 0.0
      %1586 = vmatprep.subr.mxu0 0.0
      %1587 = vmatpush1.msra.mxu0 0.0
      %1588 = vmatprep.subr.mxu0 0.0
      %1589 = vmatpush1.msra.mxu0 0.0
      %1590 = vmatprep.subr.mxu0 0.0
      %1591 = vmatpush1.msra.mxu0 0.0
      %1592 = vmatprep.subr.mxu0 0.0
      %1593 = vmatpush1.msra.mxu0 0.0
      %1594 = vmatprep.subr.mxu0 0.0
      %1595 = vmatpush1.msra.mxu0 0.0
      %1596 = vmatprep.subr.mxu0 0.0
      %1597 = vmatpush1.msra.mxu0 0.0
      %1598 = vmatprep.subr.mxu0 0.0
      %1599 = vmatpush1.msra.mxu0 0.0
      %1600 = vmatprep.subr.mxu0 0.0
      %1601 = vmatpush1.msra.mxu0 0.0
      %1602 = vmatprep.subr.mxu0 0.0
      %1603 = vmatpush1.msra.mxu0 0.0
      %1604 = vmatprep.subr.mxu0 0.0
      %1605 = vmatpush1.msra.mxu0 0.0
      %1606 = vmatprep.subr.mxu0 0.0
      %1607 = vmatpush1.msra.mxu0 0.0
      %1608 = vmatprep.subr.mxu0 0.0
      %1609 = vmatpush1.msra.mxu0 0.0
      %1610 = vmatprep.subr.mxu0 0.0
      %1611 = vmatpush1.msra.mxu0 0.0
      %1612 = vmatprep.mubr.f32.mxu0 0.0
      %1613 = vmatmul.mubr.f32.gmra.mrb[0].mxu0 %v1530
      %v1614 = vpop.f32.mrb[0].mxu0
      %v1615 = vadd.f32 0.0, %v1614
      %v1616 = vpop.f32.mrb[0].mxu0
      %v1617 = vadd.f32 0.0, %v1616
      %1618 = vmatprep.mubr.f32.mxu0 0.0
      %1619 = vmatmul.mubr.f32.gmra.mrb[0].mxu0 %v1533
      %v1620 = vpop.f32.mrb[0].mxu0
      %v1621 = vadd.f32 0.0, %v1620
      %v1622 = vpop.f32.mrb[0].mxu0
      %v1623 = vadd.f32 0.0, %v1622
      %1624 = vmatprep.mubr.f32.mxu0 0.0
      %1625 = vmatmul.mubr.f32.gmra.mrb[0].mxu0 %v1536
      %v1626 = vpop.f32.mrb[0].mxu0
      %v1627 = vadd.f32 0.0, %v1626
      %v1628 = vpop.f32.mrb[0].mxu0
      %v1629 = vadd.f32 0.0, %v1628
      %1630 = vmatprep.mubr.f32.mxu0 0.0
      %1631 = vmatmul.mubr.f32.gmra.mrb[0].mxu0 %v1539
      %v1632 = vpop.f32.mrb[0].mxu0
      %v1633 = vadd.f32 0.0, %v1632
      %v1634 = vpop.f32.mrb[0].mxu0
      %v1635 = vadd.f32 0.0, %v1634
      %1636 = vdwg.mxu0
      %v1637 = vmul.f32 %v1615, %v635
      %v1638 = vmul.f32 %v1617, %v636
      %v1639 = vmul.f32 %v1621, %v637
      %v1640 = vmul.f32 %v1623, %v638
      %v1641 = vmul.f32 %v1627, %v639
      %v1642 = vmul.f32 %v1629, %v640
      %v1643 = vmul.f32 %v1633, %v641
      %v1644 = vmul.f32 %v1635, %v642
      %v1646 = vsel %vm1528, %v1480, 0
      %v1649 = vsel %vm1528, %v1483, 0
      %v1652 = vsel %vm1528, %v1488, 0
      %v1655 = vsel %vm1528, %v1491, 0
      %1657 = vmatprep.subr.mxu0 %v644
      %1658 = vmatpush1.msra.mxu0 %v643
      %1659 = vmatprep.subr.mxu0 %v646
      %1660 = vmatpush1.msra.mxu0 %v645
      %1661 = vmatprep.subr.mxu0 %v648
      %1662 = vmatpush1.msra.mxu0 %v647
      %1663 = vmatprep.subr.mxu0 %v650
      %1664 = vmatpush1.msra.mxu0 %v649
      %1665 = vmatprep.subr.mxu0 %v652
      %1666 = vmatpush1.msra.mxu0 %v651
      %1667 = vmatprep.subr.mxu0 %v654
      %1668 = vmatpush1.msra.mxu0 %v653
      %1669 = vmatprep.subr.mxu0 %v1546
      %1670 = vmatpush1.msra.mxu0 %v1543
      %1671 = vmatprep.subr.mxu0 0.0
      %1672 = vmatpush1.msra.mxu0 0.0
      %1673 = vmatprep.subr.mxu0 0.0
      %1674 = vmatpush1.msra.mxu0 0.0
      %1675 = vmatprep.subr.mxu0 0.0
      %1676 = vmatpush1.msra.mxu0 0.0
      %1677 = vmatprep.subr.mxu0 0.0
      %1678 = vmatpush1.msra.mxu0 0.0
      %1679 = vmatprep.subr.mxu0 0.0
      %1680 = vmatpush1.msra.mxu0 0.0
      %1681 = vmatprep.subr.mxu0 0.0
      %1682 = vmatpush1.msra.mxu0 0.0
      %1683 = vmatprep.subr.mxu0 0.0
      %1684 = vmatpush1.msra.mxu0 0.0
      %1685 = vmatprep.subr.mxu0 0.0
      %1686 = vmatpush1.msra.mxu0 0.0
      %1687 = vmatprep.subr.mxu0 0.0
      %1688 = vmatpush1.msra.mxu0 0.0
      %1689 = vmatprep.subr.mxu0 0.0
      %1690 = vmatpush1.msra.mxu0 0.0
      %1691 = vmatprep.subr.mxu0 0.0
      %1692 = vmatpush1.msra.mxu0 0.0
      %1693 = vmatprep.subr.mxu0 0.0
      %1694 = vmatpush1.msra.mxu0 0.0
      %1695 = vmatprep.subr.mxu0 0.0
      %1696 = vmatpush1.msra.mxu0 0.0
      %1697 = vmatprep.subr.mxu0 0.0
      %1698 = vmatpush1.msra.mxu0 0.0
      %1699 = vmatprep.subr.mxu0 0.0
      %1700 = vmatpush1.msra.mxu0 0.0
      %1701 = vmatprep.subr.mxu0 0.0
      %1702 = vmatpush1.msra.mxu0 0.0
      %1703 = vmatprep.subr.mxu0 0.0
      %1704 = vmatpush1.msra.mxu0 0.0
      %1705 = vmatprep.subr.mxu0 0.0
      %1706 = vmatpush1.msra.mxu0 0.0
      %1707 = vmatprep.subr.mxu0 0.0
      %1708 = vmatpush1.msra.mxu0 0.0
      %1709 = vmatprep.subr.mxu0 0.0
      %1710 = vmatpush1.msra.mxu0 0.0
      %1711 = vmatprep.subr.mxu0 0.0
      %1712 = vmatpush1.msra.mxu0 0.0
      %1713 = vmatprep.subr.mxu0 0.0
      %1714 = vmatpush1.msra.mxu0 0.0
      %1715 = vmatprep.subr.mxu0 0.0
      %1716 = vmatpush1.msra.mxu0 0.0
      %1717 = vmatprep.subr.mxu0 0.0
      %1718 = vmatpush1.msra.mxu0 0.0
      %1719 = vmatprep.subr.mxu0 0.0
      %1720 = vmatpush1.msra.mxu0 0.0
      %1721 = vmatprep.mubr.f32.mxu0 0.0
      %1722 = vmatmul.mubr.f32.gmra.mrb[0].mxu0 %v1646
      %v1723 = vpop.f32.mrb[0].mxu0
      %v1724 = vadd.f32 0.0, %v1723
      %v1725 = vpop.f32.mrb[0].mxu0
      %v1726 = vadd.f32 0.0, %v1725
      %1727 = vmatprep.mubr.f32.mxu0 0.0
      %1728 = vmatmul.mubr.f32.gmra.mrb[0].mxu0 %v1649
      %v1729 = vpop.f32.mrb[0].mxu0
      %v1730 = vadd.f32 0.0, %v1729
      %v1731 = vpop.f32.mrb[0].mxu0
      %v1732 = vadd.f32 0.0, %v1731
      %1733 = vmatprep.mubr.f32.mxu0 0.0
      %1734 = vmatmul.mubr.f32.gmra.mrb[0].mxu0 %v1652
      %v1735 = vpop.f32.mrb[0].mxu0
      %v1736 = vadd.f32 0.0, %v1735
      %v1737 = vpop.f32.mrb[0].mxu0
      %v1738 = vadd.f32 0.0, %v1737
      %1739 = vmatprep.mubr.f32.mxu0 0.0
      %1740 = vmatmul.mubr.f32.gmra.mrb[0].mxu0 %v1655
      %v1741 = vpop.f32.mrb[0].mxu0
      %v1742 = vadd.f32 0.0, %v1741
      %v1743 = vpop.f32.mrb[0].mxu0
      %v1744 = vadd.f32 0.0, %v1743
      %1745 = vdwg.mxu0
      %v1746 = vmul.f32 %v1724, %v635
      %v1747 = vmul.f32 %v1726, %v636
      %v1748 = vmul.f32 %v1730, %v637
      %v1749 = vmul.f32 %v1732, %v638
      %v1750 = vmul.f32 %v1736, %v639
      %v1751 = vmul.f32 %v1738, %v640
      %v1752 = vmul.f32 %v1742, %v641
      %v1753 = vmul.f32 %v1744, %v642
      %v1754 = vpack.c.bf16 %v1748, %v1746
      %v1755 = vpack.c.bf16 %v1749, %v1747
      %v1756 = vpack.c.bf16 %v1752, %v1750
      %v1757 = vpack.c.bf16 %v1753, %v1751
      %v1758 = vpack.c.bf16 %v1499, %v1496
      %v1759 = vpack.c.bf16 %v1507, %v1504
      %1760 = vxpose.xlu0.c.b16.start [1/8] %v1754, 128
      %1761 = vxpose.xlu0.c.b16.cont [2/8] %v1756, 128
      %1762 = vxpose.xlu0.c.b16.cont [3/8] 0, 128
      %1763 = vxpose.xlu0.c.b16.cont [4/8] 0, 128
      %1764 = vxpose.xlu0.c.b16.cont [5/8] 0, 128
      %1765 = vxpose.xlu0.c.b16.cont [6/8] 0, 128
      %1766 = vxpose.xlu0.c.b16.cont [7/8] 0, 128
      %1767 = vxpose.xlu0.c.b16.end [8/8] 0, 128
      %v1768 = vpop.trf.xlu0
      %v1769 = vpop.trf.xlu0
      %v1770 = vpop.trf.xlu0
      %v1771 = vpop.trf.xlu0
      %v1772 = vpop.trf.xlu0
      %v1773 = vpop.trf.xlu0
      %v1774 = vpop.trf.xlu0
      %v1775 = vpop.trf.xlu0
      %1776 = vxpose.xlu0.c.b16.start [1/8] %v1755, 128
      %1777 = vxpose.xlu0.c.b16.cont [2/8] %v1757, 128
      %1778 = vxpose.xlu0.c.b16.cont [3/8] 0, 128
      %1779 = vxpose.xlu0.c.b16.cont [4/8] 0, 128
      %1780 = vxpose.xlu0.c.b16.cont [5/8] 0, 128
      %1781 = vxpose.xlu0.c.b16.cont [6/8] 0, 128
      %1782 = vxpose.xlu0.c.b16.cont [7/8] 0, 128
      %1783 = vxpose.xlu0.c.b16.end [8/8] 0, 128
      %v1784 = vpop.trf.xlu0
      %v1785 = vpop.trf.xlu0
      %v1786 = vpop.trf.xlu0
      %v1787 = vpop.trf.xlu0
      %v1788 = vpop.trf.xlu0
      %v1789 = vpop.trf.xlu0
      %v1790 = vpop.trf.xlu0
      %v1791 = vpop.trf.xlu0
      %v1793 = vsel %vm813, %v1768, 0
      %v1796 = vsel %vm813, %v1769, 0
      %v1799 = vsel %vm813, %v1770, 0
      %v1802 = vsel %vm813, %v1771, 0
      %v1805 = vsel %vm813, %v1772, 0
      %v1808 = vsel %vm813, %v1773, 0
      %v1811 = vsel %vm813, %v1774, 0
      %v1814 = vsel %vm813, %v1775, 0
      %v1817 = vsel %vm813, %v1784, 0
      %v1820 = vsel %vm813, %v1785, 0
      %v1823 = vsel %vm813, %v1786, 0
      %v1826 = vsel %vm813, %v1787, 0
      %v1829 = vsel %vm813, %v1788, 0
      %1831 = vmatprep.subr.bf16.mxu0 0
      %1832 = vmatpush1.bf16.msra.mxu0 %v1758
      %1833 = vmatprep.subr.bf16.mxu0 0
      %1834 = vmatpush1.bf16.msra.mxu0 %v1759
      %1835 = vmatprep.subr.bf16.mxu0 0
      %1836 = vmatpush1.bf16.msra.mxu0 0
      %1837 = vmatprep.subr.bf16.mxu0 0
      %1838 = vmatpush1.bf16.msra.mxu0 0
      %1839 = vmatprep.subr.bf16.mxu0 0
      %1840 = vmatpush1.bf16.msra.mxu0 0
      %1841 = vmatprep.subr.bf16.mxu0 0
      %1842 = vmatpush1.bf16.msra.mxu0 0
      %1843 = vmatprep.subr.bf16.mxu0 0
      %1844 = vmatpush1.bf16.msra.mxu0 0
      %1845 = vmatprep.subr.bf16.mxu0 0
      %1846 = vmatpush1.bf16.msra.mxu0 0
      %1847 = vmatprep.subr.bf16.mxu0 0
      %1848 = vmatpush1.bf16.msra.mxu0 0
      %1849 = vmatprep.subr.bf16.mxu0 0
      %1850 = vmatpush1.bf16.msra.mxu0 0
      %1851 = vmatprep.subr.bf16.mxu0 0
      %1852 = vmatpush1.bf16.msra.mxu0 0
      %1853 = vmatprep.subr.bf16.mxu0 0
      %1854 = vmatpush1.bf16.msra.mxu0 0
      %1855 = vmatprep.subr.bf16.mxu0 0
      %1856 = vmatpush1.bf16.msra.mxu0 0
      %1857 = vmatprep.subr.bf16.mxu0 0
      %1858 = vmatpush1.bf16.msra.mxu0 0
      %1859 = vmatprep.subr.bf16.mxu0 0
      %1860 = vmatpush1.bf16.msra.mxu0 0
      %1861 = vmatprep.subr.bf16.mxu0 0
      %1862 = vmatpush1.bf16.msra.mxu0 0
      %1863 = vmatprep.mubr.bf16.mxu0 0
      %1864 = vmatmul.mubr.bf16.gmra.mrb[0].mxu0 %v1793
      %v1865 = vpop.f32.mrb[0].mxu0
      %v1866 = vadd.f32 0.0, %v1865
      %v1867 = vpop.f32.mrb[0].mxu0
      %v1868 = vpop.f32.mrb[0].mxu0
      %v1869 = vadd.f32 0.0, %v1868
      %v1870 = vpop.f32.mrb[0].mxu0
      %1871 = vmatprep.mubr.bf16.mxu0 0
      %1872 = vmatmul.mubr.bf16.gmra.mrb[0].mxu0 %v1796
      %v1873 = vpop.f32.mrb[0].mxu0
      %v1874 = vadd.f32 0.0, %v1873
      %v1875 = vpop.f32.mrb[0].mxu0
      %v1876 = vpop.f32.mrb[0].mxu0
      %v1877 = vadd.f32 0.0, %v1876
      %v1878 = vpop.f32.mrb[0].mxu0
      %1879 = vmatprep.mubr.bf16.mxu0 0
      %1880 = vmatmul.mubr.bf16.gmra.mrb[0].mxu0 %v1799
      %v1881 = vpop.f32.mrb[0].mxu0
      %v1882 = vadd.f32 0.0, %v1881
      %v1883 = vpop.f32.mrb[0].mxu0
      %v1884 = vpop.f32.mrb[0].mxu0
      %v1885 = vadd.f32 0.0, %v1884
      %v1886 = vpop.f32.mrb[0].mxu0
      %1887 = vmatprep.mubr.bf16.mxu0 0
      %1888 = vmatmul.mubr.bf16.gmra.mrb[0].mxu0 %v1802
      %v1889 = vpop.f32.mrb[0].mxu0
      %v1890 = vadd.f32 0.0, %v1889
      %v1891 = vpop.f32.mrb[0].mxu0
      %v1892 = vpop.f32.mrb[0].mxu0
      %v1893 = vadd.f32 0.0, %v1892
      %v1894 = vpop.f32.mrb[0].mxu0
      %1895 = vmatprep.mubr.bf16.mxu0 0
      %1896 = vmatmul.mubr.bf16.gmra.mrb[0].mxu0 %v1805
      %v1897 = vpop.f32.mrb[0].mxu0
      %v1898 = vadd.f32 0.0, %v1897
      %v1899 = vpop.f32.mrb[0].mxu0
      %v1900 = vpop.f32.mrb[0].mxu0
      %v1901 = vadd.f32 0.0, %v1900
      %v1902 = vpop.f32.mrb[0].mxu0
      %1903 = vmatprep.mubr.bf16.mxu0 0
      %1904 = vmatmul.mubr.bf16.gmra.mrb[0].mxu0 %v1808
      %v1905 = vpop.f32.mrb[0].mxu0
      %v1906 = vadd.f32 0.0, %v1905
      %v1907 = vpop.f32.mrb[0].mxu0
      %v1908 = vpop.f32.mrb[0].mxu0
      %v1909 = vadd.f32 0.0, %v1908
      %v1910 = vpop.f32.mrb[0].mxu0
      %1911 = vmatprep.mubr.bf16.mxu0 0
      %1912 = vmatmul.mubr.bf16.gmra.mrb[0].mxu0 %v1811
      %v1913 = vpop.f32.mrb[0].mxu0
      %v1914 = vadd.f32 0.0, %v1913
      %v1915 = vpop.f32.mrb[0].mxu0
      %v1916 = vpop.f32.mrb[0].mxu0
      %v1917 = vadd.f32 0.0, %v1916
      %v1918 = vpop.f32.mrb[0].mxu0
      %1919 = vmatprep.mubr.bf16.mxu0 0
      %1920 = vmatmul.mubr.bf16.gmra.mrb[0].mxu0 %v1814
      %v1921 = vpop.f32.mrb[0].mxu0
      %v1922 = vadd.f32 0.0, %v1921
      %v1923 = vpop.f32.mrb[0].mxu0
      %v1924 = vpop.f32.mrb[0].mxu0
      %v1925 = vadd.f32 0.0, %v1924
      %v1926 = vpop.f32.mrb[0].mxu0
      %1927 = vmatprep.mubr.bf16.mxu0 0
      %1928 = vmatmul.mubr.bf16.gmra.mrb[0].mxu0 %v1817
      %v1929 = vpop.f32.mrb[0].mxu0
      %v1930 = vadd.f32 0.0, %v1929
      %v1931 = vpop.f32.mrb[0].mxu0
      %v1932 = vpop.f32.mrb[0].mxu0
      %v1933 = vadd.f32 0.0, %v1932
      %v1934 = vpop.f32.mrb[0].mxu0
      %1935 = vmatprep.mubr.bf16.mxu0 0
      %1936 = vmatmul.mubr.bf16.gmra.mrb[0].mxu0 %v1820
      %v1937 = vpop.f32.mrb[0].mxu0
      %v1938 = vadd.f32 0.0, %v1937
      %v1939 = vpop.f32.mrb[0].mxu0
      %v1940 = vpop.f32.mrb[0].mxu0
      %v1941 = vadd.f32 0.0, %v1940
      %v1942 = vpop.f32.mrb[0].mxu0
      %1943 = vmatprep.mubr.bf16.mxu0 0
      %1944 = vmatmul.mubr.bf16.gmra.mrb[0].mxu0 %v1823
      %v1945 = vpop.f32.mrb[0].mxu0
      %v1946 = vadd.f32 0.0, %v1945
      %v1947 = vpop.f32.mrb[0].mxu0
      %v1948 = vpop.f32.mrb[0].mxu0
      %v1949 = vadd.f32 0.0, %v1948
      %v1950 = vpop.f32.mrb[0].mxu0
      %1951 = vmatprep.mubr.bf16.mxu0 0
      %1952 = vmatmul.mubr.bf16.gmra.mrb[0].mxu0 %v1826
      %v1953 = vpop.f32.mrb[0].mxu0
      %v1954 = vadd.f32 0.0, %v1953
      %v1955 = vpop.f32.mrb[0].mxu0
      %v1956 = vpop.f32.mrb[0].mxu0
      %v1957 = vadd.f32 0.0, %v1956
      %v1958 = vpop.f32.mrb[0].mxu0
      %1959 = vmatprep.mubr.bf16.mxu0 0
      %1960 = vmatmul.mubr.bf16.gmra.mrb[0].mxu0 %v1829
      %v1961 = vpop.f32.mrb[0].mxu0
      %v1962 = vadd.f32 0.0, %v1961
      %v1963 = vpop.f32.mrb[0].mxu0
      %v1964 = vpop.f32.mrb[0].mxu0
      %v1965 = vpop.f32.mrb[0].mxu0
      %1966 = vdwg.mxu0
      %v1967 = vmul.f32 %v1866, 0.35355338
      %v1968 = vmul.f32 %v1869, 0.35355338
      %v1969 = vmul.f32 %v1874, 0.35355338
      %v1970 = vmul.f32 %v1877, 0.35355338
      %v1971 = vmul.f32 %v1882, 0.35355338
      %v1972 = vmul.f32 %v1885, 0.35355338
      %v1973 = vmul.f32 %v1890, 0.35355338
      %v1974 = vmul.f32 %v1893, 0.35355338
      %v1975 = vmul.f32 %v1898, 0.35355338
      %v1976 = vmul.f32 %v1901, 0.35355338
      %v1977 = vmul.f32 %v1906, 0.35355338
      %v1978 = vmul.f32 %v1909, 0.35355338
      %v1979 = vmul.f32 %v1914, 0.35355338
      %v1980 = vmul.f32 %v1917, 0.35355338
      %v1981 = vmul.f32 %v1922, 0.35355338
      %v1982 = vmul.f32 %v1925, 0.35355338
      %v1983 = vmul.f32 %v1930, 0.35355338
      %v1984 = vmul.f32 %v1933, 0.35355338
      %v1985 = vmul.f32 %v1938, 0.35355338
      %v1986 = vmul.f32 %v1941, 0.35355338
      %v1987 = vmul.f32 %v1946, 0.35355338
      %v1988 = vmul.f32 %v1949, 0.35355338
      %v1989 = vmul.f32 %v1954, 0.35355338
      %v1990 = vmul.f32 %v1957, 0.35355338
      %v1991 = vmul.f32 %v1962, 0.35355338
      %v1992 = vsel %vm1528, %v1967, -inf
      %1993 = vmax.xlane.f32.xlu0 %v1992
      %v1994 = vpop.xlane.xlu0 %1993
      %v1995 = vsel %vm1528, %v1968, -inf
      %1996 = vmax.xlane.f32.xlu0 %v1995
      %v1997 = vpop.xlane.xlu0 %1996
      %v1998 = vsel %vm1528, %v1969, -inf
      %1999 = vmax.xlane.f32.xlu0 %v1998
      %v2000 = vpop.xlane.xlu0 %1999
      %v2001 = vsel %vm1528, %v1970, -inf
      %2002 = vmax.xlane.f32.xlu0 %v2001
      %v2003 = vpop.xlane.xlu0 %2002
      %v2004 = vsel %vm1528, %v1971, -inf
      %2005 = vmax.xlane.f32.xlu0 %v2004
      %v2006 = vpop.xlane.xlu0 %2005
      %v2007 = vsel %vm1528, %v1972, -inf
      %2008 = vmax.xlane.f32.xlu0 %v2007
      %v2009 = vpop.xlane.xlu0 %2008
      %v2010 = vsel %vm1528, %v1973, -inf
      %2011 = vmax.xlane.f32.xlu0 %v2010
      %v2012 = vpop.xlane.xlu0 %2011
      %v2013 = vsel %vm1528, %v1974, -inf
      %2014 = vmax.xlane.f32.xlu0 %v2013
      %v2015 = vpop.xlane.xlu0 %2014
      %v2016 = vsel %vm1528, %v1975, -inf
      %2017 = vmax.xlane.f32.xlu0 %v2016
      %v2018 = vpop.xlane.xlu0 %2017
      %v2019 = vsel %vm1528, %v1976, -inf
      %2020 = vmax.xlane.f32.xlu0 %v2019
      %v2021 = vpop.xlane.xlu0 %2020
      %v2022 = vsel %vm1528, %v1977, -inf
      %2023 = vmax.xlane.f32.xlu0 %v2022
      %v2024 = vpop.xlane.xlu0 %2023
      %v2025 = vsel %vm1528, %v1978, -inf
      %2026 = vmax.xlane.f32.xlu0 %v2025
      %v2027 = vpop.xlane.xlu0 %2026
      %v2028 = vsel %vm1528, %v1979, -inf
      %2029 = vmax.xlane.f32.xlu0 %v2028
      %v2030 = vpop.xlane.xlu0 %2029
      %v2031 = vsel %vm1528, %v1980, -inf
      %2032 = vmax.xlane.f32.xlu0 %v2031
      %v2033 = vpop.xlane.xlu0 %2032
      %v2034 = vsel %vm1528, %v1981, -inf
      %2035 = vmax.xlane.f32.xlu0 %v2034
      %v2036 = vpop.xlane.xlu0 %2035
      %v2037 = vsel %vm1528, %v1982, -inf
      %2038 = vmax.xlane.f32.xlu0 %v2037
      %v2039 = vpop.xlane.xlu0 %2038
      %v2040 = vsel %vm1528, %v1983, -inf
      %2041 = vmax.xlane.f32.xlu0 %v2040
      %v2042 = vpop.xlane.xlu0 %2041
      %v2043 = vsel %vm1528, %v1984, -inf
      %2044 = vmax.xlane.f32.xlu0 %v2043
      %v2045 = vpop.xlane.xlu0 %2044
      %v2046 = vsel %vm1528, %v1985, -inf
      %2047 = vmax.xlane.f32.xlu0 %v2046
      %v2048 = vpop.xlane.xlu0 %2047
      %v2049 = vsel %vm1528, %v1986, -inf
      %2050 = vmax.xlane.f32.xlu0 %v2049
      %v2051 = vpop.xlane.xlu0 %2050
      %v2052 = vsel %vm1528, %v1987, -inf
      %2053 = vmax.xlane.f32.xlu0 %v2052
      %v2054 = vpop.xlane.xlu0 %2053
      %v2055 = vsel %vm1528, %v1988, -inf
      %2056 = vmax.xlane.f32.xlu0 %v2055
      %v2057 = vpop.xlane.xlu0 %2056
      %v2058 = vsel %vm1528, %v1989, -inf
      %2059 = vmax.xlane.f32.xlu0 %v2058
      %v2060 = vpop.xlane.xlu0 %2059
      %v2061 = vsel %vm1528, %v1990, -inf
      %2062 = vmax.xlane.f32.xlu0 %v2061
      %v2063 = vpop.xlane.xlu0 %2062
      %v2064 = vsel %vm1528, %v1991, -inf
      %2065 = vmax.xlane.f32.xlu0 %v2064
      %v2066 = vpop.xlane.xlu0 %2065
      %v2067 = vsub.f32 %v1967, %v1994
      %v2068 = vsub.f32 %v1968, %v1997
      %v2069 = vsub.f32 %v1969, %v2000
      %v2070 = vsub.f32 %v1970, %v2003
      %v2071 = vsub.f32 %v1971, %v2006
      %v2072 = vsub.f32 %v1972, %v2009
      %v2073 = vsub.f32 %v1973, %v2012
      %v2074 = vsub.f32 %v1974, %v2015
      %v2075 = vsub.f32 %v1975, %v2018
      %v2076 = vsub.f32 %v1976, %v2021
      %v2077 = vsub.f32 %v1977, %v2024
      %v2078 = vsub.f32 %v1978, %v2027
      %v2079 = vsub.f32 %v1979, %v2030
      %v2080 = vsub.f32 %v1980, %v2033
      %v2081 = vsub.f32 %v1981, %v2036
      %v2082 = vsub.f32 %v1982, %v2039
      %v2083 = vsub.f32 %v1983, %v2042
      %v2084 = vsub.f32 %v1984, %v2045
      %v2085 = vsub.f32 %v1985, %v2048
      %v2086 = vsub.f32 %v1986, %v2051
      %v2087 = vsub.f32 %v1987, %v2054
      %v2088 = vsub.f32 %v1988, %v2057
      %v2089 = vsub.f32 %v1989, %v2060
      %v2090 = vsub.f32 %v1990, %v2063
      %v2091 = vsub.f32 %v1991, %v2066
      %v2092 = vmul.f32 %v2067, 1.442695
      %v2093 = vpow.pop %v2092
      %v2094 = vmul.f32 %v2068, 1.442695
      %v2095 = vpow.pop %v2094
      %v2096 = vmul.f32 %v2069, 1.442695
      %v2097 = vpow.pop %v2096
      %v2098 = vmul.f32 %v2070, 1.442695
      %v2099 = vpow.pop %v2098
      %v2100 = vmul.f32 %v2071, 1.442695
      %v2101 = vpow.pop %v2100
      %v2102 = vmul.f32 %v2072, 1.442695
      %v2103 = vpow.pop %v2102
      %v2104 = vmul.f32 %v2073, 1.442695
      %v2105 = vpow.pop %v2104
      %v2106 = vmul.f32 %v2074, 1.442695
      %v2107 = vpow.pop %v2106
      %v2108 = vmul.f32 %v2075, 1.442695
      %v2109 = vpow.pop %v2108
      %v2110 = vmul.f32 %v2076, 1.442695
      %v2111 = vpow.pop %v2110
      %v2112 = vmul.f32 %v2077, 1.442695
      %v2113 = vpow.pop %v2112
      %v2114 = vmul.f32 %v2078, 1.442695
      %v2115 = vpow.pop %v2114
      %v2116 = vmul.f32 %v2079, 1.442695
      %v2117 = vpow.pop %v2116
      %v2118 = vmul.f32 %v2080, 1.442695
      %v2119 = vpow.pop %v2118
      %v2120 = vmul.f32 %v2081, 1.442695
      %v2121 = vpow.pop %v2120
      %v2122 = vmul.f32 %v2082, 1.442695
      %v2123 = vpow.pop %v2122
      %v2124 = vmul.f32 %v2083, 1.442695
      %v2125 = vpow.pop %v2124
      %v2126 = vmul.f32 %v2084, 1.442695
      %v2127 = vpow.pop %v2126
      %v2128 = vmul.f32 %v2085, 1.442695
      %v2129 = vpow.pop %v2128
      %v2130 = vmul.f32 %v2086, 1.442695
      %v2131 = vpow.pop %v2130
      %v2132 = vmul.f32 %v2087, 1.442695
      %v2133 = vpow.pop %v2132
      %v2134 = vmul.f32 %v2088, 1.442695
      %v2135 = vpow.pop %v2134
      %v2136 = vmul.f32 %v2089, 1.442695
      %v2137 = vpow.pop %v2136
      %v2138 = vmul.f32 %v2090, 1.442695
      %v2139 = vpow.pop %v2138
      %v2140 = vmul.f32 %v2091, 1.442695
      %v2141 = vpow.pop %v2140
      %v2142 = vsel %vm1528, %v2093, 0.0
      %2143 = vadd.xlane.f32.xlu0 %v2142
      %v2144 = vpop.xlane.xlu0 %2143
      %v2145 = vsel %vm1528, %v2095, 0.0
      %2146 = vadd.xlane.f32.xlu0 %v2145
      %v2147 = vpop.xlane.xlu0 %2146
      %v2148 = vsel %vm1528, %v2097, 0.0
      %2149 = vadd.xlane.f32.xlu0 %v2148
      %v2150 = vpop.xlane.xlu0 %2149
      %v2151 = vsel %vm1528, %v2099, 0.0
      %2152 = vadd.xlane.f32.xlu0 %v2151
      %v2153 = vpop.xlane.xlu0 %2152
      %v2154 = vsel %vm1528, %v2101, 0.0
      %2155 = vadd.xlane.f32.xlu0 %v2154
      %v2156 = vpop.xlane.xlu0 %2155
      %v2157 = vsel %vm1528, %v2103, 0.0
      %2158 = vadd.xlane.f32.xlu0 %v2157
      %v2159 = vpop.xlane.xlu0 %2158
      %v2160 = vsel %vm1528, %v2105, 0.0
      %2161 = vadd.xlane.f32.xlu0 %v2160
      %v2162 = vpop.xlane.xlu0 %2161
      %v2163 = vsel %vm1528, %v2107, 0.0
      %2164 = vadd.xlane.f32.xlu0 %v2163
      %v2165 = vpop.xlane.xlu0 %2164
      %v2166 = vsel %vm1528, %v2109, 0.0
      %2167 = vadd.xlane.f32.xlu0 %v2166
      %v2168 = vpop.xlane.xlu0 %2167
      %v2169 = vsel %vm1528, %v2111, 0.0
      %2170 = vadd.xlane.f32.xlu0 %v2169
      %v2171 = vpop.xlane.xlu0 %2170
      %v2172 = vsel %vm1528, %v2113, 0.0
      %2173 = vadd.xlane.f32.xlu0 %v2172
      %v2174 = vpop.xlane.xlu0 %2173
      %v2175 = vsel %vm1528, %v2115, 0.0
      %2176 = vadd.xlane.f32.xlu0 %v2175
      %v2177 = vpop.xlane.xlu0 %2176
      %v2178 = vsel %vm1528, %v2117, 0.0
      %2179 = vadd.xlane.f32.xlu0 %v2178
      %v2180 = vpop.xlane.xlu0 %2179
      %v2181 = vsel %vm1528, %v2119, 0.0
      %2182 = vadd.xlane.f32.xlu0 %v2181
      %v2183 = vpop.xlane.xlu0 %2182
      %v2184 = vsel %vm1528, %v2121, 0.0
      %2185 = vadd.xlane.f32.xlu0 %v2184
      %v2186 = vpop.xlane.xlu0 %2185
      %v2187 = vsel %vm1528, %v2123, 0.0
      %2188 = vadd.xlane.f32.xlu0 %v2187
      %v2189 = vpop.xlane.xlu0 %2188
      %v2190 = vsel %vm1528, %v2125, 0.0
      %2191 = vadd.xlane.f32.xlu0 %v2190
      %v2192 = vpop.xlane.xlu0 %2191
      %v2193 = vsel %vm1528, %v2127, 0.0
      %2194 = vadd.xlane.f32.xlu0 %v2193
      %v2195 = vpop.xlane.xlu0 %2194
      %v2196 = vsel %vm1528, %v2129, 0.0
      %2197 = vadd.xlane.f32.xlu0 %v2196
      %v2198 = vpop.xlane.xlu0 %2197
      %v2199 = vsel %vm1528, %v2131, 0.0
      %2200 = vadd.xlane.f32.xlu0 %v2199
      %v2201 = vpop.xlane.xlu0 %2200
      %v2202 = vsel %vm1528, %v2133, 0.0
      %2203 = vadd.xlane.f32.xlu0 %v2202
      %v2204 = vpop.xlane.xlu0 %2203
      %v2205 = vsel %vm1528, %v2135, 0.0
      %2206 = vadd.xlane.f32.xlu0 %v2205
      %v2207 = vpop.xlane.xlu0 %2206
      %v2208 = vsel %vm1528, %v2137, 0.0
      %2209 = vadd.xlane.f32.xlu0 %v2208
      %v2210 = vpop.xlane.xlu0 %2209
      %v2211 = vsel %vm1528, %v2139, 0.0
      %2212 = vadd.xlane.f32.xlu0 %v2211
      %v2213 = vpop.xlane.xlu0 %2212
      %v2214 = vsel %vm1528, %v2141, 0.0
      %2215 = vadd.xlane.f32.xlu0 %v2214
      %v2216 = vpop.xlane.xlu0 %2215
      %v2217 = vrcp.pop %v2144
      %v2218 = vmul.f32 %v2093, %v2217
      %v2219 = vrcp.pop %v2147
      %v2220 = vmul.f32 %v2095, %v2219
      %v2221 = vrcp.pop %v2150
      %v2222 = vmul.f32 %v2097, %v2221
      %v2223 = vrcp.pop %v2153
      %v2224 = vmul.f32 %v2099, %v2223
      %v2225 = vrcp.pop %v2156
      %v2226 = vmul.f32 %v2101, %v2225
      %v2227 = vrcp.pop %v2159
      %v2228 = vmul.f32 %v2103, %v2227
      %v2229 = vrcp.pop %v2162
      %v2230 = vmul.f32 %v2105, %v2229
      %v2231 = vrcp.pop %v2165
      %v2232 = vmul.f32 %v2107, %v2231
      %v2233 = vrcp.pop %v2168
      %v2234 = vmul.f32 %v2109, %v2233
      %v2235 = vrcp.pop %v2171
      %v2236 = vmul.f32 %v2111, %v2235
      %v2237 = vrcp.pop %v2174
      %v2238 = vmul.f32 %v2113, %v2237
      %v2239 = vrcp.pop %v2177
      %v2240 = vmul.f32 %v2115, %v2239
      %v2241 = vrcp.pop %v2180
      %v2242 = vmul.f32 %v2117, %v2241
      %v2243 = vrcp.pop %v2183
      %v2244 = vmul.f32 %v2119, %v2243
      %v2245 = vrcp.pop %v2186
      %v2246 = vmul.f32 %v2121, %v2245
      %v2247 = vrcp.pop %v2189
      %v2248 = vmul.f32 %v2123, %v2247
      %v2249 = vrcp.pop %v2192
      %v2250 = vmul.f32 %v2125, %v2249
      %v2251 = vrcp.pop %v2195
      %v2252 = vmul.f32 %v2127, %v2251
      %v2253 = vrcp.pop %v2198
      %v2254 = vmul.f32 %v2129, %v2253
      %v2255 = vrcp.pop %v2201
      %v2256 = vmul.f32 %v2131, %v2255
      %v2257 = vrcp.pop %v2204
      %v2258 = vmul.f32 %v2133, %v2257
      %v2259 = vrcp.pop %v2207
      %v2260 = vmul.f32 %v2135, %v2259
      %v2261 = vrcp.pop %v2210
      %v2262 = vmul.f32 %v2137, %v2261
      %v2263 = vrcp.pop %v2213
      %v2264 = vmul.f32 %v2139, %v2263
      %v2265 = vrcp.pop %v2216
      %v2266 = vmul.f32 %v2141, %v2265
      %v2267 = vpack.c.bf16 %v1515, %v1512
      %v2268 = vpack.c.bf16 %v1523, %v1520
      %v2269 = vpack.c.bf16 %v2220, %v2218
      %v2270 = vpack.c.bf16 %v2224, %v2222
      %v2271 = vpack.c.bf16 %v2228, %v2226
      %v2272 = vpack.c.bf16 %v2232, %v2230
      %v2273 = vpack.c.bf16 %v2236, %v2234
      %v2274 = vpack.c.bf16 %v2240, %v2238
      %v2275 = vpack.c.bf16 %v2244, %v2242
      %v2276 = vpack.c.bf16 %v2248, %v2246
      %v2277 = vpack.c.bf16 %v2252, %v2250
      %v2278 = vpack.c.bf16 %v2256, %v2254
      %v2279 = vpack.c.bf16 %v2260, %v2258
      %v2280 = vpack.c.bf16 %v2264, %v2262
      %v2281 = vpack.c.bf16 %v2266, %v2266
      %v2283 = vsel %vm1528, %v2267, 0
      %v2286 = vsel %vm1528, %v2268, 0
      %v2289 = vsel %vm1528, %v2269, 0
      %v2292 = vsel %vm1528, %v2270, 0
      %v2295 = vsel %vm1528, %v2271, 0
      %v2298 = vsel %vm1528, %v2272, 0
      %v2301 = vsel %vm1528, %v2273, 0
      %v2304 = vsel %vm1528, %v2274, 0
      %v2307 = vsel %vm1528, %v2275, 0
      %v2310 = vsel %vm1528, %v2276, 0
      %v2313 = vsel %vm1528, %v2277, 0
      %v2316 = vsel %vm1528, %v2278, 0
      %v2319 = vsel %vm1528, %v2279, 0
      %v2322 = vsel %vm1528, %v2280, 0
      %v2325 = vsel %vm1528, %v2281, 0
      %2327 = vmatprep.subr.bf16.mxu0 0
      %2328 = vmatpush1.bf16.xpose.msra.mxu0 %v2289
      %2329 = vmatprep.subr.bf16.mxu0 0
      %2330 = vmatpush1.bf16.xpose.msra.mxu0 %v2292
      %2331 = vmatprep.subr.bf16.mxu0 0
      %2332 = vmatpush1.bf16.xpose.msra.mxu0 %v2295
      %2333 = vmatprep.subr.bf16.mxu0 0
      %2334 = vmatpush1.bf16.xpose.msra.mxu0 %v2298
      %2335 = vmatprep.subr.bf16.mxu0 0
      %2336 = vmatpush1.bf16.xpose.msra.mxu0 %v2301
      %2337 = vmatprep.subr.bf16.mxu0 0
      %2338 = vmatpush1.bf16.xpose.msra.mxu0 %v2304
      %2339 = vmatprep.subr.bf16.mxu0 0
      %2340 = vmatpush1.bf16.xpose.msra.mxu0 %v2307
      %2341 = vmatprep.subr.bf16.mxu0 0
      %2342 = vmatpush1.bf16.xpose.msra.mxu0 %v2310
      %2343 = vmatprep.subr.bf16.mxu0 0
      %2344 = vmatpush1.bf16.xpose.msra.mxu0 %v2313
      %2345 = vmatprep.subr.bf16.mxu0 0
      %2346 = vmatpush1.bf16.xpose.msra.mxu0 %v2316
      %2347 = vmatprep.subr.bf16.mxu0 0
      %2348 = vmatpush1.bf16.xpose.msra.mxu0 %v2319
      %2349 = vmatprep.subr.bf16.mxu0 0
      %2350 = vmatpush1.bf16.xpose.msra.mxu0 %v2322
      %2351 = vmatprep.subr.bf16.mxu0 0
      %2352 = vmatpush1.bf16.xpose.msra.mxu0 %v2325
      %2353 = vmatprep.subr.bf16.mxu0 0
      %2354 = vmatpush1.bf16.xpose.msra.mxu0 0
      %2355 = vmatprep.subr.bf16.mxu0 0
      %2356 = vmatpush1.bf16.xpose.msra.mxu0 0
      %2357 = vmatprep.subr.bf16.mxu0 0
      %2358 = vmatpush1.bf16.xpose.msra.mxu0 0
      %2359 = vmatprep.mubr.bf16.mxu0 0
      %2360 = vmatmul.mubr.bf16.gmra.mrb[0].mxu0 %v2283
      %v2361 = vpop.f32.mrb[0].mxu0
      %v2362 = vadd.f32 0.0, %v2361
      %v2363 = vpop.f32.mrb[0].mxu0
      %v2364 = vadd.f32 0.0, %v2363
      %v2365 = vpop.f32.mrb[0].mxu0
      %v2366 = vadd.f32 0.0, %v2365
      %v2367 = vpop.f32.mrb[0].mxu0
      %v2368 = vadd.f32 0.0, %v2367
      %2369 = vmatprep.mubr.bf16.mxu0 0
      %2370 = vmatmul.mubr.bf16.gmra.mrb[0].mxu0 %v2286
      %v2371 = vpop.f32.mrb[0].mxu0
      %v2372 = vadd.f32 0.0, %v2371
      %v2373 = vpop.f32.mrb[0].mxu0
      %v2374 = vadd.f32 0.0, %v2373
      %v2375 = vpop.f32.mrb[0].mxu0
      %v2376 = vadd.f32 0.0, %v2375
      %v2377 = vpop.f32.mrb[0].mxu0
      %v2378 = vadd.f32 0.0, %v2377
      %2379 = vdwg.mxu0
      %v2380 = vmul.f32 %v2362, %v635
      %v2381 = vmul.f32 %v2364, %v636
      %v2382 = vmul.f32 %v2366, %v637
      %v2383 = vmul.f32 %v2368, %v638
      %v2384 = vmul.f32 %v2372, %v639
      %v2385 = vmul.f32 %v2374, %v640
      %v2386 = vmul.f32 %v2376, %v641
      %v2387 = vmul.f32 %v2378, %v642
      %v2388 = vpack.c.bf16 %v2382, %v2380
      %v2389 = vpack.c.bf16 %v2383, %v2381
      %v2390 = vpack.c.bf16 %v2386, %v2384
      %v2391 = vpack.c.bf16 %v2387, %v2385
      %v2417 = vunpack.c.l.b16 %v657
      %v2418 = vunpack.c.l.b16 %v658
      %v2419 = vunpack.c.l.b16 %v659
      %v2420 = vunpack.c.l.b16 %v660
      %v2421 = vunpack.c.l.b16 %v661
      %v2422 = vunpack.c.l.b16 %v662
      %v2423 = vunpack.c.l.b16 %v663
      %v2424 = vunpack.c.l.b16 %v664
      %v2425 = vunpack.c.l.b16 %v665
      %v2426 = vunpack.c.l.b16 %v666
      %v2427 = vunpack.c.l.b16 %v667
      %v2428 = vunpack.c.l.b16 %v668
      %v2429 = vunpack.c.l.b16 %v669
      %v2430 = vunpack.c.l.b16 %v670
      %v2431 = vunpack.c.l.b16 %v671
      %v2432 = vunpack.c.l.b16 %v672
      %v2433 = vunpack.c.l.b16 %v673
      %v2434 = vunpack.c.l.b16 %v674
      %v2435 = vunpack.c.l.b16 %v675
      %v2436 = vunpack.c.l.b16 %v676
      %v2437 = vunpack.c.l.b16 %v677
      %v2438 = vunpack.c.l.b16 %v678
      %v2439 = vunpack.c.l.b16 %v679
      %v2440 = vunpack.c.l.b16 %v680
      %v2441 = vunpack.c.l.b16 %v681
      %v2442 = vpack.c.b16 %v2418, %v2417
      %v2443 = vpack.c.b16 %v2420, %v2419
      %v2444 = vpack.c.b16 %v2422, %v2421
      %v2445 = vpack.c.b16 %v2424, %v2423
      %v2446 = vpack.c.b16 %v2426, %v2425
      %v2447 = vpack.c.b16 %v2428, %v2427
      %v2448 = vpack.c.b16 %v2430, %v2429
      %v2449 = vpack.c.b16 %v2432, %v2431
      %v2450 = vpack.c.b16 %v2434, %v2433
      %v2451 = vpack.c.b16 %v2436, %v2435
      %v2452 = vpack.c.b16 %v2438, %v2437
      %v2453 = vpack.c.b16 %v2440, %v2439
      %v2454 = vpack.c.b16 %v2441, %v2441
      %vm2467 = vcmask 588800
      %v2469 = vsel %vm2467, %v2389, 0
      %v2472 = vsel %vm2467, %v2391, 0
      %vm2474 = vcmask 1043456
      %v2476 = vsel %vm2474, %v2454, 0
      %2478 = vmatprep.subr.bf16.mxu0 0
      %2479 = vmatpush1.bf16.msra.mxu0 %v2442
      %2480 = vmatprep.subr.bf16.mxu0 0
      %2481 = vmatpush1.bf16.msra.mxu0 %v2443
      %2482 = vmatprep.subr.bf16.mxu0 0
      %2483 = vmatpush1.bf16.msra.mxu0 %v2444
      %2484 = vmatprep.subr.bf16.mxu0 0
      %2485 = vmatpush1.bf16.msra.mxu0 %v2445
      %2486 = vmatprep.subr.bf16.mxu0 0
      %2487 = vmatpush1.bf16.msra.mxu0 %v2446
      %2488 = vmatprep.subr.bf16.mxu0 0
      %2489 = vmatpush1.bf16.msra.mxu0 %v2447
      %2490 = vmatprep.subr.bf16.mxu0 0
      %2491 = vmatpush1.bf16.msra.mxu0 %v2448
      %2492 = vmatprep.subr.bf16.mxu0 0
      %2493 = vmatpush1.bf16.msra.mxu0 %v2449
      %2494 = vmatprep.subr.bf16.mxu0 0
      %2495 = vmatpush1.bf16.msra.mxu0 %v2450
      %2496 = vmatprep.subr.bf16.mxu0 0
      %2497 = vmatpush1.bf16.msra.mxu0 %v2451
      %2498 = vmatprep.subr.bf16.mxu0 0
      %2499 = vmatpush1.bf16.msra.mxu0 %v2452
      %2500 = vmatprep.subr.bf16.mxu0 0
      %2501 = vmatpush1.bf16.msra.mxu0 %v2453
      %2502 = vmatprep.subr.bf16.mxu0 0
      %2503 = vmatpush1.bf16.msra.mxu0 %v2476
      %2504 = vmatprep.subr.bf16.mxu0 0
      %2505 = vmatpush1.bf16.msra.mxu0 0
      %2506 = vmatprep.subr.bf16.mxu0 0
      %2507 = vmatpush1.bf16.msra.mxu0 0
      %2508 = vmatprep.subr.bf16.mxu0 0
      %2509 = vmatpush1.bf16.msra.mxu0 0
      %2510 = vmatprep.mubr.bf16.mxu0 %v2469
      %2511 = vmatmul.mubr.bf16.gmra.mrb[0].mxu0 %v2388
      %v2512 = vpop.f32.mrb[0].mxu0
      %v2513 = vadd.f32 0.0, %v2512
      %v2514 = vpop.f32.mrb[0].mxu0
      %v2515 = vpop.f32.mrb[0].mxu0
      %v2516 = vadd.f32 0.0, %v2515
      %v2517 = vpop.f32.mrb[0].mxu0
      %2518 = vmatprep.mubr.bf16.mxu0 %v2472
      %2519 = vmatmul.mubr.bf16.gmra.mrb[0].mxu0 %v2390
      %v2520 = vpop.f32.mrb[0].mxu0
      %v2521 = vadd.f32 0.0, %v2520
      %v2522 = vpop.f32.mrb[0].mxu0
      %v2523 = vpop.f32.mrb[0].mxu0
      %v2524 = vadd.f32 0.0, %v2523
      %v2525 = vpop.f32.mrb[0].mxu0
      %2526 = vdwg.mxu0
      %2527 = vxpose.xlu0.b32.start [1/16] %v1464, 128
      %2528 = vxpose.xlu0.b32.cont [2/16] %v1467, 128
      %2529 = vxpose.xlu0.b32.cont [3/16] %v1472, 128
      %2530 = vxpose.xlu0.b32.cont [4/16] %v1475, 128
      %2531 = vxpose.xlu0.b32.cont [5/16] 0.0, 128
      %2532 = vxpose.xlu0.b32.cont [6/16] 0.0, 128
      %2533 = vxpose.xlu0.b32.cont [7/16] 0.0, 128
      %2534 = vxpose.xlu0.b32.cont [8/16] 0.0, 128
      %2535 = vxpose.xlu0.b32.cont [9/16] 0.0, 128
      %2536 = vxpose.xlu0.b32.cont [10/16] 0.0, 128
      %2537 = vxpose.xlu0.b32.cont [11/16] 0.0, 128
      %2538 = vxpose.xlu0.b32.cont [12/16] 0.0, 128
      %2539 = vxpose.xlu0.b32.cont [13/16] 0.0, 128
      %2540 = vxpose.xlu0.b32.cont [14/16] 0.0, 128
      %2541 = vxpose.xlu0.b32.cont [15/16] 0.0, 128
      %2542 = vxpose.xlu0.b32.end [16/16] 0.0, 128
      %v2543 = vpop.trf.xlu0
      %v2544 = vpop.trf.xlu0
      %v2545 = vpop.trf.xlu0
      %v2546 = vpop.trf.xlu0
      %v2547 = vpop.trf.xlu0
      %v2548 = vpop.trf.xlu0
      %v2549 = vpop.trf.xlu0
      %v2550 = vpop.trf.xlu0
      %v2551 = vpop.trf.xlu0
      %v2552 = vpop.trf.xlu0
      %v2553 = vpop.trf.xlu0
      %v2554 = vpop.trf.xlu0
      %v2555 = vpop.trf.xlu0
      %v2556 = vpop.trf.xlu0
      %v2557 = vpop.trf.xlu0
      %v2558 = vpop.trf.xlu0
      %v2560 = vsel %vm813, %v2543, 0
      %v2563 = vsel %vm813, %v2544, 0
      %v2566 = vsel %vm813, %v2545, 0
      %v2569 = vsel %vm813, %v2546, 0
      %v2572 = vsel %vm813, %v2547, 0
      %v2575 = vsel %vm813, %v2548, 0
      %v2578 = vsel %vm813, %v2549, 0
      %2580 = vmatprep.subr.mxu0 %v1638
      %2581 = vmatpush1.msra.mxu0 %v1637
      %2582 = vmatprep.subr.mxu0 %v1640
      %2583 = vmatpush1.msra.mxu0 %v1639
      %2584 = vmatprep.subr.mxu0 %v1642
      %2585 = vmatpush1.msra.mxu0 %v1641
      %2586 = vmatprep.subr.mxu0 %v1644
      %2587 = vmatpush1.msra.mxu0 %v1643
      %2588 = vmatprep.subr.mxu0 0.0
      %2589 = vmatpush1.msra.mxu0 0.0
      %2590 = vmatprep.subr.mxu0 0.0
      %2591 = vmatpush1.msra.mxu0 0.0
      %2592 = vmatprep.subr.mxu0 0.0
      %2593 = vmatpush1.msra.mxu0 0.0
      %2594 = vmatprep.subr.mxu0 0.0
      %2595 = vmatpush1.msra.mxu0 0.0
      %2596 = vmatprep.subr.mxu0 0.0
      %2597 = vmatpush1.msra.mxu0 0.0
      %2598 = vmatprep.subr.mxu0 0.0
      %2599 = vmatpush1.msra.mxu0 0.0
      %2600 = vmatprep.subr.mxu0 0.0
      %2601 = vmatpush1.msra.mxu0 0.0
      %2602 = vmatprep.subr.mxu0 0.0
      %2603 = vmatpush1.msra.mxu0 0.0
      %2604 = vmatprep.subr.mxu0 0.0
      %2605 = vmatpush1.msra.mxu0 0.0
      %2606 = vmatprep.subr.mxu0 0.0
      %2607 = vmatpush1.msra.mxu0 0.0
      %2608 = vmatprep.subr.mxu0 0.0
      %2609 = vmatpush1.msra.mxu0 0.0
      %2610 = vmatprep.subr.mxu0 0.0
      %2611 = vmatpush1.msra.mxu0 0.0
      %2612 = vmatprep.subr.mxu0 0.0
      %2613 = vmatpush1.msra.mxu0 0.0
      %2614 = vmatprep.subr.mxu0 0.0
      %2615 = vmatpush1.msra.mxu0 0.0
      %2616 = vmatprep.subr.mxu0 0.0
      %2617 = vmatpush1.msra.mxu0 0.0
      %2618 = vmatprep.subr.mxu0 0.0
      %2619 = vmatpush1.msra.mxu0 0.0
      %2620 = vmatprep.subr.mxu0 0.0
      %2621 = vmatpush1.msra.mxu0 0.0
      %2622 = vmatprep.subr.mxu0 0.0
      %2623 = vmatpush1.msra.mxu0 0.0
      %2624 = vmatprep.subr.mxu0 0.0
      %2625 = vmatpush1.msra.mxu0 0.0
      %2626 = vmatprep.subr.mxu0 0.0
      %2627 = vmatpush1.msra.mxu0 0.0
      %2628 = vmatprep.subr.mxu0 0.0
      %2629 = vmatpush1.msra.mxu0 0.0
      %2630 = vmatprep.subr.mxu0 0.0
      %2631 = vmatpush1.msra.mxu0 0.0
      %2632 = vmatprep.subr.mxu0 0.0
      %2633 = vmatpush1.msra.mxu0 0.0
      %2634 = vmatprep.subr.mxu0 0.0
      %2635 = vmatpush1.msra.mxu0 0.0
      %2636 = vmatprep.subr.mxu0 0.0
      %2637 = vmatpush1.msra.mxu0 0.0
      %2638 = vmatprep.subr.mxu0 0.0
      %2639 = vmatpush1.msra.mxu0 0.0
      %2640 = vmatprep.subr.mxu0 0.0
      %2641 = vmatpush1.msra.mxu0 0.0
      %2642 = vmatprep.subr.mxu0 0.0
      %2643 = vmatpush1.msra.mxu0 0.0
      %2644 = vmatprep.mubr.f32.mxu0 0.0
      %2645 = vmatmul.mubr.f32.gmra.mrb[0].mxu0 %v2560
      %v2646 = vpop.f32.mrb[0].mxu0
      %v2647 = vadd.f32 0.0, %v2646
      %v2648 = vpop.f32.mrb[0].mxu0
      %v2649 = vadd.f32 0.0, %v2648
      %2650 = vmatprep.mubr.f32.mxu0 0.0
      %2651 = vmatmul.mubr.f32.gmra.mrb[0].mxu0 %v2563
      %v2652 = vpop.f32.mrb[0].mxu0
      %v2653 = vadd.f32 0.0, %v2652
      %v2654 = vpop.f32.mrb[0].mxu0
      %v2655 = vadd.f32 0.0, %v2654
      %2656 = vmatprep.mubr.f32.mxu0 0.0
      %2657 = vmatmul.mubr.f32.gmra.mrb[0].mxu0 %v2566
      %v2658 = vpop.f32.mrb[0].mxu0
      %v2659 = vadd.f32 0.0, %v2658
      %v2660 = vpop.f32.mrb[0].mxu0
      %v2661 = vadd.f32 0.0, %v2660
      %2662 = vmatprep.mubr.f32.mxu0 0.0
      %2663 = vmatmul.mubr.f32.gmra.mrb[0].mxu0 %v2569
      %v2664 = vpop.f32.mrb[0].mxu0
      %v2665 = vadd.f32 0.0, %v2664
      %v2666 = vpop.f32.mrb[0].mxu0
      %v2667 = vadd.f32 0.0, %v2666
      %2668 = vmatprep.mubr.f32.mxu0 0.0
      %2669 = vmatmul.mubr.f32.gmra.mrb[0].mxu0 %v2572
      %v2670 = vpop.f32.mrb[0].mxu0
      %v2671 = vadd.f32 0.0, %v2670
      %v2672 = vpop.f32.mrb[0].mxu0
      %v2673 = vadd.f32 0.0, %v2672
      %2674 = vmatprep.mubr.f32.mxu0 0.0
      %2675 = vmatmul.mubr.f32.gmra.mrb[0].mxu0 %v2575
      %v2676 = vpop.f32.mrb[0].mxu0
      %v2677 = vadd.f32 0.0, %v2676
      %v2678 = vpop.f32.mrb[0].mxu0
      %v2679 = vadd.f32 0.0, %v2678
      %2680 = vmatprep.mubr.f32.mxu0 0.0
      %2681 = vmatmul.mubr.f32.gmra.mrb[0].mxu0 %v2578
      %v2682 = vpop.f32.mrb[0].mxu0
      %v2683 = vadd.f32 0.0, %v2682
      %v2684 = vpop.f32.mrb[0].mxu0
      %v2685 = vadd.f32 0.0, %v2684
      %2686 = vdwg.mxu0
      %v2687 = vmul.f32 %v1464, %v1464
      %v2688 = vmul.f32 %v1467, %v1467
      %v2689 = vmul.f32 %v1472, %v1472
      %v2690 = vmul.f32 %v1475, %v1475
      %2691 = vxpose.xlu0.b32.start [1/16] %v2687, 128
      %2692 = vxpose.xlu0.b32.cont [2/16] %v2688, 128
      %2693 = vxpose.xlu0.b32.cont [3/16] %v2689, 128
      %2694 = vxpose.xlu0.b32.cont [4/16] %v2690, 128
      %2695 = vxpose.xlu0.b32.cont [5/16] 0.0, 128
      %2696 = vxpose.xlu0.b32.cont [6/16] 0.0, 128
      %2697 = vxpose.xlu0.b32.cont [7/16] 0.0, 128
      %2698 = vxpose.xlu0.b32.cont [8/16] 0.0, 128
      %2699 = vxpose.xlu0.b32.cont [9/16] 0.0, 128
      %2700 = vxpose.xlu0.b32.cont [10/16] 0.0, 128
      %2701 = vxpose.xlu0.b32.cont [11/16] 0.0, 128
      %2702 = vxpose.xlu0.b32.cont [12/16] 0.0, 128
      %2703 = vxpose.xlu0.b32.cont [13/16] 0.0, 128
      %2704 = vxpose.xlu0.b32.cont [14/16] 0.0, 128
      %2705 = vxpose.xlu0.b32.cont [15/16] 0.0, 128
      %2706 = vxpose.xlu0.b32.end [16/16] 0.0, 128
      %v2707 = vpop.trf.xlu0
      %v2708 = vpop.trf.xlu0
      %v2709 = vpop.trf.xlu0
      %v2710 = vpop.trf.xlu0
      %v2711 = vpop.trf.xlu0
      %v2712 = vpop.trf.xlu0
      %v2713 = vpop.trf.xlu0
      %v2714 = vpop.trf.xlu0
      %v2715 = vpop.trf.xlu0
      %v2716 = vpop.trf.xlu0
      %v2717 = vpop.trf.xlu0
      %v2718 = vpop.trf.xlu0
      %v2719 = vpop.trf.xlu0
      %v2720 = vpop.trf.xlu0
      %v2721 = vpop.trf.xlu0
      %v2722 = vpop.trf.xlu0
      %v2724 = vsel %vm813, %v2707, 0
      %v2727 = vsel %vm813, %v2708, 0
      %v2730 = vsel %vm813, %v2709, 0
      %v2733 = vsel %vm813, %v2710, 0
      %v2736 = vsel %vm813, %v2711, 0
      %v2739 = vsel %vm813, %v2712, 0
      %v2742 = vsel %vm813, %v2713, 0
      %2744 = vmatprep.subr.mxu0 %v636
      %2745 = vmatpush1.msra.mxu0 %v635
      %2746 = vmatprep.subr.mxu0 %v638
      %2747 = vmatpush1.msra.mxu0 %v637
      %2748 = vmatprep.subr.mxu0 %v640
      %2749 = vmatpush1.msra.mxu0 %v639
      %2750 = vmatprep.subr.mxu0 %v642
      %2751 = vmatpush1.msra.mxu0 %v641
      %2752 = vmatprep.subr.mxu0 0.0
      %2753 = vmatpush1.msra.mxu0 0.0
      %2754 = vmatprep.subr.mxu0 0.0
      %2755 = vmatpush1.msra.mxu0 0.0
      %2756 = vmatprep.subr.mxu0 0.0
      %2757 = vmatpush1.msra.mxu0 0.0
      %2758 = vmatprep.subr.mxu0 0.0
      %2759 = vmatpush1.msra.mxu0 0.0
      %2760 = vmatprep.subr.mxu0 0.0
      %2761 = vmatpush1.msra.mxu0 0.0
      %2762 = vmatprep.subr.mxu0 0.0
      %2763 = vmatpush1.msra.mxu0 0.0
      %2764 = vmatprep.subr.mxu0 0.0
      %2765 = vmatpush1.msra.mxu0 0.0
      %2766 = vmatprep.subr.mxu0 0.0
      %2767 = vmatpush1.msra.mxu0 0.0
      %2768 = vmatprep.subr.mxu0 0.0
      %2769 = vmatpush1.msra.mxu0 0.0
      %2770 = vmatprep.subr.mxu0 0.0
      %2771 = vmatpush1.msra.mxu0 0.0
      %2772 = vmatprep.subr.mxu0 0.0
      %2773 = vmatpush1.msra.mxu0 0.0
      %2774 = vmatprep.subr.mxu0 0.0
      %2775 = vmatpush1.msra.mxu0 0.0
      %2776 = vmatprep.subr.mxu0 0.0
      %2777 = vmatpush1.msra.mxu0 0.0
      %2778 = vmatprep.subr.mxu0 0.0
      %2779 = vmatpush1.msra.mxu0 0.0
      %2780 = vmatprep.subr.mxu0 0.0
      %2781 = vmatpush1.msra.mxu0 0.0
      %2782 = vmatprep.subr.mxu0 0.0
      %2783 = vmatpush1.msra.mxu0 0.0
      %2784 = vmatprep.subr.mxu0 0.0
      %2785 = vmatpush1.msra.mxu0 0.0
      %2786 = vmatprep.subr.mxu0 0.0
      %2787 = vmatpush1.msra.mxu0 0.0
      %2788 = vmatprep.subr.mxu0 0.0
      %2789 = vmatpush1.msra.mxu0 0.0
      %2790 = vmatprep.subr.mxu0 0.0
      %2791 = vmatpush1.msra.mxu0 0.0
      %2792 = vmatprep.subr.mxu0 0.0
      %2793 = vmatpush1.msra.mxu0 0.0
      %2794 = vmatprep.subr.mxu0 0.0
      %2795 = vmatpush1.msra.mxu0 0.0
      %2796 = vmatprep.subr.mxu0 0.0
      %2797 = vmatpush1.msra.mxu0 0.0
      %2798 = vmatprep.subr.mxu0 0.0
      %2799 = vmatpush1.msra.mxu0 0.0
      %2800 = vmatprep.subr.mxu0 0.0
      %2801 = vmatpush1.msra.mxu0 0.0
      %2802 = vmatprep.subr.mxu0 0.0
      %2803 = vmatpush1.msra.mxu0 0.0
      %2804 = vmatprep.subr.mxu0 0.0
      %2805 = vmatpush1.msra.mxu0 0.0
      %2806 = vmatprep.subr.mxu0 0.0
      %2807 = vmatpush1.msra.mxu0 0.0
      %2808 = vmatprep.mubr.f32.mxu0 0.0
      %2809 = vmatmul.mubr.f32.gmra.mrb[0].mxu0 %v2724
      %v2810 = vpop.f32.mrb[0].mxu0
      %v2811 = vadd.f32 0.0, %v2810
      %v2812 = vpop.f32.mrb[0].mxu0
      %v2813 = vadd.f32 0.0, %v2812
      %2814 = vmatprep.mubr.f32.mxu0 0.0
      %2815 = vmatmul.mubr.f32.gmra.mrb[0].mxu0 %v2727
      %v2816 = vpop.f32.mrb[0].mxu0
      %v2817 = vadd.f32 0.0, %v2816
      %v2818 = vpop.f32.mrb[0].mxu0
      %v2819 = vadd.f32 0.0, %v2818
      %2820 = vmatprep.mubr.f32.mxu0 0.0
      %2821 = vmatmul.mubr.f32.gmra.mrb[0].mxu0 %v2730
      %v2822 = vpop.f32.mrb[0].mxu0
      %v2823 = vadd.f32 0.0, %v2822
      %v2824 = vpop.f32.mrb[0].mxu0
      %v2825 = vadd.f32 0.0, %v2824
      %2826 = vmatprep.mubr.f32.mxu0 0.0
      %2827 = vmatmul.mubr.f32.gmra.mrb[0].mxu0 %v2733
      %v2828 = vpop.f32.mrb[0].mxu0
      %v2829 = vadd.f32 0.0, %v2828
      %v2830 = vpop.f32.mrb[0].mxu0
      %v2831 = vadd.f32 0.0, %v2830
      %2832 = vmatprep.mubr.f32.mxu0 0.0
      %2833 = vmatmul.mubr.f32.gmra.mrb[0].mxu0 %v2736
      %v2834 = vpop.f32.mrb[0].mxu0
      %v2835 = vadd.f32 0.0, %v2834
      %v2836 = vpop.f32.mrb[0].mxu0
      %v2837 = vadd.f32 0.0, %v2836
      %2838 = vmatprep.mubr.f32.mxu0 0.0
      %2839 = vmatmul.mubr.f32.gmra.mrb[0].mxu0 %v2739
      %v2840 = vpop.f32.mrb[0].mxu0
      %v2841 = vadd.f32 0.0, %v2840
      %v2842 = vpop.f32.mrb[0].mxu0
      %v2843 = vadd.f32 0.0, %v2842
      %2844 = vmatprep.mubr.f32.mxu0 0.0
      %2845 = vmatmul.mubr.f32.gmra.mrb[0].mxu0 %v2742
      %v2846 = vpop.f32.mrb[0].mxu0
      %v2847 = vadd.f32 0.0, %v2846
      %v2848 = vpop.f32.mrb[0].mxu0
      %v2849 = vadd.f32 0.0, %v2848
      %2850 = vdwg.mxu0
      %v2851 = vmul.f32 %v2647, 2.0
      %v2852 = vmul.f32 %v2649, 2.0
      %v2853 = vmul.f32 %v2653, 2.0
      %v2854 = vmul.f32 %v2655, 2.0
      %v2855 = vmul.f32 %v2659, 2.0
      %v2856 = vmul.f32 %v2661, 2.0
      %v2857 = vmul.f32 %v2665, 2.0
      %v2858 = vmul.f32 %v2667, 2.0
      %v2859 = vmul.f32 %v2671, 2.0
      %v2860 = vmul.f32 %v2673, 2.0
      %v2861 = vmul.f32 %v2677, 2.0
      %v2862 = vmul.f32 %v2679, 2.0
      %v2863 = vmul.f32 %v2683, 2.0
      %v2864 = vmul.f32 %v2685, 2.0
      %v2865 = vsub.f32 %v2851, %v2811
      %v2866 = vsub.f32 %v2852, %v2813
      %v2867 = vsub.f32 %v2853, %v2817
      %v2868 = vsub.f32 %v2854, %v2819
      %v2869 = vsub.f32 %v2855, %v2823
      %v2870 = vsub.f32 %v2856, %v2825
      %v2871 = vsub.f32 %v2857, %v2829
      %v2872 = vsub.f32 %v2858, %v2831
      %v2873 = vsub.f32 %v2859, %v2835
      %v2874 = vsub.f32 %v2860, %v2837
      %v2875 = vsub.f32 %v2861, %v2841
      %v2876 = vsub.f32 %v2862, %v2843
      %v2877 = vsub.f32 %v2863, %v2847
      %v2878 = vsub.f32 %v2864, %v2849
      %v2879 = vld [vmem:[%s9] sm:$0xf]
      %v2880 = vld [vmem:[%s9 + $0x4] sm:$0xf]
      %v2881 = vld [vmem:[%s9 + $0x8] sm:$0xf]
      %v2882 = vld [vmem:[%s9 + $0xc] sm:$0xf]
      %v2883 = vld [vmem:[%s9 + $0x10] sm:$0xf]
      %v2884 = vld [vmem:[%s9 + $0x14] sm:$0xf]
      %v2885 = vld [vmem:[%s9 + $0x18] sm:$0xf]
      %v2886 = vld [vmem:[%s9 + $0x1c] sm:$0xf]
      %v2887 = vld [vmem:[%s9 + $0x20] sm:$0xf]
      %v2888 = vld [vmem:[%s9 + $0x24] sm:$0xf]
      %v2889 = vld [vmem:[%s9 + $0x28] sm:$0xf]
      %v2890 = vld [vmem:[%s9 + $0x2c] sm:$0xf]
      %v2903 = vunpack.c.l.b16 %v2879
      %v2904 = vunpack.c.l.b16 %v2880
      %v2905 = vunpack.c.l.b16 %v2881
      %v2906 = vunpack.c.l.b16 %v2882
      %v2907 = vunpack.c.l.b16 %v2883
      %v2908 = vunpack.c.l.b16 %v2884
      %v2909 = vunpack.c.l.b16 %v2885
      %v2910 = vunpack.c.l.b16 %v2886
      %v2911 = vunpack.c.l.b16 %v2887
      %v2912 = vunpack.c.l.b16 %v2888
      %v2913 = vunpack.c.l.b16 %v2889
      %v2914 = vunpack.c.l.b16 %v2890
      %v2915 = vpack.c.b16 %v2904, %v2903
      %v2916 = vpack.c.b16 %v2906, %v2905
      %v2917 = vpack.c.b16 %v2908, %v2907
      %v2918 = vpack.c.b16 %v2910, %v2909
      %v2919 = vpack.c.b16 %v2912, %v2911
      %v2920 = vpack.c.b16 %v2914, %v2913
      %v2922 = vsel %vm813, %v2915, 0
      %v2925 = vsel %vm813, %v2916, 0
      %v2928 = vsel %vm813, %v2917, 0
      %v2931 = vsel %vm813, %v2918, 0
      %v2934 = vsel %vm813, %v2919, 0
      %v2937 = vsel %vm813, %v2920, 0
      %2939 = vmatprep.subr.bf16.mxu0 0
      %2940 = vmatpush1.bf16.msra.mxu0 %v1526
      %2941 = vmatprep.subr.bf16.mxu0 0
      %2942 = vmatpush1.bf16.msra.mxu0 %v1527
      %2943 = vmatprep.subr.bf16.mxu0 0
      %2944 = vmatpush1.bf16.msra.mxu0 0
      %2945 = vmatprep.subr.bf16.mxu0 0
      %2946 = vmatpush1.bf16.msra.mxu0 0
      %2947 = vmatprep.subr.bf16.mxu0 0
      %2948 = vmatpush1.bf16.msra.mxu0 0
      %2949 = vmatprep.subr.bf16.mxu0 0
      %2950 = vmatpush1.bf16.msra.mxu0 0
      %2951 = vmatprep.subr.bf16.mxu0 0
      %2952 = vmatpush1.bf16.msra.mxu0 0
      %2953 = vmatprep.subr.bf16.mxu0 0
      %2954 = vmatpush1.bf16.msra.mxu0 0
      %2955 = vmatprep.subr.bf16.mxu0 0
      %2956 = vmatpush1.bf16.msra.mxu0 0
      %2957 = vmatprep.subr.bf16.mxu0 0
      %2958 = vmatpush1.bf16.msra.mxu0 0
      %2959 = vmatprep.subr.bf16.mxu0 0
      %2960 = vmatpush1.bf16.msra.mxu0 0
      %2961 = vmatprep.subr.bf16.mxu0 0
      %2962 = vmatpush1.bf16.msra.mxu0 0
      %2963 = vmatprep.subr.bf16.mxu0 0
      %2964 = vmatpush1.bf16.msra.mxu0 0
      %2965 = vmatprep.subr.bf16.mxu0 0
      %2966 = vmatpush1.bf16.msra.mxu0 0
      %2967 = vmatprep.subr.bf16.mxu0 0
      %2968 = vmatpush1.bf16.msra.mxu0 0
      %2969 = vmatprep.subr.bf16.mxu0 0
      %2970 = vmatpush1.bf16.msra.mxu0 0
      %2971 = vmatprep.mubr.bf16.mxu0 0
      %2972 = vmatmul.mubr.bf16.gmra.mrb[0].mxu0 %v2922
      %v2973 = vpop.f32.mrb[0].mxu0
      %v2974 = vadd.f32 0.0, %v2973
      %v2975 = vpop.f32.mrb[0].mxu0
      %v2976 = vpop.f32.mrb[0].mxu0
      %v2977 = vadd.f32 0.0, %v2976
      %v2978 = vpop.f32.mrb[0].mxu0
      %2979 = vmatprep.mubr.bf16.mxu0 0
      %2980 = vmatmul.mubr.bf16.gmra.mrb[0].mxu0 %v2925
      %v2981 = vpop.f32.mrb[0].mxu0
      %v2982 = vadd.f32 0.0, %v2981
      %v2983 = vpop.f32.mrb[0].mxu0
      %v2984 = vpop.f32.mrb[0].mxu0
      %v2985 = vadd.f32 0.0, %v2984
      %v2986 = vpop.f32.mrb[0].mxu0
      %2987 = vmatprep.mubr.bf16.mxu0 0
      %2988 = vmatmul.mubr.bf16.gmra.mrb[0].mxu0 %v2928
      %v2989 = vpop.f32.mrb[0].mxu0
      %v2990 = vadd.f32 0.0, %v2989
      %v2991 = vpop.f32.mrb[0].mxu0
      %v2992 = vpop.f32.mrb[0].mxu0
      %v2993 = vadd.f32 0.0, %v2992
      %v2994 = vpop.f32.mrb[0].mxu0
      %2995 = vmatprep.mubr.bf16.mxu0 0
      %2996 = vmatmul.mubr.bf16.gmra.mrb[0].mxu0 %v2931
      %v2997 = vpop.f32.mrb[0].mxu0
      %v2998 = vadd.f32 0.0, %v2997
      %v2999 = vpop.f32.mrb[0].mxu0
      %v3000 = vpop.f32.mrb[0].mxu0
      %v3001 = vadd.f32 0.0, %v3000
      %v3002 = vpop.f32.mrb[0].mxu0
      %3003 = vmatprep.mubr.bf16.mxu0 0
      %3004 = vmatmul.mubr.bf16.gmra.mrb[0].mxu0 %v2934
      %v3005 = vpop.f32.mrb[0].mxu0
      %v3006 = vadd.f32 0.0, %v3005
      %v3007 = vpop.f32.mrb[0].mxu0
      %v3008 = vpop.f32.mrb[0].mxu0
      %v3009 = vadd.f32 0.0, %v3008
      %v3010 = vpop.f32.mrb[0].mxu0
      %3011 = vmatprep.mubr.bf16.mxu0 0
      %3012 = vmatmul.mubr.bf16.gmra.mrb[0].mxu0 %v2937
      %v3013 = vpop.f32.mrb[0].mxu0
      %v3014 = vadd.f32 0.0, %v3013
      %v3015 = vpop.f32.mrb[0].mxu0
      %v3016 = vpop.f32.mrb[0].mxu0
      %v3017 = vadd.f32 0.0, %v3016
      %v3018 = vpop.f32.mrb[0].mxu0
      %3019 = vdwg.mxu0
      %v3020 = vpack.c.bf16 %v2977, %v2974
      %v3021 = vpack.c.bf16 %v2985, %v2982
      %v3022 = vpack.c.bf16 %v2993, %v2990
      %v3023 = vpack.c.bf16 %v3001, %v2998
      %v3024 = vpack.c.bf16 %v3009, %v3006
      %v3025 = vpack.c.bf16 %v3017, %v3014
      %v3026 = vld [vmem:[%s7] sm:$0xf]
      %v3027 = vld [vmem:[%s7 + $0x4] sm:$0xf]
      %v3028 = vld [vmem:[%s7 + $0x8] sm:$0xf]
      %v3029 = vld [vmem:[%s7 + $0xc] sm:$0xf]
      %v3030 = vld [vmem:[%s8] sm:$0xff]
      %v3031 = vld [vmem:[%s8 + $0x8] sm:$0xff]
      %v3032 = vld [vmem:[%s8 + $0x10] sm:$0xff]
      %v3033 = vld [vmem:[%s8 + $0x18] sm:$0xff]
      %3035 = vset.pattern.permute.xlu0 0
      %3036 = vperm.xlu0 %3035, %v3030
      %v3037 = vpop.permute.xlu0 %3036
      %3040 = vset.pattern.permute.xlu0 0
      %3041 = vperm.xlu0 %3040, %v3031
      %v3042 = vpop.permute.xlu0 %3041
      %3045 = vset.pattern.permute.xlu0 0
      %3046 = vperm.xlu0 %3045, %v3032
      %v3047 = vpop.permute.xlu0 %3046
      %3050 = vset.pattern.permute.xlu0 0
      %3051 = vperm.xlu0 %3050, %v3033
      %v3052 = vpop.permute.xlu0 %3051
      %v3058 = vunpack.c.l.b16 %v3026
      %v3059 = vunpack.c.l.b16 %v3027
      %v3060 = vunpack.c.l.b16 %v3028
      %v3061 = vunpack.c.l.b16 %v3029
      %v3062 = vpack.c.b16 %v3059, %v3058
      %v3063 = vpack.c.b16 %v3061, %v3060
      %v3065 = vsel %vm813, %v3062, 0
      %v3068 = vsel %vm813, %v3063, 0
      %3070 = vmatprep.subr.bf16.mxu0 0
      %3071 = vmatpush1.bf16.msra.mxu0 %v1526
      %3072 = vmatprep.subr.bf16.mxu0 0
      %3073 = vmatpush1.bf16.msra.mxu0 %v1527
      %3074 = vmatprep.subr.bf16.mxu0 0
      %3075 = vmatpush1.bf16.msra.mxu0 0
      %3076 = vmatprep.subr.bf16.mxu0 0
      %3077 = vmatpush1.bf16.msra.mxu0 0
      %3078 = vmatprep.subr.bf16.mxu0 0
      %3079 = vmatpush1.bf16.msra.mxu0 0
      %3080 = vmatprep.subr.bf16.mxu0 0
      %3081 = vmatpush1.bf16.msra.mxu0 0
      %3082 = vmatprep.subr.bf16.mxu0 0
      %3083 = vmatpush1.bf16.msra.mxu0 0
      %3084 = vmatprep.subr.bf16.mxu0 0
      %3085 = vmatpush1.bf16.msra.mxu0 0
      %3086 = vmatprep.subr.bf16.mxu0 0
      %3087 = vmatpush1.bf16.msra.mxu0 0
      %3088 = vmatprep.subr.bf16.mxu0 0
      %3089 = vmatpush1.bf16.msra.mxu0 0
      %3090 = vmatprep.subr.bf16.mxu0 0
      %3091 = vmatpush1.bf16.msra.mxu0 0
      %3092 = vmatprep.subr.bf16.mxu0 0
      %3093 = vmatpush1.bf16.msra.mxu0 0
      %3094 = vmatprep.subr.bf16.mxu0 0
      %3095 = vmatpush1.bf16.msra.mxu0 0
      %3096 = vmatprep.subr.bf16.mxu0 0
      %3097 = vmatpush1.bf16.msra.mxu0 0
      %3098 = vmatprep.subr.bf16.mxu0 0
      %3099 = vmatpush1.bf16.msra.mxu0 0
      %3100 = vmatprep.subr.bf16.mxu0 0
      %3101 = vmatpush1.bf16.msra.mxu0 0
      %3102 = vmatprep.mubr.bf16.mxu0 0
      %3103 = vmatmul.mubr.bf16.gmra.mrb[0].mxu0 %v3065
      %v3104 = vpop.f32.mrb[0].mxu0
      %v3105 = vadd.f32 %v3037, %v3104
      %v3106 = vpop.f32.mrb[0].mxu0
      %v3107 = vpop.f32.mrb[0].mxu0
      %v3108 = vadd.f32 %v3042, %v3107
      %v3109 = vpop.f32.mrb[0].mxu0
      %3110 = vmatprep.mubr.bf16.mxu0 0
      %3111 = vmatmul.mubr.bf16.gmra.mrb[0].mxu0 %v3068
      %v3112 = vpop.f32.mrb[0].mxu0
      %v3113 = vadd.f32 %v3047, %v3112
      %v3114 = vpop.f32.mrb[0].mxu0
      %v3115 = vpop.f32.mrb[0].mxu0
      %v3116 = vadd.f32 %v3052, %v3115
      %v3117 = vpop.f32.mrb[0].mxu0
      %3118 = vdwg.mxu0
      %v3119 = vlaneseq
      %v3120 = vshrl.u32 %v3119, 7
      %v3121 = vadd.s32 %v3120, 8
      %v3122 = vadd.s32 %v3120, 16
      %v3123 = vadd.s32 %v3120, 24
      %v3124 = vadd.s32 %v3120, 32
      %v3125 = vadd.s32 %v3120, 40
      %v3126 = vadd.s32 %v3120, 48
      %v3127 = vcvt.s32.f32 %v3120
      %v3128 = vcvt.s32.f32 %v3121
      %v3129 = vcvt.s32.f32 %v3122
      %v3130 = vcvt.s32.f32 %v3123
      %v3131 = vcvt.s32.f32 %v3124
      %v3132 = vcvt.s32.f32 %v3125
      %v3133 = vcvt.s32.f32 %v3126
      %v3134 = vmax.f32 %v2865, %v2869
      %v3135 = vmax.f32 %v2867, %v2871
      %v3136 = vmax.f32 %v3134, %v2873
      %v3137 = vmax.f32 %v3135, %v2875
      %v3138 = vsel %vm1541, %v2877, -inf
      %v3139 = vmax.f32 %v3136, %v3138
      %v3140 = vmax.f32 %v3139, %v3137
      %v3141 = vrot.slane %v3140, 4
      %v3142 = vmax.f32 %v3140, %v3141
      %v3143 = vrot.slane %v3142, 2
      %v3144 = vmax.f32 %v3142, %v3143
      %v3145 = vrot.slane %v3144, 1
      %v3146 = vmax.f32 %v3144, %v3145
      %v3147 = vsel %vm2467, %v2866, -inf
      %v3148 = vsel %vm2467, %v2868, -inf
      %v3149 = vsel %vm2467, %v2870, -inf
      %v3150 = vmax.f32 %v3147, %v3149
      %v3151 = vsel %vm2467, %v2872, -inf
      %v3152 = vmax.f32 %v3148, %v3151
      %v3153 = vsel %vm2467, %v2874, -inf
      %v3154 = vmax.f32 %v3150, %v3153
      %v3155 = vsel %vm2467, %v2876, -inf
      %v3156 = vmax.f32 %v3152, %v3155
      %vm3157 = vcmask 582656
      %v3158 = vsel %vm3157, %v2878, -inf
      %v3159 = vmax.f32 %v3154, %v3158
      %v3160 = vmax.f32 %v3159, %v3156
      %v3161 = vrot.slane %v3160, 4
      %v3162 = vmax.f32 %v3160, %v3161
      %v3163 = vrot.slane %v3162, 2
      %v3164 = vmax.f32 %v3162, %v3163
      %v3165 = vrot.slane %v3164, 1
      %v3166 = vmax.f32 %v3164, %v3165
      %vm3167 = vcmp.ge.f32.partialorder %v2865, %v3146
      %vm3168 = vcmp.ge.f32.partialorder %v2866, %v3166
      %vm3169 = vcmp.ge.f32.partialorder %v2867, %v3146
      %vm3170 = vcmp.ge.f32.partialorder %v2868, %v3166
      %vm3171 = vcmp.ge.f32.partialorder %v2869, %v3146
      %vm3172 = vcmp.ge.f32.partialorder %v2870, %v3166
      %vm3173 = vcmp.ge.f32.partialorder %v2871, %v3146
      %vm3174 = vcmp.ge.f32.partialorder %v2872, %v3166
      %vm3175 = vcmp.ge.f32.partialorder %v2873, %v3146
      %vm3176 = vcmp.ge.f32.partialorder %v2874, %v3166
      %vm3177 = vcmp.ge.f32.partialorder %v2875, %v3146
      %vm3178 = vcmp.ge.f32.partialorder %v2876, %v3166
      %vm3179 = vcmp.ge.f32.partialorder %v2877, %v3146
      %vm3180 = vcmp.ge.f32.partialorder %v2878, %v3166
      %v3181 = vsel %vm3167, %v3127, 50.0
      %v3182 = vsel %vm3168, %v3127, 50.0
      %v3183 = vsel %vm3169, %v3128, 50.0
      %v3184 = vsel %vm3170, %v3128, 50.0
      %v3185 = vsel %vm3171, %v3129, 50.0
      %v3186 = vsel %vm3172, %v3129, 50.0
      %v3187 = vsel %vm3173, %v3130, 50.0
      %v3188 = vsel %vm3174, %v3130, 50.0
      %v3189 = vsel %vm3175, %v3131, 50.0
      %v3190 = vsel %vm3176, %v3131, 50.0
      %v3191 = vsel %vm3177, %v3132, 50.0
      %v3192 = vsel %vm3178, %v3132, 50.0
      %v3193 = vsel %vm3179, %v3133, 50.0
      %v3194 = vsel %vm3180, %v3133, 50.0
      %v3195 = vmin.f32 %v3181, %v3185
      %v3196 = vmin.f32 %v3183, %v3187
      %v3197 = vmin.f32 %v3195, %v3189
      %v3198 = vmin.f32 %v3196, %v3191
      %v3199 = vsel %vm1541, %v3193, inf
      %v3200 = vmin.f32 %v3197, %v3199
      %v3201 = vmin.f32 %v3200, %v3198
      %v3202 = vrot.slane %v3201, 4
      %v3203 = vmin.f32 %v3201, %v3202
      %v3204 = vrot.slane %v3203, 2
      %v3205 = vmin.f32 %v3203, %v3204
      %v3206 = vrot.slane %v3205, 1
      %v3207 = vmin.f32 %v3205, %v3206
      %v3208 = vsel %vm2467, %v3182, inf
      %v3209 = vsel %vm2467, %v3184, inf
      %v3210 = vsel %vm2467, %v3186, inf
      %v3211 = vmin.f32 %v3208, %v3210
      %v3212 = vsel %vm2467, %v3188, inf
      %v3213 = vmin.f32 %v3209, %v3212
      %v3214 = vsel %vm2467, %v3190, inf
      %v3215 = vmin.f32 %v3211, %v3214
      %v3216 = vsel %vm2467, %v3192, inf
      %v3217 = vmin.f32 %v3213, %v3216
      %v3218 = vsel %vm3157, %v3194, inf
      %v3219 = vmin.f32 %v3215, %v3218
      %v3220 = vmin.f32 %v3219, %v3217
      %v3221 = vrot.slane %v3220, 4
      %v3222 = vmin.f32 %v3220, %v3221
      %v3223 = vrot.slane %v3222, 2
      %v3224 = vmin.f32 %v3222, %v3223
      %v3225 = vrot.slane %v3224, 1
      %v3226 = vmin.f32 %v3224, %v3225
      %vm3227 = vcmp.eq.f32.partialorder %v3127, %v3207
      %vm3228 = vcmp.eq.f32.partialorder %v3127, %v3226
      %vm3229 = vcmp.eq.f32.partialorder %v3128, %v3207
      %vm3230 = vcmp.eq.f32.partialorder %v3128, %v3226
      %vm3231 = vcmp.eq.f32.partialorder %v3129, %v3207
      %vm3232 = vcmp.eq.f32.partialorder %v3129, %v3226
      %vm3233 = vcmp.eq.f32.partialorder %v3130, %v3207
      %vm3234 = vcmp.eq.f32.partialorder %v3130, %v3226
      %vm3235 = vcmp.eq.f32.partialorder %v3131, %v3207
      %vm3236 = vcmp.eq.f32.partialorder %v3131, %v3226
      %vm3237 = vcmp.eq.f32.partialorder %v3132, %v3207
      %vm3238 = vcmp.eq.f32.partialorder %v3132, %v3226
      %vm3239 = vcmp.eq.f32.partialorder %v3133, %v3207
      %vm3240 = vcmp.eq.f32.partialorder %v3133, %v3226
      %v3241 = vsel %vm3227, 1, 0
      %v3242 = vsel %vm3228, 1, 0
      %v3243 = vsel %vm3229, 1, 0
      %v3244 = vsel %vm3230, 1, 0
      %v3245 = vsel %vm3231, 1, 0
      %v3246 = vsel %vm3232, 1, 0
      %v3247 = vsel %vm3233, 1, 0
      %v3248 = vsel %vm3234, 1, 0
      %v3249 = vsel %vm3235, 1, 0
      %v3250 = vsel %vm3236, 1, 0
      %v3251 = vsel %vm3237, 1, 0
      %v3252 = vsel %vm3238, 1, 0
      %v3253 = vsel %vm3239, 1, 0
      %v3254 = vsel %vm3240, 1, 0
      %v3255 = vcvt.s32.f32 %v3241
      %v3256 = vcvt.s32.f32 %v3242
      %v3257 = vcvt.s32.f32 %v3243
      %v3258 = vcvt.s32.f32 %v3244
      %v3259 = vcvt.s32.f32 %v3245
      %v3260 = vcvt.s32.f32 %v3246
      %v3261 = vcvt.s32.f32 %v3247
      %v3262 = vcvt.s32.f32 %v3248
      %v3263 = vcvt.s32.f32 %v3249
      %v3264 = vcvt.s32.f32 %v3250
      %v3265 = vcvt.s32.f32 %v3251
      %v3266 = vcvt.s32.f32 %v3252
      %v3267 = vcvt.s32.f32 %v3253
      %v3268 = vcvt.s32.f32 %v3254
      %v3269 = vpack.c.bf16 %v3257, %v3255
      %v3270 = vpack.c.bf16 %v3258, %v3256
      %v3271 = vpack.c.bf16 %v3261, %v3259
      %v3272 = vpack.c.bf16 %v3262, %v3260
      %v3273 = vpack.c.bf16 %v3265, %v3263
      %v3274 = vpack.c.bf16 %v3266, %v3264
      %v3275 = vpack.c.bf16 %v3267, %v3267
      %v3276 = vpack.c.bf16 %v3268, %v3268
      %v3278 = vsel %vm1528, %v3020, 0
      %v3281 = vsel %vm1528, %v3021, 0
      %vm3283 = vcmask 1040384
      %v3285 = vsel %vm3283, %v3275, 0
      %v3288 = vsel %vm3283, %v3276, 0
      %3290 = vmatprep.subr.bf16.mxu0 %v3270
      %3291 = vmatpush1.bf16.msra.mxu0 %v3269
      %3292 = vmatprep.subr.bf16.mxu0 %v3272
      %3293 = vmatpush1.bf16.msra.mxu0 %v3271
      %3294 = vmatprep.subr.bf16.mxu0 %v3274
      %3295 = vmatpush1.bf16.msra.mxu0 %v3273
      %3296 = vmatprep.subr.bf16.mxu0 %v3288
      %3297 = vmatpush1.bf16.msra.mxu0 %v3285
      %3298 = vmatprep.subr.bf16.mxu0 0
      %3299 = vmatpush1.bf16.msra.mxu0 0
      %3300 = vmatprep.subr.bf16.mxu0 0
      %3301 = vmatpush1.bf16.msra.mxu0 0
      %3302 = vmatprep.subr.bf16.mxu0 0
      %3303 = vmatpush1.bf16.msra.mxu0 0
      %3304 = vmatprep.subr.bf16.mxu0 0
      %3305 = vmatpush1.bf16.msra.mxu0 0
      %3306 = vmatprep.subr.bf16.mxu0 0
      %3307 = vmatpush1.bf16.msra.mxu0 0
      %3308 = vmatprep.subr.bf16.mxu0 0
      %3309 = vmatpush1.bf16.msra.mxu0 0
      %3310 = vmatprep.subr.bf16.mxu0 0
      %3311 = vmatpush1.bf16.msra.mxu0 0
      %3312 = vmatprep.subr.bf16.mxu0 0
      %3313 = vmatpush1.bf16.msra.mxu0 0
      %3314 = vmatprep.subr.bf16.mxu0 0
      %3315 = vmatpush1.bf16.msra.mxu0 0
      %3316 = vmatprep.subr.bf16.mxu0 0
      %3317 = vmatpush1.bf16.msra.mxu0 0
      %3318 = vmatprep.subr.bf16.mxu0 0
      %3319 = vmatpush1.bf16.msra.mxu0 0
      %3320 = vmatprep.subr.bf16.mxu0 0
      %3321 = vmatpush1.bf16.msra.mxu0 0
      %3322 = vmatprep.mubr.bf16.mxu0 0
      %3323 = vmatmul.mubr.bf16.gmra.mrb[0].mxu0 %v3278
      %v3324 = vpop.f32.mrb[0].mxu0
      %v3325 = vadd.f32 0.0, %v3324
      %v3326 = vpop.f32.mrb[0].mxu0
      %v3327 = vadd.f32 0.0, %v3326
      %v3328 = vpop.f32.mrb[0].mxu0
      %v3329 = vadd.f32 0.0, %v3328
      %v3330 = vpop.f32.mrb[0].mxu0
      %v3331 = vadd.f32 0.0, %v3330
      %3332 = vmatprep.mubr.bf16.mxu0 0
      %3333 = vmatmul.mubr.bf16.gmra.mrb[0].mxu0 %v3281
      %v3334 = vpop.f32.mrb[0].mxu0
      %v3335 = vadd.f32 0.0, %v3334
      %v3336 = vpop.f32.mrb[0].mxu0
      %v3337 = vadd.f32 0.0, %v3336
      %v3338 = vpop.f32.mrb[0].mxu0
      %v3339 = vadd.f32 0.0, %v3338
      %v3340 = vpop.f32.mrb[0].mxu0
      %v3341 = vadd.f32 0.0, %v3340
      %3342 = vdwg.mxu0
      %v3343 = vmul.f32 %v3325, %v635
      %v3344 = vmul.f32 %v3327, %v636
      %v3345 = vmul.f32 %v3329, %v637
      %v3346 = vmul.f32 %v3331, %v638
      %v3347 = vmul.f32 %v3335, %v639
      %v3348 = vmul.f32 %v3337, %v640
      %v3349 = vmul.f32 %v3339, %v641
      %v3350 = vmul.f32 %v3341, %v642
      %v3351 = vpack.c.bf16 %v3345, %v3343
      %v3352 = vpack.c.bf16 %v3346, %v3344
      %v3353 = vpack.c.bf16 %v3349, %v3347
      %v3354 = vpack.c.bf16 %v3350, %v3348
      %v3356 = vsel %vm2467, %v3352, 0
      %v3359 = vsel %vm2467, %v3354, 0
      %3361 = vmatprep.subr.bf16.mxu0 0
      %3362 = vmatpush1.bf16.msra.mxu0 %v2442
      %3363 = vmatprep.subr.bf16.mxu0 0
      %3364 = vmatpush1.bf16.msra.mxu0 %v2443
      %3365 = vmatprep.subr.bf16.mxu0 0
      %3366 = vmatpush1.bf16.msra.mxu0 %v2444
      %3367 = vmatprep.subr.bf16.mxu0 0
      %3368 = vmatpush1.bf16.msra.mxu0 %v2445
      %3369 = vmatprep.subr.bf16.mxu0 0
      %3370 = vmatpush1.bf16.msra.mxu0 %v2446
      %3371 = vmatprep.subr.bf16.mxu0 0
      %3372 = vmatpush1.bf16.msra.mxu0 %v2447
      %3373 = vmatprep.subr.bf16.mxu0 0
      %3374 = vmatpush1.bf16.msra.mxu0 %v2448
      %3375 = vmatprep.subr.bf16.mxu0 0
      %3376 = vmatpush1.bf16.msra.mxu0 %v2449
      %3377 = vmatprep.subr.bf16.mxu0 0
      %3378 = vmatpush1.bf16.msra.mxu0 %v2450
      %3379 = vmatprep.subr.bf16.mxu0 0
      %3380 = vmatpush1.bf16.msra.mxu0 %v2451
      %3381 = vmatprep.subr.bf16.mxu0 0
      %3382 = vmatpush1.bf16.msra.mxu0 %v2452
      %3383 = vmatprep.subr.bf16.mxu0 0
      %3384 = vmatpush1.bf16.msra.mxu0 %v2453
      %3385 = vmatprep.subr.bf16.mxu0 0
      %3386 = vmatpush1.bf16.msra.mxu0 %v2476
      %3387 = vmatprep.subr.bf16.mxu0 0
      %3388 = vmatpush1.bf16.msra.mxu0 0
      %3389 = vmatprep.subr.bf16.mxu0 0
      %3390 = vmatpush1.bf16.msra.mxu0 0
      %3391 = vmatprep.subr.bf16.mxu0 0
      %3392 = vmatpush1.bf16.msra.mxu0 0
      %3393 = vmatprep.mubr.bf16.mxu0 %v3356
      %3394 = vmatmul.mubr.bf16.gmra.mrb[0].mxu0 %v3351
      %v3395 = vpop.f32.mrb[0].mxu0
      %v3396 = vadd.f32 0.0, %v3395
      %v3397 = vpop.f32.mrb[0].mxu0
      %v3398 = vpop.f32.mrb[0].mxu0
      %v3399 = vadd.f32 0.0, %v3398
      %v3400 = vpop.f32.mrb[0].mxu0
      %3401 = vmatprep.mubr.bf16.mxu0 %v3359
      %3402 = vmatmul.mubr.bf16.gmra.mrb[0].mxu0 %v3353
      %v3403 = vpop.f32.mrb[0].mxu0
      %v3404 = vadd.f32 0.0, %v3403
      %v3405 = vpop.f32.mrb[0].mxu0
      %v3406 = vpop.f32.mrb[0].mxu0
      %v3407 = vadd.f32 0.0, %v3406
      %v3408 = vpop.f32.mrb[0].mxu0
      %3409 = vdwg.mxu0
      %v3410 = vsub.f32 %v3105, %v3396
      %v3411 = vsub.f32 %v3108, %v3399
      %v3412 = vsub.f32 %v3113, %v3404
      %v3413 = vsub.f32 %v3116, %v3407
      %v3414 = vsel %vm3227, -1e+30, %v2865
      %v3415 = vsel %vm3228, -1e+30, %v2866
      %v3416 = vsel %vm3229, -1e+30, %v2867
      %v3417 = vsel %vm3230, -1e+30, %v2868
      %v3418 = vsel %vm3231, -1e+30, %v2869
      %v3419 = vsel %vm3232, -1e+30, %v2870
      %v3420 = vsel %vm3233, -1e+30, %v2871
      %v3421 = vsel %vm3234, -1e+30, %v2872
      %v3422 = vsel %vm3235, -1e+30, %v2873
      %v3423 = vsel %vm3236, -1e+30, %v2874
      %v3424 = vsel %vm3237, -1e+30, %v2875
      %v3425 = vsel %vm3238, -1e+30, %v2876
      %v3426 = vsel %vm3239, -1e+30, %v2877
      %v3427 = vsel %vm3240, -1e+30, %v2878
      %v3428 = vmax.f32 %v3414, %v3418
      %v3429 = vmax.f32 %v3416, %v3420
      %v3430 = vmax.f32 %v3428, %v3422
      %v3431 = vmax.f32 %v3429, %v3424
      %v3432 = vsel %vm1541, %v3426, -inf
      %v3433 = vmax.f32 %v3430, %v3432
      %v3434 = vmax.f32 %v3433, %v3431
      %v3435 = vrot.slane %v3434, 4
      %v3436 = vmax.f32 %v3434, %v3435
      %v3437 = vrot.slane %v3436, 2
      %v3438 = vmax.f32 %v3436, %v3437
      %v3439 = vrot.slane %v3438, 1
      %v3440 = vmax.f32 %v3438, %v3439
      %v3441 = vsel %vm2467, %v3415, -inf
      %v3442 = vsel %vm2467, %v3417, -inf
      %v3443 = vsel %vm2467, %v3419, -inf
      %v3444 = vmax.f32 %v3441, %v3443
      %v3445 = vsel %vm2467, %v3421, -inf
      %v3446 = vmax.f32 %v3442, %v3445
      %v3447 = vsel %vm2467, %v3423, -inf
      %v3448 = vmax.f32 %v3444, %v3447
      %v3449 = vsel %vm2467, %v3425, -inf
      %v3450 = vmax.f32 %v3446, %v3449
      %v3451 = vsel %vm3157, %v3427, -inf
      %v3452 = vmax.f32 %v3448, %v3451
      %v3453 = vmax.f32 %v3452, %v3450
      %v3454 = vrot.slane %v3453, 4
      %v3455 = vmax.f32 %v3453, %v3454
      %v3456 = vrot.slane %v3455, 2
      %v3457 = vmax.f32 %v3455, %v3456
      %v3458 = vrot.slane %v3457, 1
      %v3459 = vmax.f32 %v3457, %v3458
      %vm3460 = vcmp.ge.f32.partialorder %v3414, %v3440
      %vm3461 = vcmp.ge.f32.partialorder %v3415, %v3459
      %vm3462 = vcmp.ge.f32.partialorder %v3416, %v3440
      %vm3463 = vcmp.ge.f32.partialorder %v3417, %v3459
      %vm3464 = vcmp.ge.f32.partialorder %v3418, %v3440
      %vm3465 = vcmp.ge.f32.partialorder %v3419, %v3459
      %vm3466 = vcmp.ge.f32.partialorder %v3420, %v3440
      %vm3467 = vcmp.ge.f32.partialorder %v3421, %v3459
      %vm3468 = vcmp.ge.f32.partialorder %v3422, %v3440
      %vm3469 = vcmp.ge.f32.partialorder %v3423, %v3459
      %vm3470 = vcmp.ge.f32.partialorder %v3424, %v3440
      %vm3471 = vcmp.ge.f32.partialorder %v3425, %v3459
      %vm3472 = vcmp.ge.f32.partialorder %v3426, %v3440
      %vm3473 = vcmp.ge.f32.partialorder %v3427, %v3459
      %v3474 = vsel %vm3460, %v3127, 50.0
      %v3475 = vsel %vm3461, %v3127, 50.0
      %v3476 = vsel %vm3462, %v3128, 50.0
      %v3477 = vsel %vm3463, %v3128, 50.0
      %v3478 = vsel %vm3464, %v3129, 50.0
      %v3479 = vsel %vm3465, %v3129, 50.0
      %v3480 = vsel %vm3466, %v3130, 50.0
      %v3481 = vsel %vm3467, %v3130, 50.0
      %v3482 = vsel %vm3468, %v3131, 50.0
      %v3483 = vsel %vm3469, %v3131, 50.0
      %v3484 = vsel %vm3470, %v3132, 50.0
      %v3485 = vsel %vm3471, %v3132, 50.0
      %v3486 = vsel %vm3472, %v3133, 50.0
      %v3487 = vsel %vm3473, %v3133, 50.0
      %v3488 = vmin.f32 %v3474, %v3478
      %v3489 = vmin.f32 %v3476, %v3480
      %v3490 = vmin.f32 %v3488, %v3482
      %v3491 = vmin.f32 %v3489, %v3484
      %v3492 = vsel %vm1541, %v3486, inf
      %v3493 = vmin.f32 %v3490, %v3492
      %v3494 = vmin.f32 %v3493, %v3491
      %v3495 = vrot.slane %v3494, 4
      %v3496 = vmin.f32 %v3494, %v3495
      %v3497 = vrot.slane %v3496, 2
      %v3498 = vmin.f32 %v3496, %v3497
      %v3499 = vrot.slane %v3498, 1
      %v3500 = vmin.f32 %v3498, %v3499
      %v3501 = vsel %vm2467, %v3475, inf
      %v3502 = vsel %vm2467, %v3477, inf
      %v3503 = vsel %vm2467, %v3479, inf
      %v3504 = vmin.f32 %v3501, %v3503
      %v3505 = vsel %vm2467, %v3481, inf
      %v3506 = vmin.f32 %v3502, %v3505
      %v3507 = vsel %vm2467, %v3483, inf
      %v3508 = vmin.f32 %v3504, %v3507
      %v3509 = vsel %vm2467, %v3485, inf
      %v3510 = vmin.f32 %v3506, %v3509
      %v3511 = vsel %vm3157, %v3487, inf
      %v3512 = vmin.f32 %v3508, %v3511
      %v3513 = vmin.f32 %v3512, %v3510
      %v3514 = vrot.slane %v3513, 4
      %v3515 = vmin.f32 %v3513, %v3514
      %v3516 = vrot.slane %v3515, 2
      %v3517 = vmin.f32 %v3515, %v3516
      %v3518 = vrot.slane %v3517, 1
      %v3519 = vmin.f32 %v3517, %v3518
      %vm3520 = vcmp.eq.f32.partialorder %v3127, %v3500
      %vm3521 = vcmp.eq.f32.partialorder %v3127, %v3519
      %vm3522 = vcmp.eq.f32.partialorder %v3128, %v3500
      %vm3523 = vcmp.eq.f32.partialorder %v3128, %v3519
      %vm3524 = vcmp.eq.f32.partialorder %v3129, %v3500
      %vm3525 = vcmp.eq.f32.partialorder %v3129, %v3519
      %vm3526 = vcmp.eq.f32.partialorder %v3130, %v3500
      %vm3527 = vcmp.eq.f32.partialorder %v3130, %v3519
      %vm3528 = vcmp.eq.f32.partialorder %v3131, %v3500
      %vm3529 = vcmp.eq.f32.partialorder %v3131, %v3519
      %vm3530 = vcmp.eq.f32.partialorder %v3132, %v3500
      %vm3531 = vcmp.eq.f32.partialorder %v3132, %v3519
      %vm3532 = vcmp.eq.f32.partialorder %v3133, %v3500
      %vm3533 = vcmp.eq.f32.partialorder %v3133, %v3519
      %v3534 = vsel %vm3520, 1, 0
      %v3535 = vsel %vm3521, 1, 0
      %v3536 = vsel %vm3522, 1, 0
      %v3537 = vsel %vm3523, 1, 0
      %v3538 = vsel %vm3524, 1, 0
      %v3539 = vsel %vm3525, 1, 0
      %v3540 = vsel %vm3526, 1, 0
      %v3541 = vsel %vm3527, 1, 0
      %v3542 = vsel %vm3528, 1, 0
      %v3543 = vsel %vm3529, 1, 0
      %v3544 = vsel %vm3530, 1, 0
      %v3545 = vsel %vm3531, 1, 0
      %v3546 = vsel %vm3532, 1, 0
      %v3547 = vsel %vm3533, 1, 0
      %v3548 = vcvt.s32.f32 %v3534
      %v3549 = vcvt.s32.f32 %v3535
      %v3550 = vcvt.s32.f32 %v3536
      %v3551 = vcvt.s32.f32 %v3537
      %v3552 = vcvt.s32.f32 %v3538
      %v3553 = vcvt.s32.f32 %v3539
      %v3554 = vcvt.s32.f32 %v3540
      %v3555 = vcvt.s32.f32 %v3541
      %v3556 = vcvt.s32.f32 %v3542
      %v3557 = vcvt.s32.f32 %v3543
      %v3558 = vcvt.s32.f32 %v3544
      %v3559 = vcvt.s32.f32 %v3545
      %v3560 = vcvt.s32.f32 %v3546
      %v3561 = vcvt.s32.f32 %v3547
      %v3562 = vpack.c.bf16 %v3550, %v3548
      %v3563 = vpack.c.bf16 %v3551, %v3549
      %v3564 = vpack.c.bf16 %v3554, %v3552
      %v3565 = vpack.c.bf16 %v3555, %v3553
      %v3566 = vpack.c.bf16 %v3558, %v3556
      %v3567 = vpack.c.bf16 %v3559, %v3557
      %v3568 = vpack.c.bf16 %v3560, %v3560
      %v3569 = vpack.c.bf16 %v3561, %v3561
      %v3571 = vsel %vm1528, %v3022, 0
      %v3574 = vsel %vm1528, %v3023, 0
      %v3577 = vsel %vm3283, %v3568, 0
      %v3580 = vsel %vm3283, %v3569, 0
      %3582 = vmatprep.subr.bf16.mxu0 %v3563
      %3583 = vmatpush1.bf16.msra.mxu0 %v3562
      %3584 = vmatprep.subr.bf16.mxu0 %v3565
      %3585 = vmatpush1.bf16.msra.mxu0 %v3564
      %3586 = vmatprep.subr.bf16.mxu0 %v3567
      %3587 = vmatpush1.bf16.msra.mxu0 %v3566
      %3588 = vmatprep.subr.bf16.mxu0 %v3580
      %3589 = vmatpush1.bf16.msra.mxu0 %v3577
      %3590 = vmatprep.subr.bf16.mxu0 0
      %3591 = vmatpush1.bf16.msra.mxu0 0
      %3592 = vmatprep.subr.bf16.mxu0 0
      %3593 = vmatpush1.bf16.msra.mxu0 0
      %3594 = vmatprep.subr.bf16.mxu0 0
      %3595 = vmatpush1.bf16.msra.mxu0 0
      %3596 = vmatprep.subr.bf16.mxu0 0
      %3597 = vmatpush1.bf16.msra.mxu0 0
      %3598 = vmatprep.subr.bf16.mxu0 0
      %3599 = vmatpush1.bf16.msra.mxu0 0
      %3600 = vmatprep.subr.bf16.mxu0 0
      %3601 = vmatpush1.bf16.msra.mxu0 0
      %3602 = vmatprep.subr.bf16.mxu0 0
      %3603 = vmatpush1.bf16.msra.mxu0 0
      %3604 = vmatprep.subr.bf16.mxu0 0
      %3605 = vmatpush1.bf16.msra.mxu0 0
      %3606 = vmatprep.subr.bf16.mxu0 0
      %3607 = vmatpush1.bf16.msra.mxu0 0
      %3608 = vmatprep.subr.bf16.mxu0 0
      %3609 = vmatpush1.bf16.msra.mxu0 0
      %3610 = vmatprep.subr.bf16.mxu0 0
      %3611 = vmatpush1.bf16.msra.mxu0 0
      %3612 = vmatprep.subr.bf16.mxu0 0
      %3613 = vmatpush1.bf16.msra.mxu0 0
      %3614 = vmatprep.mubr.bf16.mxu0 0
      %3615 = vmatmul.mubr.bf16.gmra.mrb[0].mxu0 %v3571
      %v3616 = vpop.f32.mrb[0].mxu0
      %v3617 = vadd.f32 0.0, %v3616
      %v3618 = vpop.f32.mrb[0].mxu0
      %v3619 = vadd.f32 0.0, %v3618
      %v3620 = vpop.f32.mrb[0].mxu0
      %v3621 = vadd.f32 0.0, %v3620
      %v3622 = vpop.f32.mrb[0].mxu0
      %v3623 = vadd.f32 0.0, %v3622
      %3624 = vmatprep.mubr.bf16.mxu0 0
      %3625 = vmatmul.mubr.bf16.gmra.mrb[0].mxu0 %v3574
      %v3626 = vpop.f32.mrb[0].mxu0
      %v3627 = vadd.f32 0.0, %v3626
      %v3628 = vpop.f32.mrb[0].mxu0
      %v3629 = vadd.f32 0.0, %v3628
      %v3630 = vpop.f32.mrb[0].mxu0
      %v3631 = vadd.f32 0.0, %v3630
      %v3632 = vpop.f32.mrb[0].mxu0
      %v3633 = vadd.f32 0.0, %v3632
      %3634 = vdwg.mxu0
      %v3635 = vmul.f32 %v3617, %v635
      %v3636 = vmul.f32 %v3619, %v636
      %v3637 = vmul.f32 %v3621, %v637
      %v3638 = vmul.f32 %v3623, %v638
      %v3639 = vmul.f32 %v3627, %v639
      %v3640 = vmul.f32 %v3629, %v640
      %v3641 = vmul.f32 %v3631, %v641
      %v3642 = vmul.f32 %v3633, %v642
      %v3643 = vpack.c.bf16 %v3637, %v3635
      %v3644 = vpack.c.bf16 %v3638, %v3636
      %v3645 = vpack.c.bf16 %v3641, %v3639
      %v3646 = vpack.c.bf16 %v3642, %v3640
      %v3648 = vsel %vm2467, %v3644, 0
      %v3651 = vsel %vm2467, %v3646, 0
      %3653 = vmatprep.subr.bf16.mxu0 0
      %3654 = vmatpush1.bf16.msra.mxu0 %v2442
      %3655 = vmatprep.subr.bf16.mxu0 0
      %3656 = vmatpush1.bf16.msra.mxu0 %v2443
      %3657 = vmatprep.subr.bf16.mxu0 0
      %3658 = vmatpush1.bf16.msra.mxu0 %v2444
      %3659 = vmatprep.subr.bf16.mxu0 0
      %3660 = vmatpush1.bf16.msra.mxu0 %v2445
      %3661 = vmatprep.subr.bf16.mxu0 0
      %3662 = vmatpush1.bf16.msra.mxu0 %v2446
      %3663 = vmatprep.subr.bf16.mxu0 0
      %3664 = vmatpush1.bf16.msra.mxu0 %v2447
      %3665 = vmatprep.subr.bf16.mxu0 0
      %3666 = vmatpush1.bf16.msra.mxu0 %v2448
      %3667 = vmatprep.subr.bf16.mxu0 0
      %3668 = vmatpush1.bf16.msra.mxu0 %v2449
      %3669 = vmatprep.subr.bf16.mxu0 0
      %3670 = vmatpush1.bf16.msra.mxu0 %v2450
      %3671 = vmatprep.subr.bf16.mxu0 0
      %3672 = vmatpush1.bf16.msra.mxu0 %v2451
      %3673 = vmatprep.subr.bf16.mxu0 0
      %3674 = vmatpush1.bf16.msra.mxu0 %v2452
      %3675 = vmatprep.subr.bf16.mxu0 0
      %3676 = vmatpush1.bf16.msra.mxu0 %v2453
      %3677 = vmatprep.subr.bf16.mxu0 0
      %3678 = vmatpush1.bf16.msra.mxu0 %v2476
      %3679 = vmatprep.subr.bf16.mxu0 0
      %3680 = vmatpush1.bf16.msra.mxu0 0
      %3681 = vmatprep.subr.bf16.mxu0 0
      %3682 = vmatpush1.bf16.msra.mxu0 0
      %3683 = vmatprep.subr.bf16.mxu0 0
      %3684 = vmatpush1.bf16.msra.mxu0 0
      %3685 = vmatprep.mubr.bf16.mxu0 %v3648
      %3686 = vmatmul.mubr.bf16.gmra.mrb[0].mxu0 %v3643
      %v3687 = vpop.f32.mrb[0].mxu0
      %v3688 = vadd.f32 0.0, %v3687
      %v3689 = vpop.f32.mrb[0].mxu0
      %v3690 = vpop.f32.mrb[0].mxu0
      %v3691 = vadd.f32 0.0, %v3690
      %v3692 = vpop.f32.mrb[0].mxu0
      %3693 = vmatprep.mubr.bf16.mxu0 %v3651
      %3694 = vmatmul.mubr.bf16.gmra.mrb[0].mxu0 %v3645
      %v3695 = vpop.f32.mrb[0].mxu0
      %v3696 = vadd.f32 0.0, %v3695
      %v3697 = vpop.f32.mrb[0].mxu0
      %v3698 = vpop.f32.mrb[0].mxu0
      %v3699 = vadd.f32 0.0, %v3698
      %v3700 = vpop.f32.mrb[0].mxu0
      %3701 = vdwg.mxu0
      %v3702 = vsub.f32 %v3410, %v3688
      %v3703 = vsub.f32 %v3411, %v3691
      %v3704 = vsub.f32 %v3412, %v3696
      %v3705 = vsub.f32 %v3413, %v3699
      %v3706 = vsel %vm3520, -1e+30, %v3414
      %v3707 = vsel %vm3521, -1e+30, %v3415
      %v3708 = vsel %vm3522, -1e+30, %v3416
      %v3709 = vsel %vm3523, -1e+30, %v3417
      %v3710 = vsel %vm3524, -1e+30, %v3418
      %v3711 = vsel %vm3525, -1e+30, %v3419
      %v3712 = vsel %vm3526, -1e+30, %v3420
      %v3713 = vsel %vm3527, -1e+30, %v3421
      %v3714 = vsel %vm3528, -1e+30, %v3422
      %v3715 = vsel %vm3529, -1e+30, %v3423
      %v3716 = vsel %vm3530, -1e+30, %v3424
      %v3717 = vsel %vm3531, -1e+30, %v3425
      %v3718 = vsel %vm3532, -1e+30, %v3426
      %v3719 = vsel %vm3533, -1e+30, %v3427
      %v3720 = vmax.f32 %v3706, %v3710
      %v3721 = vmax.f32 %v3708, %v3712
      %v3722 = vmax.f32 %v3720, %v3714
      %v3723 = vmax.f32 %v3721, %v3716
      %v3724 = vsel %vm1541, %v3718, -inf
      %v3725 = vmax.f32 %v3722, %v3724
      %v3726 = vmax.f32 %v3725, %v3723
      %v3727 = vrot.slane %v3726, 4
      %v3728 = vmax.f32 %v3726, %v3727
      %v3729 = vrot.slane %v3728, 2
      %v3730 = vmax.f32 %v3728, %v3729
      %v3731 = vrot.slane %v3730, 1
      %v3732 = vmax.f32 %v3730, %v3731
      %v3733 = vsel %vm2467, %v3707, -inf
      %v3734 = vsel %vm2467, %v3709, -inf
      %v3735 = vsel %vm2467, %v3711, -inf
      %v3736 = vmax.f32 %v3733, %v3735
      %v3737 = vsel %vm2467, %v3713, -inf
      %v3738 = vmax.f32 %v3734, %v3737
      %v3739 = vsel %vm2467, %v3715, -inf
      %v3740 = vmax.f32 %v3736, %v3739
      %v3741 = vsel %vm2467, %v3717, -inf
      %v3742 = vmax.f32 %v3738, %v3741
      %v3743 = vsel %vm3157, %v3719, -inf
      %v3744 = vmax.f32 %v3740, %v3743
      %v3745 = vmax.f32 %v3744, %v3742
      %v3746 = vrot.slane %v3745, 4
      %v3747 = vmax.f32 %v3745, %v3746
      %v3748 = vrot.slane %v3747, 2
      %v3749 = vmax.f32 %v3747, %v3748
      %v3750 = vrot.slane %v3749, 1
      %v3751 = vmax.f32 %v3749, %v3750
      %vm3752 = vcmp.ge.f32.partialorder %v3706, %v3732
      %vm3753 = vcmp.ge.f32.partialorder %v3707, %v3751
      %vm3754 = vcmp.ge.f32.partialorder %v3708, %v3732
      %vm3755 = vcmp.ge.f32.partialorder %v3709, %v3751
      %vm3756 = vcmp.ge.f32.partialorder %v3710, %v3732
      %vm3757 = vcmp.ge.f32.partialorder %v3711, %v3751
      %vm3758 = vcmp.ge.f32.partialorder %v3712, %v3732
      %vm3759 = vcmp.ge.f32.partialorder %v3713, %v3751
      %vm3760 = vcmp.ge.f32.partialorder %v3714, %v3732
      %vm3761 = vcmp.ge.f32.partialorder %v3715, %v3751
      %vm3762 = vcmp.ge.f32.partialorder %v3716, %v3732
      %vm3763 = vcmp.ge.f32.partialorder %v3717, %v3751
      %vm3764 = vcmp.ge.f32.partialorder %v3718, %v3732
      %vm3765 = vcmp.ge.f32.partialorder %v3719, %v3751
      %v3766 = vsel %vm3752, %v3127, 50.0
      %v3767 = vsel %vm3753, %v3127, 50.0
      %v3768 = vsel %vm3754, %v3128, 50.0
      %v3769 = vsel %vm3755, %v3128, 50.0
      %v3770 = vsel %vm3756, %v3129, 50.0
      %v3771 = vsel %vm3757, %v3129, 50.0
      %v3772 = vsel %vm3758, %v3130, 50.0
      %v3773 = vsel %vm3759, %v3130, 50.0
      %v3774 = vsel %vm3760, %v3131, 50.0
      %v3775 = vsel %vm3761, %v3131, 50.0
      %v3776 = vsel %vm3762, %v3132, 50.0
      %v3777 = vsel %vm3763, %v3132, 50.0
      %v3778 = vsel %vm3764, %v3133, 50.0
      %v3779 = vsel %vm3765, %v3133, 50.0
      %v3780 = vmin.f32 %v3766, %v3770
      %v3781 = vmin.f32 %v3768, %v3772
      %v3782 = vmin.f32 %v3780, %v3774
      %v3783 = vmin.f32 %v3781, %v3776
      %v3784 = vsel %vm1541, %v3778, inf
      %v3785 = vmin.f32 %v3782, %v3784
      %v3786 = vmin.f32 %v3785, %v3783
      %v3787 = vrot.slane %v3786, 4
      %v3788 = vmin.f32 %v3786, %v3787
      %v3789 = vrot.slane %v3788, 2
      %v3790 = vmin.f32 %v3788, %v3789
      %v3791 = vrot.slane %v3790, 1
      %v3792 = vmin.f32 %v3790, %v3791
      %v3793 = vsel %vm2467, %v3767, inf
      %v3794 = vsel %vm2467, %v3769, inf
      %v3795 = vsel %vm2467, %v3771, inf
      %v3796 = vmin.f32 %v3793, %v3795
      %v3797 = vsel %vm2467, %v3773, inf
      %v3798 = vmin.f32 %v3794, %v3797
      %v3799 = vsel %vm2467, %v3775, inf
      %v3800 = vmin.f32 %v3796, %v3799
      %v3801 = vsel %vm2467, %v3777, inf
      %v3802 = vmin.f32 %v3798, %v3801
      %v3803 = vsel %vm3157, %v3779, inf
      %v3804 = vmin.f32 %v3800, %v3803
      %v3805 = vmin.f32 %v3804, %v3802
      %v3806 = vrot.slane %v3805, 4
      %v3807 = vmin.f32 %v3805, %v3806
      %v3808 = vrot.slane %v3807, 2
      %v3809 = vmin.f32 %v3807, %v3808
      %v3810 = vrot.slane %v3809, 1
      %v3811 = vmin.f32 %v3809, %v3810
      %vm3812 = vcmp.eq.f32.partialorder %v3127, %v3792
      %vm3813 = vcmp.eq.f32.partialorder %v3127, %v3811
      %vm3814 = vcmp.eq.f32.partialorder %v3128, %v3792
      %vm3815 = vcmp.eq.f32.partialorder %v3128, %v3811
      %vm3816 = vcmp.eq.f32.partialorder %v3129, %v3792
      %vm3817 = vcmp.eq.f32.partialorder %v3129, %v3811
      %vm3818 = vcmp.eq.f32.partialorder %v3130, %v3792
      %vm3819 = vcmp.eq.f32.partialorder %v3130, %v3811
      %vm3820 = vcmp.eq.f32.partialorder %v3131, %v3792
      %vm3821 = vcmp.eq.f32.partialorder %v3131, %v3811
      %vm3822 = vcmp.eq.f32.partialorder %v3132, %v3792
      %vm3823 = vcmp.eq.f32.partialorder %v3132, %v3811
      %vm3824 = vcmp.eq.f32.partialorder %v3133, %v3792
      %vm3825 = vcmp.eq.f32.partialorder %v3133, %v3811
      %v3826 = vsel %vm3812, 1, 0
      %v3827 = vsel %vm3813, 1, 0
      %v3828 = vsel %vm3814, 1, 0
      %v3829 = vsel %vm3815, 1, 0
      %v3830 = vsel %vm3816, 1, 0
      %v3831 = vsel %vm3817, 1, 0
      %v3832 = vsel %vm3818, 1, 0
      %v3833 = vsel %vm3819, 1, 0
      %v3834 = vsel %vm3820, 1, 0
      %v3835 = vsel %vm3821, 1, 0
      %v3836 = vsel %vm3822, 1, 0
      %v3837 = vsel %vm3823, 1, 0
      %v3838 = vsel %vm3824, 1, 0
      %v3839 = vsel %vm3825, 1, 0
      %v3840 = vcvt.s32.f32 %v3826
      %v3841 = vcvt.s32.f32 %v3827
      %v3842 = vcvt.s32.f32 %v3828
      %v3843 = vcvt.s32.f32 %v3829
      %v3844 = vcvt.s32.f32 %v3830
      %v3845 = vcvt.s32.f32 %v3831
      %v3846 = vcvt.s32.f32 %v3832
      %v3847 = vcvt.s32.f32 %v3833
      %v3848 = vcvt.s32.f32 %v3834
      %v3849 = vcvt.s32.f32 %v3835
      %v3850 = vcvt.s32.f32 %v3836
      %v3851 = vcvt.s32.f32 %v3837
      %v3852 = vcvt.s32.f32 %v3838
      %v3853 = vcvt.s32.f32 %v3839
      %v3854 = vpack.c.bf16 %v3842, %v3840
      %v3855 = vpack.c.bf16 %v3843, %v3841
      %v3856 = vpack.c.bf16 %v3846, %v3844
      %v3857 = vpack.c.bf16 %v3847, %v3845
      %v3858 = vpack.c.bf16 %v3850, %v3848
      %v3859 = vpack.c.bf16 %v3851, %v3849
      %v3860 = vpack.c.bf16 %v3852, %v3852
      %v3861 = vpack.c.bf16 %v3853, %v3853
      %v3863 = vsel %vm1528, %v3024, 0
      %v3866 = vsel %vm1528, %v3025, 0
      %v3869 = vsel %vm3283, %v3860, 0
      %v3872 = vsel %vm3283, %v3861, 0
      %3874 = vmatprep.subr.bf16.mxu0 %v3855
      %3875 = vmatpush1.bf16.msra.mxu0 %v3854
      %3876 = vmatprep.subr.bf16.mxu0 %v3857
      %3877 = vmatpush1.bf16.msra.mxu0 %v3856
      %3878 = vmatprep.subr.bf16.mxu0 %v3859
      %3879 = vmatpush1.bf16.msra.mxu0 %v3858
      %3880 = vmatprep.subr.bf16.mxu0 %v3872
      %3881 = vmatpush1.bf16.msra.mxu0 %v3869
      %3882 = vmatprep.subr.bf16.mxu0 0
      %3883 = vmatpush1.bf16.msra.mxu0 0
      %3884 = vmatprep.subr.bf16.mxu0 0
      %3885 = vmatpush1.bf16.msra.mxu0 0
      %3886 = vmatprep.subr.bf16.mxu0 0
      %3887 = vmatpush1.bf16.msra.mxu0 0
      %3888 = vmatprep.subr.bf16.mxu0 0
      %3889 = vmatpush1.bf16.msra.mxu0 0
      %3890 = vmatprep.subr.bf16.mxu0 0
      %3891 = vmatpush1.bf16.msra.mxu0 0
      %3892 = vmatprep.subr.bf16.mxu0 0
      %3893 = vmatpush1.bf16.msra.mxu0 0
      %3894 = vmatprep.subr.bf16.mxu0 0
      %3895 = vmatpush1.bf16.msra.mxu0 0
      %3896 = vmatprep.subr.bf16.mxu0 0
      %3897 = vmatpush1.bf16.msra.mxu0 0
      %3898 = vmatprep.subr.bf16.mxu0 0
      %3899 = vmatpush1.bf16.msra.mxu0 0
      %3900 = vmatprep.subr.bf16.mxu0 0
      %3901 = vmatpush1.bf16.msra.mxu0 0
      %3902 = vmatprep.subr.bf16.mxu0 0
      %3903 = vmatpush1.bf16.msra.mxu0 0
      %3904 = vmatprep.subr.bf16.mxu0 0
      %3905 = vmatpush1.bf16.msra.mxu0 0
      %3906 = vmatprep.mubr.bf16.mxu0 0
      %3907 = vmatmul.mubr.bf16.gmra.mrb[0].mxu0 %v3863
      %v3908 = vpop.f32.mrb[0].mxu0
      %v3909 = vadd.f32 0.0, %v3908
      %v3910 = vpop.f32.mrb[0].mxu0
      %v3911 = vadd.f32 0.0, %v3910
      %v3912 = vpop.f32.mrb[0].mxu0
      %v3913 = vadd.f32 0.0, %v3912
      %v3914 = vpop.f32.mrb[0].mxu0
      %v3915 = vadd.f32 0.0, %v3914
      %3916 = vmatprep.mubr.bf16.mxu0 0
      %3917 = vmatmul.mubr.bf16.gmra.mrb[0].mxu0 %v3866
      %v3918 = vpop.f32.mrb[0].mxu0
      %v3919 = vadd.f32 0.0, %v3918
      %v3920 = vpop.f32.mrb[0].mxu0
      %v3921 = vadd.f32 0.0, %v3920
      %v3922 = vpop.f32.mrb[0].mxu0
      %v3923 = vadd.f32 0.0, %v3922
      %v3924 = vpop.f32.mrb[0].mxu0
      %v3925 = vadd.f32 0.0, %v3924
      %3926 = vdwg.mxu0
      %v3927 = vmul.f32 %v3909, %v635
      %v3928 = vmul.f32 %v3911, %v636
      %v3929 = vmul.f32 %v3913, %v637
      %v3930 = vmul.f32 %v3915, %v638
      %v3931 = vmul.f32 %v3919, %v639
      %v3932 = vmul.f32 %v3921, %v640
      %v3933 = vmul.f32 %v3923, %v641
      %v3934 = vmul.f32 %v3925, %v642
      %v3935 = vpack.c.bf16 %v3929, %v3927
      %v3936 = vpack.c.bf16 %v3930, %v3928
      %v3937 = vpack.c.bf16 %v3933, %v3931
      %v3938 = vpack.c.bf16 %v3934, %v3932
      %v3940 = vsel %vm2467, %v3936, 0
      %v3943 = vsel %vm2467, %v3938, 0
      %3945 = vmatprep.subr.bf16.mxu0 0
      %3946 = vmatpush1.bf16.msra.mxu0 %v2442
      %3947 = vmatprep.subr.bf16.mxu0 0
      %3948 = vmatpush1.bf16.msra.mxu0 %v2443
      %3949 = vmatprep.subr.bf16.mxu0 0
      %3950 = vmatpush1.bf16.msra.mxu0 %v2444
      %3951 = vmatprep.subr.bf16.mxu0 0
      %3952 = vmatpush1.bf16.msra.mxu0 %v2445
      %3953 = vmatprep.subr.bf16.mxu0 0
      %3954 = vmatpush1.bf16.msra.mxu0 %v2446
      %3955 = vmatprep.subr.bf16.mxu0 0
      %3956 = vmatpush1.bf16.msra.mxu0 %v2447
      %3957 = vmatprep.subr.bf16.mxu0 0
      %3958 = vmatpush1.bf16.msra.mxu0 %v2448
      %3959 = vmatprep.subr.bf16.mxu0 0
      %3960 = vmatpush1.bf16.msra.mxu0 %v2449
      %3961 = vmatprep.subr.bf16.mxu0 0
      %3962 = vmatpush1.bf16.msra.mxu0 %v2450
      %3963 = vmatprep.subr.bf16.mxu0 0
      %3964 = vmatpush1.bf16.msra.mxu0 %v2451
      %3965 = vmatprep.subr.bf16.mxu0 0
      %3966 = vmatpush1.bf16.msra.mxu0 %v2452
      %3967 = vmatprep.subr.bf16.mxu0 0
      %3968 = vmatpush1.bf16.msra.mxu0 %v2453
      %3969 = vmatprep.subr.bf16.mxu0 0
      %3970 = vmatpush1.bf16.msra.mxu0 %v2476
      %3971 = vmatprep.subr.bf16.mxu0 0
      %3972 = vmatpush1.bf16.msra.mxu0 0
      %3973 = vmatprep.subr.bf16.mxu0 0
      %3974 = vmatpush1.bf16.msra.mxu0 0
      %3975 = vmatprep.subr.bf16.mxu0 0
      %3976 = vmatpush1.bf16.msra.mxu0 0
      %3977 = vmatprep.mubr.bf16.mxu0 %v3940
      %3978 = vmatmul.mubr.bf16.gmra.mrb[0].mxu0 %v3935
      %v3979 = vpop.f32.mrb[0].mxu0
      %v3980 = vadd.f32 0.0, %v3979
      %v3981 = vpop.f32.mrb[0].mxu0
      %v3982 = vpop.f32.mrb[0].mxu0
      %v3983 = vadd.f32 0.0, %v3982
      %v3984 = vpop.f32.mrb[0].mxu0
      %3985 = vmatprep.mubr.bf16.mxu0 %v3943
      %3986 = vmatmul.mubr.bf16.gmra.mrb[0].mxu0 %v3937
      %v3987 = vpop.f32.mrb[0].mxu0
      %v3988 = vadd.f32 0.0, %v3987
      %v3989 = vpop.f32.mrb[0].mxu0
      %v3990 = vpop.f32.mrb[0].mxu0
      %v3991 = vadd.f32 0.0, %v3990
      %v3992 = vpop.f32.mrb[0].mxu0
      %3993 = vdwg.mxu0
      %v3994 = vsub.f32 %v3702, %v3980
      %v3995 = vsub.f32 %v3703, %v3983
      %v3996 = vsub.f32 %v3704, %v3988
      %v3997 = vsub.f32 %v3705, %v3991
      %v3998 = vsel %vm3812, -1e+30, %v3706
      %v3999 = vsel %vm3813, -1e+30, %v3707
      %v4000 = vsel %vm3814, -1e+30, %v3708
      %v4001 = vsel %vm3815, -1e+30, %v3709
      %v4002 = vsel %vm3816, -1e+30, %v3710
      %v4003 = vsel %vm3817, -1e+30, %v3711
      %v4004 = vsel %vm3818, -1e+30, %v3712
      %v4005 = vsel %vm3819, -1e+30, %v3713
      %v4006 = vsel %vm3820, -1e+30, %v3714
      %v4007 = vsel %vm3821, -1e+30, %v3715
      %v4008 = vsel %vm3822, -1e+30, %v3716
      %v4009 = vsel %vm3823, -1e+30, %v3717
      %v4010 = vsel %vm3824, -1e+30, %v3718
      %v4011 = vsel %vm3825, -1e+30, %v3719
      %v4012 = vmax.f32 %v3998, %v4002
      %v4013 = vmax.f32 %v4000, %v4004
      %v4014 = vmax.f32 %v4012, %v4006
      %v4015 = vmax.f32 %v4013, %v4008
      %v4016 = vsel %vm1541, %v4010, -inf
      %v4017 = vmax.f32 %v4014, %v4016
      %v4018 = vmax.f32 %v4017, %v4015
      %v4019 = vrot.slane %v4018, 4
      %v4020 = vmax.f32 %v4018, %v4019
      %v4021 = vrot.slane %v4020, 2
      %v4022 = vmax.f32 %v4020, %v4021
      %v4023 = vrot.slane %v4022, 1
      %v4024 = vmax.f32 %v4022, %v4023
      %v4025 = vsel %vm2467, %v3999, -inf
      %v4026 = vsel %vm2467, %v4001, -inf
      %v4027 = vsel %vm2467, %v4003, -inf
      %v4028 = vmax.f32 %v4025, %v4027
      %v4029 = vsel %vm2467, %v4005, -inf
      %v4030 = vmax.f32 %v4026, %v4029
      %v4031 = vsel %vm2467, %v4007, -inf
      %v4032 = vmax.f32 %v4028, %v4031
      %v4033 = vsel %vm2467, %v4009, -inf
      %v4034 = vmax.f32 %v4030, %v4033
      %v4035 = vsel %vm3157, %v4011, -inf
      %v4036 = vmax.f32 %v4032, %v4035
      %v4037 = vmax.f32 %v4036, %v4034
      %v4038 = vrot.slane %v4037, 4
      %v4039 = vmax.f32 %v4037, %v4038
      %v4040 = vrot.slane %v4039, 2
      %v4041 = vmax.f32 %v4039, %v4040
      %v4042 = vrot.slane %v4041, 1
      %v4043 = vmax.f32 %v4041, %v4042
      %vm4044 = vcmp.ge.f32.partialorder %v3998, %v4024
      %vm4045 = vcmp.ge.f32.partialorder %v3999, %v4043
      %vm4046 = vcmp.ge.f32.partialorder %v4000, %v4024
      %vm4047 = vcmp.ge.f32.partialorder %v4001, %v4043
      %vm4048 = vcmp.ge.f32.partialorder %v4002, %v4024
      %vm4049 = vcmp.ge.f32.partialorder %v4003, %v4043
      %vm4050 = vcmp.ge.f32.partialorder %v4004, %v4024
      %vm4051 = vcmp.ge.f32.partialorder %v4005, %v4043
      %vm4052 = vcmp.ge.f32.partialorder %v4006, %v4024
      %vm4053 = vcmp.ge.f32.partialorder %v4007, %v4043
      %vm4054 = vcmp.ge.f32.partialorder %v4008, %v4024
      %vm4055 = vcmp.ge.f32.partialorder %v4009, %v4043
      %vm4056 = vcmp.ge.f32.partialorder %v4010, %v4024
      %vm4057 = vcmp.ge.f32.partialorder %v4011, %v4043
      %v4058 = vsel %vm4044, %v3127, 50.0
      %v4059 = vsel %vm4045, %v3127, 50.0
      %v4060 = vsel %vm4046, %v3128, 50.0
      %v4061 = vsel %vm4047, %v3128, 50.0
      %v4062 = vsel %vm4048, %v3129, 50.0
      %v4063 = vsel %vm4049, %v3129, 50.0
      %v4064 = vsel %vm4050, %v3130, 50.0
      %v4065 = vsel %vm4051, %v3130, 50.0
      %v4066 = vsel %vm4052, %v3131, 50.0
      %v4067 = vsel %vm4053, %v3131, 50.0
      %v4068 = vsel %vm4054, %v3132, 50.0
      %v4069 = vsel %vm4055, %v3132, 50.0
      %v4070 = vsel %vm4056, %v3133, 50.0
      %v4071 = vsel %vm4057, %v3133, 50.0
      %v4072 = vmin.f32 %v4058, %v4062
      %v4073 = vmin.f32 %v4060, %v4064
      %v4074 = vmin.f32 %v4072, %v4066
      %v4075 = vmin.f32 %v4073, %v4068
      %v4076 = vsel %vm1541, %v4070, inf
      %v4077 = vmin.f32 %v4074, %v4076
      %v4078 = vmin.f32 %v4077, %v4075
      %v4079 = vrot.slane %v4078, 4
      %v4080 = vmin.f32 %v4078, %v4079
      %v4081 = vrot.slane %v4080, 2
      %v4082 = vmin.f32 %v4080, %v4081
      %v4083 = vrot.slane %v4082, 1
      %v4084 = vmin.f32 %v4082, %v4083
      %v4085 = vsel %vm2467, %v4059, inf
      %v4086 = vsel %vm2467, %v4061, inf
      %v4087 = vsel %vm2467, %v4063, inf
      %v4088 = vmin.f32 %v4085, %v4087
      %v4089 = vsel %vm2467, %v4065, inf
      %v4090 = vmin.f32 %v4086, %v4089
      %v4091 = vsel %vm2467, %v4067, inf
      %v4092 = vmin.f32 %v4088, %v4091
      %v4093 = vsel %vm2467, %v4069, inf
      %v4094 = vmin.f32 %v4090, %v4093
      %v4095 = vsel %vm3157, %v4071, inf
      %v4096 = vmin.f32 %v4092, %v4095
      %v4097 = vmin.f32 %v4096, %v4094
      %v4098 = vrot.slane %v4097, 4
      %v4099 = vmin.f32 %v4097, %v4098
      %v4100 = vrot.slane %v4099, 2
      %v4101 = vmin.f32 %v4099, %v4100
      %v4102 = vrot.slane %v4101, 1
      %v4103 = vmin.f32 %v4101, %v4102
      %vm4104 = vcmp.eq.f32.partialorder %v3127, %v4084
      %vm4105 = vcmp.eq.f32.partialorder %v3127, %v4103
      %vm4106 = vcmp.eq.f32.partialorder %v3128, %v4084
      %vm4107 = vcmp.eq.f32.partialorder %v3128, %v4103
      %vm4108 = vcmp.eq.f32.partialorder %v3129, %v4084
      %vm4109 = vcmp.eq.f32.partialorder %v3129, %v4103
      %vm4110 = vcmp.eq.f32.partialorder %v3130, %v4084
      %vm4111 = vcmp.eq.f32.partialorder %v3130, %v4103
      %vm4112 = vcmp.eq.f32.partialorder %v3131, %v4084
      %vm4113 = vcmp.eq.f32.partialorder %v3131, %v4103
      %vm4114 = vcmp.eq.f32.partialorder %v3132, %v4084
      %vm4115 = vcmp.eq.f32.partialorder %v3132, %v4103
      %vm4116 = vcmp.eq.f32.partialorder %v3133, %v4084
      %vm4117 = vcmp.eq.f32.partialorder %v3133, %v4103
      %v4118 = vsel %vm4104, 1, 0
      %v4119 = vsel %vm4105, 1, 0
      %v4120 = vsel %vm4106, 1, 0
      %v4121 = vsel %vm4107, 1, 0
      %v4122 = vsel %vm4108, 1, 0
      %v4123 = vsel %vm4109, 1, 0
      %v4124 = vsel %vm4110, 1, 0
      %v4125 = vsel %vm4111, 1, 0
      %v4126 = vsel %vm4112, 1, 0
      %v4127 = vsel %vm4113, 1, 0
      %v4128 = vsel %vm4114, 1, 0
      %v4129 = vsel %vm4115, 1, 0
      %v4130 = vsel %vm4116, 1, 0
      %v4131 = vsel %vm4117, 1, 0
      %v4132 = vcvt.s32.f32 %v4118
      %v4133 = vcvt.s32.f32 %v4119
      %v4134 = vcvt.s32.f32 %v4120
      %v4135 = vcvt.s32.f32 %v4121
      %v4136 = vcvt.s32.f32 %v4122
      %v4137 = vcvt.s32.f32 %v4123
      %v4138 = vcvt.s32.f32 %v4124
      %v4139 = vcvt.s32.f32 %v4125
      %v4140 = vcvt.s32.f32 %v4126
      %v4141 = vcvt.s32.f32 %v4127
      %v4142 = vcvt.s32.f32 %v4128
      %v4143 = vcvt.s32.f32 %v4129
      %v4144 = vcvt.s32.f32 %v4130
      %v4145 = vcvt.s32.f32 %v4131
      %v4146 = vpack.c.bf16 %v4134, %v4132
      %v4147 = vpack.c.bf16 %v4135, %v4133
      %v4148 = vpack.c.bf16 %v4138, %v4136
      %v4149 = vpack.c.bf16 %v4139, %v4137
      %v4150 = vpack.c.bf16 %v4142, %v4140
      %v4151 = vpack.c.bf16 %v4143, %v4141
      %v4152 = vpack.c.bf16 %v4144, %v4144
      %v4153 = vpack.c.bf16 %v4145, %v4145
      %v4155 = vsel %vm3283, %v4152, 0
      %v4158 = vsel %vm3283, %v4153, 0
      %4160 = vmatprep.subr.bf16.mxu0 %v4147
      %4161 = vmatpush1.bf16.msra.mxu0 %v4146
      %4162 = vmatprep.subr.bf16.mxu0 %v4149
      %4163 = vmatpush1.bf16.msra.mxu0 %v4148
      %4164 = vmatprep.subr.bf16.mxu0 %v4151
      %4165 = vmatpush1.bf16.msra.mxu0 %v4150
      %4166 = vmatprep.subr.bf16.mxu0 %v4158
      %4167 = vmatpush1.bf16.msra.mxu0 %v4155
      %4168 = vmatprep.subr.bf16.mxu0 0
      %4169 = vmatpush1.bf16.msra.mxu0 0
      %4170 = vmatprep.subr.bf16.mxu0 0
      %4171 = vmatpush1.bf16.msra.mxu0 0
      %4172 = vmatprep.subr.bf16.mxu0 0
      %4173 = vmatpush1.bf16.msra.mxu0 0
      %4174 = vmatprep.subr.bf16.mxu0 0
      %4175 = vmatpush1.bf16.msra.mxu0 0
      %4176 = vmatprep.subr.bf16.mxu0 0
      %4177 = vmatpush1.bf16.msra.mxu0 0
      %4178 = vmatprep.subr.bf16.mxu0 0
      %4179 = vmatpush1.bf16.msra.mxu0 0
      %4180 = vmatprep.subr.bf16.mxu0 0
      %4181 = vmatpush1.bf16.msra.mxu0 0
      %4182 = vmatprep.subr.bf16.mxu0 0
      %4183 = vmatpush1.bf16.msra.mxu0 0
      %4184 = vmatprep.subr.bf16.mxu0 0
      %4185 = vmatpush1.bf16.msra.mxu0 0
      %4186 = vmatprep.subr.bf16.mxu0 0
      %4187 = vmatpush1.bf16.msra.mxu0 0
      %4188 = vmatprep.subr.bf16.mxu0 0
      %4189 = vmatpush1.bf16.msra.mxu0 0
      %4190 = vmatprep.subr.bf16.mxu0 0
      %4191 = vmatpush1.bf16.msra.mxu0 0
      %4192 = vmatprep.mubr.bf16.mxu0 0
      %4193 = vmatmul.mubr.bf16.gmra.mrb[0].mxu0 %v3278
      %v4194 = vpop.f32.mrb[0].mxu0
      %v4195 = vadd.f32 0.0, %v4194
      %v4196 = vpop.f32.mrb[0].mxu0
      %v4197 = vadd.f32 0.0, %v4196
      %v4198 = vpop.f32.mrb[0].mxu0
      %v4199 = vadd.f32 0.0, %v4198
      %v4200 = vpop.f32.mrb[0].mxu0
      %v4201 = vadd.f32 0.0, %v4200
      %4202 = vmatprep.mubr.bf16.mxu0 0
      %4203 = vmatmul.mubr.bf16.gmra.mrb[0].mxu0 %v3281
      %v4204 = vpop.f32.mrb[0].mxu0
      %v4205 = vadd.f32 0.0, %v4204
      %v4206 = vpop.f32.mrb[0].mxu0
      %v4207 = vadd.f32 0.0, %v4206
      %v4208 = vpop.f32.mrb[0].mxu0
      %v4209 = vadd.f32 0.0, %v4208
      %v4210 = vpop.f32.mrb[0].mxu0
      %v4211 = vadd.f32 0.0, %v4210
      %4212 = vdwg.mxu0
      %v4213 = vmul.f32 %v4195, %v635
      %v4214 = vmul.f32 %v4197, %v636
      %v4215 = vmul.f32 %v4199, %v637
      %v4216 = vmul.f32 %v4201, %v638
      %v4217 = vmul.f32 %v4205, %v639
      %v4218 = vmul.f32 %v4207, %v640
      %v4219 = vmul.f32 %v4209, %v641
      %v4220 = vmul.f32 %v4211, %v642
      %v4221 = vpack.c.bf16 %v4215, %v4213
      %v4222 = vpack.c.bf16 %v4216, %v4214
      %v4223 = vpack.c.bf16 %v4219, %v4217
      %v4224 = vpack.c.bf16 %v4220, %v4218
      %v4226 = vsel %vm2467, %v4222, 0
      %v4229 = vsel %vm2467, %v4224, 0
      %4231 = vmatprep.subr.bf16.mxu0 0
      %4232 = vmatpush1.bf16.msra.mxu0 %v2442
      %4233 = vmatprep.subr.bf16.mxu0 0
      %4234 = vmatpush1.bf16.msra.mxu0 %v2443
      %4235 = vmatprep.subr.bf16.mxu0 0
      %4236 = vmatpush1.bf16.msra.mxu0 %v2444
      %4237 = vmatprep.subr.bf16.mxu0 0
      %4238 = vmatpush1.bf16.msra.mxu0 %v2445
      %4239 = vmatprep.subr.bf16.mxu0 0
      %4240 = vmatpush1.bf16.msra.mxu0 %v2446
      %4241 = vmatprep.subr.bf16.mxu0 0
      %4242 = vmatpush1.bf16.msra.mxu0 %v2447
      %4243 = vmatprep.subr.bf16.mxu0 0
      %4244 = vmatpush1.bf16.msra.mxu0 %v2448
      %4245 = vmatprep.subr.bf16.mxu0 0
      %4246 = vmatpush1.bf16.msra.mxu0 %v2449
      %4247 = vmatprep.subr.bf16.mxu0 0
      %4248 = vmatpush1.bf16.msra.mxu0 %v2450
      %4249 = vmatprep.subr.bf16.mxu0 0
      %4250 = vmatpush1.bf16.msra.mxu0 %v2451
      %4251 = vmatprep.subr.bf16.mxu0 0
      %4252 = vmatpush1.bf16.msra.mxu0 %v2452
      %4253 = vmatprep.subr.bf16.mxu0 0
      %4254 = vmatpush1.bf16.msra.mxu0 %v2453
      %4255 = vmatprep.subr.bf16.mxu0 0
      %4256 = vmatpush1.bf16.msra.mxu0 %v2476
      %4257 = vmatprep.subr.bf16.mxu0 0
      %4258 = vmatpush1.bf16.msra.mxu0 0
      %4259 = vmatprep.subr.bf16.mxu0 0
      %4260 = vmatpush1.bf16.msra.mxu0 0
      %4261 = vmatprep.subr.bf16.mxu0 0
      %4262 = vmatpush1.bf16.msra.mxu0 0
      %4263 = vmatprep.mubr.bf16.mxu0 %v4226
      %4264 = vmatmul.mubr.bf16.gmra.mrb[0].mxu0 %v4221
      %v4265 = vpop.f32.mrb[0].mxu0
      %v4266 = vadd.f32 0.0, %v4265
      %v4267 = vpop.f32.mrb[0].mxu0
      %v4268 = vpop.f32.mrb[0].mxu0
      %v4269 = vadd.f32 0.0, %v4268
      %v4270 = vpop.f32.mrb[0].mxu0
      %4271 = vmatprep.mubr.bf16.mxu0 %v4229
      %4272 = vmatmul.mubr.bf16.gmra.mrb[0].mxu0 %v4223
      %v4273 = vpop.f32.mrb[0].mxu0
      %v4274 = vadd.f32 0.0, %v4273
      %v4275 = vpop.f32.mrb[0].mxu0
      %v4276 = vpop.f32.mrb[0].mxu0
      %v4277 = vadd.f32 0.0, %v4276
      %v4278 = vpop.f32.mrb[0].mxu0
      %4279 = vdwg.mxu0
      %v4280 = vsub.f32 %v3105, %v4266
      %v4281 = vsub.f32 %v3108, %v4269
      %v4282 = vsub.f32 %v3113, %v4274
      %v4283 = vsub.f32 %v3116, %v4277
      %v4284 = vsel %vm4104, -1e+30, %v3998
      %v4285 = vsel %vm4105, -1e+30, %v3999
      %v4286 = vsel %vm4106, -1e+30, %v4000
      %v4287 = vsel %vm4107, -1e+30, %v4001
      %v4288 = vsel %vm4108, -1e+30, %v4002
      %v4289 = vsel %vm4109, -1e+30, %v4003
      %v4290 = vsel %vm4110, -1e+30, %v4004
      %v4291 = vsel %vm4111, -1e+30, %v4005
      %v4292 = vsel %vm4112, -1e+30, %v4006
      %v4293 = vsel %vm4113, -1e+30, %v4007
      %v4294 = vsel %vm4114, -1e+30, %v4008
      %v4295 = vsel %vm4115, -1e+30, %v4009
      %v4296 = vsel %vm4116, -1e+30, %v4010
      %v4297 = vsel %vm4117, -1e+30, %v4011
      %v4298 = vmax.f32 %v4284, %v4288
      %v4299 = vmax.f32 %v4286, %v4290
      %v4300 = vmax.f32 %v4298, %v4292
      %v4301 = vmax.f32 %v4299, %v4294
      %v4302 = vsel %vm1541, %v4296, -inf
      %v4303 = vmax.f32 %v4300, %v4302
      %v4304 = vmax.f32 %v4303, %v4301
      %v4305 = vrot.slane %v4304, 4
      %v4306 = vmax.f32 %v4304, %v4305
      %v4307 = vrot.slane %v4306, 2
      %v4308 = vmax.f32 %v4306, %v4307
      %v4309 = vrot.slane %v4308, 1
      %v4310 = vmax.f32 %v4308, %v4309
      %v4311 = vsel %vm2467, %v4285, -inf
      %v4312 = vsel %vm2467, %v4287, -inf
      %v4313 = vsel %vm2467, %v4289, -inf
      %v4314 = vmax.f32 %v4311, %v4313
      %v4315 = vsel %vm2467, %v4291, -inf
      %v4316 = vmax.f32 %v4312, %v4315
      %v4317 = vsel %vm2467, %v4293, -inf
      %v4318 = vmax.f32 %v4314, %v4317
      %v4319 = vsel %vm2467, %v4295, -inf
      %v4320 = vmax.f32 %v4316, %v4319
      %v4321 = vsel %vm3157, %v4297, -inf
      %v4322 = vmax.f32 %v4318, %v4321
      %v4323 = vmax.f32 %v4322, %v4320
      %v4324 = vrot.slane %v4323, 4
      %v4325 = vmax.f32 %v4323, %v4324
      %v4326 = vrot.slane %v4325, 2
      %v4327 = vmax.f32 %v4325, %v4326
      %v4328 = vrot.slane %v4327, 1
      %v4329 = vmax.f32 %v4327, %v4328
      %vm4330 = vcmp.ge.f32.partialorder %v4284, %v4310
      %vm4331 = vcmp.ge.f32.partialorder %v4285, %v4329
      %vm4332 = vcmp.ge.f32.partialorder %v4286, %v4310
      %vm4333 = vcmp.ge.f32.partialorder %v4287, %v4329
      %vm4334 = vcmp.ge.f32.partialorder %v4288, %v4310
      %vm4335 = vcmp.ge.f32.partialorder %v4289, %v4329
      %vm4336 = vcmp.ge.f32.partialorder %v4290, %v4310
      %vm4337 = vcmp.ge.f32.partialorder %v4291, %v4329
      %vm4338 = vcmp.ge.f32.partialorder %v4292, %v4310
      %vm4339 = vcmp.ge.f32.partialorder %v4293, %v4329
      %vm4340 = vcmp.ge.f32.partialorder %v4294, %v4310
      %vm4341 = vcmp.ge.f32.partialorder %v4295, %v4329
      %vm4342 = vcmp.ge.f32.partialorder %v4296, %v4310
      %vm4343 = vcmp.ge.f32.partialorder %v4297, %v4329
      %v4344 = vsel %vm4330, %v3127, 50.0
      %v4345 = vsel %vm4331, %v3127, 50.0
      %v4346 = vsel %vm4332, %v3128, 50.0
      %v4347 = vsel %vm4333, %v3128, 50.0
      %v4348 = vsel %vm4334, %v3129, 50.0
      %v4349 = vsel %vm4335, %v3129, 50.0
      %v4350 = vsel %vm4336, %v3130, 50.0
      %v4351 = vsel %vm4337, %v3130, 50.0
      %v4352 = vsel %vm4338, %v3131, 50.0
      %v4353 = vsel %vm4339, %v3131, 50.0
      %v4354 = vsel %vm4340, %v3132, 50.0
      %v4355 = vsel %vm4341, %v3132, 50.0
      %v4356 = vsel %vm4342, %v3133, 50.0
      %v4357 = vsel %vm4343, %v3133, 50.0
      %v4358 = vmin.f32 %v4344, %v4348
      %v4359 = vmin.f32 %v4346, %v4350
      %v4360 = vmin.f32 %v4358, %v4352
      %v4361 = vmin.f32 %v4359, %v4354
      %v4362 = vsel %vm1541, %v4356, inf
      %v4363 = vmin.f32 %v4360, %v4362
      %v4364 = vmin.f32 %v4363, %v4361
      %v4365 = vrot.slane %v4364, 4
      %v4366 = vmin.f32 %v4364, %v4365
      %v4367 = vrot.slane %v4366, 2
      %v4368 = vmin.f32 %v4366, %v4367
      %v4369 = vrot.slane %v4368, 1
      %v4370 = vmin.f32 %v4368, %v4369
      %v4371 = vsel %vm2467, %v4345, inf
      %v4372 = vsel %vm2467, %v4347, inf
      %v4373 = vsel %vm2467, %v4349, inf
      %v4374 = vmin.f32 %v4371, %v4373
      %v4375 = vsel %vm2467, %v4351, inf
      %v4376 = vmin.f32 %v4372, %v4375
      %v4377 = vsel %vm2467, %v4353, inf
      %v4378 = vmin.f32 %v4374, %v4377
      %v4379 = vsel %vm2467, %v4355, inf
      %v4380 = vmin.f32 %v4376, %v4379
      %v4381 = vsel %vm3157, %v4357, inf
      %v4382 = vmin.f32 %v4378, %v4381
      %v4383 = vmin.f32 %v4382, %v4380
      %v4384 = vrot.slane %v4383, 4
      %v4385 = vmin.f32 %v4383, %v4384
      %v4386 = vrot.slane %v4385, 2
      %v4387 = vmin.f32 %v4385, %v4386
      %v4388 = vrot.slane %v4387, 1
      %v4389 = vmin.f32 %v4387, %v4388
      %vm4390 = vcmp.eq.f32.partialorder %v3127, %v4370
      %vm4391 = vcmp.eq.f32.partialorder %v3127, %v4389
      %vm4392 = vcmp.eq.f32.partialorder %v3128, %v4370
      %vm4393 = vcmp.eq.f32.partialorder %v3128, %v4389
      %vm4394 = vcmp.eq.f32.partialorder %v3129, %v4370
      %vm4395 = vcmp.eq.f32.partialorder %v3129, %v4389
      %vm4396 = vcmp.eq.f32.partialorder %v3130, %v4370
      %vm4397 = vcmp.eq.f32.partialorder %v3130, %v4389
      %vm4398 = vcmp.eq.f32.partialorder %v3131, %v4370
      %vm4399 = vcmp.eq.f32.partialorder %v3131, %v4389
      %vm4400 = vcmp.eq.f32.partialorder %v3132, %v4370
      %vm4401 = vcmp.eq.f32.partialorder %v3132, %v4389
      %vm4402 = vcmp.eq.f32.partialorder %v3133, %v4370
      %vm4403 = vcmp.eq.f32.partialorder %v3133, %v4389
      %v4404 = vsel %vm4390, 1, 0
      %v4405 = vsel %vm4391, 1, 0
      %v4406 = vsel %vm4392, 1, 0
      %v4407 = vsel %vm4393, 1, 0
      %v4408 = vsel %vm4394, 1, 0
      %v4409 = vsel %vm4395, 1, 0
      %v4410 = vsel %vm4396, 1, 0
      %v4411 = vsel %vm4397, 1, 0
      %v4412 = vsel %vm4398, 1, 0
      %v4413 = vsel %vm4399, 1, 0
      %v4414 = vsel %vm4400, 1, 0
      %v4415 = vsel %vm4401, 1, 0
      %v4416 = vsel %vm4402, 1, 0
      %v4417 = vsel %vm4403, 1, 0
      %v4418 = vcvt.s32.f32 %v4404
      %v4419 = vcvt.s32.f32 %v4405
      %v4420 = vcvt.s32.f32 %v4406
      %v4421 = vcvt.s32.f32 %v4407
      %v4422 = vcvt.s32.f32 %v4408
      %v4423 = vcvt.s32.f32 %v4409
      %v4424 = vcvt.s32.f32 %v4410
      %v4425 = vcvt.s32.f32 %v4411
      %v4426 = vcvt.s32.f32 %v4412
      %v4427 = vcvt.s32.f32 %v4413
      %v4428 = vcvt.s32.f32 %v4414
      %v4429 = vcvt.s32.f32 %v4415
      %v4430 = vcvt.s32.f32 %v4416
      %v4431 = vcvt.s32.f32 %v4417
      %v4432 = vpack.c.bf16 %v4420, %v4418
      %v4433 = vpack.c.bf16 %v4421, %v4419
      %v4434 = vpack.c.bf16 %v4424, %v4422
      %v4435 = vpack.c.bf16 %v4425, %v4423
      %v4436 = vpack.c.bf16 %v4428, %v4426
      %v4437 = vpack.c.bf16 %v4429, %v4427
      %v4438 = vpack.c.bf16 %v4430, %v4430
      %v4439 = vpack.c.bf16 %v4431, %v4431
      %v4441 = vsel %vm3283, %v4438, 0
      %v4444 = vsel %vm3283, %v4439, 0
      %4446 = vmatprep.subr.bf16.mxu0 %v4433
      %4447 = vmatpush1.bf16.msra.mxu0 %v4432
      %4448 = vmatprep.subr.bf16.mxu0 %v4435
      %4449 = vmatpush1.bf16.msra.mxu0 %v4434
      %4450 = vmatprep.subr.bf16.mxu0 %v4437
      %4451 = vmatpush1.bf16.msra.mxu0 %v4436
      %4452 = vmatprep.subr.bf16.mxu0 %v4444
      %4453 = vmatpush1.bf16.msra.mxu0 %v4441
      %4454 = vmatprep.subr.bf16.mxu0 0
      %4455 = vmatpush1.bf16.msra.mxu0 0
      %4456 = vmatprep.subr.bf16.mxu0 0
      %4457 = vmatpush1.bf16.msra.mxu0 0
      %4458 = vmatprep.subr.bf16.mxu0 0
      %4459 = vmatpush1.bf16.msra.mxu0 0
      %4460 = vmatprep.subr.bf16.mxu0 0
      %4461 = vmatpush1.bf16.msra.mxu0 0
      %4462 = vmatprep.subr.bf16.mxu0 0
      %4463 = vmatpush1.bf16.msra.mxu0 0
      %4464 = vmatprep.subr.bf16.mxu0 0
      %4465 = vmatpush1.bf16.msra.mxu0 0
      %4466 = vmatprep.subr.bf16.mxu0 0
      %4467 = vmatpush1.bf16.msra.mxu0 0
      %4468 = vmatprep.subr.bf16.mxu0 0
      %4469 = vmatpush1.bf16.msra.mxu0 0
      %4470 = vmatprep.subr.bf16.mxu0 0
      %4471 = vmatpush1.bf16.msra.mxu0 0
      %4472 = vmatprep.subr.bf16.mxu0 0
      %4473 = vmatpush1.bf16.msra.mxu0 0
      %4474 = vmatprep.subr.bf16.mxu0 0
      %4475 = vmatpush1.bf16.msra.mxu0 0
      %4476 = vmatprep.subr.bf16.mxu0 0
      %4477 = vmatpush1.bf16.msra.mxu0 0
      %4478 = vmatprep.mubr.bf16.mxu0 0
      %4479 = vmatmul.mubr.bf16.gmra.mrb[0].mxu0 %v3571
      %v4480 = vpop.f32.mrb[0].mxu0
      %v4481 = vadd.f32 0.0, %v4480
      %v4482 = vpop.f32.mrb[0].mxu0
      %v4483 = vadd.f32 0.0, %v4482
      %v4484 = vpop.f32.mrb[0].mxu0
      %v4485 = vadd.f32 0.0, %v4484
      %v4486 = vpop.f32.mrb[0].mxu0
      %v4487 = vadd.f32 0.0, %v4486
      %4488 = vmatprep.mubr.bf16.mxu0 0
      %4489 = vmatmul.mubr.bf16.gmra.mrb[0].mxu0 %v3574
      %v4490 = vpop.f32.mrb[0].mxu0
      %v4491 = vadd.f32 0.0, %v4490
      %v4492 = vpop.f32.mrb[0].mxu0
      %v4493 = vadd.f32 0.0, %v4492
      %v4494 = vpop.f32.mrb[0].mxu0
      %v4495 = vadd.f32 0.0, %v4494
      %v4496 = vpop.f32.mrb[0].mxu0
      %v4497 = vadd.f32 0.0, %v4496
      %4498 = vdwg.mxu0
      %v4499 = vmul.f32 %v4481, %v635
      %v4500 = vmul.f32 %v4483, %v636
      %v4501 = vmul.f32 %v4485, %v637
      %v4502 = vmul.f32 %v4487, %v638
      %v4503 = vmul.f32 %v4491, %v639
      %v4504 = vmul.f32 %v4493, %v640
      %v4505 = vmul.f32 %v4495, %v641
      %v4506 = vmul.f32 %v4497, %v642
      %v4507 = vpack.c.bf16 %v4501, %v4499
      %v4508 = vpack.c.bf16 %v4502, %v4500
      %v4509 = vpack.c.bf16 %v4505, %v4503
      %v4510 = vpack.c.bf16 %v4506, %v4504
      %v4512 = vsel %vm2467, %v4508, 0
      %v4515 = vsel %vm2467, %v4510, 0
      %4517 = vmatprep.subr.bf16.mxu0 0
      %4518 = vmatpush1.bf16.msra.mxu0 %v2442
      %4519 = vmatprep.subr.bf16.mxu0 0
      %4520 = vmatpush1.bf16.msra.mxu0 %v2443
      %4521 = vmatprep.subr.bf16.mxu0 0
      %4522 = vmatpush1.bf16.msra.mxu0 %v2444
      %4523 = vmatprep.subr.bf16.mxu0 0
      %4524 = vmatpush1.bf16.msra.mxu0 %v2445
      %4525 = vmatprep.subr.bf16.mxu0 0
      %4526 = vmatpush1.bf16.msra.mxu0 %v2446
      %4527 = vmatprep.subr.bf16.mxu0 0
      %4528 = vmatpush1.bf16.msra.mxu0 %v2447
      %4529 = vmatprep.subr.bf16.mxu0 0
      %4530 = vmatpush1.bf16.msra.mxu0 %v2448
      %4531 = vmatprep.subr.bf16.mxu0 0
      %4532 = vmatpush1.bf16.msra.mxu0 %v2449
      %4533 = vmatprep.subr.bf16.mxu0 0
      %4534 = vmatpush1.bf16.msra.mxu0 %v2450
      %4535 = vmatprep.subr.bf16.mxu0 0
      %4536 = vmatpush1.bf16.msra.mxu0 %v2451
      %4537 = vmatprep.subr.bf16.mxu0 0
      %4538 = vmatpush1.bf16.msra.mxu0 %v2452
      %4539 = vmatprep.subr.bf16.mxu0 0
      %4540 = vmatpush1.bf16.msra.mxu0 %v2453
      %4541 = vmatprep.subr.bf16.mxu0 0
      %4542 = vmatpush1.bf16.msra.mxu0 %v2476
      %4543 = vmatprep.subr.bf16.mxu0 0
      %4544 = vmatpush1.bf16.msra.mxu0 0
      %4545 = vmatprep.subr.bf16.mxu0 0
      %4546 = vmatpush1.bf16.msra.mxu0 0
      %4547 = vmatprep.subr.bf16.mxu0 0
      %4548 = vmatpush1.bf16.msra.mxu0 0
      %4549 = vmatprep.mubr.bf16.mxu0 %v4512
      %4550 = vmatmul.mubr.bf16.gmra.mrb[0].mxu0 %v4507
      %v4551 = vpop.f32.mrb[0].mxu0
      %v4552 = vadd.f32 0.0, %v4551
      %v4553 = vpop.f32.mrb[0].mxu0
      %v4554 = vpop.f32.mrb[0].mxu0
      %v4555 = vadd.f32 0.0, %v4554
      %v4556 = vpop.f32.mrb[0].mxu0
      %4557 = vmatprep.mubr.bf16.mxu0 %v4515
      %4558 = vmatmul.mubr.bf16.gmra.mrb[0].mxu0 %v4509
      %v4559 = vpop.f32.mrb[0].mxu0
      %v4560 = vadd.f32 0.0, %v4559
      %v4561 = vpop.f32.mrb[0].mxu0
      %v4562 = vpop.f32.mrb[0].mxu0
      %v4563 = vadd.f32 0.0, %v4562
      %v4564 = vpop.f32.mrb[0].mxu0
      %4565 = vdwg.mxu0
      %v4566 = vsub.f32 %v4280, %v4552
      %v4567 = vsub.f32 %v4281, %v4555
      %v4568 = vsub.f32 %v4282, %v4560
      %v4569 = vsub.f32 %v4283, %v4563
      %v4570 = vsel %vm4390, -1e+30, %v4284
      %v4571 = vsel %vm4391, -1e+30, %v4285
      %v4572 = vsel %vm4392, -1e+30, %v4286
      %v4573 = vsel %vm4393, -1e+30, %v4287
      %v4574 = vsel %vm4394, -1e+30, %v4288
      %v4575 = vsel %vm4395, -1e+30, %v4289
      %v4576 = vsel %vm4396, -1e+30, %v4290
      %v4577 = vsel %vm4397, -1e+30, %v4291
      %v4578 = vsel %vm4398, -1e+30, %v4292
      %v4579 = vsel %vm4399, -1e+30, %v4293
      %v4580 = vsel %vm4400, -1e+30, %v4294
      %v4581 = vsel %vm4401, -1e+30, %v4295
      %v4582 = vsel %vm4402, -1e+30, %v4296
      %v4583 = vsel %vm4403, -1e+30, %v4297
      %v4584 = vmax.f32 %v4570, %v4574
      %v4585 = vmax.f32 %v4572, %v4576
      %v4586 = vmax.f32 %v4584, %v4578
      %v4587 = vmax.f32 %v4585, %v4580
      %v4588 = vsel %vm1541, %v4582, -inf
      %v4589 = vmax.f32 %v4586, %v4588
      %v4590 = vmax.f32 %v4589, %v4587
      %v4591 = vrot.slane %v4590, 4
      %v4592 = vmax.f32 %v4590, %v4591
      %v4593 = vrot.slane %v4592, 2
      %v4594 = vmax.f32 %v4592, %v4593
      %v4595 = vrot.slane %v4594, 1
      %v4596 = vmax.f32 %v4594, %v4595
      %v4597 = vsel %vm2467, %v4571, -inf
      %v4598 = vsel %vm2467, %v4573, -inf
      %v4599 = vsel %vm2467, %v4575, -inf
      %v4600 = vmax.f32 %v4597, %v4599
      %v4601 = vsel %vm2467, %v4577, -inf
      %v4602 = vmax.f32 %v4598, %v4601
      %v4603 = vsel %vm2467, %v4579, -inf
      %v4604 = vmax.f32 %v4600, %v4603
      %v4605 = vsel %vm2467, %v4581, -inf
      %v4606 = vmax.f32 %v4602, %v4605
      %v4607 = vsel %vm3157, %v4583, -inf
      %v4608 = vmax.f32 %v4604, %v4607
      %v4609 = vmax.f32 %v4608, %v4606
      %v4610 = vrot.slane %v4609, 4
      %v4611 = vmax.f32 %v4609, %v4610
      %v4612 = vrot.slane %v4611, 2
      %v4613 = vmax.f32 %v4611, %v4612
      %v4614 = vrot.slane %v4613, 1
      %v4615 = vmax.f32 %v4613, %v4614
      %vm4616 = vcmp.ge.f32.partialorder %v4570, %v4596
      %vm4617 = vcmp.ge.f32.partialorder %v4571, %v4615
      %vm4618 = vcmp.ge.f32.partialorder %v4572, %v4596
      %vm4619 = vcmp.ge.f32.partialorder %v4573, %v4615
      %vm4620 = vcmp.ge.f32.partialorder %v4574, %v4596
      %vm4621 = vcmp.ge.f32.partialorder %v4575, %v4615
      %vm4622 = vcmp.ge.f32.partialorder %v4576, %v4596
      %vm4623 = vcmp.ge.f32.partialorder %v4577, %v4615
      %vm4624 = vcmp.ge.f32.partialorder %v4578, %v4596
      %vm4625 = vcmp.ge.f32.partialorder %v4579, %v4615
      %vm4626 = vcmp.ge.f32.partialorder %v4580, %v4596
      %vm4627 = vcmp.ge.f32.partialorder %v4581, %v4615
      %vm4628 = vcmp.ge.f32.partialorder %v4582, %v4596
      %vm4629 = vcmp.ge.f32.partialorder %v4583, %v4615
      %v4630 = vsel %vm4616, %v3127, 50.0
      %v4631 = vsel %vm4617, %v3127, 50.0
      %v4632 = vsel %vm4618, %v3128, 50.0
      %v4633 = vsel %vm4619, %v3128, 50.0
      %v4634 = vsel %vm4620, %v3129, 50.0
      %v4635 = vsel %vm4621, %v3129, 50.0
      %v4636 = vsel %vm4622, %v3130, 50.0
      %v4637 = vsel %vm4623, %v3130, 50.0
      %v4638 = vsel %vm4624, %v3131, 50.0
      %v4639 = vsel %vm4625, %v3131, 50.0
      %v4640 = vsel %vm4626, %v3132, 50.0
      %v4641 = vsel %vm4627, %v3132, 50.0
      %v4642 = vsel %vm4628, %v3133, 50.0
      %v4643 = vsel %vm4629, %v3133, 50.0
      %v4644 = vmin.f32 %v4630, %v4634
      %v4645 = vmin.f32 %v4632, %v4636
      %v4646 = vmin.f32 %v4644, %v4638
      %v4647 = vmin.f32 %v4645, %v4640
      %v4648 = vsel %vm1541, %v4642, inf
      %v4649 = vmin.f32 %v4646, %v4648
      %v4650 = vmin.f32 %v4649, %v4647
      %v4651 = vrot.slane %v4650, 4
      %v4652 = vmin.f32 %v4650, %v4651
      %v4653 = vrot.slane %v4652, 2
      %v4654 = vmin.f32 %v4652, %v4653
      %v4655 = vrot.slane %v4654, 1
      %v4656 = vmin.f32 %v4654, %v4655
      %v4657 = vsel %vm2467, %v4631, inf
      %v4658 = vsel %vm2467, %v4633, inf
      %v4659 = vsel %vm2467, %v4635, inf
      %v4660 = vmin.f32 %v4657, %v4659
      %v4661 = vsel %vm2467, %v4637, inf
      %v4662 = vmin.f32 %v4658, %v4661
      %v4663 = vsel %vm2467, %v4639, inf
      %v4664 = vmin.f32 %v4660, %v4663
      %v4665 = vsel %vm2467, %v4641, inf
      %v4666 = vmin.f32 %v4662, %v4665
      %v4667 = vsel %vm3157, %v4643, inf
      %v4668 = vmin.f32 %v4664, %v4667
      %v4669 = vmin.f32 %v4668, %v4666
      %v4670 = vrot.slane %v4669, 4
      %v4671 = vmin.f32 %v4669, %v4670
      %v4672 = vrot.slane %v4671, 2
      %v4673 = vmin.f32 %v4671, %v4672
      %v4674 = vrot.slane %v4673, 1
      %v4675 = vmin.f32 %v4673, %v4674
      %vm4676 = vcmp.eq.f32.partialorder %v3127, %v4656
      %vm4677 = vcmp.eq.f32.partialorder %v3127, %v4675
      %vm4678 = vcmp.eq.f32.partialorder %v3128, %v4656
      %vm4679 = vcmp.eq.f32.partialorder %v3128, %v4675
      %vm4680 = vcmp.eq.f32.partialorder %v3129, %v4656
      %vm4681 = vcmp.eq.f32.partialorder %v3129, %v4675
      %vm4682 = vcmp.eq.f32.partialorder %v3130, %v4656
      %vm4683 = vcmp.eq.f32.partialorder %v3130, %v4675
      %vm4684 = vcmp.eq.f32.partialorder %v3131, %v4656
      %vm4685 = vcmp.eq.f32.partialorder %v3131, %v4675
      %vm4686 = vcmp.eq.f32.partialorder %v3132, %v4656
      %vm4687 = vcmp.eq.f32.partialorder %v3132, %v4675
      %vm4688 = vcmp.eq.f32.partialorder %v3133, %v4656
      %vm4689 = vcmp.eq.f32.partialorder %v3133, %v4675
      %v4690 = vsel %vm4676, 1, 0
      %v4691 = vsel %vm4677, 1, 0
      %v4692 = vsel %vm4678, 1, 0
      %v4693 = vsel %vm4679, 1, 0
      %v4694 = vsel %vm4680, 1, 0
      %v4695 = vsel %vm4681, 1, 0
      %v4696 = vsel %vm4682, 1, 0
      %v4697 = vsel %vm4683, 1, 0
      %v4698 = vsel %vm4684, 1, 0
      %v4699 = vsel %vm4685, 1, 0
      %v4700 = vsel %vm4686, 1, 0
      %v4701 = vsel %vm4687, 1, 0
      %v4702 = vsel %vm4688, 1, 0
      %v4703 = vsel %vm4689, 1, 0
      %v4704 = vcvt.s32.f32 %v4690
      %v4705 = vcvt.s32.f32 %v4691
      %v4706 = vcvt.s32.f32 %v4692
      %v4707 = vcvt.s32.f32 %v4693
      %v4708 = vcvt.s32.f32 %v4694
      %v4709 = vcvt.s32.f32 %v4695
      %v4710 = vcvt.s32.f32 %v4696
      %v4711 = vcvt.s32.f32 %v4697
      %v4712 = vcvt.s32.f32 %v4698
      %v4713 = vcvt.s32.f32 %v4699
      %v4714 = vcvt.s32.f32 %v4700
      %v4715 = vcvt.s32.f32 %v4701
      %v4716 = vcvt.s32.f32 %v4702
      %v4717 = vcvt.s32.f32 %v4703
      %v4718 = vpack.c.bf16 %v4706, %v4704
      %v4719 = vpack.c.bf16 %v4707, %v4705
      %v4720 = vpack.c.bf16 %v4710, %v4708
      %v4721 = vpack.c.bf16 %v4711, %v4709
      %v4722 = vpack.c.bf16 %v4714, %v4712
      %v4723 = vpack.c.bf16 %v4715, %v4713
      %v4724 = vpack.c.bf16 %v4716, %v4716
      %v4725 = vpack.c.bf16 %v4717, %v4717
      %v4727 = vsel %vm3283, %v4724, 0
      %v4730 = vsel %vm3283, %v4725, 0
      %4732 = vmatprep.subr.bf16.mxu0 %v4719
      %4733 = vmatpush1.bf16.msra.mxu0 %v4718
      %4734 = vmatprep.subr.bf16.mxu0 %v4721
      %4735 = vmatpush1.bf16.msra.mxu0 %v4720
      %4736 = vmatprep.subr.bf16.mxu0 %v4723
      %4737 = vmatpush1.bf16.msra.mxu0 %v4722
      %4738 = vmatprep.subr.bf16.mxu0 %v4730
      %4739 = vmatpush1.bf16.msra.mxu0 %v4727
      %4740 = vmatprep.subr.bf16.mxu0 0
      %4741 = vmatpush1.bf16.msra.mxu0 0
      %4742 = vmatprep.subr.bf16.mxu0 0
      %4743 = vmatpush1.bf16.msra.mxu0 0
      %4744 = vmatprep.subr.bf16.mxu0 0
      %4745 = vmatpush1.bf16.msra.mxu0 0
      %4746 = vmatprep.subr.bf16.mxu0 0
      %4747 = vmatpush1.bf16.msra.mxu0 0
      %4748 = vmatprep.subr.bf16.mxu0 0
      %4749 = vmatpush1.bf16.msra.mxu0 0
      %4750 = vmatprep.subr.bf16.mxu0 0
      %4751 = vmatpush1.bf16.msra.mxu0 0
      %4752 = vmatprep.subr.bf16.mxu0 0
      %4753 = vmatpush1.bf16.msra.mxu0 0
      %4754 = vmatprep.subr.bf16.mxu0 0
      %4755 = vmatpush1.bf16.msra.mxu0 0
      %4756 = vmatprep.subr.bf16.mxu0 0
      %4757 = vmatpush1.bf16.msra.mxu0 0
      %4758 = vmatprep.subr.bf16.mxu0 0
      %4759 = vmatpush1.bf16.msra.mxu0 0
      %4760 = vmatprep.subr.bf16.mxu0 0
      %4761 = vmatpush1.bf16.msra.mxu0 0
      %4762 = vmatprep.subr.bf16.mxu0 0
      %4763 = vmatpush1.bf16.msra.mxu0 0
      %4764 = vmatprep.mubr.bf16.mxu0 0
      %4765 = vmatmul.mubr.bf16.gmra.mrb[0].mxu0 %v3863
      %v4766 = vpop.f32.mrb[0].mxu0
      %v4767 = vadd.f32 0.0, %v4766
      %v4768 = vpop.f32.mrb[0].mxu0
      %v4769 = vadd.f32 0.0, %v4768
      %v4770 = vpop.f32.mrb[0].mxu0
      %v4771 = vadd.f32 0.0, %v4770
      %v4772 = vpop.f32.mrb[0].mxu0
      %v4773 = vadd.f32 0.0, %v4772
      %4774 = vmatprep.mubr.bf16.mxu0 0
      %4775 = vmatmul.mubr.bf16.gmra.mrb[0].mxu0 %v3866
      %v4776 = vpop.f32.mrb[0].mxu0
      %v4777 = vadd.f32 0.0, %v4776
      %v4778 = vpop.f32.mrb[0].mxu0
      %v4779 = vadd.f32 0.0, %v4778
      %v4780 = vpop.f32.mrb[0].mxu0
      %v4781 = vadd.f32 0.0, %v4780
      %v4782 = vpop.f32.mrb[0].mxu0
      %v4783 = vadd.f32 0.0, %v4782
      %4784 = vdwg.mxu0
      %v4785 = vmul.f32 %v4767, %v635
      %v4786 = vmul.f32 %v4769, %v636
      %v4787 = vmul.f32 %v4771, %v637
      %v4788 = vmul.f32 %v4773, %v638
      %v4789 = vmul.f32 %v4777, %v639
      %v4790 = vmul.f32 %v4779, %v640
      %v4791 = vmul.f32 %v4781, %v641
      %v4792 = vmul.f32 %v4783, %v642
      %v4793 = vpack.c.bf16 %v4787, %v4785
      %v4794 = vpack.c.bf16 %v4788, %v4786
      %v4795 = vpack.c.bf16 %v4791, %v4789
      %v4796 = vpack.c.bf16 %v4792, %v4790
      %v4798 = vsel %vm2467, %v4794, 0
      %v4801 = vsel %vm2467, %v4796, 0
      %4803 = vmatprep.subr.bf16.mxu0 0
      %4804 = vmatpush1.bf16.msra.mxu0 %v2442
      %4805 = vmatprep.subr.bf16.mxu0 0
      %4806 = vmatpush1.bf16.msra.mxu0 %v2443
      %4807 = vmatprep.subr.bf16.mxu0 0
      %4808 = vmatpush1.bf16.msra.mxu0 %v2444
      %4809 = vmatprep.subr.bf16.mxu0 0
      %4810 = vmatpush1.bf16.msra.mxu0 %v2445
      %4811 = vmatprep.subr.bf16.mxu0 0
      %4812 = vmatpush1.bf16.msra.mxu0 %v2446
      %4813 = vmatprep.subr.bf16.mxu0 0
      %4814 = vmatpush1.bf16.msra.mxu0 %v2447
      %4815 = vmatprep.subr.bf16.mxu0 0
      %4816 = vmatpush1.bf16.msra.mxu0 %v2448
      %4817 = vmatprep.subr.bf16.mxu0 0
      %4818 = vmatpush1.bf16.msra.mxu0 %v2449
      %4819 = vmatprep.subr.bf16.mxu0 0
      %4820 = vmatpush1.bf16.msra.mxu0 %v2450
      %4821 = vmatprep.subr.bf16.mxu0 0
      %4822 = vmatpush1.bf16.msra.mxu0 %v2451
      %4823 = vmatprep.subr.bf16.mxu0 0
      %4824 = vmatpush1.bf16.msra.mxu0 %v2452
      %4825 = vmatprep.subr.bf16.mxu0 0
      %4826 = vmatpush1.bf16.msra.mxu0 %v2453
      %4827 = vmatprep.subr.bf16.mxu0 0
      %4828 = vmatpush1.bf16.msra.mxu0 %v2476
      %4829 = vmatprep.subr.bf16.mxu0 0
      %4830 = vmatpush1.bf16.msra.mxu0 0
      %4831 = vmatprep.subr.bf16.mxu0 0
      %4832 = vmatpush1.bf16.msra.mxu0 0
      %4833 = vmatprep.subr.bf16.mxu0 0
      %4834 = vmatpush1.bf16.msra.mxu0 0
      %4835 = vmatprep.mubr.bf16.mxu0 %v4798
      %4836 = vmatmul.mubr.bf16.gmra.mrb[0].mxu0 %v4793
      %v4837 = vpop.f32.mrb[0].mxu0
      %v4838 = vadd.f32 0.0, %v4837
      %v4839 = vpop.f32.mrb[0].mxu0
      %v4840 = vpop.f32.mrb[0].mxu0
      %v4841 = vadd.f32 0.0, %v4840
      %v4842 = vpop.f32.mrb[0].mxu0
      %4843 = vmatprep.mubr.bf16.mxu0 %v4801
      %4844 = vmatmul.mubr.bf16.gmra.mrb[0].mxu0 %v4795
      %v4845 = vpop.f32.mrb[0].mxu0
      %v4846 = vadd.f32 0.0, %v4845
      %v4847 = vpop.f32.mrb[0].mxu0
      %v4848 = vpop.f32.mrb[0].mxu0
      %v4849 = vadd.f32 0.0, %v4848
      %v4850 = vpop.f32.mrb[0].mxu0
      %4851 = vdwg.mxu0
      %v4852 = vsub.f32 %v4566, %v4838
      %v4853 = vsub.f32 %v4567, %v4841
      %v4854 = vsub.f32 %v4568, %v4846
      %v4855 = vsub.f32 %v4569, %v4849
      %v4856 = vsel %vm4676, -1e+30, %v4570
      %v4857 = vsel %vm4677, -1e+30, %v4571
      %v4858 = vsel %vm4678, -1e+30, %v4572
      %v4859 = vsel %vm4679, -1e+30, %v4573
      %v4860 = vsel %vm4680, -1e+30, %v4574
      %v4861 = vsel %vm4681, -1e+30, %v4575
      %v4862 = vsel %vm4682, -1e+30, %v4576
      %v4863 = vsel %vm4683, -1e+30, %v4577
      %v4864 = vsel %vm4684, -1e+30, %v4578
      %v4865 = vsel %vm4685, -1e+30, %v4579
      %v4866 = vsel %vm4686, -1e+30, %v4580
      %v4867 = vsel %vm4687, -1e+30, %v4581
      %v4868 = vsel %vm4688, -1e+30, %v4582
      %v4869 = vsel %vm4689, -1e+30, %v4583
      %v4870 = vmax.f32 %v4856, %v4860
      %v4871 = vmax.f32 %v4858, %v4862
      %v4872 = vmax.f32 %v4870, %v4864
      %v4873 = vmax.f32 %v4871, %v4866
      %v4874 = vsel %vm1541, %v4868, -inf
      %v4875 = vmax.f32 %v4872, %v4874
      %v4876 = vmax.f32 %v4875, %v4873
      %v4877 = vrot.slane %v4876, 4
      %v4878 = vmax.f32 %v4876, %v4877
      %v4879 = vrot.slane %v4878, 2
      %v4880 = vmax.f32 %v4878, %v4879
      %v4881 = vrot.slane %v4880, 1
      %v4882 = vmax.f32 %v4880, %v4881
      %v4883 = vsel %vm2467, %v4857, -inf
      %v4884 = vsel %vm2467, %v4859, -inf
      %v4885 = vsel %vm2467, %v4861, -inf
      %v4886 = vmax.f32 %v4883, %v4885
      %v4887 = vsel %vm2467, %v4863, -inf
      %v4888 = vmax.f32 %v4884, %v4887
      %v4889 = vsel %vm2467, %v4865, -inf
      %v4890 = vmax.f32 %v4886, %v4889
      %v4891 = vsel %vm2467, %v4867, -inf
      %v4892 = vmax.f32 %v4888, %v4891
      %v4893 = vsel %vm3157, %v4869, -inf
      %v4894 = vmax.f32 %v4890, %v4893
      %v4895 = vmax.f32 %v4894, %v4892
      %v4896 = vrot.slane %v4895, 4
      %v4897 = vmax.f32 %v4895, %v4896
      %v4898 = vrot.slane %v4897, 2
      %v4899 = vmax.f32 %v4897, %v4898
      %v4900 = vrot.slane %v4899, 1
      %v4901 = vmax.f32 %v4899, %v4900
      %vm4902 = vcmp.ge.f32.partialorder %v4856, %v4882
      %vm4903 = vcmp.ge.f32.partialorder %v4857, %v4901
      %vm4904 = vcmp.ge.f32.partialorder %v4858, %v4882
      %vm4905 = vcmp.ge.f32.partialorder %v4859, %v4901
      %vm4906 = vcmp.ge.f32.partialorder %v4860, %v4882
      %vm4907 = vcmp.ge.f32.partialorder %v4861, %v4901
      %vm4908 = vcmp.ge.f32.partialorder %v4862, %v4882
      %vm4909 = vcmp.ge.f32.partialorder %v4863, %v4901
      %vm4910 = vcmp.ge.f32.partialorder %v4864, %v4882
      %vm4911 = vcmp.ge.f32.partialorder %v4865, %v4901
      %vm4912 = vcmp.ge.f32.partialorder %v4866, %v4882
      %vm4913 = vcmp.ge.f32.partialorder %v4867, %v4901
      %vm4914 = vcmp.ge.f32.partialorder %v4868, %v4882
      %vm4915 = vcmp.ge.f32.partialorder %v4869, %v4901
      %v4916 = vsel %vm4902, %v3127, 50.0
      %v4917 = vsel %vm4903, %v3127, 50.0
      %v4918 = vsel %vm4904, %v3128, 50.0
      %v4919 = vsel %vm4905, %v3128, 50.0
      %v4920 = vsel %vm4906, %v3129, 50.0
      %v4921 = vsel %vm4907, %v3129, 50.0
      %v4922 = vsel %vm4908, %v3130, 50.0
      %v4923 = vsel %vm4909, %v3130, 50.0
      %v4924 = vsel %vm4910, %v3131, 50.0
      %v4925 = vsel %vm4911, %v3131, 50.0
      %v4926 = vsel %vm4912, %v3132, 50.0
      %v4927 = vsel %vm4913, %v3132, 50.0
      %v4928 = vsel %vm4914, %v3133, 50.0
      %v4929 = vsel %vm4915, %v3133, 50.0
      %v4930 = vmin.f32 %v4916, %v4920
      %v4931 = vmin.f32 %v4918, %v4922
      %v4932 = vmin.f32 %v4930, %v4924
      %v4933 = vmin.f32 %v4931, %v4926
      %v4934 = vsel %vm1541, %v4928, inf
      %v4935 = vmin.f32 %v4932, %v4934
      %v4936 = vmin.f32 %v4935, %v4933
      %v4937 = vrot.slane %v4936, 4
      %v4938 = vmin.f32 %v4936, %v4937
      %v4939 = vrot.slane %v4938, 2
      %v4940 = vmin.f32 %v4938, %v4939
      %v4941 = vrot.slane %v4940, 1
      %v4942 = vmin.f32 %v4940, %v4941
      %v4943 = vsel %vm2467, %v4917, inf
      %v4944 = vsel %vm2467, %v4919, inf
      %v4945 = vsel %vm2467, %v4921, inf
      %v4946 = vmin.f32 %v4943, %v4945
      %v4947 = vsel %vm2467, %v4923, inf
      %v4948 = vmin.f32 %v4944, %v4947
      %v4949 = vsel %vm2467, %v4925, inf
      %v4950 = vmin.f32 %v4946, %v4949
      %v4951 = vsel %vm2467, %v4927, inf
      %v4952 = vmin.f32 %v4948, %v4951
      %v4953 = vsel %vm3157, %v4929, inf
      %v4954 = vmin.f32 %v4950, %v4953
      %v4955 = vmin.f32 %v4954, %v4952
      %v4956 = vrot.slane %v4955, 4
      %v4957 = vmin.f32 %v4955, %v4956
      %v4958 = vrot.slane %v4957, 2
      %v4959 = vmin.f32 %v4957, %v4958
      %v4960 = vrot.slane %v4959, 1
      %v4961 = vmin.f32 %v4959, %v4960
      %vm4962 = vcmp.eq.f32.partialorder %v3127, %v4942
      %vm4963 = vcmp.eq.f32.partialorder %v3127, %v4961
      %vm4964 = vcmp.eq.f32.partialorder %v3128, %v4942
      %vm4965 = vcmp.eq.f32.partialorder %v3128, %v4961
      %vm4966 = vcmp.eq.f32.partialorder %v3129, %v4942
      %vm4967 = vcmp.eq.f32.partialorder %v3129, %v4961
      %vm4968 = vcmp.eq.f32.partialorder %v3130, %v4942
      %vm4969 = vcmp.eq.f32.partialorder %v3130, %v4961
      %vm4970 = vcmp.eq.f32.partialorder %v3131, %v4942
      %vm4971 = vcmp.eq.f32.partialorder %v3131, %v4961
      %vm4972 = vcmp.eq.f32.partialorder %v3132, %v4942
      %vm4973 = vcmp.eq.f32.partialorder %v3132, %v4961
      %vm4974 = vcmp.eq.f32.partialorder %v3133, %v4942
      %vm4975 = vcmp.eq.f32.partialorder %v3133, %v4961
      %v4976 = vsel %vm4962, 1, 0
      %v4977 = vsel %vm4963, 1, 0
      %v4978 = vsel %vm4964, 1, 0
      %v4979 = vsel %vm4965, 1, 0
      %v4980 = vsel %vm4966, 1, 0
      %v4981 = vsel %vm4967, 1, 0
      %v4982 = vsel %vm4968, 1, 0
      %v4983 = vsel %vm4969, 1, 0
      %v4984 = vsel %vm4970, 1, 0
      %v4985 = vsel %vm4971, 1, 0
      %v4986 = vsel %vm4972, 1, 0
      %v4987 = vsel %vm4973, 1, 0
      %v4988 = vsel %vm4974, 1, 0
      %v4989 = vsel %vm4975, 1, 0
      %v4990 = vcvt.s32.f32 %v4976
      %v4991 = vcvt.s32.f32 %v4977
      %v4992 = vcvt.s32.f32 %v4978
      %v4993 = vcvt.s32.f32 %v4979
      %v4994 = vcvt.s32.f32 %v4980
      %v4995 = vcvt.s32.f32 %v4981
      %v4996 = vcvt.s32.f32 %v4982
      %v4997 = vcvt.s32.f32 %v4983
      %v4998 = vcvt.s32.f32 %v4984
      %v4999 = vcvt.s32.f32 %v4985
      %v5000 = vcvt.s32.f32 %v4986
      %v5001 = vcvt.s32.f32 %v4987
      %v5002 = vcvt.s32.f32 %v4988
      %v5003 = vcvt.s32.f32 %v4989
      %v5004 = vpack.c.bf16 %v4992, %v4990
      %v5005 = vpack.c.bf16 %v4993, %v4991
      %v5006 = vpack.c.bf16 %v4996, %v4994
      %v5007 = vpack.c.bf16 %v4997, %v4995
      %v5008 = vpack.c.bf16 %v5000, %v4998
      %v5009 = vpack.c.bf16 %v5001, %v4999
      %v5010 = vpack.c.bf16 %v5002, %v5002
      %v5011 = vpack.c.bf16 %v5003, %v5003
      %v5013 = vsel %vm3283, %v5010, 0
      %v5016 = vsel %vm3283, %v5011, 0
      %5018 = vmatprep.subr.bf16.mxu0 %v5005
      %5019 = vmatpush1.bf16.msra.mxu0 %v5004
      %5020 = vmatprep.subr.bf16.mxu0 %v5007
      %5021 = vmatpush1.bf16.msra.mxu0 %v5006
      %5022 = vmatprep.subr.bf16.mxu0 %v5009
      %5023 = vmatpush1.bf16.msra.mxu0 %v5008
      %5024 = vmatprep.subr.bf16.mxu0 %v5016
      %5025 = vmatpush1.bf16.msra.mxu0 %v5013
      %5026 = vmatprep.subr.bf16.mxu0 0
      %5027 = vmatpush1.bf16.msra.mxu0 0
      %5028 = vmatprep.subr.bf16.mxu0 0
      %5029 = vmatpush1.bf16.msra.mxu0 0
      %5030 = vmatprep.subr.bf16.mxu0 0
      %5031 = vmatpush1.bf16.msra.mxu0 0
      %5032 = vmatprep.subr.bf16.mxu0 0
      %5033 = vmatpush1.bf16.msra.mxu0 0
      %5034 = vmatprep.subr.bf16.mxu0 0
      %5035 = vmatpush1.bf16.msra.mxu0 0
      %5036 = vmatprep.subr.bf16.mxu0 0
      %5037 = vmatpush1.bf16.msra.mxu0 0
      %5038 = vmatprep.subr.bf16.mxu0 0
      %5039 = vmatpush1.bf16.msra.mxu0 0
      %5040 = vmatprep.subr.bf16.mxu0 0
      %5041 = vmatpush1.bf16.msra.mxu0 0
      %5042 = vmatprep.subr.bf16.mxu0 0
      %5043 = vmatpush1.bf16.msra.mxu0 0
      %5044 = vmatprep.subr.bf16.mxu0 0
      %5045 = vmatpush1.bf16.msra.mxu0 0
      %5046 = vmatprep.subr.bf16.mxu0 0
      %5047 = vmatpush1.bf16.msra.mxu0 0
      %5048 = vmatprep.subr.bf16.mxu0 0
      %5049 = vmatpush1.bf16.msra.mxu0 0
      %5050 = vmatprep.mubr.bf16.mxu0 0
      %5051 = vmatmul.mubr.bf16.gmra.mrb[0].mxu0 %v3278
      %v5052 = vpop.f32.mrb[0].mxu0
      %v5053 = vadd.f32 0.0, %v5052
      %v5054 = vpop.f32.mrb[0].mxu0
      %v5055 = vadd.f32 0.0, %v5054
      %v5056 = vpop.f32.mrb[0].mxu0
      %v5057 = vadd.f32 0.0, %v5056
      %v5058 = vpop.f32.mrb[0].mxu0
      %v5059 = vadd.f32 0.0, %v5058
      %5060 = vmatprep.mubr.bf16.mxu0 0
      %5061 = vmatmul.mubr.bf16.gmra.mrb[0].mxu0 %v3281
      %v5062 = vpop.f32.mrb[0].mxu0
      %v5063 = vadd.f32 0.0, %v5062
      %v5064 = vpop.f32.mrb[0].mxu0
      %v5065 = vadd.f32 0.0, %v5064
      %v5066 = vpop.f32.mrb[0].mxu0
      %v5067 = vadd.f32 0.0, %v5066
      %v5068 = vpop.f32.mrb[0].mxu0
      %v5069 = vadd.f32 0.0, %v5068
      %5070 = vdwg.mxu0
      %v5071 = vmul.f32 %v5053, %v635
      %v5072 = vmul.f32 %v5055, %v636
      %v5073 = vmul.f32 %v5057, %v637
      %v5074 = vmul.f32 %v5059, %v638
      %v5075 = vmul.f32 %v5063, %v639
      %v5076 = vmul.f32 %v5065, %v640
      %v5077 = vmul.f32 %v5067, %v641
      %v5078 = vmul.f32 %v5069, %v642
      %v5079 = vpack.c.bf16 %v5073, %v5071
      %v5080 = vpack.c.bf16 %v5074, %v5072
      %v5081 = vpack.c.bf16 %v5077, %v5075
      %v5082 = vpack.c.bf16 %v5078, %v5076
      %v5084 = vsel %vm2467, %v5080, 0
      %v5087 = vsel %vm2467, %v5082, 0
      %5089 = vmatprep.subr.bf16.mxu0 0
      %5090 = vmatpush1.bf16.msra.mxu0 %v2442
      %5091 = vmatprep.subr.bf16.mxu0 0
      %5092 = vmatpush1.bf16.msra.mxu0 %v2443
      %5093 = vmatprep.subr.bf16.mxu0 0
      %5094 = vmatpush1.bf16.msra.mxu0 %v2444
      %5095 = vmatprep.subr.bf16.mxu0 0
      %5096 = vmatpush1.bf16.msra.mxu0 %v2445
      %5097 = vmatprep.subr.bf16.mxu0 0
      %5098 = vmatpush1.bf16.msra.mxu0 %v2446
      %5099 = vmatprep.subr.bf16.mxu0 0
      %5100 = vmatpush1.bf16.msra.mxu0 %v2447
      %5101 = vmatprep.subr.bf16.mxu0 0
      %5102 = vmatpush1.bf16.msra.mxu0 %v2448
      %5103 = vmatprep.subr.bf16.mxu0 0
      %5104 = vmatpush1.bf16.msra.mxu0 %v2449
      %5105 = vmatprep.subr.bf16.mxu0 0
      %5106 = vmatpush1.bf16.msra.mxu0 %v2450
      %5107 = vmatprep.subr.bf16.mxu0 0
      %5108 = vmatpush1.bf16.msra.mxu0 %v2451
      %5109 = vmatprep.subr.bf16.mxu0 0
      %5110 = vmatpush1.bf16.msra.mxu0 %v2452
      %5111 = vmatprep.subr.bf16.mxu0 0
      %5112 = vmatpush1.bf16.msra.mxu0 %v2453
      %5113 = vmatprep.subr.bf16.mxu0 0
      %5114 = vmatpush1.bf16.msra.mxu0 %v2476
      %5115 = vmatprep.subr.bf16.mxu0 0
      %5116 = vmatpush1.bf16.msra.mxu0 0
      %5117 = vmatprep.subr.bf16.mxu0 0
      %5118 = vmatpush1.bf16.msra.mxu0 0
      %5119 = vmatprep.subr.bf16.mxu0 0
      %5120 = vmatpush1.bf16.msra.mxu0 0
      %5121 = vmatprep.mubr.bf16.mxu0 %v5084
      %5122 = vmatmul.mubr.bf16.gmra.mrb[0].mxu0 %v5079
      %v5123 = vpop.f32.mrb[0].mxu0
      %v5124 = vadd.f32 0.0, %v5123
      %v5125 = vpop.f32.mrb[0].mxu0
      %v5126 = vpop.f32.mrb[0].mxu0
      %v5127 = vadd.f32 0.0, %v5126
      %v5128 = vpop.f32.mrb[0].mxu0
      %5129 = vmatprep.mubr.bf16.mxu0 %v5087
      %5130 = vmatmul.mubr.bf16.gmra.mrb[0].mxu0 %v5081
      %v5131 = vpop.f32.mrb[0].mxu0
      %v5132 = vadd.f32 0.0, %v5131
      %v5133 = vpop.f32.mrb[0].mxu0
      %v5134 = vpop.f32.mrb[0].mxu0
      %v5135 = vadd.f32 0.0, %v5134
      %v5136 = vpop.f32.mrb[0].mxu0
      %5137 = vdwg.mxu0
      %v5138 = vsub.f32 %v3105, %v5124
      %v5139 = vsub.f32 %v3108, %v5127
      %v5140 = vsub.f32 %v3113, %v5132
      %v5141 = vsub.f32 %v3116, %v5135
      %v5142 = vsel %vm4962, -1e+30, %v4856
      %v5143 = vsel %vm4963, -1e+30, %v4857
      %v5144 = vsel %vm4964, -1e+30, %v4858
      %v5145 = vsel %vm4965, -1e+30, %v4859
      %v5146 = vsel %vm4966, -1e+30, %v4860
      %v5147 = vsel %vm4967, -1e+30, %v4861
      %v5148 = vsel %vm4968, -1e+30, %v4862
      %v5149 = vsel %vm4969, -1e+30, %v4863
      %v5150 = vsel %vm4970, -1e+30, %v4864
      %v5151 = vsel %vm4971, -1e+30, %v4865
      %v5152 = vsel %vm4972, -1e+30, %v4866
      %v5153 = vsel %vm4973, -1e+30, %v4867
      %v5154 = vsel %vm4974, -1e+30, %v4868
      %v5155 = vsel %vm4975, -1e+30, %v4869
      %v5156 = vmax.f32 %v5142, %v5146
      %v5157 = vmax.f32 %v5144, %v5148
      %v5158 = vmax.f32 %v5156, %v5150
      %v5159 = vmax.f32 %v5157, %v5152
      %v5160 = vsel %vm1541, %v5154, -inf
      %v5161 = vmax.f32 %v5158, %v5160
      %v5162 = vmax.f32 %v5161, %v5159
      %v5163 = vrot.slane %v5162, 4
      %v5164 = vmax.f32 %v5162, %v5163
      %v5165 = vrot.slane %v5164, 2
      %v5166 = vmax.f32 %v5164, %v5165
      %v5167 = vrot.slane %v5166, 1
      %v5168 = vmax.f32 %v5166, %v5167
      %v5169 = vsel %vm2467, %v5143, -inf
      %v5170 = vsel %vm2467, %v5145, -inf
      %v5171 = vsel %vm2467, %v5147, -inf
      %v5172 = vmax.f32 %v5169, %v5171
      %v5173 = vsel %vm2467, %v5149, -inf
      %v5174 = vmax.f32 %v5170, %v5173
      %v5175 = vsel %vm2467, %v5151, -inf
      %v5176 = vmax.f32 %v5172, %v5175
      %v5177 = vsel %vm2467, %v5153, -inf
      %v5178 = vmax.f32 %v5174, %v5177
      %v5179 = vsel %vm3157, %v5155, -inf
      %v5180 = vmax.f32 %v5176, %v5179
      %v5181 = vmax.f32 %v5180, %v5178
      %v5182 = vrot.slane %v5181, 4
      %v5183 = vmax.f32 %v5181, %v5182
      %v5184 = vrot.slane %v5183, 2
      %v5185 = vmax.f32 %v5183, %v5184
      %v5186 = vrot.slane %v5185, 1
      %v5187 = vmax.f32 %v5185, %v5186
      %vm5188 = vcmp.ge.f32.partialorder %v5142, %v5168
      %vm5189 = vcmp.ge.f32.partialorder %v5143, %v5187
      %vm5190 = vcmp.ge.f32.partialorder %v5144, %v5168
      %vm5191 = vcmp.ge.f32.partialorder %v5145, %v5187
      %vm5192 = vcmp.ge.f32.partialorder %v5146, %v5168
      %vm5193 = vcmp.ge.f32.partialorder %v5147, %v5187
      %vm5194 = vcmp.ge.f32.partialorder %v5148, %v5168
      %vm5195 = vcmp.ge.f32.partialorder %v5149, %v5187
      %vm5196 = vcmp.ge.f32.partialorder %v5150, %v5168
      %vm5197 = vcmp.ge.f32.partialorder %v5151, %v5187
      %vm5198 = vcmp.ge.f32.partialorder %v5152, %v5168
      %vm5199 = vcmp.ge.f32.partialorder %v5153, %v5187
      %vm5200 = vcmp.ge.f32.partialorder %v5154, %v5168
      %vm5201 = vcmp.ge.f32.partialorder %v5155, %v5187
      %v5202 = vsel %vm5188, %v3127, 50.0
      %v5203 = vsel %vm5189, %v3127, 50.0
      %v5204 = vsel %vm5190, %v3128, 50.0
      %v5205 = vsel %vm5191, %v3128, 50.0
      %v5206 = vsel %vm5192, %v3129, 50.0
      %v5207 = vsel %vm5193, %v3129, 50.0
      %v5208 = vsel %vm5194, %v3130, 50.0
      %v5209 = vsel %vm5195, %v3130, 50.0
      %v5210 = vsel %vm5196, %v3131, 50.0
      %v5211 = vsel %vm5197, %v3131, 50.0
      %v5212 = vsel %vm5198, %v3132, 50.0
      %v5213 = vsel %vm5199, %v3132, 50.0
      %v5214 = vsel %vm5200, %v3133, 50.0
      %v5215 = vsel %vm5201, %v3133, 50.0
      %v5216 = vmin.f32 %v5202, %v5206
      %v5217 = vmin.f32 %v5204, %v5208
      %v5218 = vmin.f32 %v5216, %v5210
      %v5219 = vmin.f32 %v5217, %v5212
      %v5220 = vsel %vm1541, %v5214, inf
      %v5221 = vmin.f32 %v5218, %v5220
      %v5222 = vmin.f32 %v5221, %v5219
      %v5223 = vrot.slane %v5222, 4
      %v5224 = vmin.f32 %v5222, %v5223
      %v5225 = vrot.slane %v5224, 2
      %v5226 = vmin.f32 %v5224, %v5225
      %v5227 = vrot.slane %v5226, 1
      %v5228 = vmin.f32 %v5226, %v5227
      %v5229 = vsel %vm2467, %v5203, inf
      %v5230 = vsel %vm2467, %v5205, inf
      %v5231 = vsel %vm2467, %v5207, inf
      %v5232 = vmin.f32 %v5229, %v5231
      %v5233 = vsel %vm2467, %v5209, inf
      %v5234 = vmin.f32 %v5230, %v5233
      %v5235 = vsel %vm2467, %v5211, inf
      %v5236 = vmin.f32 %v5232, %v5235
      %v5237 = vsel %vm2467, %v5213, inf
      %v5238 = vmin.f32 %v5234, %v5237
      %v5239 = vsel %vm3157, %v5215, inf
      %v5240 = vmin.f32 %v5236, %v5239
      %v5241 = vmin.f32 %v5240, %v5238
      %v5242 = vrot.slane %v5241, 4
      %v5243 = vmin.f32 %v5241, %v5242
      %v5244 = vrot.slane %v5243, 2
      %v5245 = vmin.f32 %v5243, %v5244
      %v5246 = vrot.slane %v5245, 1
      %v5247 = vmin.f32 %v5245, %v5246
      %vm5248 = vcmp.eq.f32.partialorder %v3127, %v5228
      %vm5249 = vcmp.eq.f32.partialorder %v3127, %v5247
      %vm5250 = vcmp.eq.f32.partialorder %v3128, %v5228
      %vm5251 = vcmp.eq.f32.partialorder %v3128, %v5247
      %vm5252 = vcmp.eq.f32.partialorder %v3129, %v5228
      %vm5253 = vcmp.eq.f32.partialorder %v3129, %v5247
      %vm5254 = vcmp.eq.f32.partialorder %v3130, %v5228
      %vm5255 = vcmp.eq.f32.partialorder %v3130, %v5247
      %vm5256 = vcmp.eq.f32.partialorder %v3131, %v5228
      %vm5257 = vcmp.eq.f32.partialorder %v3131, %v5247
      %vm5258 = vcmp.eq.f32.partialorder %v3132, %v5228
      %vm5259 = vcmp.eq.f32.partialorder %v3132, %v5247
      %vm5260 = vcmp.eq.f32.partialorder %v3133, %v5228
      %vm5261 = vcmp.eq.f32.partialorder %v3133, %v5247
      %v5262 = vsel %vm5248, 1, 0
      %v5263 = vsel %vm5249, 1, 0
      %v5264 = vsel %vm5250, 1, 0
      %v5265 = vsel %vm5251, 1, 0
      %v5266 = vsel %vm5252, 1, 0
      %v5267 = vsel %vm5253, 1, 0
      %v5268 = vsel %vm5254, 1, 0
      %v5269 = vsel %vm5255, 1, 0
      %v5270 = vsel %vm5256, 1, 0
      %v5271 = vsel %vm5257, 1, 0
      %v5272 = vsel %vm5258, 1, 0
      %v5273 = vsel %vm5259, 1, 0
      %v5274 = vsel %vm5260, 1, 0
      %v5275 = vsel %vm5261, 1, 0
      %v5276 = vcvt.s32.f32 %v5262
      %v5277 = vcvt.s32.f32 %v5263
      %v5278 = vcvt.s32.f32 %v5264
      %v5279 = vcvt.s32.f32 %v5265
      %v5280 = vcvt.s32.f32 %v5266
      %v5281 = vcvt.s32.f32 %v5267
      %v5282 = vcvt.s32.f32 %v5268
      %v5283 = vcvt.s32.f32 %v5269
      %v5284 = vcvt.s32.f32 %v5270
      %v5285 = vcvt.s32.f32 %v5271
      %v5286 = vcvt.s32.f32 %v5272
      %v5287 = vcvt.s32.f32 %v5273
      %v5288 = vcvt.s32.f32 %v5274
      %v5289 = vcvt.s32.f32 %v5275
      %v5290 = vpack.c.bf16 %v5278, %v5276
      %v5291 = vpack.c.bf16 %v5279, %v5277
      %v5292 = vpack.c.bf16 %v5282, %v5280
      %v5293 = vpack.c.bf16 %v5283, %v5281
      %v5294 = vpack.c.bf16 %v5286, %v5284
      %v5295 = vpack.c.bf16 %v5287, %v5285
      %v5296 = vpack.c.bf16 %v5288, %v5288
      %v5297 = vpack.c.bf16 %v5289, %v5289
      %v5299 = vsel %vm3283, %v5296, 0
      %v5302 = vsel %vm3283, %v5297, 0
      %5304 = vmatprep.subr.bf16.mxu0 %v5291
      %5305 = vmatpush1.bf16.msra.mxu0 %v5290
      %5306 = vmatprep.subr.bf16.mxu0 %v5293
      %5307 = vmatpush1.bf16.msra.mxu0 %v5292
      %5308 = vmatprep.subr.bf16.mxu0 %v5295
      %5309 = vmatpush1.bf16.msra.mxu0 %v5294
      %5310 = vmatprep.subr.bf16.mxu0 %v5302
      %5311 = vmatpush1.bf16.msra.mxu0 %v5299
      %5312 = vmatprep.subr.bf16.mxu0 0
      %5313 = vmatpush1.bf16.msra.mxu0 0
      %5314 = vmatprep.subr.bf16.mxu0 0
      %5315 = vmatpush1.bf16.msra.mxu0 0
      %5316 = vmatprep.subr.bf16.mxu0 0
      %5317 = vmatpush1.bf16.msra.mxu0 0
      %5318 = vmatprep.subr.bf16.mxu0 0
      %5319 = vmatpush1.bf16.msra.mxu0 0
      %5320 = vmatprep.subr.bf16.mxu0 0
      %5321 = vmatpush1.bf16.msra.mxu0 0
      %5322 = vmatprep.subr.bf16.mxu0 0
      %5323 = vmatpush1.bf16.msra.mxu0 0
      %5324 = vmatprep.subr.bf16.mxu0 0
      %5325 = vmatpush1.bf16.msra.mxu0 0
      %5326 = vmatprep.subr.bf16.mxu0 0
      %5327 = vmatpush1.bf16.msra.mxu0 0
      %5328 = vmatprep.subr.bf16.mxu0 0
      %5329 = vmatpush1.bf16.msra.mxu0 0
      %5330 = vmatprep.subr.bf16.mxu0 0
      %5331 = vmatpush1.bf16.msra.mxu0 0
      %5332 = vmatprep.subr.bf16.mxu0 0
      %5333 = vmatpush1.bf16.msra.mxu0 0
      %5334 = vmatprep.subr.bf16.mxu0 0
      %5335 = vmatpush1.bf16.msra.mxu0 0
      %5336 = vmatprep.mubr.bf16.mxu0 0
      %5337 = vmatmul.mubr.bf16.gmra.mrb[0].mxu0 %v3571
      %v5338 = vpop.f32.mrb[0].mxu0
      %v5339 = vadd.f32 0.0, %v5338
      %v5340 = vpop.f32.mrb[0].mxu0
      %v5341 = vadd.f32 0.0, %v5340
      %v5342 = vpop.f32.mrb[0].mxu0
      %v5343 = vadd.f32 0.0, %v5342
      %v5344 = vpop.f32.mrb[0].mxu0
      %v5345 = vadd.f32 0.0, %v5344
      %5346 = vmatprep.mubr.bf16.mxu0 0
      %5347 = vmatmul.mubr.bf16.gmra.mrb[0].mxu0 %v3574
      %v5348 = vpop.f32.mrb[0].mxu0
      %v5349 = vadd.f32 0.0, %v5348
      %v5350 = vpop.f32.mrb[0].mxu0
      %v5351 = vadd.f32 0.0, %v5350
      %v5352 = vpop.f32.mrb[0].mxu0
      %v5353 = vadd.f32 0.0, %v5352
      %v5354 = vpop.f32.mrb[0].mxu0
      %v5355 = vadd.f32 0.0, %v5354
      %5356 = vdwg.mxu0
      %v5357 = vmul.f32 %v5339, %v635
      %v5358 = vmul.f32 %v5341, %v636
      %v5359 = vmul.f32 %v5343, %v637
      %v5360 = vmul.f32 %v5345, %v638
      %v5361 = vmul.f32 %v5349, %v639
      %v5362 = vmul.f32 %v5351, %v640
      %v5363 = vmul.f32 %v5353, %v641
      %v5364 = vmul.f32 %v5355, %v642
      %v5365 = vpack.c.bf16 %v5359, %v5357
      %v5366 = vpack.c.bf16 %v5360, %v5358
      %v5367 = vpack.c.bf16 %v5363, %v5361
      %v5368 = vpack.c.bf16 %v5364, %v5362
      %v5370 = vsel %vm2467, %v5366, 0
      %v5373 = vsel %vm2467, %v5368, 0
      %5375 = vmatprep.subr.bf16.mxu0 0
      %5376 = vmatpush1.bf16.msra.mxu0 %v2442
      %5377 = vmatprep.subr.bf16.mxu0 0
      %5378 = vmatpush1.bf16.msra.mxu0 %v2443
      %5379 = vmatprep.subr.bf16.mxu0 0
      %5380 = vmatpush1.bf16.msra.mxu0 %v2444
      %5381 = vmatprep.subr.bf16.mxu0 0
      %5382 = vmatpush1.bf16.msra.mxu0 %v2445
      %5383 = vmatprep.subr.bf16.mxu0 0
      %5384 = vmatpush1.bf16.msra.mxu0 %v2446
      %5385 = vmatprep.subr.bf16.mxu0 0
      %5386 = vmatpush1.bf16.msra.mxu0 %v2447
      %5387 = vmatprep.subr.bf16.mxu0 0
      %5388 = vmatpush1.bf16.msra.mxu0 %v2448
      %5389 = vmatprep.subr.bf16.mxu0 0
      %5390 = vmatpush1.bf16.msra.mxu0 %v2449
      %5391 = vmatprep.subr.bf16.mxu0 0
      %5392 = vmatpush1.bf16.msra.mxu0 %v2450
      %5393 = vmatprep.subr.bf16.mxu0 0
      %5394 = vmatpush1.bf16.msra.mxu0 %v2451
      %5395 = vmatprep.subr.bf16.mxu0 0
      %5396 = vmatpush1.bf16.msra.mxu0 %v2452
      %5397 = vmatprep.subr.bf16.mxu0 0
      %5398 = vmatpush1.bf16.msra.mxu0 %v2453
      %5399 = vmatprep.subr.bf16.mxu0 0
      %5400 = vmatpush1.bf16.msra.mxu0 %v2476
      %5401 = vmatprep.subr.bf16.mxu0 0
      %5402 = vmatpush1.bf16.msra.mxu0 0
      %5403 = vmatprep.subr.bf16.mxu0 0
      %5404 = vmatpush1.bf16.msra.mxu0 0
      %5405 = vmatprep.subr.bf16.mxu0 0
      %5406 = vmatpush1.bf16.msra.mxu0 0
      %5407 = vmatprep.mubr.bf16.mxu0 %v5370
      %5408 = vmatmul.mubr.bf16.gmra.mrb[0].mxu0 %v5365
      %v5409 = vpop.f32.mrb[0].mxu0
      %v5410 = vadd.f32 0.0, %v5409
      %v5411 = vpop.f32.mrb[0].mxu0
      %v5412 = vpop.f32.mrb[0].mxu0
      %v5413 = vadd.f32 0.0, %v5412
      %v5414 = vpop.f32.mrb[0].mxu0
      %5415 = vmatprep.mubr.bf16.mxu0 %v5373
      %5416 = vmatmul.mubr.bf16.gmra.mrb[0].mxu0 %v5367
      %v5417 = vpop.f32.mrb[0].mxu0
      %v5418 = vadd.f32 0.0, %v5417
      %v5419 = vpop.f32.mrb[0].mxu0
      %v5420 = vpop.f32.mrb[0].mxu0
      %v5421 = vadd.f32 0.0, %v5420
      %v5422 = vpop.f32.mrb[0].mxu0
      %5423 = vdwg.mxu0
      %v5424 = vsub.f32 %v5138, %v5410
      %v5425 = vsub.f32 %v5139, %v5413
      %v5426 = vsub.f32 %v5140, %v5418
      %v5427 = vsub.f32 %v5141, %v5421
      %v5428 = vsel %vm5248, -1e+30, %v5142
      %v5429 = vsel %vm5249, -1e+30, %v5143
      %v5430 = vsel %vm5250, -1e+30, %v5144
      %v5431 = vsel %vm5251, -1e+30, %v5145
      %v5432 = vsel %vm5252, -1e+30, %v5146
      %v5433 = vsel %vm5253, -1e+30, %v5147
      %v5434 = vsel %vm5254, -1e+30, %v5148
      %v5435 = vsel %vm5255, -1e+30, %v5149
      %v5436 = vsel %vm5256, -1e+30, %v5150
      %v5437 = vsel %vm5257, -1e+30, %v5151
      %v5438 = vsel %vm5258, -1e+30, %v5152
      %v5439 = vsel %vm5259, -1e+30, %v5153
      %v5440 = vsel %vm5260, -1e+30, %v5154
      %v5441 = vsel %vm5261, -1e+30, %v5155
      %v5442 = vmax.f32 %v5428, %v5432
      %v5443 = vmax.f32 %v5430, %v5434
      %v5444 = vmax.f32 %v5442, %v5436
      %v5445 = vmax.f32 %v5443, %v5438
      %v5446 = vsel %vm1541, %v5440, -inf
      %v5447 = vmax.f32 %v5444, %v5446
      %v5448 = vmax.f32 %v5447, %v5445
      %v5449 = vrot.slane %v5448, 4
      %v5450 = vmax.f32 %v5448, %v5449
      %v5451 = vrot.slane %v5450, 2
      %v5452 = vmax.f32 %v5450, %v5451
      %v5453 = vrot.slane %v5452, 1
      %v5454 = vmax.f32 %v5452, %v5453
      %v5455 = vsel %vm2467, %v5429, -inf
      %v5456 = vsel %vm2467, %v5431, -inf
      %v5457 = vsel %vm2467, %v5433, -inf
      %v5458 = vmax.f32 %v5455, %v5457
      %v5459 = vsel %vm2467, %v5435, -inf
      %v5460 = vmax.f32 %v5456, %v5459
      %v5461 = vsel %vm2467, %v5437, -inf
      %v5462 = vmax.f32 %v5458, %v5461
      %v5463 = vsel %vm2467, %v5439, -inf
      %v5464 = vmax.f32 %v5460, %v5463
      %v5465 = vsel %vm3157, %v5441, -inf
      %v5466 = vmax.f32 %v5462, %v5465
      %v5467 = vmax.f32 %v5466, %v5464
      %v5468 = vrot.slane %v5467, 4
      %v5469 = vmax.f32 %v5467, %v5468
      %v5470 = vrot.slane %v5469, 2
      %v5471 = vmax.f32 %v5469, %v5470
      %v5472 = vrot.slane %v5471, 1
      %v5473 = vmax.f32 %v5471, %v5472
      %vm5474 = vcmp.ge.f32.partialorder %v5428, %v5454
      %vm5475 = vcmp.ge.f32.partialorder %v5429, %v5473
      %vm5476 = vcmp.ge.f32.partialorder %v5430, %v5454
      %vm5477 = vcmp.ge.f32.partialorder %v5431, %v5473
      %vm5478 = vcmp.ge.f32.partialorder %v5432, %v5454
      %vm5479 = vcmp.ge.f32.partialorder %v5433, %v5473
      %vm5480 = vcmp.ge.f32.partialorder %v5434, %v5454
      %vm5481 = vcmp.ge.f32.partialorder %v5435, %v5473
      %vm5482 = vcmp.ge.f32.partialorder %v5436, %v5454
      %vm5483 = vcmp.ge.f32.partialorder %v5437, %v5473
      %vm5484 = vcmp.ge.f32.partialorder %v5438, %v5454
      %vm5485 = vcmp.ge.f32.partialorder %v5439, %v5473
      %vm5486 = vcmp.ge.f32.partialorder %v5440, %v5454
      %vm5487 = vcmp.ge.f32.partialorder %v5441, %v5473
      %v5488 = vsel %vm5474, %v3127, 50.0
      %v5489 = vsel %vm5475, %v3127, 50.0
      %v5490 = vsel %vm5476, %v3128, 50.0
      %v5491 = vsel %vm5477, %v3128, 50.0
      %v5492 = vsel %vm5478, %v3129, 50.0
      %v5493 = vsel %vm5479, %v3129, 50.0
      %v5494 = vsel %vm5480, %v3130, 50.0
      %v5495 = vsel %vm5481, %v3130, 50.0
      %v5496 = vsel %vm5482, %v3131, 50.0
      %v5497 = vsel %vm5483, %v3131, 50.0
      %v5498 = vsel %vm5484, %v3132, 50.0
      %v5499 = vsel %vm5485, %v3132, 50.0
      %v5500 = vsel %vm5486, %v3133, 50.0
      %v5501 = vsel %vm5487, %v3133, 50.0
      %v5502 = vmin.f32 %v5488, %v5492
      %v5503 = vmin.f32 %v5490, %v5494
      %v5504 = vmin.f32 %v5502, %v5496
      %v5505 = vmin.f32 %v5503, %v5498
      %v5506 = vsel %vm1541, %v5500, inf
      %v5507 = vmin.f32 %v5504, %v5506
      %v5508 = vmin.f32 %v5507, %v5505
      %v5509 = vrot.slane %v5508, 4
      %v5510 = vmin.f32 %v5508, %v5509
      %v5511 = vrot.slane %v5510, 2
      %v5512 = vmin.f32 %v5510, %v5511
      %v5513 = vrot.slane %v5512, 1
      %v5514 = vmin.f32 %v5512, %v5513
      %v5515 = vsel %vm2467, %v5489, inf
      %v5516 = vsel %vm2467, %v5491, inf
      %v5517 = vsel %vm2467, %v5493, inf
      %v5518 = vmin.f32 %v5515, %v5517
      %v5519 = vsel %vm2467, %v5495, inf
      %v5520 = vmin.f32 %v5516, %v5519
      %v5521 = vsel %vm2467, %v5497, inf
      %v5522 = vmin.f32 %v5518, %v5521
      %v5523 = vsel %vm2467, %v5499, inf
      %v5524 = vmin.f32 %v5520, %v5523
      %v5525 = vsel %vm3157, %v5501, inf
      %v5526 = vmin.f32 %v5522, %v5525
      %v5527 = vmin.f32 %v5526, %v5524
      %v5528 = vrot.slane %v5527, 4
      %v5529 = vmin.f32 %v5527, %v5528
      %v5530 = vrot.slane %v5529, 2
      %v5531 = vmin.f32 %v5529, %v5530
      %v5532 = vrot.slane %v5531, 1
      %v5533 = vmin.f32 %v5531, %v5532
      %vm5534 = vcmp.eq.f32.partialorder %v3127, %v5514
      %vm5535 = vcmp.eq.f32.partialorder %v3127, %v5533
      %vm5536 = vcmp.eq.f32.partialorder %v3128, %v5514
      %vm5537 = vcmp.eq.f32.partialorder %v3128, %v5533
      %vm5538 = vcmp.eq.f32.partialorder %v3129, %v5514
      %vm5539 = vcmp.eq.f32.partialorder %v3129, %v5533
      %vm5540 = vcmp.eq.f32.partialorder %v3130, %v5514
      %vm5541 = vcmp.eq.f32.partialorder %v3130, %v5533
      %vm5542 = vcmp.eq.f32.partialorder %v3131, %v5514
      %vm5543 = vcmp.eq.f32.partialorder %v3131, %v5533
      %vm5544 = vcmp.eq.f32.partialorder %v3132, %v5514
      %vm5545 = vcmp.eq.f32.partialorder %v3132, %v5533
      %vm5546 = vcmp.eq.f32.partialorder %v3133, %v5514
      %vm5547 = vcmp.eq.f32.partialorder %v3133, %v5533
      %v5548 = vsel %vm5534, 1, 0
      %v5549 = vsel %vm5535, 1, 0
      %v5550 = vsel %vm5536, 1, 0
      %v5551 = vsel %vm5537, 1, 0
      %v5552 = vsel %vm5538, 1, 0
      %v5553 = vsel %vm5539, 1, 0
      %v5554 = vsel %vm5540, 1, 0
      %v5555 = vsel %vm5541, 1, 0
      %v5556 = vsel %vm5542, 1, 0
      %v5557 = vsel %vm5543, 1, 0
      %v5558 = vsel %vm5544, 1, 0
      %v5559 = vsel %vm5545, 1, 0
      %v5560 = vsel %vm5546, 1, 0
      %v5561 = vsel %vm5547, 1, 0
      %v5562 = vcvt.s32.f32 %v5548
      %v5563 = vcvt.s32.f32 %v5549
      %v5564 = vcvt.s32.f32 %v5550
      %v5565 = vcvt.s32.f32 %v5551
      %v5566 = vcvt.s32.f32 %v5552
      %v5567 = vcvt.s32.f32 %v5553
      %v5568 = vcvt.s32.f32 %v5554
      %v5569 = vcvt.s32.f32 %v5555
      %v5570 = vcvt.s32.f32 %v5556
      %v5571 = vcvt.s32.f32 %v5557
      %v5572 = vcvt.s32.f32 %v5558
      %v5573 = vcvt.s32.f32 %v5559
      %v5574 = vcvt.s32.f32 %v5560
      %v5575 = vcvt.s32.f32 %v5561
      %v5576 = vpack.c.bf16 %v5564, %v5562
      %v5577 = vpack.c.bf16 %v5565, %v5563
      %v5578 = vpack.c.bf16 %v5568, %v5566
      %v5579 = vpack.c.bf16 %v5569, %v5567
      %v5580 = vpack.c.bf16 %v5572, %v5570
      %v5581 = vpack.c.bf16 %v5573, %v5571
      %v5582 = vpack.c.bf16 %v5574, %v5574
      %v5583 = vpack.c.bf16 %v5575, %v5575
      %v5585 = vsel %vm3283, %v5582, 0
      %v5588 = vsel %vm3283, %v5583, 0
      %5590 = vmatprep.subr.bf16.mxu0 %v5577
      %5591 = vmatpush1.bf16.msra.mxu0 %v5576
      %5592 = vmatprep.subr.bf16.mxu0 %v5579
      %5593 = vmatpush1.bf16.msra.mxu0 %v5578
      %5594 = vmatprep.subr.bf16.mxu0 %v5581
      %5595 = vmatpush1.bf16.msra.mxu0 %v5580
      %5596 = vmatprep.subr.bf16.mxu0 %v5588
      %5597 = vmatpush1.bf16.msra.mxu0 %v5585
      %5598 = vmatprep.subr.bf16.mxu0 0
      %5599 = vmatpush1.bf16.msra.mxu0 0
      %5600 = vmatprep.subr.bf16.mxu0 0
      %5601 = vmatpush1.bf16.msra.mxu0 0
      %5602 = vmatprep.subr.bf16.mxu0 0
      %5603 = vmatpush1.bf16.msra.mxu0 0
      %5604 = vmatprep.subr.bf16.mxu0 0
      %5605 = vmatpush1.bf16.msra.mxu0 0
      %5606 = vmatprep.subr.bf16.mxu0 0
      %5607 = vmatpush1.bf16.msra.mxu0 0
      %5608 = vmatprep.subr.bf16.mxu0 0
      %5609 = vmatpush1.bf16.msra.mxu0 0
      %5610 = vmatprep.subr.bf16.mxu0 0
      %5611 = vmatpush1.bf16.msra.mxu0 0
      %5612 = vmatprep.subr.bf16.mxu0 0
      %5613 = vmatpush1.bf16.msra.mxu0 0
      %5614 = vmatprep.subr.bf16.mxu0 0
      %5615 = vmatpush1.bf16.msra.mxu0 0
      %5616 = vmatprep.subr.bf16.mxu0 0
      %5617 = vmatpush1.bf16.msra.mxu0 0
      %5618 = vmatprep.subr.bf16.mxu0 0
      %5619 = vmatpush1.bf16.msra.mxu0 0
      %5620 = vmatprep.subr.bf16.mxu0 0
      %5621 = vmatpush1.bf16.msra.mxu0 0
      %5622 = vmatprep.mubr.bf16.mxu0 0
      %5623 = vmatmul.mubr.bf16.gmra.mrb[0].mxu0 %v3863
      %v5624 = vpop.f32.mrb[0].mxu0
      %v5625 = vadd.f32 0.0, %v5624
      %v5626 = vpop.f32.mrb[0].mxu0
      %v5627 = vadd.f32 0.0, %v5626
      %v5628 = vpop.f32.mrb[0].mxu0
      %v5629 = vadd.f32 0.0, %v5628
      %v5630 = vpop.f32.mrb[0].mxu0
      %v5631 = vadd.f32 0.0, %v5630
      %5632 = vmatprep.mubr.bf16.mxu0 0
      %5633 = vmatmul.mubr.bf16.gmra.mrb[0].mxu0 %v3866
      %v5634 = vpop.f32.mrb[0].mxu0
      %v5635 = vadd.f32 0.0, %v5634
      %v5636 = vpop.f32.mrb[0].mxu0
      %v5637 = vadd.f32 0.0, %v5636
      %v5638 = vpop.f32.mrb[0].mxu0
      %v5639 = vadd.f32 0.0, %v5638
      %v5640 = vpop.f32.mrb[0].mxu0
      %v5641 = vadd.f32 0.0, %v5640
      %5642 = vdwg.mxu0
      %v5643 = vmul.f32 %v5625, %v635
      %v5644 = vmul.f32 %v5627, %v636
      %v5645 = vmul.f32 %v5629, %v637
      %v5646 = vmul.f32 %v5631, %v638
      %v5647 = vmul.f32 %v5635, %v639
      %v5648 = vmul.f32 %v5637, %v640
      %v5649 = vmul.f32 %v5639, %v641
      %v5650 = vmul.f32 %v5641, %v642
      %v5651 = vpack.c.bf16 %v5645, %v5643
      %v5652 = vpack.c.bf16 %v5646, %v5644
      %v5653 = vpack.c.bf16 %v5649, %v5647
      %v5654 = vpack.c.bf16 %v5650, %v5648
      %v5656 = vsel %vm2467, %v5652, 0
      %v5659 = vsel %vm2467, %v5654, 0
      %5661 = vmatprep.subr.bf16.mxu0 0
      %5662 = vmatpush1.bf16.msra.mxu0 %v2442
      %5663 = vmatprep.subr.bf16.mxu0 0
      %5664 = vmatpush1.bf16.msra.mxu0 %v2443
      %5665 = vmatprep.subr.bf16.mxu0 0
      %5666 = vmatpush1.bf16.msra.mxu0 %v2444
      %5667 = vmatprep.subr.bf16.mxu0 0
      %5668 = vmatpush1.bf16.msra.mxu0 %v2445
      %5669 = vmatprep.subr.bf16.mxu0 0
      %5670 = vmatpush1.bf16.msra.mxu0 %v2446
      %5671 = vmatprep.subr.bf16.mxu0 0
      %5672 = vmatpush1.bf16.msra.mxu0 %v2447
      %5673 = vmatprep.subr.bf16.mxu0 0
      %5674 = vmatpush1.bf16.msra.mxu0 %v2448
      %5675 = vmatprep.subr.bf16.mxu0 0
      %5676 = vmatpush1.bf16.msra.mxu0 %v2449
      %5677 = vmatprep.subr.bf16.mxu0 0
      %5678 = vmatpush1.bf16.msra.mxu0 %v2450
      %5679 = vmatprep.subr.bf16.mxu0 0
      %5680 = vmatpush1.bf16.msra.mxu0 %v2451
      %5681 = vmatprep.subr.bf16.mxu0 0
      %5682 = vmatpush1.bf16.msra.mxu0 %v2452
      %5683 = vmatprep.subr.bf16.mxu0 0
      %5684 = vmatpush1.bf16.msra.mxu0 %v2453
      %5685 = vmatprep.subr.bf16.mxu0 0
      %5686 = vmatpush1.bf16.msra.mxu0 %v2476
      %5687 = vmatprep.subr.bf16.mxu0 0
      %5688 = vmatpush1.bf16.msra.mxu0 0
      %5689 = vmatprep.subr.bf16.mxu0 0
      %5690 = vmatpush1.bf16.msra.mxu0 0
      %5691 = vmatprep.subr.bf16.mxu0 0
      %5692 = vmatpush1.bf16.msra.mxu0 0
      %5693 = vmatprep.mubr.bf16.mxu0 %v5656
      %5694 = vmatmul.mubr.bf16.gmra.mrb[0].mxu0 %v5651
      %v5695 = vpop.f32.mrb[0].mxu0
      %v5696 = vadd.f32 0.0, %v5695
      %v5697 = vpop.f32.mrb[0].mxu0
      %v5698 = vpop.f32.mrb[0].mxu0
      %v5699 = vadd.f32 0.0, %v5698
      %v5700 = vpop.f32.mrb[0].mxu0
      %5701 = vmatprep.mubr.bf16.mxu0 %v5659
      %5702 = vmatmul.mubr.bf16.gmra.mrb[0].mxu0 %v5653
      %v5703 = vpop.f32.mrb[0].mxu0
      %v5704 = vadd.f32 0.0, %v5703
      %v5705 = vpop.f32.mrb[0].mxu0
      %v5706 = vpop.f32.mrb[0].mxu0
      %v5707 = vadd.f32 0.0, %v5706
      %v5708 = vpop.f32.mrb[0].mxu0
      %5709 = vdwg.mxu0
      %v5710 = vsub.f32 %v5424, %v5696
      %v5711 = vsub.f32 %v5425, %v5699
      %v5712 = vsub.f32 %v5426, %v5704
      %v5713 = vsub.f32 %v5427, %v5707
      %v5714 = vmul.f32 %v3994, 0.999995
      %v5715 = vmul.f32 %v3995, 0.999995
      %v5716 = vmul.f32 %v3996, 0.999995
      %v5717 = vmul.f32 %v3997, 0.999995
      %v5718 = vmax.f32 %v5714, 0.0
      %v5719 = vmax.f32 %v5715, 0.0
      %v5720 = vmax.f32 %v5716, 0.0
      %v5721 = vmax.f32 %v5717, 0.0
      %v5722 = vmul.f32 %v4852, 0.999995
      %v5723 = vmul.f32 %v4853, 0.999995
      %v5724 = vmul.f32 %v4854, 0.999995
      %v5725 = vmul.f32 %v4855, 0.999995
      %v5726 = vmax.f32 %v5722, 0.0
      %v5727 = vmax.f32 %v5723, 0.0
      %v5728 = vmax.f32 %v5724, 0.0
      %v5729 = vmax.f32 %v5725, 0.0
      %v5730 = vmul.f32 %v5710, 0.999995
      %v5731 = vmul.f32 %v5711, 0.999995
      %v5732 = vmul.f32 %v5712, 0.999995
      %v5733 = vmul.f32 %v5713, 0.999995
      %v5734 = vmax.f32 %v5730, 0.0
      %v5735 = vmax.f32 %v5731, 0.0
      %v5736 = vmax.f32 %v5732, 0.0
      %v5737 = vmax.f32 %v5733, 0.0
      %v5738 = vld [vmem:[%s10] sm:$0xf]
      %v5739 = vld [vmem:[%s10 + $0x4] sm:$0xf]
      %v5740 = vld [vmem:[%s10 + $0x8] sm:$0xf]
      %v5741 = vld [vmem:[%s10 + $0xc] sm:$0xf]
      %v5742 = vpack.c.bf16 %v5719, %v5718
      %v5743 = vpack.c.bf16 %v5721, %v5720
      %v5744 = vpack.c.bf16 %v5727, %v5726
      %v5745 = vpack.c.bf16 %v5729, %v5728
      %v5746 = vpack.c.bf16 %v5735, %v5734
      %v5747 = vpack.c.bf16 %v5737, %v5736
      %v5748 = vld [vmem:[%s11] sm:$0xff]
      %v5749 = vld [vmem:[%s11 + $0x8] sm:$0xff]
      %v5750 = vld [vmem:[%s11 + $0x10] sm:$0xff]
      %v5751 = vld [vmem:[%s11 + $0x18] sm:$0xff]
      %5753 = vset.pattern.permute.xlu0 0
      %5754 = vperm.xlu0 %5753, %v5748
      %v5755 = vpop.permute.xlu0 %5754
      %5758 = vset.pattern.permute.xlu0 0
      %5759 = vperm.xlu0 %5758, %v5749
      %v5760 = vpop.permute.xlu0 %5759
      %5763 = vset.pattern.permute.xlu0 0
      %5764 = vperm.xlu0 %5763, %v5750
      %v5765 = vpop.permute.xlu0 %5764
      %5768 = vset.pattern.permute.xlu0 0
      %5769 = vperm.xlu0 %5768, %v5751
      %v5770 = vpop.permute.xlu0 %5769
      %v5776 = vunpack.c.l.b16 %v5738
      %v5777 = vunpack.c.l.b16 %v5739
      %v5778 = vunpack.c.l.b16 %v5740
      %v5779 = vunpack.c.l.b16 %v5741
      %v5780 = vpack.c.b16 %v5777, %v5776
      %v5781 = vpack.c.b16 %v5779, %v5778
      %vm5782 = vcmask 785408
      %v5784 = vsel %vm5782, %v5780, 0
      %v5787 = vsel %vm5782, %v5781, 0
      %5789 = vmatprep.subr.bf16.mxu0 0
      %5790 = vmatpush1.bf16.msra.mxu0 %v5742
      %5791 = vmatprep.subr.bf16.mxu0 0
      %5792 = vmatpush1.bf16.msra.mxu0 %v5743
      %5793 = vmatprep.subr.bf16.mxu0 0
      %5794 = vmatpush1.bf16.msra.mxu0 %v5744
      %5795 = vmatprep.subr.bf16.mxu0 0
      %5796 = vmatpush1.bf16.msra.mxu0 %v5745
      %5797 = vmatprep.subr.bf16.mxu0 0
      %5798 = vmatpush1.bf16.msra.mxu0 %v5746
      %5799 = vmatprep.subr.bf16.mxu0 0
      %5800 = vmatpush1.bf16.msra.mxu0 %v5747
      %5801 = vmatprep.subr.bf16.mxu0 0
      %5802 = vmatpush1.bf16.msra.mxu0 0
      %5803 = vmatprep.subr.bf16.mxu0 0
      %5804 = vmatpush1.bf16.msra.mxu0 0
      %5805 = vmatprep.subr.bf16.mxu0 0
      %5806 = vmatpush1.bf16.msra.mxu0 0
      %5807 = vmatprep.subr.bf16.mxu0 0
      %5808 = vmatpush1.bf16.msra.mxu0 0
      %5809 = vmatprep.subr.bf16.mxu0 0
      %5810 = vmatpush1.bf16.msra.mxu0 0
      %5811 = vmatprep.subr.bf16.mxu0 0
      %5812 = vmatpush1.bf16.msra.mxu0 0
      %5813 = vmatprep.subr.bf16.mxu0 0
      %5814 = vmatpush1.bf16.msra.mxu0 0
      %5815 = vmatprep.subr.bf16.mxu0 0
      %5816 = vmatpush1.bf16.msra.mxu0 0
      %5817 = vmatprep.subr.bf16.mxu0 0
      %5818 = vmatpush1.bf16.msra.mxu0 0
      %5819 = vmatprep.subr.bf16.mxu0 0
      %5820 = vmatpush1.bf16.msra.mxu0 0
      %5821 = vmatprep.mubr.bf16.mxu0 0
      %5822 = vmatmul.mubr.bf16.gmra.mrb[0].mxu0 %v5784
      %v5823 = vpop.f32.mrb[0].mxu0
      %v5824 = vadd.f32 %v5755, %v5823
      %v5825 = vpop.f32.mrb[0].mxu0
      %v5826 = vpop.f32.mrb[0].mxu0
      %v5827 = vadd.f32 %v5760, %v5826
      %v5828 = vpop.f32.mrb[0].mxu0
      %5829 = vmatprep.mubr.bf16.mxu0 0
      %5830 = vmatmul.mubr.bf16.gmra.mrb[0].mxu0 %v5787
      %v5831 = vpop.f32.mrb[0].mxu0
      %v5832 = vadd.f32 %v5765, %v5831
      %v5833 = vpop.f32.mrb[0].mxu0
      %v5834 = vpop.f32.mrb[0].mxu0
      %v5835 = vadd.f32 %v5770, %v5834
      %v5836 = vpop.f32.mrb[0].mxu0
      %5837 = vdwg.mxu0
      %v5838 = vmul.f32 %v5824, 0.999995
      %v5839 = vmul.f32 %v5827, 0.999995
      %v5840 = vmul.f32 %v5832, 0.999995
      %v5841 = vmul.f32 %v5835, 0.999995
      %v5842 = vmax.f32 %v5838, 0.0
      %v5843 = vmax.f32 %v5839, 0.0
      %v5844 = vmax.f32 %v5840, 0.0
      %v5845 = vmax.f32 %v5841, 0.0
      %v5846 = vld [vmem:[%s12] sm:$0xf]
      %v5847 = vld [vmem:[%s12 + $0x4] sm:$0xf]
      %v5848 = vld [vmem:[%s12 + $0x8] sm:$0xf]
      %v5849 = vld [vmem:[%s12 + $0xc] sm:$0xf]
      %v5850 = vpack.c.bf16 %v5843, %v5842
      %v5851 = vpack.c.bf16 %v5845, %v5844
      %v5852 = vld [vmem:[%s13] sm:$0xf]
      %v5853 = vld [vmem:[%s13 + $0x4] sm:$0xf]
      %v5854 = vld [vmem:[%s13 + $0x8] sm:$0xf]
      %v5855 = vld [vmem:[%s13 + $0xc] sm:$0xf]
      %v5856 = vpack.c.bf16 %v2516, %v2513
      %v5857 = vpack.c.bf16 %v2524, %v2521
      %v5862 = vunpack.c.l.b16 %v5852
      %v5863 = vunpack.c.l.b16 %v5853
      %v5864 = vunpack.c.l.b16 %v5854
      %v5865 = vunpack.c.l.b16 %v5855
      %v5866 = vpack.c.b16 %v5863, %v5862
      %v5867 = vpack.c.b16 %v5865, %v5864
      %v5869 = vsel %vm813, %v5866, 0
      %v5872 = vsel %vm813, %v5867, 0
      %5874 = vmatprep.subr.bf16.mxu0 0
      %5875 = vmatpush1.bf16.msra.mxu0 %v5856
      %5876 = vmatprep.subr.bf16.mxu0 0
      %5877 = vmatpush1.bf16.msra.mxu0 %v5857
      %5878 = vmatprep.subr.bf16.mxu0 0
      %5879 = vmatpush1.bf16.msra.mxu0 0
      %5880 = vmatprep.subr.bf16.mxu0 0
      %5881 = vmatpush1.bf16.msra.mxu0 0
      %5882 = vmatprep.subr.bf16.mxu0 0
      %5883 = vmatpush1.bf16.msra.mxu0 0
      %5884 = vmatprep.subr.bf16.mxu0 0
      %5885 = vmatpush1.bf16.msra.mxu0 0
      %5886 = vmatprep.subr.bf16.mxu0 0
      %5887 = vmatpush1.bf16.msra.mxu0 0
      %5888 = vmatprep.subr.bf16.mxu0 0
      %5889 = vmatpush1.bf16.msra.mxu0 0
      %5890 = vmatprep.subr.bf16.mxu0 0
      %5891 = vmatpush1.bf16.msra.mxu0 0
      %5892 = vmatprep.subr.bf16.mxu0 0
      %5893 = vmatpush1.bf16.msra.mxu0 0
      %5894 = vmatprep.subr.bf16.mxu0 0
      %5895 = vmatpush1.bf16.msra.mxu0 0
      %5896 = vmatprep.subr.bf16.mxu0 0
      %5897 = vmatpush1.bf16.msra.mxu0 0
      %5898 = vmatprep.subr.bf16.mxu0 0
      %5899 = vmatpush1.bf16.msra.mxu0 0
      %5900 = vmatprep.subr.bf16.mxu0 0
      %5901 = vmatpush1.bf16.msra.mxu0 0
      %5902 = vmatprep.subr.bf16.mxu0 0
      %5903 = vmatpush1.bf16.msra.mxu0 0
      %5904 = vmatprep.subr.bf16.mxu0 0
      %5905 = vmatpush1.bf16.msra.mxu0 0
      %5906 = vmatprep.mubr.bf16.mxu0 0
      %5907 = vmatmul.mubr.bf16.gmra.mrb[0].mxu0 %v5869
      %v5908 = vpop.f32.mrb[0].mxu0
      %v5909 = vadd.f32 0.0, %v5908
      %v5910 = vpop.f32.mrb[0].mxu0
      %v5911 = vpop.f32.mrb[0].mxu0
      %v5912 = vadd.f32 0.0, %v5911
      %v5913 = vpop.f32.mrb[0].mxu0
      %5914 = vmatprep.mubr.bf16.mxu0 0
      %5915 = vmatmul.mubr.bf16.gmra.mrb[0].mxu0 %v5872
      %v5916 = vpop.f32.mrb[0].mxu0
      %v5917 = vadd.f32 0.0, %v5916
      %v5918 = vpop.f32.mrb[0].mxu0
      %v5919 = vpop.f32.mrb[0].mxu0
      %v5920 = vadd.f32 0.0, %v5919
      %v5921 = vpop.f32.mrb[0].mxu0
      %5922 = vdwg.mxu0
      %v5927 = vunpack.c.l.b16 %v5846
      %v5928 = vunpack.c.l.b16 %v5847
      %v5929 = vunpack.c.l.b16 %v5848
      %v5930 = vunpack.c.l.b16 %v5849
      %v5931 = vpack.c.b16 %v5928, %v5927
      %v5932 = vpack.c.b16 %v5930, %v5929
      %v5934 = vsel %vm813, %v5931, 0
      %v5937 = vsel %vm813, %v5932, 0
      %5939 = vmatprep.subr.bf16.mxu0 0
      %5940 = vmatpush1.bf16.msra.mxu0 %v5850
      %5941 = vmatprep.subr.bf16.mxu0 0
      %5942 = vmatpush1.bf16.msra.mxu0 %v5851
      %5943 = vmatprep.subr.bf16.mxu0 0
      %5944 = vmatpush1.bf16.msra.mxu0 0
      %5945 = vmatprep.subr.bf16.mxu0 0
      %5946 = vmatpush1.bf16.msra.mxu0 0
      %5947 = vmatprep.subr.bf16.mxu0 0
      %5948 = vmatpush1.bf16.msra.mxu0 0
      %5949 = vmatprep.subr.bf16.mxu0 0
      %5950 = vmatpush1.bf16.msra.mxu0 0
      %5951 = vmatprep.subr.bf16.mxu0 0
      %5952 = vmatpush1.bf16.msra.mxu0 0
      %5953 = vmatprep.subr.bf16.mxu0 0
      %5954 = vmatpush1.bf16.msra.mxu0 0
      %5955 = vmatprep.subr.bf16.mxu0 0
      %5956 = vmatpush1.bf16.msra.mxu0 0
      %5957 = vmatprep.subr.bf16.mxu0 0
      %5958 = vmatpush1.bf16.msra.mxu0 0
      %5959 = vmatprep.subr.bf16.mxu0 0
      %5960 = vmatpush1.bf16.msra.mxu0 0
      %5961 = vmatprep.subr.bf16.mxu0 0
      %5962 = vmatpush1.bf16.msra.mxu0 0
      %5963 = vmatprep.subr.bf16.mxu0 0
      %5964 = vmatpush1.bf16.msra.mxu0 0
      %5965 = vmatprep.subr.bf16.mxu0 0
      %5966 = vmatpush1.bf16.msra.mxu0 0
      %5967 = vmatprep.subr.bf16.mxu0 0
      %5968 = vmatpush1.bf16.msra.mxu0 0
      %5969 = vmatprep.subr.bf16.mxu0 0
      %5970 = vmatpush1.bf16.msra.mxu0 0
      %5971 = vmatprep.mubr.bf16.mxu0 0
      %5972 = vmatmul.mubr.bf16.gmra.mrb[0].mxu0 %v5934
      %v5973 = vpop.f32.mrb[0].mxu0
      %v5974 = vadd.f32 %v5909, %v5973
      %v5975 = vpop.f32.mrb[0].mxu0
      %v5976 = vpop.f32.mrb[0].mxu0
      %v5977 = vadd.f32 %v5912, %v5976
      %v5978 = vpop.f32.mrb[0].mxu0
      %5979 = vmatprep.mubr.bf16.mxu0 0
      %5980 = vmatmul.mubr.bf16.gmra.mrb[0].mxu0 %v5937
      %v5981 = vpop.f32.mrb[0].mxu0
      %v5982 = vadd.f32 %v5917, %v5981
      %v5983 = vpop.f32.mrb[0].mxu0
      %v5984 = vpop.f32.mrb[0].mxu0
      %v5985 = vadd.f32 %v5920, %v5984
      %v5986 = vpop.f32.mrb[0].mxu0
      %5987 = vdwg.mxu0
      %v5988 = vld [vmem:[%s14] sm:$0xff]
      %v5989 = vld [vmem:[%s14 + $0x8] sm:$0xff]
      %v5990 = vld [vmem:[%s14 + $0x10] sm:$0xff]
      %v5991 = vld [vmem:[%s14 + $0x18] sm:$0xff]
      %5993 = vset.pattern.permute.xlu0 0
      %5994 = vperm.xlu0 %5993, %v5988
      %v5995 = vpop.permute.xlu0 %5994
      %5998 = vset.pattern.permute.xlu0 0
      %5999 = vperm.xlu0 %5998, %v5989
      %v6000 = vpop.permute.xlu0 %5999
      %6003 = vset.pattern.permute.xlu0 0
      %6004 = vperm.xlu0 %6003, %v5990
      %v6005 = vpop.permute.xlu0 %6004
      %6008 = vset.pattern.permute.xlu0 0
      %6009 = vperm.xlu0 %6008, %v5991
      %v6010 = vpop.permute.xlu0 %6009
      %v6012 = vadd.f32 %v5974, %v5995
      %v6013 = vadd.f32 %v5977, %v6000
      %v6014 = vadd.f32 %v5982, %v6005
      %v6015 = vadd.f32 %v5985, %v6010
      %v6016 = vpack.c.bf16 %v6013, %v6012
      %v6017 = vpack.c.bf16 %v6015, %v6014
      %v6018 = vpack.c.bf16 %v1172, %v1171
      %v6019 = vpack.c.bf16 %v1174, %v1173
      %v6020 = vpack.c.bf16 %v1176, %v1175
      %v6021 = vpack.c.bf16 %v1177, %v1177
      %v6023 = vsel %vm1528, %v6016, 0
      %v6026 = vsel %vm1528, %v6017, 0
      %v6029 = vsel %vm3283, %v6021, 0
      %6031 = vmatprep.subr.bf16.mxu0 0
      %6032 = vmatpush1.bf16.msra.mxu0 %v6018
      %6033 = vmatprep.subr.bf16.mxu0 0
      %6034 = vmatpush1.bf16.msra.mxu0 %v6019
      %6035 = vmatprep.subr.bf16.mxu0 0
      %6036 = vmatpush1.bf16.msra.mxu0 %v6020
      %6037 = vmatprep.subr.bf16.mxu0 0
      %6038 = vmatpush1.bf16.msra.mxu0 %v6029
      %6039 = vmatprep.subr.bf16.mxu0 0
      %6040 = vmatpush1.bf16.msra.mxu0 0
      %6041 = vmatprep.subr.bf16.mxu0 0
      %6042 = vmatpush1.bf16.msra.mxu0 0
      %6043 = vmatprep.subr.bf16.mxu0 0
      %6044 = vmatpush1.bf16.msra.mxu0 0
      %6045 = vmatprep.subr.bf16.mxu0 0
      %6046 = vmatpush1.bf16.msra.mxu0 0
      %6047 = vmatprep.subr.bf16.mxu0 0
      %6048 = vmatpush1.bf16.msra.mxu0 0
      %6049 = vmatprep.subr.bf16.mxu0 0
      %6050 = vmatpush1.bf16.msra.mxu0 0
      %6051 = vmatprep.subr.bf16.mxu0 0
      %6052 = vmatpush1.bf16.msra.mxu0 0
      %6053 = vmatprep.subr.bf16.mxu0 0
      %6054 = vmatpush1.bf16.msra.mxu0 0
      %6055 = vmatprep.subr.bf16.mxu0 0
      %6056 = vmatpush1.bf16.msra.mxu0 0
      %6057 = vmatprep.subr.bf16.mxu0 0
      %6058 = vmatpush1.bf16.msra.mxu0 0
      %6059 = vmatprep.subr.bf16.mxu0 0
      %6060 = vmatpush1.bf16.msra.mxu0 0
      %6061 = vmatprep.subr.bf16.mxu0 0
      %6062 = vmatpush1.bf16.msra.mxu0 0
      %6063 = vmatprep.mubr.bf16.mxu0 0
      %6064 = vmatmul.mubr.bf16.gmra.mrb[0].mxu0 %v6023
      %v6065 = vpop.f32.mrb[0].mxu0
      %v6066 = vadd.f32 0.0, %v6065
      %v6067 = vpop.f32.mrb[0].mxu0
      %v6068 = vpop.f32.mrb[0].mxu0
      %v6069 = vadd.f32 0.0, %v6068
      %v6070 = vpop.f32.mrb[0].mxu0
      %6071 = vmatprep.mubr.bf16.mxu0 0
      %6072 = vmatmul.mubr.bf16.gmra.mrb[0].mxu0 %v6026
      %v6073 = vpop.f32.mrb[0].mxu0
      %v6074 = vadd.f32 0.0, %v6073
      %v6075 = vpop.f32.mrb[0].mxu0
      %v6076 = vpop.f32.mrb[0].mxu0
      %v6077 = vadd.f32 0.0, %v6076
      %v6078 = vpop.f32.mrb[0].mxu0
      %6079 = vdwg.mxu0
      %v6080 = vld [vmem:[%s15] sm:$0xf]
      %v6081 = vld [vmem:[%s15 + $0x4] sm:$0xf]
      %v6082 = vld [vmem:[%s15 + $0x8] sm:$0xf]
      %v6083 = vld [vmem:[%s15 + $0xc] sm:$0xf]
      %v6084 = vpack.c.bf16 %v6069, %v6066
      %v6085 = vpack.c.bf16 %v6077, %v6074
      %v6086 = vld [vmem:[%s16] sm:$0xff]
      %v6087 = vld [vmem:[%s16 + $0x8] sm:$0xff]
      %v6088 = vld [vmem:[%s16 + $0x10] sm:$0xff]
      %v6089 = vld [vmem:[%s16 + $0x18] sm:$0xff]
      %6091 = vset.pattern.permute.xlu0 0
      %6092 = vperm.xlu0 %6091, %v6086
      %v6093 = vpop.permute.xlu0 %6092
      %6096 = vset.pattern.permute.xlu0 0
      %6097 = vperm.xlu0 %6096, %v6087
      %v6098 = vpop.permute.xlu0 %6097
      %6101 = vset.pattern.permute.xlu0 0
      %6102 = vperm.xlu0 %6101, %v6088
      %v6103 = vpop.permute.xlu0 %6102
      %6106 = vset.pattern.permute.xlu0 0
      %6107 = vperm.xlu0 %6106, %v6089
      %v6108 = vpop.permute.xlu0 %6107
      %v6114 = vunpack.c.l.b16 %v6080
      %v6115 = vunpack.c.l.b16 %v6081
      %v6116 = vunpack.c.l.b16 %v6082
      %v6117 = vunpack.c.l.b16 %v6083
      %v6118 = vpack.c.b16 %v6115, %v6114
      %v6119 = vpack.c.b16 %v6117, %v6116
      %v6121 = vsel %vm813, %v6118, 0
      %v6124 = vsel %vm813, %v6119, 0
      %6126 = vmatprep.subr.bf16.mxu0 0
      %6127 = vmatpush1.bf16.msra.mxu0 %v6084
      %6128 = vmatprep.subr.bf16.mxu0 0
      %6129 = vmatpush1.bf16.msra.mxu0 %v6085
      %6130 = vmatprep.subr.bf16.mxu0 0
      %6131 = vmatpush1.bf16.msra.mxu0 0
      %6132 = vmatprep.subr.bf16.mxu0 0
      %6133 = vmatpush1.bf16.msra.mxu0 0
      %6134 = vmatprep.subr.bf16.mxu0 0
      %6135 = vmatpush1.bf16.msra.mxu0 0
      %6136 = vmatprep.subr.bf16.mxu0 0
      %6137 = vmatpush1.bf16.msra.mxu0 0
      %6138 = vmatprep.subr.bf16.mxu0 0
      %6139 = vmatpush1.bf16.msra.mxu0 0
      %6140 = vmatprep.subr.bf16.mxu0 0
      %6141 = vmatpush1.bf16.msra.mxu0 0
      %6142 = vmatprep.subr.bf16.mxu0 0
      %6143 = vmatpush1.bf16.msra.mxu0 0
      %6144 = vmatprep.subr.bf16.mxu0 0
      %6145 = vmatpush1.bf16.msra.mxu0 0
      %6146 = vmatprep.subr.bf16.mxu0 0
      %6147 = vmatpush1.bf16.msra.mxu0 0
      %6148 = vmatprep.subr.bf16.mxu0 0
      %6149 = vmatpush1.bf16.msra.mxu0 0
      %6150 = vmatprep.subr.bf16.mxu0 0
      %6151 = vmatpush1.bf16.msra.mxu0 0
      %6152 = vmatprep.subr.bf16.mxu0 0
      %6153 = vmatpush1.bf16.msra.mxu0 0
      %6154 = vmatprep.subr.bf16.mxu0 0
      %6155 = vmatpush1.bf16.msra.mxu0 0
      %6156 = vmatprep.subr.bf16.mxu0 0
      %6157 = vmatpush1.bf16.msra.mxu0 0
      %6158 = vmatprep.mubr.bf16.mxu0 0
      %6159 = vmatmul.mubr.bf16.gmra.mrb[0].mxu0 %v6121
      %v6160 = vpop.f32.mrb[0].mxu0
      %v6161 = vadd.f32 %v6093, %v6160
      %v6162 = vpop.f32.mrb[0].mxu0
      %v6163 = vpop.f32.mrb[0].mxu0
      %v6164 = vadd.f32 %v6098, %v6163
      %v6165 = vpop.f32.mrb[0].mxu0
      %6166 = vmatprep.mubr.bf16.mxu0 0
      %6167 = vmatmul.mubr.bf16.gmra.mrb[0].mxu0 %v6124
      %v6168 = vpop.f32.mrb[0].mxu0
      %v6169 = vadd.f32 %v6103, %v6168
      %v6170 = vpop.f32.mrb[0].mxu0
      %v6171 = vpop.f32.mrb[0].mxu0
      %v6172 = vadd.f32 %v6108, %v6171
      %v6173 = vpop.f32.mrb[0].mxu0
      %6174 = vdwg.mxu0
      %6175 = vst.msk [vmem:[%s629] sm:$0xff] %vm682, %v6161
      %6176 = vst.msk [vmem:[%s629 + $0x8] sm:$0xff] %vm682, %v6164
      %6177 = vst.msk [vmem:[%s629 + $0x10] sm:$0xff] %vm682, %v6169
      %6178 = vst.msk [vmem:[%s629 + $0x18] sm:$0xff] %vm682, %v6172
      %p6179 = scmp.lt.s32.totalorder %s31, 1
      %s6180 = scalar_select %p6179, %s31, 1
      %s6181 = smul.addr %s6180, 4
      %s6182 = smul.addr %s6181, 8
      %s6183 = scalar_lea.vmem %s20, %s6182
      // Predicated region
      $region101: #{efficient_attention_forward.1} parent=99 // pred_check
        %p6184 = pneg %p474
      $region102: #{efficient_attention_forward.1} parent=99 // pred_check_branch
        %6186 = sbr.rel (%p6184) target = $region104
      $region103: #{efficient_attention_forward.1} parent=99 // pred_region
        _
      $region104: #{efficient_attention_forward.1} parent=99 // pred_fallthru
        _
    $region100: #{efficient_attention_forward.1} parent=5 // pred_fallthru
      _
    %p6187 = scmp.le.s32.totalorder 2, %s26
    // Predicated region
    $region105: #{efficient_attention_forward.1} parent=5 // pred_check
      %p6188 = pneg %p6187
    $region106: #{efficient_attention_forward.1} parent=5 // pred_check_branch
      %6190 = sbr.rel (%p6188) target = $region108
    $region107: #{efficient_attention_forward.1} parent=5 // pred_region
      %s6191 = ssub.s32 %s26, 2
      // Predicated region
      $region109: #{efficient_attention_forward.1} parent=107 // pred_check
        %p6192 = pneg %p480
      $region110: #{efficient_attention_forward.1} parent=107 // pred_check_branch
        %6194 = sbr.rel (%p6192) target = $region112
      $region111: #{efficient_attention_forward.1} parent=107 // pred_region
        %p6195 = scmp.lt.s32.totalorder %s32, 1
        %s6196 = scalar_select %p6195, %s32, 1
        %s6197 = smul.addr %s6196, 4
        %s6198 = smul.addr %s6197, 8
        %s6199 = scalar_lea.vmem %s20, %s6198
      $region112: #{efficient_attention_forward.1} parent=107 // pred_fallthru
        _
    $region108: #{efficient_attention_forward.1} parent=5 // pred_fallthru
      _
  $region6: #{efficient_attention_forward.1} parent=0 // loop_footer
    %s30 = sadd.s32 1, %s26
  $region7: #{efficient_attention_forward.1} parent=0 // loop_footer_branch
    %25 = sbr.rel target = $region3
  $region8: #{efficient_attention_forward.1} parent=0 // loop_exit
    _

</llo_original>
